<compile_context>
chip_gen: v6e
topology: v6e:2x2x1
jax: 0.10.0
libtpu: 0.0.40
codegen_flags: <defaults>
</compile_context>

<pallas_src>
import functools

import jax
import jax.numpy as jnp
from jax import lax
from jax.experimental import pallas as pl
from jax.experimental.pallas import tpu as pltpu

EPS = 1e-5    # nn.BatchNorm2d default eps
LANE = 128


def _round_up(x, m):
  return (x + m - 1) // m * m


def _vmem_capacity_bytes():
  """Physical VMEM of the current TPU generation (64 MiB fallback = v7x)."""
  try:
    info = pltpu.get_tpu_info()
    cap = getattr(info, "vmem_capacity_bytes", None)
    if cap:
      return int(cap)
  except Exception:
    pass
  return 64 * 1024 * 1024


def _vmem_limit_bytes(h, w, cp, pp):
  """Explicit scoped-VMEM limit derived from the per-step working set."""
  cm = max(cp, pp)
  halo_in = (h + 2) * (w + 2) * cm * 2        # bf16 padded input block
  act = h * w * pp * 2                        # bf16 activation block
  out_f32 = h * w * pp * 4                    # kernel C f32 output block
  wts = 9 * cm * pp * 2                       # bf16 conv weights
  acc = h * w * pp * 4                        # f32 accumulator temporary
  slab = (h + 2) * w * cm * 4                 # shifted-slab temporary (f32 bound)
  pad_scratch = (h + 2) * (w + 2) * pp * 4    # kernel B f32 pad scratch
  stats = 2 * pp * 4
  est = (2 * (halo_in + act + wts + stats + max(act, out_f32))
         + pad_scratch + acc + 3 * slab)
  est = int(est * 1.5)                        # headroom for relayout temps
  cap = _vmem_capacity_bytes()
  return int(min(max(est, 32 * 1024 * 1024), int(cap * 0.9)))


# ----------------------------------------------------------------------------
# Kernels (grid = (batch,); one whole image per grid step)
# ----------------------------------------------------------------------------
def _conv3x3_acc(pad_ref, w_ref, h, w, cin, cout):
  """3x3 conv over a zero-padded (h+2, w+2, cin) ref -> f32 (h*w, cout)."""
  acc = jnp.zeros((h * w, cout), jnp.float32)
  for kx in range(3):
    # One kx-shifted slab per tile (3 relayouts instead of 9); the ky taps
    # below are plain leading-dim row windows of the flattened slab.
    slab = pad_ref[:, kx:kx + w, :].astype(jnp.bfloat16)
    slab = slab.reshape((h + 2) * w, cin)
    for ky in range(3):
      patch = slab[ky * w:ky * w + h * w, :]
      acc += jnp.dot(patch, w_ref[ky * 3 + kx],
                     preferred_element_type=jnp.float32)
  return acc


def _conv1_kernel(x_ref, w_ref, out_ref, stats_ref, *, h, w, cin, cout):
  """conv1 on the pre-padded bf16 input + per-image BN sum / sum-of-squares."""
  acc = _conv3x3_acc(x_ref, w_ref, h, w, cin, cout)
  s = jnp.sum(acc, axis=0, keepdims=True)
  ss = jnp.sum(acc * acc, axis=0, keepdims=True)
  stats_ref[...] = jnp.concatenate([s, ss], axis=0)      # f32 stats
  out_ref[...] = acc.reshape(h, w, cout).astype(out_ref.dtype)   # bf16 store


def _bn_relu_conv2_kernel(y_ref, scale_ref, shift_ref, w_ref,
                          out_ref, stats_ref, apad_ref, *, h, w, cout):
  """bn1 (precomputed scale/shift) + ReLU + in-VMEM zero pad + conv2 + stats."""
  scale = scale_ref[...].reshape(1, 1, -1)
  shift = shift_ref[...].reshape(1, 1, -1)
  a = jnp.maximum(y_ref[...].astype(jnp.float32) * scale + shift, 0.0)
  # conv2's spatial zero padding applies to the post-bn/ReLU activation:
  # build it in VMEM scratch instead of an HBM round-trip through XLA glue.
  apad_ref[...] = jnp.zeros_like(apad_ref)
  apad_ref[1:h + 1, 1:w + 1, :] = a
  acc = _conv3x3_acc(apad_ref, w_ref, h, w, cout, cout)
  s = jnp.sum(acc, axis=0, keepdims=True)
  ss = jnp.sum(acc * acc, axis=0, keepdims=True)
  stats_ref[...] = jnp.concatenate([s, ss], axis=0)
  out_ref[...] = acc.reshape(h, w, cout).astype(out_ref.dtype)   # bf16 store


def _bn_add_relu_kernel(y_ref, xpad_ref, scale_ref, shift_ref, out_ref,
                        *, h, w):
  """bn2 (precomputed scale/shift) + residual add + ReLU, per image."""
  scale = scale_ref[...].reshape(1, 1, -1)
  shift = shift_ref[...].reshape(1, 1, -1)
  y = y_ref[...].astype(jnp.float32) * scale + shift
  identity = xpad_ref[1:h + 1, 1:w + 1, :].astype(jnp.float32)
  out_ref[...] = jnp.maximum(y + identity, 0.0)


# ----------------------------------------------------------------------------
# Wrapper glue
# ----------------------------------------------------------------------------
def _conv_weight(w_oihw, cin_p, cout_p):
  """(P, C, 3, 3) PyTorch layout -> (9, Cp, Pp) bf16, zero padded."""
  p, c, _, _ = w_oihw.shape
  wm = jnp.transpose(w_oihw, (2, 3, 1, 0))              # (3, 3, C, P)
  wm = jnp.pad(wm, ((0, 0), (0, 0), (0, cin_p - c), (0, cout_p - p)))
  return wm.reshape(9, cin_p, cout_p).astype(jnp.bfloat16)


def _bn_scale_shift(stats, gamma_p, beta_p, m):
  """Turn summed (sum, sum_sq) into per-channel BN scale / shift (f32)."""
  mean = stats[0] / m
  var = jnp.maximum(stats[1] / m - mean * mean, 0.0)     # single-pass variance
  inv = lax.rsqrt(var + EPS)
  scale = gamma_p * inv
  shift = beta_p - mean * scale
  return (scale.reshape(1, -1).astype(jnp.float32),
          shift.reshape(1, -1).astype(jnp.float32))


def basic_block_forward(x_nchw, w1, g1, b1, w2, g2, b2):
  """Pallas implementation of BasicBlock.forward (stride=1, no downsample)."""
  n, c, h, w = x_nchw.shape
  p = w1.shape[0]
  assert p == c, "stride=1 / downsample=None requires planes == inplanes"

  cp = _round_up(c, LANE)
  pp = _round_up(p, LANE)
  m = n * h * w

  # Single fused producer pass (boundary only): NCHW->NHWC transpose +
  # channel pad to a lane-dense multiple of 128 + 1-pixel spatial zero ring +
  # bf16 cast.  This array doubles as the residual identity for kernel C.
  x_nhwc = jnp.transpose(x_nchw, (0, 2, 3, 1))
  x_pad = jnp.pad(
      x_nhwc, ((0, 0), (1, 1), (1, 1), (0, cp - c))).astype(jnp.bfloat16)

  w1m = _conv_weight(w1, cp, pp)
  w2m = _conv_weight(w2, pp, pp)
  g1p = jnp.pad(g1, (0, pp - p))
  b1p = jnp.pad(b1, (0, pp - p))
  g2p = jnp.pad(g2, (0, pp - p))
  b2p = jnp.pad(b2, (0, pp - p))

  cparams = pltpu.CompilerParams(
      dimension_semantics=("parallel",),
      vmem_limit_bytes=_vmem_limit_bytes(h, w, cp, pp))
  grid = (n,)

  # ---- kernel A: conv1 + partial bn1 stats ----------------------------------
  conv1_raw, stats1 = pl.pallas_call(
      functools.partial(_conv1_kernel, h=h, w=w, cin=cp, cout=pp),
      grid=grid,
      in_specs=[
          pl.BlockSpec((None, h + 2, w + 2, cp), lambda i: (i, 0, 0, 0)),
          pl.BlockSpec((9, cp, pp), lambda i: (0, 0, 0)),       # constant index
      ],
      out_specs=(
          pl.BlockSpec((None, h, w, pp), lambda i: (i, 0, 0, 0)),
          pl.BlockSpec((None, 2, pp), lambda i: (i, 0, 0)),
      ),
      out_shape=(
          jax.ShapeDtypeStruct((n, h, w, pp), jnp.bfloat16),
          jax.ShapeDtypeStruct((n, 2, pp), jnp.float32),
      ),
      compiler_params=cparams,
  )(x_pad, w1m)

  scale1, shift1 = _bn_scale_shift(jnp.sum(stats1, axis=0), g1p, b1p, m)

  # ---- kernel B: bn1 + ReLU + conv2 + partial bn2 stats ---------------------
  conv2_raw, stats2 = pl.pallas_call(
      functools.partial(_bn_relu_conv2_kernel, h=h, w=w, cout=pp),
      grid=grid,
      in_specs=[
          pl.BlockSpec((None, h, w, pp), lambda i: (i, 0, 0, 0)),
          pl.BlockSpec((1, pp), lambda i: (0, 0)),
          pl.BlockSpec((1, pp), lambda i: (0, 0)),
          pl.BlockSpec((9, pp, pp), lambda i: (0, 0, 0)),
      ],
      out_specs=(
          pl.BlockSpec((None, h, w, pp), lambda i: (i, 0, 0, 0)),
          pl.BlockSpec((None, 2, pp), lambda i: (i, 0, 0)),
      ),
      out_shape=(
          jax.ShapeDtypeStruct((n, h, w, pp), jnp.bfloat16),
          jax.ShapeDtypeStruct((n, 2, pp), jnp.float32),
      ),
      scratch_shapes=[pltpu.VMEM((h + 2, w + 2, pp), jnp.float32)],
      compiler_params=cparams,
  )(conv1_raw, scale1, shift1, w2m)

  scale2, shift2 = _bn_scale_shift(jnp.sum(stats2, axis=0), g2p, b2p, m)

  # ---- kernel C: bn2 + residual add + ReLU ----------------------------------
  out_nhwc = pl.pallas_call(
      functools.partial(_bn_add_relu_kernel, h=h, w=w),
      grid=grid,
      in_specs=[
          pl.BlockSpec((None, h, w, pp), lambda i: (i, 0, 0, 0)),
          pl.BlockSpec((None, h + 2, w + 2, cp), lambda i: (i, 0, 0, 0)),
          pl.BlockSpec((1, pp), lambda i: (0, 0)),
          pl.BlockSpec((1, pp), lambda i: (0, 0)),
      ],
      out_specs=pl.BlockSpec((None, h, w, pp), lambda i: (i, 0, 0, 0)),
      out_shape=jax.ShapeDtypeStruct((n, h, w, pp), jnp.float32),
      compiler_params=cparams,
  )(conv2_raw, x_pad, scale2, shift2)

  # Boundary layout conversion only.  When chaining blocks, keep activations
  # NHWC / Cp-padded / bf16 between blocks and skip this slice + transpose.
  out = out_nhwc[:, :, :, :c]
  return jnp.transpose(out, (0, 3, 1, 2))


# ----------------------------------------------------------------------------
# Pure-JAX reference (same semantics) for the correctness check.
# ----------------------------------------------------------------------------
def basic_block_reference(x, w1, g1, b1, w2, g2, b2):
  def conv(x, w):
    return lax.conv_general_dilated(
        x, w, window_strides=(1, 1), padding=((1, 1), (1, 1)),
        dimension_numbers=("NCHW", "OIHW", "NCHW"))

  def bn(x, g, b):
    mean = jnp.mean(x, axis=(0, 2, 3), keepdims=True)
    var = jnp.mean(jnp.square(x - mean), axis=(0, 2, 3), keepdims=True)
    return ((x - mean) * lax.rsqrt(var + EPS)
            * g.reshape(1, -1, 1, 1) + b.reshape(1, -1, 1, 1))

  out = jnp.maximum(bn(conv(x, w1), g1, b1), 0.0)
  out = bn(conv(out, w2), g2, b2) + x
  return jnp.maximum(out, 0.0)


if __name__ == "__main__":
  # Small shapes consistent with the module: inplanes = planes = 4, stride = 1.
  N, C, H, W = 2, 4, 16, 16
  PLANES = 4

  key = jax.random.PRNGKey(0)
  kx, kw1, kw2, kg1, kb1, kg2, kb2 = jax.random.split(key, 7)

  x = jax.random.normal(kx, (N, C, H, W), dtype=jnp.float32)
  w1 = 0.1 * jax.random.normal(kw1, (PLANES, C, 3, 3), dtype=jnp.float32)
  w2 = 0.1 * jax.random.normal(kw2, (PLANES, PLANES, 3, 3), dtype=jnp.float32)
  g1 = 1.0 + 0.1 * jax.random.normal(kg1, (PLANES,), dtype=jnp.float32)
  b1 = 0.1 * jax.random.normal(kb1, (PLANES,), dtype=jnp.float32)
  g2 = 1.0 + 0.1 * jax.random.normal(kg2, (PLANES,), dtype=jnp.float32)
  b2 = 0.1 * jax.random.normal(kb2, (PLANES,), dtype=jnp.float32)

  out = jax.block_until_ready(
      jax.jit(basic_block_forward)(x, w1, g1, b1, w2, g2, b2))
  ref = jax.block_until_ready(
      jax.jit(basic_block_reference)(x, w1, g1, b1, w2, g2, b2))

  assert out.shape == (N, C, H, W), out.shape
  # bf16 MXU inputs and bf16-stored intermediates with f32 accumulation =>
  # ~bf16-level relative accuracy vs the pure-f32 reference.
  max_err = float(jnp.max(jnp.abs(out - ref)))
  assert max_err < 1e-1, max_err
  assert jnp.allclose(out, ref, atol=1e-1, rtol=1e-1), max_err
  print("KERNEL_OK")
</pallas_src>

<mosaic_0001>
module attributes {stable_mosaic.version = 11 : i64} {
  func.func @_conv1_kernel(%arg0: i32, %arg1: memref<1x18x18x128xbf16, #tpu.memory_space<vmem>>, %arg2: memref<9x128x128xbf16, #tpu.memory_space<vmem>>, %arg3: memref<1x16x16x128xbf16, #tpu.memory_space<vmem>>, %arg4: memref<1x2x128xf32, #tpu.memory_space<vmem>>) attributes {dimension_semantics = [#tpu.dimension_semantics<parallel>], iteration_bounds = array<i64: 2>, scalar_prefetch = 0 : i64, scratch_operands = 0 : i64, tpu.core_type = #tpu.core_type<tc>, window_params = [{transform_indices = @transform_0, window_bounds = array<i64: 1, 18, 18, 128>}, {pipeline_mode = #tpu.pipeline_mode<synchronous>, transform_indices = @transform_1, window_bounds = array<i64: 9, 128, 128>}, {transform_indices = @transform_2, window_bounds = array<i64: 1, 16, 16, 128>}, {transform_indices = @transform_3, window_bounds = array<i64: 1, 2, 128>}]} {
    %cst = arith.constant 0.000000e+00 : f32
    %0 = vector.broadcast %cst : f32 to vector<256x128xf32>
    %c0 = arith.constant 0 : index
    %c0_0 = arith.constant 0 : index
    %c0_1 = arith.constant 0 : index
    %c0_2 = arith.constant 0 : index
    %1 = vector.load %arg1[%c0, %c0_0, %c0_1, %c0_2] : memref<1x18x18x128xbf16, #tpu.memory_space<vmem>>, vector<1x18x16x128xbf16>
    %2 = vector.shape_cast %1 : vector<1x18x16x128xbf16> to vector<18x16x128xbf16>
    %3 = vector.shape_cast %2 : vector<18x16x128xbf16> to vector<288x128xbf16>
    %4 = vector.extract_strided_slice %3 {offsets = [0, 0], sizes = [256, 128], strides = [1, 1]} : vector<288x128xbf16> to vector<256x128xbf16>
    %c0_3 = arith.constant 0 : index
    %c0_4 = arith.constant 0 : index
    %c0_5 = arith.constant 0 : index
    %5 = vector.load %arg2[%c0_3, %c0_4, %c0_5] : memref<9x128x128xbf16, #tpu.memory_space<vmem>>, vector<1x128x128xbf16>
    %6 = vector.shape_cast %5 : vector<1x128x128xbf16> to vector<128x128xbf16>
    %cst_6 = arith.constant dense<0.000000e+00> : vector<256x128xf32>
    %7 = tpu.matmul %4, %6, %cst_6 {dimension_numbers = #tpu.dot_dimension_numbers<[1], [0], [0], [1], [0, 0, 1, 1], [], []>} : vector<256x128xbf16>, vector<128x128xbf16>, vector<256x128xf32> -> vector<256x128xf32>
    %8 = arith.addf %0, %7 : vector<256x128xf32>
    %9 = vector.extract_strided_slice %3 {offsets = [16, 0], sizes = [256, 128], strides = [1, 1]} : vector<288x128xbf16> to vector<256x128xbf16>
    %c3 = arith.constant 3 : index
    %c0_7 = arith.constant 0 : index
    %c0_8 = arith.constant 0 : index
    %10 = vector.load %arg2[%c3, %c0_7, %c0_8] : memref<9x128x128xbf16, #tpu.memory_space<vmem>>, vector<1x128x128xbf16>
    %11 = vector.shape_cast %10 : vector<1x128x128xbf16> to vector<128x128xbf16>
    %cst_9 = arith.constant dense<0.000000e+00> : vector<256x128xf32>
    %12 = tpu.matmul %9, %11, %cst_9 {dimension_numbers = #tpu.dot_dimension_numbers<[1], [0], [0], [1], [0, 0, 1, 1], [], []>} : vector<256x128xbf16>, vector<128x128xbf16>, vector<256x128xf32> -> vector<256x128xf32>
    %13 = arith.addf %8, %12 : vector<256x128xf32>
    %14 = vector.extract_strided_slice %3 {offsets = [32, 0], sizes = [256, 128], strides = [1, 1]} : vector<288x128xbf16> to vector<256x128xbf16>
    %c6 = arith.constant 6 : index
    %c0_10 = arith.constant 0 : index
    %c0_11 = arith.constant 0 : index
    %15 = vector.load %arg2[%c6, %c0_10, %c0_11] : memref<9x128x128xbf16, #tpu.memory_space<vmem>>, vector<1x128x128xbf16>
    %16 = vector.shape_cast %15 : vector<1x128x128xbf16> to vector<128x128xbf16>
    %cst_12 = arith.constant dense<0.000000e+00> : vector<256x128xf32>
    %17 = tpu.matmul %14, %16, %cst_12 {dimension_numbers = #tpu.dot_dimension_numbers<[1], [0], [0], [1], [0, 0, 1, 1], [], []>} : vector<256x128xbf16>, vector<128x128xbf16>, vector<256x128xf32> -> vector<256x128xf32>
    %18 = arith.addf %13, %17 : vector<256x128xf32>
    %c0_13 = arith.constant 0 : index
    %c0_14 = arith.constant 0 : index
    %c1 = arith.constant 1 : index
    %c0_15 = arith.constant 0 : index
    %19 = vector.load %arg1[%c0_13, %c0_14, %c1, %c0_15] : memref<1x18x18x128xbf16, #tpu.memory_space<vmem>>, vector<1x18x16x128xbf16>
    %20 = vector.shape_cast %19 : vector<1x18x16x128xbf16> to vector<18x16x128xbf16>
    %21 = vector.shape_cast %20 : vector<18x16x128xbf16> to vector<288x128xbf16>
    %22 = vector.extract_strided_slice %21 {offsets = [0, 0], sizes = [256, 128], strides = [1, 1]} : vector<288x128xbf16> to vector<256x128xbf16>
    %c1_16 = arith.constant 1 : index
    %c0_17 = arith.constant 0 : index
    %c0_18 = arith.constant 0 : index
    %23 = vector.load %arg2[%c1_16, %c0_17, %c0_18] : memref<9x128x128xbf16, #tpu.memory_space<vmem>>, vector<1x128x128xbf16>
    %24 = vector.shape_cast %23 : vector<1x128x128xbf16> to vector<128x128xbf16>
    %cst_19 = arith.constant dense<0.000000e+00> : vector<256x128xf32>
    %25 = tpu.matmul %22, %24, %cst_19 {dimension_numbers = #tpu.dot_dimension_numbers<[1], [0], [0], [1], [0, 0, 1, 1], [], []>} : vector<256x128xbf16>, vector<128x128xbf16>, vector<256x128xf32> -> vector<256x128xf32>
    %26 = arith.addf %18, %25 : vector<256x128xf32>
    %27 = vector.extract_strided_slice %21 {offsets = [16, 0], sizes = [256, 128], strides = [1, 1]} : vector<288x128xbf16> to vector<256x128xbf16>
    %c4 = arith.constant 4 : index
    %c0_20 = arith.constant 0 : index
    %c0_21 = arith.constant 0 : index
    %28 = vector.load %arg2[%c4, %c0_20, %c0_21] : memref<9x128x128xbf16, #tpu.memory_space<vmem>>, vector<1x128x128xbf16>
    %29 = vector.shape_cast %28 : vector<1x128x128xbf16> to vector<128x128xbf16>
    %cst_22 = arith.constant dense<0.000000e+00> : vector<256x128xf32>
    %30 = tpu.matmul %27, %29, %cst_22 {dimension_numbers = #tpu.dot_dimension_numbers<[1], [0], [0], [1], [0, 0, 1, 1], [], []>} : vector<256x128xbf16>, vector<128x128xbf16>, vector<256x128xf32> -> vector<256x128xf32>
    %31 = arith.addf %26, %30 : vector<256x128xf32>
    %32 = vector.extract_strided_slice %21 {offsets = [32, 0], sizes = [256, 128], strides = [1, 1]} : vector<288x128xbf16> to vector<256x128xbf16>
    %c7 = arith.constant 7 : index
    %c0_23 = arith.constant 0 : index
    %c0_24 = arith.constant 0 : index
    %33 = vector.load %arg2[%c7, %c0_23, %c0_24] : memref<9x128x128xbf16, #tpu.memory_space<vmem>>, vector<1x128x128xbf16>
    %34 = vector.shape_cast %33 : vector<1x128x128xbf16> to vector<128x128xbf16>
    %cst_25 = arith.constant dense<0.000000e+00> : vector<256x128xf32>
    %35 = tpu.matmul %32, %34, %cst_25 {dimension_numbers = #tpu.dot_dimension_numbers<[1], [0], [0], [1], [0, 0, 1, 1], [], []>} : vector<256x128xbf16>, vector<128x128xbf16>, vector<256x128xf32> -> vector<256x128xf32>
    %36 = arith.addf %31, %35 : vector<256x128xf32>
    %c0_26 = arith.constant 0 : index
    %c0_27 = arith.constant 0 : index
    %c2 = arith.constant 2 : index
    %c0_28 = arith.constant 0 : index
    %37 = vector.load %arg1[%c0_26, %c0_27, %c2, %c0_28] : memref<1x18x18x128xbf16, #tpu.memory_space<vmem>>, vector<1x18x16x128xbf16>
    %38 = vector.shape_cast %37 : vector<1x18x16x128xbf16> to vector<18x16x128xbf16>
    %39 = vector.shape_cast %38 : vector<18x16x128xbf16> to vector<288x128xbf16>
    %40 = vector.extract_strided_slice %39 {offsets = [0, 0], sizes = [256, 128], strides = [1, 1]} : vector<288x128xbf16> to vector<256x128xbf16>
    %c2_29 = arith.constant 2 : index
    %c0_30 = arith.constant 0 : index
    %c0_31 = arith.constant 0 : index
    %41 = vector.load %arg2[%c2_29, %c0_30, %c0_31] : memref<9x128x128xbf16, #tpu.memory_space<vmem>>, vector<1x128x128xbf16>
    %42 = vector.shape_cast %41 : vector<1x128x128xbf16> to vector<128x128xbf16>
    %cst_32 = arith.constant dense<0.000000e+00> : vector<256x128xf32>
    %43 = tpu.matmul %40, %42, %cst_32 {dimension_numbers = #tpu.dot_dimension_numbers<[1], [0], [0], [1], [0, 0, 1, 1], [], []>} : vector<256x128xbf16>, vector<128x128xbf16>, vector<256x128xf32> -> vector<256x128xf32>
    %44 = arith.addf %36, %43 : vector<256x128xf32>
    %45 = vector.extract_strided_slice %39 {offsets = [16, 0], sizes = [256, 128], strides = [1, 1]} : vector<288x128xbf16> to vector<256x128xbf16>
    %c5 = arith.constant 5 : index
    %c0_33 = arith.constant 0 : index
    %c0_34 = arith.constant 0 : index
    %46 = vector.load %arg2[%c5, %c0_33, %c0_34] : memref<9x128x128xbf16, #tpu.memory_space<vmem>>, vector<1x128x128xbf16>
    %47 = vector.shape_cast %46 : vector<1x128x128xbf16> to vector<128x128xbf16>
    %cst_35 = arith.constant dense<0.000000e+00> : vector<256x128xf32>
    %48 = tpu.matmul %45, %47, %cst_35 {dimension_numbers = #tpu.dot_dimension_numbers<[1], [0], [0], [1], [0, 0, 1, 1], [], []>} : vector<256x128xbf16>, vector<128x128xbf16>, vector<256x128xf32> -> vector<256x128xf32>
    %49 = arith.addf %44, %48 : vector<256x128xf32>
    %50 = vector.extract_strided_slice %39 {offsets = [32, 0], sizes = [256, 128], strides = [1, 1]} : vector<288x128xbf16> to vector<256x128xbf16>
    %c8 = arith.constant 8 : index
    %c0_36 = arith.constant 0 : index
    %c0_37 = arith.constant 0 : index
    %51 = vector.load %arg2[%c8, %c0_36, %c0_37] : memref<9x128x128xbf16, #tpu.memory_space<vmem>>, vector<1x128x128xbf16>
    %52 = vector.shape_cast %51 : vector<1x128x128xbf16> to vector<128x128xbf16>
    %cst_38 = arith.constant dense<0.000000e+00> : vector<256x128xf32>
    %53 = tpu.matmul %50, %52, %cst_38 {dimension_numbers = #tpu.dot_dimension_numbers<[1], [0], [0], [1], [0, 0, 1, 1], [], []>} : vector<256x128xbf16>, vector<128x128xbf16>, vector<256x128xf32> -> vector<256x128xf32>
    %54 = arith.addf %49, %53 : vector<256x128xf32>
    %cst_39 = arith.constant dense<0.000000e+00> : vector<128xf32>
    %55 = vector.multi_reduction <add>, %54, %cst_39 [0] : vector<256x128xf32> to vector<128xf32>
    %56 = vector.shape_cast %55 : vector<128xf32> to vector<1x128xf32>
    %57 = arith.mulf %54, %54 : vector<256x128xf32>
    %cst_40 = arith.constant dense<0.000000e+00> : vector<128xf32>
    %58 = vector.multi_reduction <add>, %57, %cst_40 [0] : vector<256x128xf32> to vector<128xf32>
    %59 = vector.shape_cast %58 : vector<128xf32> to vector<1x128xf32>
    %60 = tpu.concatenate %56, %59 in 0 : vector<1x128xf32>, vector<1x128xf32> -> vector<2x128xf32>
    %c0_41 = arith.constant 0 : index
    %c0_42 = arith.constant 0 : index
    %c0_43 = arith.constant 0 : index
    %61 = vector.load %arg4[%c0_41, %c0_42, %c0_43] : memref<1x2x128xf32, #tpu.memory_space<vmem>>, vector<1x2x128xf32>
    %62 = vector.shape_cast %61 : vector<1x2x128xf32> to vector<2x128xf32>
    %63 = vector.shape_cast %60 : vector<2x128xf32> to vector<1x2x128xf32>
    tpu.vector_store %arg4[%c0_41, %c0_42, %c0_43], %63 {strides = array<i32>} : memref<1x2x128xf32, #tpu.memory_space<vmem>>, vector<1x2x128xf32>,
    %64 = vector.shape_cast %54 : vector<256x128xf32> to vector<16x16x128xf32>
    %65 = arith.truncf %64 : vector<16x16x128xf32> to vector<16x16x128xbf16>
    %c0_44 = arith.constant 0 : index
    %c0_45 = arith.constant 0 : index
    %c0_46 = arith.constant 0 : index
    %c0_47 = arith.constant 0 : index
    %66 = vector.load %arg3[%c0_44, %c0_45, %c0_46, %c0_47] : memref<1x16x16x128xbf16, #tpu.memory_space<vmem>>, vector<1x16x16x128xbf16>
    %67 = vector.shape_cast %66 : vector<1x16x16x128xbf16> to vector<16x16x128xbf16>
    %68 = vector.shape_cast %65 : vector<16x16x128xbf16> to vector<1x16x16x128xbf16>
    tpu.vector_store %arg3[%c0_44, %c0_45, %c0_46, %c0_47], %68 {strides = array<i32>} : memref<1x16x16x128xbf16, #tpu.memory_space<vmem>>, vector<1x16x16x128xbf16>,
    return
  }
  func.func @transform_0(%arg0: i32) -> (i32, i32, i32, i32) {
    %c0_i32 = arith.constant 0 : i32
    %c0_i32_0 = arith.constant 0 : i32
    %c0_i32_1 = arith.constant 0 : i32
    %c0_i32_2 = arith.constant 0 : i32
    return %arg0, %c0_i32, %c0_i32_0, %c0_i32_1 : i32, i32, i32, i32
  }
  func.func @transform_1(%arg0: i32) -> (i32, i32, i32) {
    %c0_i32 = arith.constant 0 : i32
    %c0_i32_0 = arith.constant 0 : i32
    %c0_i32_1 = arith.constant 0 : i32
    %c0_i32_2 = arith.constant 0 : i32
    return %c0_i32, %c0_i32_0, %c0_i32_1 : i32, i32, i32
  }
  func.func @transform_2(%arg0: i32) -> (i32, i32, i32, i32) {
    %c0_i32 = arith.constant 0 : i32
    %c0_i32_0 = arith.constant 0 : i32
    %c0_i32_1 = arith.constant 0 : i32
    %c0_i32_2 = arith.constant 0 : i32
    return %arg0, %c0_i32, %c0_i32_0, %c0_i32_1 : i32, i32, i32, i32
  }
  func.func @transform_3(%arg0: i32) -> (i32, i32, i32) {
    %c0_i32 = arith.constant 0 : i32
    %c0_i32_0 = arith.constant 0 : i32
    %c0_i32_1 = arith.constant 0 : i32
    return %arg0, %c0_i32, %c0_i32_0 : i32, i32, i32
  }
}

module attributes {stable_mosaic.version = 11 : i64} {
  func.func @_bn_relu_conv2_kernel(%arg0: i32, %arg1: memref<1x16x16x128xbf16, #tpu.memory_space<vmem>>, %arg2: memref<1x128xf32, #tpu.memory_space<vmem>>, %arg3: memref<1x128xf32, #tpu.memory_space<vmem>>, %arg4: memref<9x128x128xbf16, #tpu.memory_space<vmem>>, %arg5: memref<1x16x16x128xbf16, #tpu.memory_space<vmem>>, %arg6: memref<1x2x128xf32, #tpu.memory_space<vmem>>, %arg7: memref<18x18x128xf32, #tpu.memory_space<vmem>>) attributes {dimension_semantics = [#tpu.dimension_semantics<parallel>], iteration_bounds = array<i64: 2>, scalar_prefetch = 0 : i64, scratch_operands = 1 : i64, tpu.core_type = #tpu.core_type<tc>, window_params = [{transform_indices = @transform_0, window_bounds = array<i64: 1, 16, 16, 128>}, {pipeline_mode = #tpu.pipeline_mode<synchronous>, transform_indices = @transform_1, window_bounds = array<i64: 1, 128>}, {pipeline_mode = #tpu.pipeline_mode<synchronous>, transform_indices = @transform_2, window_bounds = array<i64: 1, 128>}, {pipeline_mode = #tpu.pipeline_mode<synchronous>, transform_indices = @transform_3, window_bounds = array<i64: 9, 128, 128>}, {transform_indices = @transform_4, window_bounds = array<i64: 1, 16, 16, 128>}, {transform_indices = @transform_5, window_bounds = array<i64: 1, 2, 128>}]} {
    %c0 = arith.constant 0 : index
    %c0_0 = arith.constant 0 : index
    %0 = vector.load %arg2[%c0, %c0_0] : memref<1x128xf32, #tpu.memory_space<vmem>>, vector<1x128xf32>
    %1 = vector.shape_cast %0 : vector<1x128xf32> to vector<1x1x128xf32>
    %c0_1 = arith.constant 0 : index
    %c0_2 = arith.constant 0 : index
    %2 = vector.load %arg3[%c0_1, %c0_2] : memref<1x128xf32, #tpu.memory_space<vmem>>, vector<1x128xf32>
    %3 = vector.shape_cast %2 : vector<1x128xf32> to vector<1x1x128xf32>
    %c0_3 = arith.constant 0 : index
    %c0_4 = arith.constant 0 : index
    %c0_5 = arith.constant 0 : index
    %c0_6 = arith.constant 0 : index
    %4 = vector.load %arg1[%c0_3, %c0_4, %c0_5, %c0_6] : memref<1x16x16x128xbf16, #tpu.memory_space<vmem>>, vector<1x16x16x128xbf16>
    %5 = vector.shape_cast %4 : vector<1x16x16x128xbf16> to vector<16x16x128xbf16>
    %6 = arith.extf %5 : vector<16x16x128xbf16> to vector<16x16x128xf32>
    %7 = vector.broadcast %1 : vector<1x1x128xf32> to vector<16x16x128xf32>
    %8 = arith.mulf %6, %7 : vector<16x16x128xf32>
    %9 = vector.broadcast %3 : vector<1x1x128xf32> to vector<16x16x128xf32>
    %10 = arith.addf %8, %9 : vector<16x16x128xf32>
    %cst = arith.constant 0.000000e+00 : f32
    %11 = vector.broadcast %cst : f32 to vector<16x16x128xf32>
    %12 = arith.maximumf %10, %11 : vector<16x16x128xf32>
    %cst_7 = arith.constant 0.000000e+00 : f32
    %13 = vector.broadcast %cst_7 : f32 to vector<18x18x128xf32>
    %c0_8 = arith.constant 0 : index
    %c0_9 = arith.constant 0 : index
    %c0_10 = arith.constant 0 : index
    %14 = vector.load %arg7[%c0_8, %c0_9, %c0_10] : memref<18x18x128xf32, #tpu.memory_space<vmem>>, vector<18x18x128xf32>
    tpu.vector_store %arg7[%c0_8, %c0_9, %c0_10], %13 {strides = array<i32>} : memref<18x18x128xf32, #tpu.memory_space<vmem>>, vector<18x18x128xf32>,
    %c1 = arith.constant 1 : index
    %c1_11 = arith.constant 1 : index
    %c0_12 = arith.constant 0 : index
    %15 = vector.load %arg7[%c1, %c1_11, %c0_12] : memref<18x18x128xf32, #tpu.memory_space<vmem>>, vector<16x16x128xf32>
    tpu.vector_store %arg7[%c1, %c1_11, %c0_12], %12 {strides = array<i32>} : memref<18x18x128xf32, #tpu.memory_space<vmem>>, vector<16x16x128xf32>,
    %cst_13 = arith.constant 0.000000e+00 : f32
    %16 = vector.broadcast %cst_13 : f32 to vector<256x128xf32>
    %c0_14 = arith.constant 0 : index
    %c0_15 = arith.constant 0 : index
    %c0_16 = arith.constant 0 : index
    %17 = vector.load %arg7[%c0_14, %c0_15, %c0_16] : memref<18x18x128xf32, #tpu.memory_space<vmem>>, vector<18x16x128xf32>
    %18 = arith.truncf %17 : vector<18x16x128xf32> to vector<18x16x128xbf16>
    %19 = vector.shape_cast %18 : vector<18x16x128xbf16> to vector<288x128xbf16>
    %20 = vector.extract_strided_slice %19 {offsets = [0, 0], sizes = [256, 128], strides = [1, 1]} : vector<288x128xbf16> to vector<256x128xbf16>
    %c0_17 = arith.constant 0 : index
    %c0_18 = arith.constant 0 : index
    %c0_19 = arith.constant 0 : index
    %21 = vector.load %arg4[%c0_17, %c0_18, %c0_19] : memref<9x128x128xbf16, #tpu.memory_space<vmem>>, vector<1x128x128xbf16>
    %22 = vector.shape_cast %21 : vector<1x128x128xbf16> to vector<128x128xbf16>
    %cst_20 = arith.constant dense<0.000000e+00> : vector<256x128xf32>
    %23 = tpu.matmul %20, %22, %cst_20 {dimension_numbers = #tpu.dot_dimension_numbers<[1], [0], [0], [1], [0, 0, 1, 1], [], []>} : vector<256x128xbf16>, vector<128x128xbf16>, vector<256x128xf32> -> vector<256x128xf32>
    %24 = arith.addf %16, %23 : vector<256x128xf32>
    %25 = vector.extract_strided_slice %19 {offsets = [16, 0], sizes = [256, 128], strides = [1, 1]} : vector<288x128xbf16> to vector<256x128xbf16>
    %c3 = arith.constant 3 : index
    %c0_21 = arith.constant 0 : index
    %c0_22 = arith.constant 0 : index
    %26 = vector.load %arg4[%c3, %c0_21, %c0_22] : memref<9x128x128xbf16, #tpu.memory_space<vmem>>, vector<1x128x128xbf16>
    %27 = vector.shape_cast %26 : vector<1x128x128xbf16> to vector<128x128xbf16>
    %cst_23 = arith.constant dense<0.000000e+00> : vector<256x128xf32>
    %28 = tpu.matmul %25, %27, %cst_23 {dimension_numbers = #tpu.dot_dimension_numbers<[1], [0], [0], [1], [0, 0, 1, 1], [], []>} : vector<256x128xbf16>, vector<128x128xbf16>, vector<256x128xf32> -> vector<256x128xf32>
    %29 = arith.addf %24, %28 : vector<256x128xf32>
    %30 = vector.extract_strided_slice %19 {offsets = [32, 0], sizes = [256, 128], strides = [1, 1]} : vector<288x128xbf16> to vector<256x128xbf16>
    %c6 = arith.constant 6 : index
    %c0_24 = arith.constant 0 : index
    %c0_25 = arith.constant 0 : index
    %31 = vector.load %arg4[%c6, %c0_24, %c0_25] : memref<9x128x128xbf16, #tpu.memory_space<vmem>>, vector<1x128x128xbf16>
    %32 = vector.shape_cast %31 : vector<1x128x128xbf16> to vector<128x128xbf16>
    %cst_26 = arith.constant dense<0.000000e+00> : vector<256x128xf32>
    %33 = tpu.matmul %30, %32, %cst_26 {dimension_numbers = #tpu.dot_dimension_numbers<[1], [0], [0], [1], [0, 0, 1, 1], [], []>} : vector<256x128xbf16>, vector<128x128xbf16>, vector<256x128xf32> -> vector<256x128xf32>
    %34 = arith.addf %29, %33 : vector<256x128xf32>
    %c0_27 = arith.constant 0 : index
    %c1_28 = arith.constant 1 : index
    %c0_29 = arith.constant 0 : index
    %35 = vector.load %arg7[%c0_27, %c1_28, %c0_29] : memref<18x18x128xf32, #tpu.memory_space<vmem>>, vector<18x16x128xf32>
    %36 = arith.truncf %35 : vector<18x16x128xf32> to vector<18x16x128xbf16>
    %37 = vector.shape_cast %36 : vector<18x16x128xbf16> to vector<288x128xbf16>
    %38 = vector.extract_strided_slice %37 {offsets = [0, 0], sizes = [256, 128], strides = [1, 1]} : vector<288x128xbf16> to vector<256x128xbf16>
    %c1_30 = arith.constant 1 : index
    %c0_31 = arith.constant 0 : index
    %c0_32 = arith.constant 0 : index
    %39 = vector.load %arg4[%c1_30, %c0_31, %c0_32] : memref<9x128x128xbf16, #tpu.memory_space<vmem>>, vector<1x128x128xbf16>
    %40 = vector.shape_cast %39 : vector<1x128x128xbf16> to vector<128x128xbf16>
    %cst_33 = arith.constant dense<0.000000e+00> : vector<256x128xf32>
    %41 = tpu.matmul %38, %40, %cst_33 {dimension_numbers = #tpu.dot_dimension_numbers<[1], [0], [0], [1], [0, 0, 1, 1], [], []>} : vector<256x128xbf16>, vector<128x128xbf16>, vector<256x128xf32> -> vector<256x128xf32>
    %42 = arith.addf %34, %41 : vector<256x128xf32>
    %43 = vector.extract_strided_slice %37 {offsets = [16, 0], sizes = [256, 128], strides = [1, 1]} : vector<288x128xbf16> to vector<256x128xbf16>
    %c4 = arith.constant 4 : index
    %c0_34 = arith.constant 0 : index
    %c0_35 = arith.constant 0 : index
    %44 = vector.load %arg4[%c4, %c0_34, %c0_35] : memref<9x128x128xbf16, #tpu.memory_space<vmem>>, vector<1x128x128xbf16>
    %45 = vector.shape_cast %44 : vector<1x128x128xbf16> to vector<128x128xbf16>
    %cst_36 = arith.constant dense<0.000000e+00> : vector<256x128xf32>
    %46 = tpu.matmul %43, %45, %cst_36 {dimension_numbers = #tpu.dot_dimension_numbers<[1], [0], [0], [1], [0, 0, 1, 1], [], []>} : vector<256x128xbf16>, vector<128x128xbf16>, vector<256x128xf32> -> vector<256x128xf32>
    %47 = arith.addf %42, %46 : vector<256x128xf32>
    %48 = vector.extract_strided_slice %37 {offsets = [32, 0], sizes = [256, 128], strides = [1, 1]} : vector<288x128xbf16> to vector<256x128xbf16>
    %c7 = arith.constant 7 : index
    %c0_37 = arith.constant 0 : index
    %c0_38 = arith.constant 0 : index
    %49 = vector.load %arg4[%c7, %c0_37, %c0_38] : memref<9x128x128xbf16, #tpu.memory_space<vmem>>, vector<1x128x128xbf16>
    %50 = vector.shape_cast %49 : vector<1x128x128xbf16> to vector<128x128xbf16>
    %cst_39 = arith.constant dense<0.000000e+00> : vector<256x128xf32>
    %51 = tpu.matmul %48, %50, %cst_39 {dimension_numbers = #tpu.dot_dimension_numbers<[1], [0], [0], [1], [0, 0, 1, 1], [], []>} : vector<256x128xbf16>, vector<128x128xbf16>, vector<256x128xf32> -> vector<256x128xf32>
    %52 = arith.addf %47, %51 : vector<256x128xf32>
    %c0_40 = arith.constant 0 : index
    %c2 = arith.constant 2 : index
    %c0_41 = arith.constant 0 : index
    %53 = vector.load %arg7[%c0_40, %c2, %c0_41] : memref<18x18x128xf32, #tpu.memory_space<vmem>>, vector<18x16x128xf32>
    %54 = arith.truncf %53 : vector<18x16x128xf32> to vector<18x16x128xbf16>
    %55 = vector.shape_cast %54 : vector<18x16x128xbf16> to vector<288x128xbf16>
    %56 = vector.extract_strided_slice %55 {offsets = [0, 0], sizes = [256, 128], strides = [1, 1]} : vector<288x128xbf16> to vector<256x128xbf16>
    %c2_42 = arith.constant 2 : index
    %c0_43 = arith.constant 0 : index
    %c0_44 = arith.constant 0 : index
    %57 = vector.load %arg4[%c2_42, %c0_43, %c0_44] : memref<9x128x128xbf16, #tpu.memory_space<vmem>>, vector<1x128x128xbf16>
    %58 = vector.shape_cast %57 : vector<1x128x128xbf16> to vector<128x128xbf16>
    %cst_45 = arith.constant dense<0.000000e+00> : vector<256x128xf32>
    %59 = tpu.matmul %56, %58, %cst_45 {dimension_numbers = #tpu.dot_dimension_numbers<[1], [0], [0], [1], [0, 0, 1, 1], [], []>} : vector<256x128xbf16>, vector<128x128xbf16>, vector<256x128xf32> -> vector<256x128xf32>
    %60 = arith.addf %52, %59 : vector<256x128xf32>
    %61 = vector.extract_strided_slice %55 {offsets = [16, 0], sizes = [256, 128], strides = [1, 1]} : vector<288x128xbf16> to vector<256x128xbf16>
    %c5 = arith.constant 5 : index
    %c0_46 = arith.constant 0 : index
    %c0_47 = arith.constant 0 : index
    %62 = vector.load %arg4[%c5, %c0_46, %c0_47] : memref<9x128x128xbf16, #tpu.memory_space<vmem>>, vector<1x128x128xbf16>
    %63 = vector.shape_cast %62 : vector<1x128x128xbf16> to vector<128x128xbf16>
    %cst_48 = arith.constant dense<0.000000e+00> : vector<256x128xf32>
    %64 = tpu.matmul %61, %63, %cst_48 {dimension_numbers = #tpu.dot_dimension_numbers<[1], [0], [0], [1], [0, 0, 1, 1], [], []>} : vector<256x128xbf16>, vector<128x128xbf16>, vector<256x128xf32> -> vector<256x128xf32>
    %65 = arith.addf %60, %64 : vector<256x128xf32>
    %66 = vector.extract_strided_slice %55 {offsets = [32, 0], sizes = [256, 128], strides = [1, 1]} : vector<288x128xbf16> to vector<256x128xbf16>
    %c8 = arith.constant 8 : index
    %c0_49 = arith.constant 0 : index
    %c0_50 = arith.constant 0 : index
    %67 = vector.load %arg4[%c8, %c0_49, %c0_50] : memref<9x128x128xbf16, #tpu.memory_space<vmem>>, vector<1x128x128xbf16>
    %68 = vector.shape_cast %67 : vector<1x128x128xbf16> to vector<128x128xbf16>
    %cst_51 = arith.constant dense<0.000000e+00> : vector<256x128xf32>
    %69 = tpu.matmul %66, %68, %cst_51 {dimension_numbers = #tpu.dot_dimension_numbers<[1], [0], [0], [1], [0, 0, 1, 1], [], []>} : vector<256x128xbf16>, vector<128x128xbf16>, vector<256x128xf32> -> vector<256x128xf32>
    %70 = arith.addf %65, %69 : vector<256x128xf32>
    %cst_52 = arith.constant dense<0.000000e+00> : vector<128xf32>
    %71 = vector.multi_reduction <add>, %70, %cst_52 [0] : vector<256x128xf32> to vector<128xf32>
    %72 = vector.shape_cast %71 : vector<128xf32> to vector<1x128xf32>
    %73 = arith.mulf %70, %70 : vector<256x128xf32>
    %cst_53 = arith.constant dense<0.000000e+00> : vector<128xf32>
    %74 = vector.multi_reduction <add>, %73, %cst_53 [0] : vector<256x128xf32> to vector<128xf32>
    %75 = vector.shape_cast %74 : vector<128xf32> to vector<1x128xf32>
    %76 = tpu.concatenate %72, %75 in 0 : vector<1x128xf32>, vector<1x128xf32> -> vector<2x128xf32>
    %c0_54 = arith.constant 0 : index
    %c0_55 = arith.constant 0 : index
    %c0_56 = arith.constant 0 : index
    %77 = vector.load %arg6[%c0_54, %c0_55, %c0_56] : memref<1x2x128xf32, #tpu.memory_space<vmem>>, vector<1x2x128xf32>
    %78 = vector.shape_cast %77 : vector<1x2x128xf32> to vector<2x128xf32>
    %79 = vector.shape_cast %76 : vector<2x128xf32> to vector<1x2x128xf32>
    tpu.vector_store %arg6[%c0_54, %c0_55, %c0_56], %79 {strides = array<i32>} : memref<1x2x128xf32, #tpu.memory_space<vmem>>, vector<1x2x128xf32>,
    %80 = vector.shape_cast %70 : vector<256x128xf32> to vector<16x16x128xf32>
    %81 = arith.truncf %80 : vector<16x16x128xf32> to vector<16x16x128xbf16>
    %c0_57 = arith.constant 0 : index
    %c0_58 = arith.constant 0 : index
    %c0_59 = arith.constant 0 : index
    %c0_60 = arith.constant 0 : index
    %82 = vector.load %arg5[%c0_57, %c0_58, %c0_59, %c0_60] : memref<1x16x16x128xbf16, #tpu.memory_space<vmem>>, vector<1x16x16x128xbf16>
    %83 = vector.shape_cast %82 : vector<1x16x16x128xbf16> to vector<16x16x128xbf16>
    %84 = vector.shape_cast %81 : vector<16x16x128xbf16> to vector<1x16x16x128xbf16>
    tpu.vector_store %arg5[%c0_57, %c0_58, %c0_59, %c0_60], %84 {strides = array<i32>} : memref<1x16x16x128xbf16, #tpu.memory_space<vmem>>, vector<1x16x16x128xbf16>,
    return
  }
  func.func @transform_0(%arg0: i32) -> (i32, i32, i32, i32) {
    %c0_i32 = arith.constant 0 : i32
    %c0_i32_0 = arith.constant 0 : i32
    %c0_i32_1 = arith.constant 0 : i32
    %c0_i32_2 = arith.constant 0 : i32
    return %arg0, %c0_i32, %c0_i32_0, %c0_i32_1 : i32, i32, i32, i32
  }
  func.func @transform_1(%arg0: i32) -> (i32, i32) {
    %c0_i32 = arith.constant 0 : i32
    %c0_i32_0 = arith.constant 0 : i32
    %c0_i32_1 = arith.constant 0 : i32
    return %c0_i32, %c0_i32_0 : i32, i32
  }
  func.func @transform_2(%arg0: i32) -> (i32, i32) {
    %c0_i32 = arith.constant 0 : i32
    %c0_i32_0 = arith.constant 0 : i32
    %c0_i32_1 = arith.constant 0 : i32
    return %c0_i32, %c0_i32_0 : i32, i32
  }
  func.func @transform_3(%arg0: i32) -> (i32, i32, i32) {
    %c0_i32 = arith.constant 0 : i32
    %c0_i32_0 = arith.constant 0 : i32
    %c0_i32_1 = arith.constant 0 : i32
    %c0_i32_2 = arith.constant 0 : i32
    return %c0_i32, %c0_i32_0, %c0_i32_1 : i32, i32, i32
  }
  func.func @transform_4(%arg0: i32) -> (i32, i32, i32, i32) {
    %c0_i32 = arith.constant 0 : i32
    %c0_i32_0 = arith.constant 0 : i32
    %c0_i32_1 = arith.constant 0 : i32
    %c0_i32_2 = arith.constant 0 : i32
    return %arg0, %c0_i32, %c0_i32_0, %c0_i32_1 : i32, i32, i32, i32
  }
  func.func @transform_5(%arg0: i32) -> (i32, i32, i32) {
    %c0_i32 = arith.constant 0 : i32
    %c0_i32_0 = arith.constant 0 : i32
    %c0_i32_1 = arith.constant 0 : i32
    return %arg0, %c0_i32, %c0_i32_0 : i32, i32, i32
  }
}

module attributes {stable_mosaic.version = 11 : i64} {
  func.func @_bn_add_relu_kernel(%arg0: i32, %arg1: memref<1x16x16x128xbf16, #tpu.memory_space<vmem>>, %arg2: memref<1x18x18x128xbf16, #tpu.memory_space<vmem>>, %arg3: memref<1x128xf32, #tpu.memory_space<vmem>>, %arg4: memref<1x128xf32, #tpu.memory_space<vmem>>, %arg5: memref<1x16x16x128xf32, #tpu.memory_space<vmem>>) attributes {dimension_semantics = [#tpu.dimension_semantics<parallel>], iteration_bounds = array<i64: 2>, scalar_prefetch = 0 : i64, scratch_operands = 0 : i64, tpu.core_type = #tpu.core_type<tc>, window_params = [{transform_indices = @transform_0, window_bounds = array<i64: 1, 16, 16, 128>}, {transform_indices = @transform_1, window_bounds = array<i64: 1, 18, 18, 128>}, {pipeline_mode = #tpu.pipeline_mode<synchronous>, transform_indices = @transform_2, window_bounds = array<i64: 1, 128>}, {pipeline_mode = #tpu.pipeline_mode<synchronous>, transform_indices = @transform_3, window_bounds = array<i64: 1, 128>}, {transform_indices = @transform_4, window_bounds = array<i64: 1, 16, 16, 128>}]} {
    %c0 = arith.constant 0 : index
    %c0_0 = arith.constant 0 : index
    %0 = vector.load %arg3[%c0, %c0_0] : memref<1x128xf32, #tpu.memory_space<vmem>>, vector<1x128xf32>
    %1 = vector.shape_cast %0 : vector<1x128xf32> to vector<1x1x128xf32>
    %c0_1 = arith.constant 0 : index
    %c0_2 = arith.constant 0 : index
    %2 = vector.load %arg4[%c0_1, %c0_2] : memref<1x128xf32, #tpu.memory_space<vmem>>, vector<1x128xf32>
    %3 = vector.shape_cast %2 : vector<1x128xf32> to vector<1x1x128xf32>
    %c0_3 = arith.constant 0 : index
    %c0_4 = arith.constant 0 : index
    %c0_5 = arith.constant 0 : index
    %c0_6 = arith.constant 0 : index
    %4 = vector.load %arg1[%c0_3, %c0_4, %c0_5, %c0_6] : memref<1x16x16x128xbf16, #tpu.memory_space<vmem>>, vector<1x16x16x128xbf16>
    %5 = vector.shape_cast %4 : vector<1x16x16x128xbf16> to vector<16x16x128xbf16>
    %6 = arith.extf %5 : vector<16x16x128xbf16> to vector<16x16x128xf32>
    %7 = vector.broadcast %1 : vector<1x1x128xf32> to vector<16x16x128xf32>
    %8 = arith.mulf %6, %7 : vector<16x16x128xf32>
    %9 = vector.broadcast %3 : vector<1x1x128xf32> to vector<16x16x128xf32>
    %10 = arith.addf %8, %9 : vector<16x16x128xf32>
    %c0_7 = arith.constant 0 : index
    %c1 = arith.constant 1 : index
    %c1_8 = arith.constant 1 : index
    %c0_9 = arith.constant 0 : index
    %11 = vector.load %arg2[%c0_7, %c1, %c1_8, %c0_9] : memref<1x18x18x128xbf16, #tpu.memory_space<vmem>>, vector<1x16x16x128xbf16>
    %12 = vector.shape_cast %11 : vector<1x16x16x128xbf16> to vector<16x16x128xbf16>
    %13 = arith.extf %12 : vector<16x16x128xbf16> to vector<16x16x128xf32>
    %14 = arith.addf %10, %13 : vector<16x16x128xf32>
    %cst = arith.constant 0.000000e+00 : f32
    %15 = vector.broadcast %cst : f32 to vector<16x16x128xf32>
    %16 = arith.maximumf %14, %15 : vector<16x16x128xf32>
    %c0_10 = arith.constant 0 : index
    %c0_11 = arith.constant 0 : index
    %c0_12 = arith.constant 0 : index
    %c0_13 = arith.constant 0 : index
    %17 = vector.load %arg5[%c0_10, %c0_11, %c0_12, %c0_13] : memref<1x16x16x128xf32, #tpu.memory_space<vmem>>, vector<1x16x16x128xf32>
    %18 = vector.shape_cast %17 : vector<1x16x16x128xf32> to vector<16x16x128xf32>
    %19 = vector.shape_cast %16 : vector<16x16x128xf32> to vector<1x16x16x128xf32>
    tpu.vector_store %arg5[%c0_10, %c0_11, %c0_12, %c0_13], %19 {strides = array<i32>} : memref<1x16x16x128xf32, #tpu.memory_space<vmem>>, vector<1x16x16x128xf32>,
    return
  }
  func.func @transform_0(%arg0: i32) -> (i32, i32, i32, i32) {
    %c0_i32 = arith.constant 0 : i32
    %c0_i32_0 = arith.constant 0 : i32
    %c0_i32_1 = arith.constant 0 : i32
    %c0_i32_2 = arith.constant 0 : i32
    return %arg0, %c0_i32, %c0_i32_0, %c0_i32_1 : i32, i32, i32, i32
  }
  func.func @transform_1(%arg0: i32) -> (i32, i32, i32, i32) {
    %c0_i32 = arith.constant 0 : i32
    %c0_i32_0 = arith.constant 0 : i32
    %c0_i32_1 = arith.constant 0 : i32
    %c0_i32_2 = arith.constant 0 : i32
    return %arg0, %c0_i32, %c0_i32_0, %c0_i32_1 : i32, i32, i32, i32
  }
  func.func @transform_2(%arg0: i32) -> (i32, i32) {
    %c0_i32 = arith.constant 0 : i32
    %c0_i32_0 = arith.constant 0 : i32
    %c0_i32_1 = arith.constant 0 : i32
    return %c0_i32, %c0_i32_0 : i32, i32
  }
  func.func @transform_3(%arg0: i32) -> (i32, i32) {
    %c0_i32 = arith.constant 0 : i32
    %c0_i32_0 = arith.constant 0 : i32
    %c0_i32_1 = arith.constant 0 : i32
    return %c0_i32, %c0_i32_0 : i32, i32
  }
  func.func @transform_4(%arg0: i32) -> (i32, i32, i32, i32) {
    %c0_i32 = arith.constant 0 : i32
    %c0_i32_0 = arith.constant 0 : i32
    %c0_i32_1 = arith.constant 0 : i32
    %c0_i32_2 = arith.constant 0 : i32
    return %arg0, %c0_i32, %c0_i32_0, %c0_i32_1 : i32, i32, i32, i32
  }
}

</mosaic_0001>

<llo_original>
// kernel: basic_block_forward.5
$region0: #{basic_block_forward.5}
  #allocation0 [shape = 'u32[]', space=smem, size = 0x4, offset = 0x4, fixed_abs, tag = 'smem constant byte address 0x4 - core index']
  #allocation1 [shape = 'u32[144,128]{1,0:T(1,128)}', space=vmem, size = 0x12000, scoped, tag = 'internal scratch']
  %s0 = inlined_call_operand.vmem [shape: bf16[2,16,16,128], index: 0, kind: input, shape index: {}]
  %s1 = inlined_call_operand.vmem [shape: bf16[2,18,18,128], index: 1, kind: input, shape index: {}]
  %s2 = inlined_call_operand.vmem [shape: f32[1,128], index: 2, kind: input, shape index: {}]
  %s3 = inlined_call_operand.vmem [shape: f32[1,128], index: 3, kind: input, shape index: {}]
  %s4 = inlined_call_operand.vmem [shape: f32[2,16,16,128], index: 4, kind: output, shape index: {}]
  %s5 = sld [smem:[#allocation0]]
  $region49: #{basic_block_forward.5} parent=0
    _
  %s7 = ssub.s32 1, %s5
  %s8 = scalar_select 0, %s7, %s5
  loop: start=0, step=1, limit=4
  $region2: #{basic_block_forward.5} parent=0 // loop_pre_header
    _
  $region3: #{basic_block_forward.5} parent=0 // loop_header
    %s10 = sphi 0, %s14
    %p11 = scmp.ge.s32.totalorder %s10, 4
    %s20 = sphi 0, %s22
    %s23 = sphi 0, %s20
    %s24 = sphi 0, %s23
    %s40 = sphi 0, %s24
    %s46 = sphi 0, %s48
    %s49 = sphi 0, %s46
    %s50 = sphi 0, %s49
    %s66 = sphi 0, %s50
    %s70 = sphi 0, %s70
    %s72 = sphi 0, %s70
    %s73 = sphi 0, %s72
    %s87 = sphi 0, %s73
    %s91 = sphi 0, %s91
    %s93 = sphi 0, %s91
    %s94 = sphi 0, %s93
    %s108 = sphi 0, %s94
    %s114 = sphi 0, %s116
    %s117 = sphi 0, %s114
    %s118 = sphi 0, %s117
    %s134 = sphi 0, %s118
  $region4: #{basic_block_forward.5} parent=0 // loop_header_branch
    %13 = sbr.rel (%p11) target = $region8
  $region5: #{basic_block_forward.5} parent=0 // loop_body
    %s15 = ssub.s32 %s10, 1
    %s16 = ssub.s32 %s10, 2
    %s17 = sadd.s32 %s10, 1
    %s18 = ssub.s32 %s10, %s17
    %p19 = scmp.eq.s32.totalorder %s18, 0
    %s21 = sadd.s32 %s20, 1
    %s22 = scalar_select %p19, %s20, %s21
    %p25 = pneg %p19
    %p26 = scmp.eq.s32.totalorder %s10, 1
    %p27 = por %p25, %p26
    %p28 = scmp.ne.s32.totalorder %s20, %s23
    %p29 = scmp.eq.s32.totalorder %s10, 0
    %p30 = por %p28, %p29
    %p31 = scmp.ne.s32.totalorder %s20, %s23
    %p32 = scmp.eq.s32.totalorder %s15, 1
    %p33 = por %p31, %p32
    %p34 = scmp.ne.s32.totalorder %s23, %s24
    %p35 = scmp.eq.s32.totalorder %s15, 0
    %p36 = por %p34, %p35
    %p37 = scmp.ne.s32.totalorder %s23, %s24
    %p38 = scmp.eq.s32.totalorder %s16, 1
    %p39 = por %p37, %p38
    %p41 = scmp.ne.s32.totalorder %s24, %s40
    %p42 = scmp.eq.s32.totalorder %s16, 0
    %p43 = por %p41, %p42
    %s44 = ssub.s32 %s10, %s17
    %p45 = scmp.eq.s32.totalorder %s44, 0
    %s47 = sadd.s32 %s46, 1
    %s48 = scalar_select %p45, %s46, %s47
    %p51 = pneg %p45
    %p52 = scmp.eq.s32.totalorder %s10, 1
    %p53 = por %p51, %p52
    %p54 = scmp.ne.s32.totalorder %s46, %s49
    %p55 = scmp.eq.s32.totalorder %s10, 0
    %p56 = por %p54, %p55
    %p57 = scmp.ne.s32.totalorder %s46, %s49
    %p58 = scmp.eq.s32.totalorder %s15, 1
    %p59 = por %p57, %p58
    %p60 = scmp.ne.s32.totalorder %s49, %s50
    %p61 = scmp.eq.s32.totalorder %s15, 0
    %p62 = por %p60, %p61
    %p63 = scmp.ne.s32.totalorder %s49, %s50
    %p64 = scmp.eq.s32.totalorder %s16, 1
    %p65 = por %p63, %p64
    %p67 = scmp.ne.s32.totalorder %s50, %s66
    %p68 = scmp.eq.s32.totalorder %s16, 0
    %p69 = por %p67, %p68
    %s71 = sadd.s32 %s70, 1
    %p74 = scmp.eq.s32.totalorder %s10, 1
    %p75 = scmp.ne.s32.totalorder %s70, %s72
    %p76 = scmp.eq.s32.totalorder %s10, 0
    %p77 = por %p75, %p76
    %p78 = scmp.ne.s32.totalorder %s70, %s72
    %p79 = scmp.eq.s32.totalorder %s15, 1
    %p80 = por %p78, %p79
    %p81 = scmp.ne.s32.totalorder %s72, %s73
    %p82 = scmp.eq.s32.totalorder %s15, 0
    %p83 = por %p81, %p82
    %p84 = scmp.ne.s32.totalorder %s72, %s73
    %p85 = scmp.eq.s32.totalorder %s16, 1
    %p86 = por %p84, %p85
    %p88 = scmp.ne.s32.totalorder %s73, %s87
    %p89 = scmp.eq.s32.totalorder %s16, 0
    %p90 = por %p88, %p89
    %s92 = sadd.s32 %s91, 1
    %p95 = scmp.eq.s32.totalorder %s10, 1
    %p96 = scmp.ne.s32.totalorder %s91, %s93
    %p97 = scmp.eq.s32.totalorder %s10, 0
    %p98 = por %p96, %p97
    %p99 = scmp.ne.s32.totalorder %s91, %s93
    %p100 = scmp.eq.s32.totalorder %s15, 1
    %p101 = por %p99, %p100
    %p102 = scmp.ne.s32.totalorder %s93, %s94
    %p103 = scmp.eq.s32.totalorder %s15, 0
    %p104 = por %p102, %p103
    %p105 = scmp.ne.s32.totalorder %s93, %s94
    %p106 = scmp.eq.s32.totalorder %s16, 1
    %p107 = por %p105, %p106
    %p109 = scmp.ne.s32.totalorder %s94, %s108
    %p110 = scmp.eq.s32.totalorder %s16, 0
    %p111 = por %p109, %p110
    %s112 = ssub.s32 %s10, %s17
    %p113 = scmp.eq.s32.totalorder %s112, 0
    %s115 = sadd.s32 %s114, 1
    %s116 = scalar_select %p113, %s114, %s115
    %p119 = pneg %p113
    %p120 = scmp.eq.s32.totalorder %s10, 1
    %p121 = por %p119, %p120
    %p122 = scmp.ne.s32.totalorder %s114, %s117
    %p123 = scmp.eq.s32.totalorder %s10, 0
    %p124 = por %p122, %p123
    %p125 = scmp.ne.s32.totalorder %s114, %s117
    %p126 = scmp.eq.s32.totalorder %s15, 1
    %p127 = por %p125, %p126
    %p128 = scmp.ne.s32.totalorder %s117, %s118
    %p129 = scmp.eq.s32.totalorder %s15, 0
    %p130 = por %p128, %p129
    %p131 = scmp.ne.s32.totalorder %s117, %s118
    %p132 = scmp.eq.s32.totalorder %s16, 1
    %p133 = por %p131, %p132
    %p135 = scmp.ne.s32.totalorder %s118, %s134
    %p136 = scmp.eq.s32.totalorder %s16, 0
    %p137 = por %p135, %p136
    %p138 = scmp.le.s32.totalorder 1, %s10
    %p139 = scmp.lt.s32.totalorder %s10, 3
    %p140 = pnand %p138, %p139
    %p141 = pneg %p140
    // Predicated region
    $region9: #{basic_block_forward.5} parent=5 // pred_check
      _
    $region10: #{basic_block_forward.5} parent=5 // pred_check_branch
      %143 = sbr.rel (%p140) target = $region12
    $region11: #{basic_block_forward.5} parent=5 // pred_region
      %s144 = ssub.s32 %s10, 1
      // Predicated region
      $region13: #{basic_block_forward.5} parent=11 // pred_check
        %p145 = pneg %p83
      $region14: #{basic_block_forward.5} parent=11 // pred_check_branch
        %147 = sbr.rel (%p145) target = $region16
      $region15: #{basic_block_forward.5} parent=11 // pred_region
        _
      $region16: #{basic_block_forward.5} parent=11 // pred_fallthru
        _
      // Predicated region
      $region17: #{basic_block_forward.5} parent=11 // pred_check
        %p148 = pneg %p104
      $region18: #{basic_block_forward.5} parent=11 // pred_check_branch
        %150 = sbr.rel (%p148) target = $region20
      $region19: #{basic_block_forward.5} parent=11 // pred_region
        _
      $region20: #{basic_block_forward.5} parent=11 // pred_fallthru
        _
    $region12: #{basic_block_forward.5} parent=5 // pred_fallthru
      _
    %p151 = scmp.lt.s32.totalorder %s10, 2
    // Predicated region
    $region21: #{basic_block_forward.5} parent=5 // pred_check
      %p152 = pneg %p151
    $region22: #{basic_block_forward.5} parent=5 // pred_check_branch
      %154 = sbr.rel (%p152) target = $region24
    $region23: #{basic_block_forward.5} parent=5 // pred_region
      // Predicated region
      $region25: #{basic_block_forward.5} parent=23 // pred_check
        %p155 = pneg %p30
      $region26: #{basic_block_forward.5} parent=23 // pred_check_branch
        %157 = sbr.rel (%p155) target = $region28
      $region27: #{basic_block_forward.5} parent=23 // pred_region
        %p158 = scmp.lt.s32.totalorder %s10, 1
        %s159 = scalar_select %p158, %s10, 1
        %s160 = smul.addr %s159, 32
        %s161 = smul.addr %s160, 4
        %s162 = scalar_lea.vmem %s0, %s161
      $region28: #{basic_block_forward.5} parent=23 // pred_fallthru
        _
      // Predicated region
      $region29: #{basic_block_forward.5} parent=23 // pred_check
        %p163 = pneg %p56
      $region30: #{basic_block_forward.5} parent=23 // pred_check_branch
        %165 = sbr.rel (%p163) target = $region32
      $region31: #{basic_block_forward.5} parent=23 // pred_region
        %p166 = scmp.lt.s32.totalorder %s10, 1
        %s167 = scalar_select %p166, %s10, 1
        %s168 = smul.addr %s167, 54
        %s169 = smul.addr %s168, 4
        %s170 = scalar_lea.vmem %s1, %s169
      $region32: #{basic_block_forward.5} parent=23 // pred_fallthru
        _
    $region24: #{basic_block_forward.5} parent=5 // pred_fallthru
      _
    %p171 = scmp.le.s32.totalorder 1, %s10
    %p172 = scmp.lt.s32.totalorder %s10, 3
    %p173 = pnand %p171, %p172
    %p174 = pneg %p173
    // Predicated region
    $region33: #{basic_block_forward.5} parent=5 // pred_check
      _
    $region34: #{basic_block_forward.5} parent=5 // pred_check_branch
      %176 = sbr.rel (%p173) target = $region36
    $region35: #{basic_block_forward.5} parent=5 // pred_region
      %s177 = ssub.s32 %s10, 1
      %p178 = scmp.lt.s32.totalorder %s15, 1
      %s179 = scalar_select %p178, %s15, 1
      %s180 = smul.addr %s179, 32
      %s181 = smul.addr %s180, 4
      %s182 = scalar_lea.vmem %s0, %s181
      %p183 = pneg %p36
      %p184 = pneg %p33
      %p185 = scmp.lt.s32.totalorder %s15, 1
      %s186 = scalar_select %p185, %s15, 1
      %s187 = smul.addr %s186, 54
      %s188 = smul.addr %s187, 4
      %s189 = scalar_lea.vmem %s1, %s188
      %p190 = pneg %p62
      %p191 = pneg %p59
      %p192 = pneg %p83
      %p193 = pneg %p80
      %p194 = pneg %p104
      %p195 = pneg %p101
      %p196 = pneg %p130
      %p197 = pneg %p127
      %p198 = scmp.lt.s32.totalorder %s15, 1
      %s199 = scalar_select %p198, %s15, 1
      %s200 = smul.addr %s199, 32
      %s201 = smul.addr %s200, 8
      %s202 = scalar_lea.vmem %s4, %s201
      %p203 = scmp.lt.s32.totalorder %s15, 1
      %s204 = scalar_select %p203, %s15, 1
      %s205 = smul.addr %s204, 32
      %s206 = smul.addr %s205, 4
      %s207 = scalar_lea.vmem %s0, %s206
      %p208 = scmp.lt.s32.totalorder %s15, 1
      %s209 = scalar_select %p208, %s15, 1
      %s210 = smul.addr %s209, 54
      %s211 = smul.addr %s210, 4
      %s212 = scalar_lea.vmem %s1, %s211
      %p213 = scmp.lt.s32.totalorder %s15, 1
      %s214 = scalar_select %p213, %s15, 1
      %s215 = smul.addr %s214, 32
      %s216 = smul.addr %s215, 8
      %s217 = scalar_lea.vmem %s4, %s216
      %v218 = vld [vmem:[%s2] sm:$0x1]
      %v219 = vld [vmem:[%s3] sm:$0x1]
      %v220 = vld [vmem:[%s207] sm:$0xf]
      %v221 = vld [vmem:[%s207 + $0x4] sm:$0xf]
      %v222 = vld [vmem:[%s207 + $0x8] sm:$0xf]
      %v223 = vld [vmem:[%s207 + $0xc] sm:$0xf]
      %v224 = vld [vmem:[%s207 + $0x10] sm:$0xf]
      %v225 = vld [vmem:[%s207 + $0x14] sm:$0xf]
      %v226 = vld [vmem:[%s207 + $0x18] sm:$0xf]
      %v227 = vld [vmem:[%s207 + $0x1c] sm:$0xf]
      %v228 = vld [vmem:[%s207 + $0x20] sm:$0xf]
      %v229 = vld [vmem:[%s207 + $0x24] sm:$0xf]
      %v230 = vld [vmem:[%s207 + $0x28] sm:$0xf]
      %v231 = vld [vmem:[%s207 + $0x2c] sm:$0xf]
      %v232 = vld [vmem:[%s207 + $0x30] sm:$0xf]
      %v233 = vld [vmem:[%s207 + $0x34] sm:$0xf]
      %v234 = vld [vmem:[%s207 + $0x38] sm:$0xf]
      %v235 = vld [vmem:[%s207 + $0x3c] sm:$0xf]
      %v236 = vld [vmem:[%s207 + $0x40] sm:$0xf]
      %v237 = vld [vmem:[%s207 + $0x44] sm:$0xf]
      %v238 = vld [vmem:[%s207 + $0x48] sm:$0xf]
      %v239 = vld [vmem:[%s207 + $0x4c] sm:$0xf]
      %v240 = vld [vmem:[%s207 + $0x50] sm:$0xf]
      %v241 = vld [vmem:[%s207 + $0x54] sm:$0xf]
      %v242 = vld [vmem:[%s207 + $0x58] sm:$0xf]
      %v243 = vld [vmem:[%s207 + $0x5c] sm:$0xf]
      %v244 = vld [vmem:[%s207 + $0x60] sm:$0xf]
      %v245 = vld [vmem:[%s207 + $0x64] sm:$0xf]
      %v246 = vld [vmem:[%s207 + $0x68] sm:$0xf]
      %v247 = vld [vmem:[%s207 + $0x6c] sm:$0xf]
      %v248 = vld [vmem:[%s207 + $0x70] sm:$0xf]
      %v249 = vld [vmem:[%s207 + $0x74] sm:$0xf]
      %v250 = vld [vmem:[%s207 + $0x78] sm:$0xf]
      %v251 = vld [vmem:[%s207 + $0x7c] sm:$0xf]
      %v252 = vunpack.c.l.bf16 %v220
      %v253 = vunpack.c.l.bf16 %v221
      %v254 = vunpack.c.l.bf16 %v222
      %v255 = vunpack.c.l.bf16 %v223
      %v256 = vunpack.c.l.bf16 %v224
      %v257 = vunpack.c.l.bf16 %v225
      %v258 = vunpack.c.l.bf16 %v226
      %v259 = vunpack.c.l.bf16 %v227
      %v260 = vunpack.c.l.bf16 %v228
      %v261 = vunpack.c.l.bf16 %v229
      %v262 = vunpack.c.l.bf16 %v230
      %v263 = vunpack.c.l.bf16 %v231
      %v264 = vunpack.c.l.bf16 %v232
      %v265 = vunpack.c.l.bf16 %v233
      %v266 = vunpack.c.l.bf16 %v234
      %v267 = vunpack.c.l.bf16 %v235
      %v268 = vunpack.c.l.bf16 %v236
      %v269 = vunpack.c.l.bf16 %v237
      %v270 = vunpack.c.l.bf16 %v238
      %v271 = vunpack.c.l.bf16 %v239
      %v272 = vunpack.c.l.bf16 %v240
      %v273 = vunpack.c.l.bf16 %v241
      %v274 = vunpack.c.l.bf16 %v242
      %v275 = vunpack.c.l.bf16 %v243
      %v276 = vunpack.c.l.bf16 %v244
      %v277 = vunpack.c.l.bf16 %v245
      %v278 = vunpack.c.l.bf16 %v246
      %v279 = vunpack.c.l.bf16 %v247
      %v280 = vunpack.c.l.bf16 %v248
      %v281 = vunpack.c.l.bf16 %v249
      %v282 = vunpack.c.l.bf16 %v250
      %v283 = vunpack.c.l.bf16 %v251
      %v285 = vlaneseq
      %v286 = vshrl.u32 %v285, 7
      %v287 = vsub.s32 0, %v286
      %v288 = vrot.slane %v218, %v287
      %v290 = vmul.f32 %v252, %v288
      %v291 = vmul.f32 %v253, %v288
      %v292 = vmul.f32 %v254, %v288
      %v293 = vmul.f32 %v255, %v288
      %v294 = vmul.f32 %v256, %v288
      %v295 = vmul.f32 %v257, %v288
      %v296 = vmul.f32 %v258, %v288
      %v297 = vmul.f32 %v259, %v288
      %v298 = vmul.f32 %v260, %v288
      %v299 = vmul.f32 %v261, %v288
      %v300 = vmul.f32 %v262, %v288
      %v301 = vmul.f32 %v263, %v288
      %v302 = vmul.f32 %v264, %v288
      %v303 = vmul.f32 %v265, %v288
      %v304 = vmul.f32 %v266, %v288
      %v305 = vmul.f32 %v267, %v288
      %v306 = vmul.f32 %v268, %v288
      %v307 = vmul.f32 %v269, %v288
      %v308 = vmul.f32 %v270, %v288
      %v309 = vmul.f32 %v271, %v288
      %v310 = vmul.f32 %v272, %v288
      %v311 = vmul.f32 %v273, %v288
      %v312 = vmul.f32 %v274, %v288
      %v313 = vmul.f32 %v275, %v288
      %v314 = vmul.f32 %v276, %v288
      %v315 = vmul.f32 %v277, %v288
      %v316 = vmul.f32 %v278, %v288
      %v317 = vmul.f32 %v279, %v288
      %v318 = vmul.f32 %v280, %v288
      %v319 = vmul.f32 %v281, %v288
      %v320 = vmul.f32 %v282, %v288
      %v321 = vmul.f32 %v283, %v288
      %v323 = vlaneseq
      %v324 = vshrl.u32 %v323, 7
      %v325 = vsub.s32 0, %v324
      %v326 = vrot.slane %v219, %v325
      %v328 = vadd.f32 %v290, %v326
      %v329 = vadd.f32 %v291, %v326
      %v330 = vadd.f32 %v292, %v326
      %v331 = vadd.f32 %v293, %v326
      %v332 = vadd.f32 %v294, %v326
      %v333 = vadd.f32 %v295, %v326
      %v334 = vadd.f32 %v296, %v326
      %v335 = vadd.f32 %v297, %v326
      %v336 = vadd.f32 %v298, %v326
      %v337 = vadd.f32 %v299, %v326
      %v338 = vadd.f32 %v300, %v326
      %v339 = vadd.f32 %v301, %v326
      %v340 = vadd.f32 %v302, %v326
      %v341 = vadd.f32 %v303, %v326
      %v342 = vadd.f32 %v304, %v326
      %v343 = vadd.f32 %v305, %v326
      %v344 = vadd.f32 %v306, %v326
      %v345 = vadd.f32 %v307, %v326
      %v346 = vadd.f32 %v308, %v326
      %v347 = vadd.f32 %v309, %v326
      %v348 = vadd.f32 %v310, %v326
      %v349 = vadd.f32 %v311, %v326
      %v350 = vadd.f32 %v312, %v326
      %v351 = vadd.f32 %v313, %v326
      %v352 = vadd.f32 %v314, %v326
      %v353 = vadd.f32 %v315, %v326
      %v354 = vadd.f32 %v316, %v326
      %v355 = vadd.f32 %v317, %v326
      %v356 = vadd.f32 %v318, %v326
      %v357 = vadd.f32 %v319, %v326
      %v358 = vadd.f32 %v320, %v326
      %v359 = vadd.f32 %v321, %v326
      %s360 = scalar_lea.vmem %s212, 12
      %v361 = vld [vmem:[%s360] sm:$0xf]
      %v362 = vld [vmem:[%s360 + $0x4] sm:$0xf]
      %v363 = vld [vmem:[%s360 + $0x8] sm:$0x1]
      %v364 = vld [vmem:[%s360 + $0xc] sm:$0xf]
      %v365 = vld [vmem:[%s360 + $0x10] sm:$0xf]
      %v366 = vld [vmem:[%s360 + $0x14] sm:$0x1]
      %v367 = vld [vmem:[%s360 + $0x18] sm:$0xf]
      %v368 = vld [vmem:[%s360 + $0x1c] sm:$0xf]
      %v369 = vld [vmem:[%s360 + $0x20] sm:$0x1]
      %v370 = vld [vmem:[%s360 + $0x24] sm:$0xf]
      %v371 = vld [vmem:[%s360 + $0x28] sm:$0xf]
      %v372 = vld [vmem:[%s360 + $0x2c] sm:$0x1]
      %v373 = vld [vmem:[%s360 + $0x30] sm:$0xf]
      %v374 = vld [vmem:[%s360 + $0x34] sm:$0xf]
      %v375 = vld [vmem:[%s360 + $0x38] sm:$0x1]
      %v376 = vld [vmem:[%s360 + $0x3c] sm:$0xf]
      %v377 = vld [vmem:[%s360 + $0x40] sm:$0xf]
      %v378 = vld [vmem:[%s360 + $0x44] sm:$0x1]
      %v379 = vld [vmem:[%s360 + $0x48] sm:$0xf]
      %v380 = vld [vmem:[%s360 + $0x4c] sm:$0xf]
      %v381 = vld [vmem:[%s360 + $0x50] sm:$0x1]
      %v382 = vld [vmem:[%s360 + $0x54] sm:$0xf]
      %v383 = vld [vmem:[%s360 + $0x58] sm:$0xf]
      %v384 = vld [vmem:[%s360 + $0x5c] sm:$0x1]
      %v385 = vld [vmem:[%s360 + $0x60] sm:$0xf]
      %v386 = vld [vmem:[%s360 + $0x64] sm:$0xf]
      %v387 = vld [vmem:[%s360 + $0x68] sm:$0x1]
      %v388 = vld [vmem:[%s360 + $0x6c] sm:$0xf]
      %v389 = vld [vmem:[%s360 + $0x70] sm:$0xf]
      %v390 = vld [vmem:[%s360 + $0x74] sm:$0x1]
      %v391 = vld [vmem:[%s360 + $0x78] sm:$0xf]
      %v392 = vld [vmem:[%s360 + $0x7c] sm:$0xf]
      %v393 = vld [vmem:[%s360 + $0x80] sm:$0x1]
      %v394 = vld [vmem:[%s360 + $0x84] sm:$0xf]
      %v395 = vld [vmem:[%s360 + $0x88] sm:$0xf]
      %v396 = vld [vmem:[%s360 + $0x8c] sm:$0x1]
      %v397 = vld [vmem:[%s360 + $0x90] sm:$0xf]
      %v398 = vld [vmem:[%s360 + $0x94] sm:$0xf]
      %v399 = vld [vmem:[%s360 + $0x98] sm:$0x1]
      %v400 = vld [vmem:[%s360 + $0x9c] sm:$0xf]
      %v401 = vld [vmem:[%s360 + $0xa0] sm:$0xf]
      %v402 = vld [vmem:[%s360 + $0xa4] sm:$0x1]
      %v403 = vld [vmem:[%s360 + $0xa8] sm:$0xf]
      %v404 = vld [vmem:[%s360 + $0xac] sm:$0xf]
      %v405 = vld [vmem:[%s360 + $0xb0] sm:$0x1]
      %v406 = vld [vmem:[%s360 + $0xb4] sm:$0xf]
      %v407 = vld [vmem:[%s360 + $0xb8] sm:$0xf]
      %v408 = vld [vmem:[%s360 + $0xbc] sm:$0x1]
      %v409 = vunpack.c.l.bf16 %v361
      %v410 = vunpack.c.l.bf16 %v362
      %v411 = vunpack.c.l.bf16 %v363
      %v412 = vunpack.c.l.bf16 %v364
      %v413 = vunpack.c.l.bf16 %v365
      %v414 = vunpack.c.l.bf16 %v366
      %v415 = vunpack.c.l.bf16 %v367
      %v416 = vunpack.c.l.bf16 %v368
      %v417 = vunpack.c.l.bf16 %v369
      %v418 = vunpack.c.l.bf16 %v370
      %v419 = vunpack.c.l.bf16 %v371
      %v420 = vunpack.c.l.bf16 %v372
      %v421 = vunpack.c.l.bf16 %v373
      %v422 = vunpack.c.l.bf16 %v374
      %v423 = vunpack.c.l.bf16 %v375
      %v424 = vunpack.c.l.bf16 %v376
      %v425 = vunpack.c.l.bf16 %v377
      %v426 = vunpack.c.l.bf16 %v378
      %v427 = vunpack.c.l.bf16 %v379
      %v428 = vunpack.c.l.bf16 %v380
      %v429 = vunpack.c.l.bf16 %v381
      %v430 = vunpack.c.l.bf16 %v382
      %v431 = vunpack.c.l.bf16 %v383
      %v432 = vunpack.c.l.bf16 %v384
      %v433 = vunpack.c.l.bf16 %v385
      %v434 = vunpack.c.l.bf16 %v386
      %v435 = vunpack.c.l.bf16 %v387
      %v436 = vunpack.c.l.bf16 %v388
      %v437 = vunpack.c.l.bf16 %v389
      %v438 = vunpack.c.l.bf16 %v390
      %v439 = vunpack.c.l.bf16 %v391
      %v440 = vunpack.c.l.bf16 %v392
      %v441 = vunpack.c.l.bf16 %v393
      %v442 = vunpack.c.l.bf16 %v394
      %v443 = vunpack.c.l.bf16 %v395
      %v444 = vunpack.c.l.bf16 %v396
      %v445 = vunpack.c.l.bf16 %v397
      %v446 = vunpack.c.l.bf16 %v398
      %v447 = vunpack.c.l.bf16 %v399
      %v448 = vunpack.c.l.bf16 %v400
      %v449 = vunpack.c.l.bf16 %v401
      %v450 = vunpack.c.l.bf16 %v402
      %v451 = vunpack.c.l.bf16 %v403
      %v452 = vunpack.c.l.bf16 %v404
      %v453 = vunpack.c.l.bf16 %v405
      %v454 = vunpack.c.l.bf16 %v406
      %v455 = vunpack.c.l.bf16 %v407
      %v456 = vunpack.c.l.bf16 %v408
      %vm505 = vcmask 1046528
      %v506 = vrot.slane %v409, 1
      %v507 = vrot.slane %v410, 1
      %v508 = vsel %vm505, %v506, %v507
      %v509 = vrot.slane %v411, 1
      %v510 = vsel %vm505, %v507, %v509
      %v511 = vrot.slane %v412, 1
      %v512 = vrot.slane %v413, 1
      %v513 = vsel %vm505, %v511, %v512
      %v514 = vrot.slane %v414, 1
      %v515 = vsel %vm505, %v512, %v514
      %v516 = vrot.slane %v415, 1
      %v517 = vrot.slane %v416, 1
      %v518 = vsel %vm505, %v516, %v517
      %v519 = vrot.slane %v417, 1
      %v520 = vsel %vm505, %v517, %v519
      %v521 = vrot.slane %v418, 1
      %v522 = vrot.slane %v419, 1
      %v523 = vsel %vm505, %v521, %v522
      %v524 = vrot.slane %v420, 1
      %v525 = vsel %vm505, %v522, %v524
      %v526 = vrot.slane %v421, 1
      %v527 = vrot.slane %v422, 1
      %v528 = vsel %vm505, %v526, %v527
      %v529 = vrot.slane %v423, 1
      %v530 = vsel %vm505, %v527, %v529
      %v531 = vrot.slane %v424, 1
      %v532 = vrot.slane %v425, 1
      %v533 = vsel %vm505, %v531, %v532
      %v534 = vrot.slane %v426, 1
      %v535 = vsel %vm505, %v532, %v534
      %v536 = vrot.slane %v427, 1
      %v537 = vrot.slane %v428, 1
      %v538 = vsel %vm505, %v536, %v537
      %v539 = vrot.slane %v429, 1
      %v540 = vsel %vm505, %v537, %v539
      %v541 = vrot.slane %v430, 1
      %v542 = vrot.slane %v431, 1
      %v543 = vsel %vm505, %v541, %v542
      %v544 = vrot.slane %v432, 1
      %v545 = vsel %vm505, %v542, %v544
      %v546 = vrot.slane %v433, 1
      %v547 = vrot.slane %v434, 1
      %v548 = vsel %vm505, %v546, %v547
      %v549 = vrot.slane %v435, 1
      %v550 = vsel %vm505, %v547, %v549
      %v551 = vrot.slane %v436, 1
      %v552 = vrot.slane %v437, 1
      %v553 = vsel %vm505, %v551, %v552
      %v554 = vrot.slane %v438, 1
      %v555 = vsel %vm505, %v552, %v554
      %v556 = vrot.slane %v439, 1
      %v557 = vrot.slane %v440, 1
      %v558 = vsel %vm505, %v556, %v557
      %v559 = vrot.slane %v441, 1
      %v560 = vsel %vm505, %v557, %v559
      %v561 = vrot.slane %v442, 1
      %v562 = vrot.slane %v443, 1
      %v563 = vsel %vm505, %v561, %v562
      %v564 = vrot.slane %v444, 1
      %v565 = vsel %vm505, %v562, %v564
      %v566 = vrot.slane %v445, 1
      %v567 = vrot.slane %v446, 1
      %v568 = vsel %vm505, %v566, %v567
      %v569 = vrot.slane %v447, 1
      %v570 = vsel %vm505, %v567, %v569
      %v571 = vrot.slane %v448, 1
      %v572 = vrot.slane %v449, 1
      %v573 = vsel %vm505, %v571, %v572
      %v574 = vrot.slane %v450, 1
      %v575 = vsel %vm505, %v572, %v574
      %v576 = vrot.slane %v451, 1
      %v577 = vrot.slane %v452, 1
      %v578 = vsel %vm505, %v576, %v577
      %v579 = vrot.slane %v453, 1
      %v580 = vsel %vm505, %v577, %v579
      %v581 = vrot.slane %v454, 1
      %v582 = vrot.slane %v455, 1
      %v583 = vsel %vm505, %v581, %v582
      %v584 = vrot.slane %v456, 1
      %v585 = vsel %vm505, %v582, %v584
      %v618 = vadd.f32 %v328, %v508
      %v619 = vadd.f32 %v329, %v510
      %v620 = vadd.f32 %v330, %v513
      %v621 = vadd.f32 %v331, %v515
      %v622 = vadd.f32 %v332, %v518
      %v623 = vadd.f32 %v333, %v520
      %v624 = vadd.f32 %v334, %v523
      %v625 = vadd.f32 %v335, %v525
      %v626 = vadd.f32 %v336, %v528
      %v627 = vadd.f32 %v337, %v530
      %v628 = vadd.f32 %v338, %v533
      %v629 = vadd.f32 %v339, %v535
      %v630 = vadd.f32 %v340, %v538
      %v631 = vadd.f32 %v341, %v540
      %v632 = vadd.f32 %v342, %v543
      %v633 = vadd.f32 %v343, %v545
      %v634 = vadd.f32 %v344, %v548
      %v635 = vadd.f32 %v345, %v550
      %v636 = vadd.f32 %v346, %v553
      %v637 = vadd.f32 %v347, %v555
      %v638 = vadd.f32 %v348, %v558
      %v639 = vadd.f32 %v349, %v560
      %v640 = vadd.f32 %v350, %v563
      %v641 = vadd.f32 %v351, %v565
      %v642 = vadd.f32 %v352, %v568
      %v643 = vadd.f32 %v353, %v570
      %v644 = vadd.f32 %v354, %v573
      %v645 = vadd.f32 %v355, %v575
      %v646 = vadd.f32 %v356, %v578
      %v647 = vadd.f32 %v357, %v580
      %v648 = vadd.f32 %v358, %v583
      %v649 = vadd.f32 %v359, %v585
      %v650 = vmax.f32 %v618, 0.0
      %v651 = vmax.f32 %v619, 0.0
      %v652 = vmax.f32 %v620, 0.0
      %v653 = vmax.f32 %v621, 0.0
      %v654 = vmax.f32 %v622, 0.0
      %v655 = vmax.f32 %v623, 0.0
      %v656 = vmax.f32 %v624, 0.0
      %v657 = vmax.f32 %v625, 0.0
      %v658 = vmax.f32 %v626, 0.0
      %v659 = vmax.f32 %v627, 0.0
      %v660 = vmax.f32 %v628, 0.0
      %v661 = vmax.f32 %v629, 0.0
      %v662 = vmax.f32 %v630, 0.0
      %v663 = vmax.f32 %v631, 0.0
      %v664 = vmax.f32 %v632, 0.0
      %v665 = vmax.f32 %v633, 0.0
      %v666 = vmax.f32 %v634, 0.0
      %v667 = vmax.f32 %v635, 0.0
      %v668 = vmax.f32 %v636, 0.0
      %v669 = vmax.f32 %v637, 0.0
      %v670 = vmax.f32 %v638, 0.0
      %v671 = vmax.f32 %v639, 0.0
      %v672 = vmax.f32 %v640, 0.0
      %v673 = vmax.f32 %v641, 0.0
      %v674 = vmax.f32 %v642, 0.0
      %v675 = vmax.f32 %v643, 0.0
      %v676 = vmax.f32 %v644, 0.0
      %v677 = vmax.f32 %v645, 0.0
      %v678 = vmax.f32 %v646, 0.0
      %v679 = vmax.f32 %v647, 0.0
      %v680 = vmax.f32 %v648, 0.0
      %v681 = vmax.f32 %v649, 0.0
      %682 = vst [vmem:[%s217] sm:$0xff] %v650
      %683 = vst [vmem:[%s217 + $0x8] sm:$0xff] %v651
      %684 = vst [vmem:[%s217 + $0x10] sm:$0xff] %v652
      %685 = vst [vmem:[%s217 + $0x18] sm:$0xff] %v653
      %686 = vst [vmem:[%s217 + $0x20] sm:$0xff] %v654
      %687 = vst [vmem:[%s217 + $0x28] sm:$0xff] %v655
      %688 = vst [vmem:[%s217 + $0x30] sm:$0xff] %v656
      %689 = vst [vmem:[%s217 + $0x38] sm:$0xff] %v657
      %690 = vst [vmem:[%s217 + $0x40] sm:$0xff] %v658
      %691 = vst [vmem:[%s217 + $0x48] sm:$0xff] %v659
      %692 = vst [vmem:[%s217 + $0x50] sm:$0xff] %v660
      %693 = vst [vmem:[%s217 + $0x58] sm:$0xff] %v661
      %694 = vst [vmem:[%s217 + $0x60] sm:$0xff] %v662
      %695 = vst [vmem:[%s217 + $0x68] sm:$0xff] %v663
      %696 = vst [vmem:[%s217 + $0x70] sm:$0xff] %v664
      %697 = vst [vmem:[%s217 + $0x78] sm:$0xff] %v665
      %698 = vst [vmem:[%s217 + $0x80] sm:$0xff] %v666
      %699 = vst [vmem:[%s217 + $0x88] sm:$0xff] %v667
      %700 = vst [vmem:[%s217 + $0x90] sm:$0xff] %v668
      %701 = vst [vmem:[%s217 + $0x98] sm:$0xff] %v669
      %702 = vst [vmem:[%s217 + $0xa0] sm:$0xff] %v670
      %703 = vst [vmem:[%s217 + $0xa8] sm:$0xff] %v671
      %704 = vst [vmem:[%s217 + $0xb0] sm:$0xff] %v672
      %705 = vst [vmem:[%s217 + $0xb8] sm:$0xff] %v673
      %706 = vst [vmem:[%s217 + $0xc0] sm:$0xff] %v674
      %707 = vst [vmem:[%s217 + $0xc8] sm:$0xff] %v675
      %708 = vst [vmem:[%s217 + $0xd0] sm:$0xff] %v676
      %709 = vst [vmem:[%s217 + $0xd8] sm:$0xff] %v677
      %710 = vst [vmem:[%s217 + $0xe0] sm:$0xff] %v678
      %711 = vst [vmem:[%s217 + $0xe8] sm:$0xff] %v679
      %712 = vst [vmem:[%s217 + $0xf0] sm:$0xff] %v680
      %713 = vst [vmem:[%s217 + $0xf8] sm:$0xff] %v681
      %p714 = scmp.lt.s32.totalorder %s15, 1
      %s715 = scalar_select %p714, %s15, 1
      %s716 = smul.addr %s715, 32
      %s717 = smul.addr %s716, 8
      %s718 = scalar_lea.vmem %s4, %s717
      // Predicated region
      $region37: #{basic_block_forward.5} parent=35 // pred_check
        %p719 = pneg %p127
      $region38: #{basic_block_forward.5} parent=35 // pred_check_branch
        %721 = sbr.rel (%p719) target = $region40
      $region39: #{basic_block_forward.5} parent=35 // pred_region
        _
      $region40: #{basic_block_forward.5} parent=35 // pred_fallthru
        _
    $region36: #{basic_block_forward.5} parent=5 // pred_fallthru
      _
    %p722 = scmp.le.s32.totalorder 2, %s10
    // Predicated region
    $region41: #{basic_block_forward.5} parent=5 // pred_check
      %p723 = pneg %p722
    $region42: #{basic_block_forward.5} parent=5 // pred_check_branch
      %725 = sbr.rel (%p723) target = $region44
    $region43: #{basic_block_forward.5} parent=5 // pred_region
      %s726 = ssub.s32 %s10, 2
      // Predicated region
      $region45: #{basic_block_forward.5} parent=43 // pred_check
        %p727 = pneg %p133
      $region46: #{basic_block_forward.5} parent=43 // pred_check_branch
        %729 = sbr.rel (%p727) target = $region48
      $region47: #{basic_block_forward.5} parent=43 // pred_region
        %p730 = scmp.lt.s32.totalorder %s16, 1
        %s731 = scalar_select %p730, %s16, 1
        %s732 = smul.addr %s731, 32
        %s733 = smul.addr %s732, 8
        %s734 = scalar_lea.vmem %s4, %s733
      $region48: #{basic_block_forward.5} parent=43 // pred_fallthru
        _
    $region44: #{basic_block_forward.5} parent=5 // pred_fallthru
      _
  $region6: #{basic_block_forward.5} parent=0 // loop_footer
    %s14 = sadd.s32 1, %s10
  $region7: #{basic_block_forward.5} parent=0 // loop_footer_branch
    %9 = sbr.rel target = $region3
  $region8: #{basic_block_forward.5} parent=0 // loop_exit
    _

// kernel: basic_block_forward.4
$region0: #{basic_block_forward.4}
  #allocation0 [shape = 'u32[]', space=smem, size = 0x4, offset = 0x4, fixed_abs, tag = 'smem constant byte address 0x4 - core index']
  #allocation1 [shape = 'u32[144,128]{1,0:T(1,128)}', space=vmem, size = 0x12000, scoped, tag = 'internal scratch']
  #allocation2 [shape = 'f32[18,18,128]{2,1,0:T(8,128)}', space=vmem, size = 0x36000, scoped, tag = 'scratch operand']
  %s0 = inlined_call_operand.vmem [shape: bf16[2,16,16,128], index: 0, kind: input, shape index: {}]
  %s1 = inlined_call_operand.vmem [shape: f32[1,128], index: 1, kind: input, shape index: {}]
  %s2 = inlined_call_operand.vmem [shape: f32[1,128], index: 2, kind: input, shape index: {}]
  %s3 = inlined_call_operand.vmem [shape: bf16[9,128,128], index: 3, kind: input, shape index: {}]
  %s4 = inlined_call_operand.vmem [shape: bf16[2,16,16,128], index: 4, kind: output, shape index: {0}]
  %s5 = inlined_call_operand.vmem [shape: f32[2,2,128], index: 5, kind: output, shape index: {1}]
  %6 = xla_tuple %s4, %s5
  %s7 = sld [smem:[#allocation0]]
  $region57: #{basic_block_forward.4} parent=0
    _
  %s9 = ssub.s32 1, %s7
  %s10 = scalar_select 0, %s9, %s7
  loop: start=0, step=1, limit=4
  $region2: #{basic_block_forward.4} parent=0 // loop_pre_header
    _
  $region3: #{basic_block_forward.4} parent=0 // loop_header
    %s12 = sphi 0, %s16
    %p13 = scmp.ge.s32.totalorder %s12, 4
    %s22 = sphi 0, %s24
    %s25 = sphi 0, %s22
    %s26 = sphi 0, %s25
    %s42 = sphi 0, %s26
    %s46 = sphi 0, %s46
    %s48 = sphi 0, %s46
    %s49 = sphi 0, %s48
    %s63 = sphi 0, %s49
    %s67 = sphi 0, %s67
    %s69 = sphi 0, %s67
    %s70 = sphi 0, %s69
    %s84 = sphi 0, %s70
    %s88 = sphi 0, %s88
    %s90 = sphi 0, %s88
    %s91 = sphi 0, %s90
    %s105 = sphi 0, %s91
    %s111 = sphi 0, %s113
    %s114 = sphi 0, %s111
    %s115 = sphi 0, %s114
    %s131 = sphi 0, %s115
    %s137 = sphi 0, %s139
    %s140 = sphi 0, %s137
    %s141 = sphi 0, %s140
    %s157 = sphi 0, %s141
  $region4: #{basic_block_forward.4} parent=0 // loop_header_branch
    %15 = sbr.rel (%p13) target = $region8
  $region5: #{basic_block_forward.4} parent=0 // loop_body
    %s17 = ssub.s32 %s12, 1
    %s18 = ssub.s32 %s12, 2
    %s19 = sadd.s32 %s12, 1
    %s20 = ssub.s32 %s12, %s19
    %p21 = scmp.eq.s32.totalorder %s20, 0
    %s23 = sadd.s32 %s22, 1
    %s24 = scalar_select %p21, %s22, %s23
    %p27 = pneg %p21
    %p28 = scmp.eq.s32.totalorder %s12, 1
    %p29 = por %p27, %p28
    %p30 = scmp.ne.s32.totalorder %s22, %s25
    %p31 = scmp.eq.s32.totalorder %s12, 0
    %p32 = por %p30, %p31
    %p33 = scmp.ne.s32.totalorder %s22, %s25
    %p34 = scmp.eq.s32.totalorder %s17, 1
    %p35 = por %p33, %p34
    %p36 = scmp.ne.s32.totalorder %s25, %s26
    %p37 = scmp.eq.s32.totalorder %s17, 0
    %p38 = por %p36, %p37
    %p39 = scmp.ne.s32.totalorder %s25, %s26
    %p40 = scmp.eq.s32.totalorder %s18, 1
    %p41 = por %p39, %p40
    %p43 = scmp.ne.s32.totalorder %s26, %s42
    %p44 = scmp.eq.s32.totalorder %s18, 0
    %p45 = por %p43, %p44
    %s47 = sadd.s32 %s46, 1
    %p50 = scmp.eq.s32.totalorder %s12, 1
    %p51 = scmp.ne.s32.totalorder %s46, %s48
    %p52 = scmp.eq.s32.totalorder %s12, 0
    %p53 = por %p51, %p52
    %p54 = scmp.ne.s32.totalorder %s46, %s48
    %p55 = scmp.eq.s32.totalorder %s17, 1
    %p56 = por %p54, %p55
    %p57 = scmp.ne.s32.totalorder %s48, %s49
    %p58 = scmp.eq.s32.totalorder %s17, 0
    %p59 = por %p57, %p58
    %p60 = scmp.ne.s32.totalorder %s48, %s49
    %p61 = scmp.eq.s32.totalorder %s18, 1
    %p62 = por %p60, %p61
    %p64 = scmp.ne.s32.totalorder %s49, %s63
    %p65 = scmp.eq.s32.totalorder %s18, 0
    %p66 = por %p64, %p65
    %s68 = sadd.s32 %s67, 1
    %p71 = scmp.eq.s32.totalorder %s12, 1
    %p72 = scmp.ne.s32.totalorder %s67, %s69
    %p73 = scmp.eq.s32.totalorder %s12, 0
    %p74 = por %p72, %p73
    %p75 = scmp.ne.s32.totalorder %s67, %s69
    %p76 = scmp.eq.s32.totalorder %s17, 1
    %p77 = por %p75, %p76
    %p78 = scmp.ne.s32.totalorder %s69, %s70
    %p79 = scmp.eq.s32.totalorder %s17, 0
    %p80 = por %p78, %p79
    %p81 = scmp.ne.s32.totalorder %s69, %s70
    %p82 = scmp.eq.s32.totalorder %s18, 1
    %p83 = por %p81, %p82
    %p85 = scmp.ne.s32.totalorder %s70, %s84
    %p86 = scmp.eq.s32.totalorder %s18, 0
    %p87 = por %p85, %p86
    %s89 = sadd.s32 %s88, 1
    %p92 = scmp.eq.s32.totalorder %s12, 1
    %p93 = scmp.ne.s32.totalorder %s88, %s90
    %p94 = scmp.eq.s32.totalorder %s12, 0
    %p95 = por %p93, %p94
    %p96 = scmp.ne.s32.totalorder %s88, %s90
    %p97 = scmp.eq.s32.totalorder %s17, 1
    %p98 = por %p96, %p97
    %p99 = scmp.ne.s32.totalorder %s90, %s91
    %p100 = scmp.eq.s32.totalorder %s17, 0
    %p101 = por %p99, %p100
    %p102 = scmp.ne.s32.totalorder %s90, %s91
    %p103 = scmp.eq.s32.totalorder %s18, 1
    %p104 = por %p102, %p103
    %p106 = scmp.ne.s32.totalorder %s91, %s105
    %p107 = scmp.eq.s32.totalorder %s18, 0
    %p108 = por %p106, %p107
    %s109 = ssub.s32 %s12, %s19
    %p110 = scmp.eq.s32.totalorder %s109, 0
    %s112 = sadd.s32 %s111, 1
    %s113 = scalar_select %p110, %s111, %s112
    %p116 = pneg %p110
    %p117 = scmp.eq.s32.totalorder %s12, 1
    %p118 = por %p116, %p117
    %p119 = scmp.ne.s32.totalorder %s111, %s114
    %p120 = scmp.eq.s32.totalorder %s12, 0
    %p121 = por %p119, %p120
    %p122 = scmp.ne.s32.totalorder %s111, %s114
    %p123 = scmp.eq.s32.totalorder %s17, 1
    %p124 = por %p122, %p123
    %p125 = scmp.ne.s32.totalorder %s114, %s115
    %p126 = scmp.eq.s32.totalorder %s17, 0
    %p127 = por %p125, %p126
    %p128 = scmp.ne.s32.totalorder %s114, %s115
    %p129 = scmp.eq.s32.totalorder %s18, 1
    %p130 = por %p128, %p129
    %p132 = scmp.ne.s32.totalorder %s115, %s131
    %p133 = scmp.eq.s32.totalorder %s18, 0
    %p134 = por %p132, %p133
    %s135 = ssub.s32 %s12, %s19
    %p136 = scmp.eq.s32.totalorder %s135, 0
    %s138 = sadd.s32 %s137, 1
    %s139 = scalar_select %p136, %s137, %s138
    %p142 = pneg %p136
    %p143 = scmp.eq.s32.totalorder %s12, 1
    %p144 = por %p142, %p143
    %p145 = scmp.ne.s32.totalorder %s137, %s140
    %p146 = scmp.eq.s32.totalorder %s12, 0
    %p147 = por %p145, %p146
    %p148 = scmp.ne.s32.totalorder %s137, %s140
    %p149 = scmp.eq.s32.totalorder %s17, 1
    %p150 = por %p148, %p149
    %p151 = scmp.ne.s32.totalorder %s140, %s141
    %p152 = scmp.eq.s32.totalorder %s17, 0
    %p153 = por %p151, %p152
    %p154 = scmp.ne.s32.totalorder %s140, %s141
    %p155 = scmp.eq.s32.totalorder %s18, 1
    %p156 = por %p154, %p155
    %p158 = scmp.ne.s32.totalorder %s141, %s157
    %p159 = scmp.eq.s32.totalorder %s18, 0
    %p160 = por %p158, %p159
    %p161 = scmp.le.s32.totalorder 1, %s12
    %p162 = scmp.lt.s32.totalorder %s12, 3
    %p163 = pnand %p161, %p162
    %p164 = pneg %p163
    // Predicated region
    $region9: #{basic_block_forward.4} parent=5 // pred_check
      _
    $region10: #{basic_block_forward.4} parent=5 // pred_check_branch
      %166 = sbr.rel (%p163) target = $region12
    $region11: #{basic_block_forward.4} parent=5 // pred_region
      %s167 = ssub.s32 %s12, 1
      // Predicated region
      $region13: #{basic_block_forward.4} parent=11 // pred_check
        %p168 = pneg %p59
      $region14: #{basic_block_forward.4} parent=11 // pred_check_branch
        %170 = sbr.rel (%p168) target = $region16
      $region15: #{basic_block_forward.4} parent=11 // pred_region
        _
      $region16: #{basic_block_forward.4} parent=11 // pred_fallthru
        _
      // Predicated region
      $region17: #{basic_block_forward.4} parent=11 // pred_check
        %p171 = pneg %p80
      $region18: #{basic_block_forward.4} parent=11 // pred_check_branch
        %173 = sbr.rel (%p171) target = $region20
      $region19: #{basic_block_forward.4} parent=11 // pred_region
        _
      $region20: #{basic_block_forward.4} parent=11 // pred_fallthru
        _
      // Predicated region
      $region21: #{basic_block_forward.4} parent=11 // pred_check
        %p174 = pneg %p101
      $region22: #{basic_block_forward.4} parent=11 // pred_check_branch
        %176 = sbr.rel (%p174) target = $region24
      $region23: #{basic_block_forward.4} parent=11 // pred_region
        _
      $region24: #{basic_block_forward.4} parent=11 // pred_fallthru
        _
    $region12: #{basic_block_forward.4} parent=5 // pred_fallthru
      _
    %p177 = scmp.lt.s32.totalorder %s12, 2
    // Predicated region
    $region25: #{basic_block_forward.4} parent=5 // pred_check
      %p178 = pneg %p177
    $region26: #{basic_block_forward.4} parent=5 // pred_check_branch
      %180 = sbr.rel (%p178) target = $region28
    $region27: #{basic_block_forward.4} parent=5 // pred_region
      // Predicated region
      $region29: #{basic_block_forward.4} parent=27 // pred_check
        %p181 = pneg %p32
      $region30: #{basic_block_forward.4} parent=27 // pred_check_branch
        %183 = sbr.rel (%p181) target = $region32
      $region31: #{basic_block_forward.4} parent=27 // pred_region
        %p184 = scmp.lt.s32.totalorder %s12, 1
        %s185 = scalar_select %p184, %s12, 1
        %s186 = smul.addr %s185, 32
        %s187 = smul.addr %s186, 4
        %s188 = scalar_lea.vmem %s0, %s187
      $region32: #{basic_block_forward.4} parent=27 // pred_fallthru
        _
    $region28: #{basic_block_forward.4} parent=5 // pred_fallthru
      _
    %p189 = scmp.le.s32.totalorder 1, %s12
    %p190 = scmp.lt.s32.totalorder %s12, 3
    %p191 = pnand %p189, %p190
    %p192 = pneg %p191
    // Predicated region
    $region33: #{basic_block_forward.4} parent=5 // pred_check
      _
    $region34: #{basic_block_forward.4} parent=5 // pred_check_branch
      %194 = sbr.rel (%p191) target = $region36
    $region35: #{basic_block_forward.4} parent=5 // pred_region
      %s195 = ssub.s32 %s12, 1
      %p196 = scmp.lt.s32.totalorder %s17, 1
      %s197 = scalar_select %p196, %s17, 1
      %s198 = smul.addr %s197, 32
      %s199 = smul.addr %s198, 4
      %s200 = scalar_lea.vmem %s0, %s199
      %p201 = pneg %p38
      %p202 = pneg %p35
      %p203 = pneg %p59
      %p204 = pneg %p56
      %p205 = pneg %p80
      %p206 = pneg %p77
      %p207 = pneg %p101
      %p208 = pneg %p98
      %p209 = pneg %p127
      %p210 = pneg %p124
      %p211 = scmp.lt.s32.totalorder %s17, 1
      %s212 = scalar_select %p211, %s17, 1
      %s213 = smul.addr %s212, 32
      %s214 = smul.addr %s213, 4
      %s215 = scalar_lea.vmem %s4, %s214
      %p216 = pneg %p153
      %p217 = pneg %p150
      %p218 = scmp.lt.s32.totalorder %s17, 1
      %s219 = scalar_select %p218, %s17, 1
      %s220 = smul.addr %s219, 2
      %s221 = scalar_lea.vmem %s5, %s220
      %p222 = scmp.lt.s32.totalorder %s17, 1
      %s223 = scalar_select %p222, %s17, 1
      %s224 = smul.addr %s223, 32
      %s225 = smul.addr %s224, 4
      %s226 = scalar_lea.vmem %s0, %s225
      %p227 = scmp.lt.s32.totalorder %s17, 1
      %s228 = scalar_select %p227, %s17, 1
      %s229 = smul.addr %s228, 32
      %s230 = smul.addr %s229, 4
      %s231 = scalar_lea.vmem %s4, %s230
      %p232 = scmp.lt.s32.totalorder %s17, 1
      %s233 = scalar_select %p232, %s17, 1
      %s234 = smul.addr %s233, 2
      %s235 = scalar_lea.vmem %s5, %s234
      %v237 = vld [vmem:[%s1] sm:$0x1]
      %v238 = vld [vmem:[%s2] sm:$0x1]
      %v239 = vld [vmem:[%s226] sm:$0xf]
      %v240 = vld [vmem:[%s226 + $0x4] sm:$0xf]
      %v241 = vld [vmem:[%s226 + $0x8] sm:$0xf]
      %v242 = vld [vmem:[%s226 + $0xc] sm:$0xf]
      %v243 = vld [vmem:[%s226 + $0x10] sm:$0xf]
      %v244 = vld [vmem:[%s226 + $0x14] sm:$0xf]
      %v245 = vld [vmem:[%s226 + $0x18] sm:$0xf]
      %v246 = vld [vmem:[%s226 + $0x1c] sm:$0xf]
      %v247 = vld [vmem:[%s226 + $0x20] sm:$0xf]
      %v248 = vld [vmem:[%s226 + $0x24] sm:$0xf]
      %v249 = vld [vmem:[%s226 + $0x28] sm:$0xf]
      %v250 = vld [vmem:[%s226 + $0x2c] sm:$0xf]
      %v251 = vld [vmem:[%s226 + $0x30] sm:$0xf]
      %v252 = vld [vmem:[%s226 + $0x34] sm:$0xf]
      %v253 = vld [vmem:[%s226 + $0x38] sm:$0xf]
      %v254 = vld [vmem:[%s226 + $0x3c] sm:$0xf]
      %v255 = vld [vmem:[%s226 + $0x40] sm:$0xf]
      %v256 = vld [vmem:[%s226 + $0x44] sm:$0xf]
      %v257 = vld [vmem:[%s226 + $0x48] sm:$0xf]
      %v258 = vld [vmem:[%s226 + $0x4c] sm:$0xf]
      %v259 = vld [vmem:[%s226 + $0x50] sm:$0xf]
      %v260 = vld [vmem:[%s226 + $0x54] sm:$0xf]
      %v261 = vld [vmem:[%s226 + $0x58] sm:$0xf]
      %v262 = vld [vmem:[%s226 + $0x5c] sm:$0xf]
      %v263 = vld [vmem:[%s226 + $0x60] sm:$0xf]
      %v264 = vld [vmem:[%s226 + $0x64] sm:$0xf]
      %v265 = vld [vmem:[%s226 + $0x68] sm:$0xf]
      %v266 = vld [vmem:[%s226 + $0x6c] sm:$0xf]
      %v267 = vld [vmem:[%s226 + $0x70] sm:$0xf]
      %v268 = vld [vmem:[%s226 + $0x74] sm:$0xf]
      %v269 = vld [vmem:[%s226 + $0x78] sm:$0xf]
      %v270 = vld [vmem:[%s226 + $0x7c] sm:$0xf]
      %v271 = vunpack.c.l.bf16 %v239
      %v272 = vunpack.c.l.bf16 %v240
      %v273 = vunpack.c.l.bf16 %v241
      %v274 = vunpack.c.l.bf16 %v242
      %v275 = vunpack.c.l.bf16 %v243
      %v276 = vunpack.c.l.bf16 %v244
      %v277 = vunpack.c.l.bf16 %v245
      %v278 = vunpack.c.l.bf16 %v246
      %v279 = vunpack.c.l.bf16 %v247
      %v280 = vunpack.c.l.bf16 %v248
      %v281 = vunpack.c.l.bf16 %v249
      %v282 = vunpack.c.l.bf16 %v250
      %v283 = vunpack.c.l.bf16 %v251
      %v284 = vunpack.c.l.bf16 %v252
      %v285 = vunpack.c.l.bf16 %v253
      %v286 = vunpack.c.l.bf16 %v254
      %v287 = vunpack.c.l.bf16 %v255
      %v288 = vunpack.c.l.bf16 %v256
      %v289 = vunpack.c.l.bf16 %v257
      %v290 = vunpack.c.l.bf16 %v258
      %v291 = vunpack.c.l.bf16 %v259
      %v292 = vunpack.c.l.bf16 %v260
      %v293 = vunpack.c.l.bf16 %v261
      %v294 = vunpack.c.l.bf16 %v262
      %v295 = vunpack.c.l.bf16 %v263
      %v296 = vunpack.c.l.bf16 %v264
      %v297 = vunpack.c.l.bf16 %v265
      %v298 = vunpack.c.l.bf16 %v266
      %v299 = vunpack.c.l.bf16 %v267
      %v300 = vunpack.c.l.bf16 %v268
      %v301 = vunpack.c.l.bf16 %v269
      %v302 = vunpack.c.l.bf16 %v270
      %v304 = vlaneseq
      %v305 = vshrl.u32 %v304, 7
      %v306 = vsub.s32 0, %v305
      %v307 = vrot.slane %v237, %v306
      %v309 = vmul.f32 %v271, %v307
      %v310 = vmul.f32 %v272, %v307
      %v311 = vmul.f32 %v273, %v307
      %v312 = vmul.f32 %v274, %v307
      %v313 = vmul.f32 %v275, %v307
      %v314 = vmul.f32 %v276, %v307
      %v315 = vmul.f32 %v277, %v307
      %v316 = vmul.f32 %v278, %v307
      %v317 = vmul.f32 %v279, %v307
      %v318 = vmul.f32 %v280, %v307
      %v319 = vmul.f32 %v281, %v307
      %v320 = vmul.f32 %v282, %v307
      %v321 = vmul.f32 %v283, %v307
      %v322 = vmul.f32 %v284, %v307
      %v323 = vmul.f32 %v285, %v307
      %v324 = vmul.f32 %v286, %v307
      %v325 = vmul.f32 %v287, %v307
      %v326 = vmul.f32 %v288, %v307
      %v327 = vmul.f32 %v289, %v307
      %v328 = vmul.f32 %v290, %v307
      %v329 = vmul.f32 %v291, %v307
      %v330 = vmul.f32 %v292, %v307
      %v331 = vmul.f32 %v293, %v307
      %v332 = vmul.f32 %v294, %v307
      %v333 = vmul.f32 %v295, %v307
      %v334 = vmul.f32 %v296, %v307
      %v335 = vmul.f32 %v297, %v307
      %v336 = vmul.f32 %v298, %v307
      %v337 = vmul.f32 %v299, %v307
      %v338 = vmul.f32 %v300, %v307
      %v339 = vmul.f32 %v301, %v307
      %v340 = vmul.f32 %v302, %v307
      %v342 = vlaneseq
      %v343 = vshrl.u32 %v342, 7
      %v344 = vsub.s32 0, %v343
      %v345 = vrot.slane %v238, %v344
      %v347 = vadd.f32 %v309, %v345
      %v348 = vadd.f32 %v310, %v345
      %v349 = vadd.f32 %v311, %v345
      %v350 = vadd.f32 %v312, %v345
      %v351 = vadd.f32 %v313, %v345
      %v352 = vadd.f32 %v314, %v345
      %v353 = vadd.f32 %v315, %v345
      %v354 = vadd.f32 %v316, %v345
      %v355 = vadd.f32 %v317, %v345
      %v356 = vadd.f32 %v318, %v345
      %v357 = vadd.f32 %v319, %v345
      %v358 = vadd.f32 %v320, %v345
      %v359 = vadd.f32 %v321, %v345
      %v360 = vadd.f32 %v322, %v345
      %v361 = vadd.f32 %v323, %v345
      %v362 = vadd.f32 %v324, %v345
      %v363 = vadd.f32 %v325, %v345
      %v364 = vadd.f32 %v326, %v345
      %v365 = vadd.f32 %v327, %v345
      %v366 = vadd.f32 %v328, %v345
      %v367 = vadd.f32 %v329, %v345
      %v368 = vadd.f32 %v330, %v345
      %v369 = vadd.f32 %v331, %v345
      %v370 = vadd.f32 %v332, %v345
      %v371 = vadd.f32 %v333, %v345
      %v372 = vadd.f32 %v334, %v345
      %v373 = vadd.f32 %v335, %v345
      %v374 = vadd.f32 %v336, %v345
      %v375 = vadd.f32 %v337, %v345
      %v376 = vadd.f32 %v338, %v345
      %v377 = vadd.f32 %v339, %v345
      %v378 = vadd.f32 %v340, %v345
      %v379 = vmax.f32 %v347, 0.0
      %v380 = vmax.f32 %v348, 0.0
      %v381 = vmax.f32 %v349, 0.0
      %v382 = vmax.f32 %v350, 0.0
      %v383 = vmax.f32 %v351, 0.0
      %v384 = vmax.f32 %v352, 0.0
      %v385 = vmax.f32 %v353, 0.0
      %v386 = vmax.f32 %v354, 0.0
      %v387 = vmax.f32 %v355, 0.0
      %v388 = vmax.f32 %v356, 0.0
      %v389 = vmax.f32 %v357, 0.0
      %v390 = vmax.f32 %v358, 0.0
      %v391 = vmax.f32 %v359, 0.0
      %v392 = vmax.f32 %v360, 0.0
      %v393 = vmax.f32 %v361, 0.0
      %v394 = vmax.f32 %v362, 0.0
      %v395 = vmax.f32 %v363, 0.0
      %v396 = vmax.f32 %v364, 0.0
      %v397 = vmax.f32 %v365, 0.0
      %v398 = vmax.f32 %v366, 0.0
      %v399 = vmax.f32 %v367, 0.0
      %v400 = vmax.f32 %v368, 0.0
      %v401 = vmax.f32 %v369, 0.0
      %v402 = vmax.f32 %v370, 0.0
      %v403 = vmax.f32 %v371, 0.0
      %v404 = vmax.f32 %v372, 0.0
      %v405 = vmax.f32 %v373, 0.0
      %v406 = vmax.f32 %v374, 0.0
      %v407 = vmax.f32 %v375, 0.0
      %v408 = vmax.f32 %v376, 0.0
      %v409 = vmax.f32 %v377, 0.0
      %v410 = vmax.f32 %v378, 0.0
      %411 = vst [vmem:[#allocation2] sm:$0xff] 0.0
      %412 = vst [vmem:[#allocation2 + $0x8] sm:$0xff] 0.0
      %413 = vst [vmem:[#allocation2 + $0x10] sm:$0x3] 0.0
      %414 = vst [vmem:[#allocation2 + $0x18] sm:$0xff] 0.0
      %415 = vst [vmem:[#allocation2 + $0x20] sm:$0xff] 0.0
      %416 = vst [vmem:[#allocation2 + $0x28] sm:$0x3] 0.0
      %417 = vst [vmem:[#allocation2 + $0x30] sm:$0xff] 0.0
      %418 = vst [vmem:[#allocation2 + $0x38] sm:$0xff] 0.0
      %419 = vst [vmem:[#allocation2 + $0x40] sm:$0x3] 0.0
      %420 = vst [vmem:[#allocation2 + $0x48] sm:$0xff] 0.0
      %421 = vst [vmem:[#allocation2 + $0x50] sm:$0xff] 0.0
      %422 = vst [vmem:[#allocation2 + $0x58] sm:$0x3] 0.0
      %423 = vst [vmem:[#allocation2 + $0x60] sm:$0xff] 0.0
      %424 = vst [vmem:[#allocation2 + $0x68] sm:$0xff] 0.0
      %425 = vst [vmem:[#allocation2 + $0x70] sm:$0x3] 0.0
      %426 = vst [vmem:[#allocation2 + $0x78] sm:$0xff] 0.0
      %427 = vst [vmem:[#allocation2 + $0x80] sm:$0xff] 0.0
      %428 = vst [vmem:[#allocation2 + $0x88] sm:$0x3] 0.0
      %429 = vst [vmem:[#allocation2 + $0x90] sm:$0xff] 0.0
      %430 = vst [vmem:[#allocation2 + $0x98] sm:$0xff] 0.0
      %431 = vst [vmem:[#allocation2 + $0xa0] sm:$0x3] 0.0
      %432 = vst [vmem:[#allocation2 + $0xa8] sm:$0xff] 0.0
      %433 = vst [vmem:[#allocation2 + $0xb0] sm:$0xff] 0.0
      %434 = vst [vmem:[#allocation2 + $0xb8] sm:$0x3] 0.0
      %435 = vst [vmem:[#allocation2 + $0xc0] sm:$0xff] 0.0
      %436 = vst [vmem:[#allocation2 + $0xc8] sm:$0xff] 0.0
      %437 = vst [vmem:[#allocation2 + $0xd0] sm:$0x3] 0.0
      %438 = vst [vmem:[#allocation2 + $0xd8] sm:$0xff] 0.0
      %439 = vst [vmem:[#allocation2 + $0xe0] sm:$0xff] 0.0
      %440 = vst [vmem:[#allocation2 + $0xe8] sm:$0x3] 0.0
      %441 = vst [vmem:[#allocation2 + $0xf0] sm:$0xff] 0.0
      %442 = vst [vmem:[#allocation2 + $0xf8] sm:$0xff] 0.0
      %443 = vst [vmem:[#allocation2 + $0x100] sm:$0x3] 0.0
      %444 = vst [vmem:[#allocation2 + $0x108] sm:$0xff] 0.0
      %445 = vst [vmem:[#allocation2 + $0x110] sm:$0xff] 0.0
      %446 = vst [vmem:[#allocation2 + $0x118] sm:$0x3] 0.0
      %447 = vst [vmem:[#allocation2 + $0x120] sm:$0xff] 0.0
      %448 = vst [vmem:[#allocation2 + $0x128] sm:$0xff] 0.0
      %449 = vst [vmem:[#allocation2 + $0x130] sm:$0x3] 0.0
      %450 = vst [vmem:[#allocation2 + $0x138] sm:$0xff] 0.0
      %451 = vst [vmem:[#allocation2 + $0x140] sm:$0xff] 0.0
      %452 = vst [vmem:[#allocation2 + $0x148] sm:$0x3] 0.0
      %453 = vst [vmem:[#allocation2 + $0x150] sm:$0xff] 0.0
      %454 = vst [vmem:[#allocation2 + $0x158] sm:$0xff] 0.0
      %455 = vst [vmem:[#allocation2 + $0x160] sm:$0x3] 0.0
      %456 = vst [vmem:[#allocation2 + $0x168] sm:$0xff] 0.0
      %457 = vst [vmem:[#allocation2 + $0x170] sm:$0xff] 0.0
      %458 = vst [vmem:[#allocation2 + $0x178] sm:$0x3] 0.0
      %459 = vst [vmem:[#allocation2 + $0x180] sm:$0xff] 0.0
      %460 = vst [vmem:[#allocation2 + $0x188] sm:$0xff] 0.0
      %461 = vst [vmem:[#allocation2 + $0x190] sm:$0x3] 0.0
      %462 = vst [vmem:[#allocation2 + $0x198] sm:$0xff] 0.0
      %463 = vst [vmem:[#allocation2 + $0x1a0] sm:$0xff] 0.0
      %464 = vst [vmem:[#allocation2 + $0x1a8] sm:$0x3] 0.0
      %s465 = scalar_lea.vmem [#allocation2], 24
      %466 = vst [vmem:[%s465 + $0x1] sm:$0xff] %v379
      %467 = vst [vmem:[%s465 + $0x9] sm:$0xff] %v380
      %468 = vst [vmem:[%s465 + $0x19] sm:$0xff] %v381
      %469 = vst [vmem:[%s465 + $0x21] sm:$0xff] %v382
      %470 = vst [vmem:[%s465 + $0x31] sm:$0xff] %v383
      %471 = vst [vmem:[%s465 + $0x39] sm:$0xff] %v384
      %472 = vst [vmem:[%s465 + $0x49] sm:$0xff] %v385
      %473 = vst [vmem:[%s465 + $0x51] sm:$0xff] %v386
      %474 = vst [vmem:[%s465 + $0x61] sm:$0xff] %v387
      %475 = vst [vmem:[%s465 + $0x69] sm:$0xff] %v388
      %476 = vst [vmem:[%s465 + $0x79] sm:$0xff] %v389
      %477 = vst [vmem:[%s465 + $0x81] sm:$0xff] %v390
      %478 = vst [vmem:[%s465 + $0x91] sm:$0xff] %v391
      %479 = vst [vmem:[%s465 + $0x99] sm:$0xff] %v392
      %480 = vst [vmem:[%s465 + $0xa9] sm:$0xff] %v393
      %481 = vst [vmem:[%s465 + $0xb1] sm:$0xff] %v394
      %482 = vst [vmem:[%s465 + $0xc1] sm:$0xff] %v395
      %483 = vst [vmem:[%s465 + $0xc9] sm:$0xff] %v396
      %484 = vst [vmem:[%s465 + $0xd9] sm:$0xff] %v397
      %485 = vst [vmem:[%s465 + $0xe1] sm:$0xff] %v398
      %486 = vst [vmem:[%s465 + $0xf1] sm:$0xff] %v399
      %487 = vst [vmem:[%s465 + $0xf9] sm:$0xff] %v400
      %488 = vst [vmem:[%s465 + $0x109] sm:$0xff] %v401
      %489 = vst [vmem:[%s465 + $0x111] sm:$0xff] %v402
      %490 = vst [vmem:[%s465 + $0x121] sm:$0xff] %v403
      %491 = vst [vmem:[%s465 + $0x129] sm:$0xff] %v404
      %492 = vst [vmem:[%s465 + $0x139] sm:$0xff] %v405
      %493 = vst [vmem:[%s465 + $0x141] sm:$0xff] %v406
      %494 = vst [vmem:[%s465 + $0x151] sm:$0xff] %v407
      %495 = vst [vmem:[%s465 + $0x159] sm:$0xff] %v408
      %496 = vst [vmem:[%s465 + $0x169] sm:$0xff] %v409
      %497 = vst [vmem:[%s465 + $0x171] sm:$0xff] %v410
      %v498 = vld [vmem:[#allocation2] sm:$0xff]
      %v499 = vld [vmem:[#allocation2 + $0x8] sm:$0xff]
      %v500 = vld [vmem:[#allocation2 + $0x18] sm:$0xff]
      %v501 = vld [vmem:[#allocation2 + $0x20] sm:$0xff]
      %v502 = vld [vmem:[#allocation2 + $0x30] sm:$0xff]
      %v503 = vld [vmem:[#allocation2 + $0x38] sm:$0xff]
      %v504 = vld [vmem:[#allocation2 + $0x48] sm:$0xff]
      %v505 = vld [vmem:[#allocation2 + $0x50] sm:$0xff]
      %v506 = vld [vmem:[#allocation2 + $0x60] sm:$0xff]
      %v507 = vld [vmem:[#allocation2 + $0x68] sm:$0xff]
      %v508 = vld [vmem:[#allocation2 + $0x78] sm:$0xff]
      %v509 = vld [vmem:[#allocation2 + $0x80] sm:$0xff]
      %v510 = vld [vmem:[#allocation2 + $0x90] sm:$0xff]
      %v511 = vld [vmem:[#allocation2 + $0x98] sm:$0xff]
      %v512 = vld [vmem:[#allocation2 + $0xa8] sm:$0xff]
      %v513 = vld [vmem:[#allocation2 + $0xb0] sm:$0xff]
      %v514 = vld [vmem:[#allocation2 + $0xc0] sm:$0xff]
      %v515 = vld [vmem:[#allocation2 + $0xc8] sm:$0xff]
      %v516 = vld [vmem:[#allocation2 + $0xd8] sm:$0xff]
      %v517 = vld [vmem:[#allocation2 + $0xe0] sm:$0xff]
      %v518 = vld [vmem:[#allocation2 + $0xf0] sm:$0xff]
      %v519 = vld [vmem:[#allocation2 + $0xf8] sm:$0xff]
      %v520 = vld [vmem:[#allocation2 + $0x108] sm:$0xff]
      %v521 = vld [vmem:[#allocation2 + $0x110] sm:$0xff]
      %v522 = vld [vmem:[#allocation2 + $0x120] sm:$0xff]
      %v523 = vld [vmem:[#allocation2 + $0x128] sm:$0xff]
      %v524 = vld [vmem:[#allocation2 + $0x138] sm:$0xff]
      %v525 = vld [vmem:[#allocation2 + $0x140] sm:$0xff]
      %v526 = vld [vmem:[#allocation2 + $0x150] sm:$0xff]
      %v527 = vld [vmem:[#allocation2 + $0x158] sm:$0xff]
      %v528 = vld [vmem:[#allocation2 + $0x168] sm:$0xff]
      %v529 = vld [vmem:[#allocation2 + $0x170] sm:$0xff]
      %v530 = vld [vmem:[#allocation2 + $0x180] sm:$0xff]
      %v531 = vld [vmem:[#allocation2 + $0x188] sm:$0xff]
      %v532 = vld [vmem:[#allocation2 + $0x198] sm:$0xff]
      %v533 = vld [vmem:[#allocation2 + $0x1a0] sm:$0xff]
      %v534 = vpack.c.bf16 %v499, %v498
      %v535 = vpack.c.bf16 %v501, %v500
      %v536 = vpack.c.bf16 %v503, %v502
      %v537 = vpack.c.bf16 %v505, %v504
      %v538 = vpack.c.bf16 %v507, %v506
      %v539 = vpack.c.bf16 %v509, %v508
      %v540 = vpack.c.bf16 %v511, %v510
      %v541 = vpack.c.bf16 %v513, %v512
      %v542 = vpack.c.bf16 %v515, %v514
      %v543 = vpack.c.bf16 %v517, %v516
      %v544 = vpack.c.bf16 %v519, %v518
      %v545 = vpack.c.bf16 %v521, %v520
      %v546 = vpack.c.bf16 %v523, %v522
      %v547 = vpack.c.bf16 %v525, %v524
      %v548 = vpack.c.bf16 %v527, %v526
      %v549 = vpack.c.bf16 %v529, %v528
      %v550 = vpack.c.bf16 %v531, %v530
      %v551 = vpack.c.bf16 %v533, %v532
      %v552 = vld [vmem:[%s3] sm:$0xf]
      %v553 = vld [vmem:[%s3 + $0x4] sm:$0xf]
      %v554 = vld [vmem:[%s3 + $0x8] sm:$0xf]
      %v555 = vld [vmem:[%s3 + $0xc] sm:$0xf]
      %v556 = vld [vmem:[%s3 + $0x10] sm:$0xf]
      %v557 = vld [vmem:[%s3 + $0x14] sm:$0xf]
      %v558 = vld [vmem:[%s3 + $0x18] sm:$0xf]
      %v559 = vld [vmem:[%s3 + $0x1c] sm:$0xf]
      %v560 = vld [vmem:[%s3 + $0x20] sm:$0xf]
      %v561 = vld [vmem:[%s3 + $0x24] sm:$0xf]
      %v562 = vld [vmem:[%s3 + $0x28] sm:$0xf]
      %v563 = vld [vmem:[%s3 + $0x2c] sm:$0xf]
      %v564 = vld [vmem:[%s3 + $0x30] sm:$0xf]
      %v565 = vld [vmem:[%s3 + $0x34] sm:$0xf]
      %v566 = vld [vmem:[%s3 + $0x38] sm:$0xf]
      %v567 = vld [vmem:[%s3 + $0x3c] sm:$0xf]
      %s568 = scalar_lea.vmem %s3, 192
      %v569 = vld [vmem:[%s568] sm:$0xf]
      %v570 = vld [vmem:[%s568 + $0x4] sm:$0xf]
      %v571 = vld [vmem:[%s568 + $0x8] sm:$0xf]
      %v572 = vld [vmem:[%s568 + $0xc] sm:$0xf]
      %v573 = vld [vmem:[%s568 + $0x10] sm:$0xf]
      %v574 = vld [vmem:[%s568 + $0x14] sm:$0xf]
      %v575 = vld [vmem:[%s568 + $0x18] sm:$0xf]
      %v576 = vld [vmem:[%s568 + $0x1c] sm:$0xf]
      %v577 = vld [vmem:[%s568 + $0x20] sm:$0xf]
      %v578 = vld [vmem:[%s568 + $0x24] sm:$0xf]
      %v579 = vld [vmem:[%s568 + $0x28] sm:$0xf]
      %v580 = vld [vmem:[%s568 + $0x2c] sm:$0xf]
      %v581 = vld [vmem:[%s568 + $0x30] sm:$0xf]
      %v582 = vld [vmem:[%s568 + $0x34] sm:$0xf]
      %v583 = vld [vmem:[%s568 + $0x38] sm:$0xf]
      %v584 = vld [vmem:[%s568 + $0x3c] sm:$0xf]
      %v601 = vunpack.c.l.b16 %v569
      %v602 = vunpack.c.l.b16 %v570
      %v603 = vunpack.c.l.b16 %v571
      %v604 = vunpack.c.l.b16 %v572
      %v605 = vunpack.c.l.b16 %v573
      %v606 = vunpack.c.l.b16 %v574
      %v607 = vunpack.c.l.b16 %v575
      %v608 = vunpack.c.l.b16 %v576
      %v609 = vunpack.c.l.b16 %v577
      %v610 = vunpack.c.l.b16 %v578
      %v611 = vunpack.c.l.b16 %v579
      %v612 = vunpack.c.l.b16 %v580
      %v613 = vunpack.c.l.b16 %v581
      %v614 = vunpack.c.l.b16 %v582
      %v615 = vunpack.c.l.b16 %v583
      %v616 = vunpack.c.l.b16 %v584
      %v617 = vpack.c.b16 %v602, %v601
      %v618 = vpack.c.b16 %v604, %v603
      %v619 = vpack.c.b16 %v606, %v605
      %v620 = vpack.c.b16 %v608, %v607
      %v621 = vpack.c.b16 %v610, %v609
      %v622 = vpack.c.b16 %v612, %v611
      %v623 = vpack.c.b16 %v614, %v613
      %v624 = vpack.c.b16 %v616, %v615
      %633 = vmatprep.subr.bf16.mxu0 0
      %634 = vmatpush1.bf16.msra.mxu0 %v624
      %635 = vmatprep.subr.bf16.mxu0 0
      %636 = vmatpush1.bf16.msra.mxu0 %v623
      %637 = vmatprep.subr.bf16.mxu0 0
      %638 = vmatpush1.bf16.msra.mxu0 %v622
      %639 = vmatprep.subr.bf16.mxu0 0
      %640 = vmatpush1.bf16.msra.mxu0 %v621
      %641 = vmatprep.subr.bf16.mxu0 0
      %642 = vmatpush1.bf16.msra.mxu0 %v620
      %643 = vmatprep.subr.bf16.mxu0 0
      %644 = vmatpush1.bf16.msra.mxu0 %v619
      %645 = vmatprep.subr.bf16.mxu0 0
      %646 = vmatpush1.bf16.msra.mxu0 %v618
      %647 = vmatprep.subr.bf16.mxu0 0
      %648 = vmatpush1.bf16.msra.mxu0 %v617
      %649 = vmatprep.subr.bf16.mxu0 0
      %650 = vmatpush2.bf16.msra.mxu0 0
      %651 = vmatprep.subr.bf16.mxu0 0
      %652 = vmatpush2.bf16.msra.mxu0 0
      %653 = vmatprep.subr.bf16.mxu0 0
      %654 = vmatpush2.bf16.msra.mxu0 0
      %655 = vmatprep.subr.bf16.mxu0 0
      %656 = vmatpush2.bf16.msra.mxu0 0
      %657 = vmatprep.subr.bf16.mxu0 0
      %658 = vmatpush2.bf16.msra.mxu0 0
      %659 = vmatprep.subr.bf16.mxu0 0
      %660 = vmatpush2.bf16.msra.mxu0 0
      %661 = vmatprep.subr.bf16.mxu0 0
      %662 = vmatpush2.bf16.msra.mxu0 0
      %663 = vmatprep.subr.bf16.mxu0 0
      %664 = vmatpush2.bf16.msra.mxu0 0
      %665 = vmatprep.mubr.bf16.mxu0 0
      %666 = vmatmul.mubr.bf16.gmra.mxu0 %v535
      %v667 = vpop.f32.mrf.mxu0
      %v668 = vadd.f32 0.0, %v667
      %v669 = vpop.f32.mrf.mxu0
      %v670 = vpop.f32.mrf.mxu0
      %v671 = vadd.f32 0.0, %v670
      %v672 = vpop.f32.mrf.mxu0
      %673 = vmatprep.mubr.bf16.mxu0 0
      %674 = vmatmul.mubr.bf16.gmra.mxu0 %v536
      %v675 = vpop.f32.mrf.mxu0
      %v676 = vadd.f32 0.0, %v675
      %v677 = vpop.f32.mrf.mxu0
      %v678 = vpop.f32.mrf.mxu0
      %v679 = vadd.f32 0.0, %v678
      %v680 = vpop.f32.mrf.mxu0
      %681 = vmatprep.mubr.bf16.mxu0 0
      %682 = vmatmul.mubr.bf16.gmra.mxu0 %v537
      %v683 = vpop.f32.mrf.mxu0
      %v684 = vadd.f32 0.0, %v683
      %v685 = vpop.f32.mrf.mxu0
      %v686 = vpop.f32.mrf.mxu0
      %v687 = vadd.f32 0.0, %v686
      %v688 = vpop.f32.mrf.mxu0
      %689 = vmatprep.mubr.bf16.mxu0 0
      %690 = vmatmul.mubr.bf16.gmra.mxu0 %v538
      %v691 = vpop.f32.mrf.mxu0
      %v692 = vadd.f32 0.0, %v691
      %v693 = vpop.f32.mrf.mxu0
      %v694 = vpop.f32.mrf.mxu0
      %v695 = vadd.f32 0.0, %v694
      %v696 = vpop.f32.mrf.mxu0
      %697 = vmatprep.mubr.bf16.mxu0 0
      %698 = vmatmul.mubr.bf16.gmra.mxu0 %v539
      %v699 = vpop.f32.mrf.mxu0
      %v700 = vadd.f32 0.0, %v699
      %v701 = vpop.f32.mrf.mxu0
      %v702 = vpop.f32.mrf.mxu0
      %v703 = vadd.f32 0.0, %v702
      %v704 = vpop.f32.mrf.mxu0
      %705 = vmatprep.mubr.bf16.mxu0 0
      %706 = vmatmul.mubr.bf16.gmra.mxu0 %v540
      %v707 = vpop.f32.mrf.mxu0
      %v708 = vadd.f32 0.0, %v707
      %v709 = vpop.f32.mrf.mxu0
      %v710 = vpop.f32.mrf.mxu0
      %v711 = vadd.f32 0.0, %v710
      %v712 = vpop.f32.mrf.mxu0
      %713 = vmatprep.mubr.bf16.mxu0 0
      %714 = vmatmul.mubr.bf16.gmra.mxu0 %v541
      %v715 = vpop.f32.mrf.mxu0
      %v716 = vadd.f32 0.0, %v715
      %v717 = vpop.f32.mrf.mxu0
      %v718 = vpop.f32.mrf.mxu0
      %v719 = vadd.f32 0.0, %v718
      %v720 = vpop.f32.mrf.mxu0
      %721 = vmatprep.mubr.bf16.mxu0 0
      %722 = vmatmul.mubr.bf16.gmra.mxu0 %v542
      %v723 = vpop.f32.mrf.mxu0
      %v724 = vadd.f32 0.0, %v723
      %v725 = vpop.f32.mrf.mxu0
      %v726 = vpop.f32.mrf.mxu0
      %v727 = vadd.f32 0.0, %v726
      %v728 = vpop.f32.mrf.mxu0
      %729 = vmatprep.mubr.bf16.mxu0 0
      %730 = vmatmul.mubr.bf16.gmra.mxu0 %v543
      %v731 = vpop.f32.mrf.mxu0
      %v732 = vadd.f32 0.0, %v731
      %v733 = vpop.f32.mrf.mxu0
      %v734 = vpop.f32.mrf.mxu0
      %v735 = vadd.f32 0.0, %v734
      %v736 = vpop.f32.mrf.mxu0
      %737 = vmatprep.mubr.bf16.mxu0 0
      %738 = vmatmul.mubr.bf16.gmra.mxu0 %v544
      %v739 = vpop.f32.mrf.mxu0
      %v740 = vadd.f32 0.0, %v739
      %v741 = vpop.f32.mrf.mxu0
      %v742 = vpop.f32.mrf.mxu0
      %v743 = vadd.f32 0.0, %v742
      %v744 = vpop.f32.mrf.mxu0
      %745 = vmatprep.mubr.bf16.mxu0 0
      %746 = vmatmul.mubr.bf16.gmra.mxu0 %v545
      %v747 = vpop.f32.mrf.mxu0
      %v748 = vadd.f32 0.0, %v747
      %v749 = vpop.f32.mrf.mxu0
      %v750 = vpop.f32.mrf.mxu0
      %v751 = vadd.f32 0.0, %v750
      %v752 = vpop.f32.mrf.mxu0
      %753 = vmatprep.mubr.bf16.mxu0 0
      %754 = vmatmul.mubr.bf16.gmra.mxu0 %v546
      %v755 = vpop.f32.mrf.mxu0
      %v756 = vadd.f32 0.0, %v755
      %v757 = vpop.f32.mrf.mxu0
      %v758 = vpop.f32.mrf.mxu0
      %v759 = vadd.f32 0.0, %v758
      %v760 = vpop.f32.mrf.mxu0
      %761 = vmatprep.mubr.bf16.mxu0 0
      %762 = vmatmul.mubr.bf16.gmra.mxu0 %v547
      %v763 = vpop.f32.mrf.mxu0
      %v764 = vadd.f32 0.0, %v763
      %v765 = vpop.f32.mrf.mxu0
      %v766 = vpop.f32.mrf.mxu0
      %v767 = vadd.f32 0.0, %v766
      %v768 = vpop.f32.mrf.mxu0
      %769 = vmatprep.mubr.bf16.mxu0 0
      %770 = vmatmul.mubr.bf16.gmra.mxu0 %v548
      %v771 = vpop.f32.mrf.mxu0
      %v772 = vadd.f32 0.0, %v771
      %v773 = vpop.f32.mrf.mxu0
      %v774 = vpop.f32.mrf.mxu0
      %v775 = vadd.f32 0.0, %v774
      %v776 = vpop.f32.mrf.mxu0
      %777 = vmatprep.mubr.bf16.mxu0 0
      %778 = vmatmul.mubr.bf16.gmra.mxu0 %v549
      %v779 = vpop.f32.mrf.mxu0
      %v780 = vadd.f32 0.0, %v779
      %v781 = vpop.f32.mrf.mxu0
      %v782 = vpop.f32.mrf.mxu0
      %v783 = vadd.f32 0.0, %v782
      %v784 = vpop.f32.mrf.mxu0
      %785 = vmatprep.mubr.bf16.mxu0 0
      %786 = vmatmul.mubr.bf16.gmra.mxu0 %v550
      %v787 = vpop.f32.mrf.mxu0
      %v788 = vadd.f32 0.0, %v787
      %v789 = vpop.f32.mrf.mxu0
      %v790 = vpop.f32.mrf.mxu0
      %v791 = vadd.f32 0.0, %v790
      %v792 = vpop.f32.mrf.mxu0
      %793 = vdwg.mxu0
      %v810 = vunpack.c.l.b16 %v552
      %v811 = vunpack.c.l.b16 %v553
      %v812 = vunpack.c.l.b16 %v554
      %v813 = vunpack.c.l.b16 %v555
      %v814 = vunpack.c.l.b16 %v556
      %v815 = vunpack.c.l.b16 %v557
      %v816 = vunpack.c.l.b16 %v558
      %v817 = vunpack.c.l.b16 %v559
      %v818 = vunpack.c.l.b16 %v560
      %v819 = vunpack.c.l.b16 %v561
      %v820 = vunpack.c.l.b16 %v562
      %v821 = vunpack.c.l.b16 %v563
      %v822 = vunpack.c.l.b16 %v564
      %v823 = vunpack.c.l.b16 %v565
      %v824 = vunpack.c.l.b16 %v566
      %v825 = vunpack.c.l.b16 %v567
      %v826 = vpack.c.b16 %v811, %v810
      %v827 = vpack.c.b16 %v813, %v812
      %v828 = vpack.c.b16 %v815, %v814
      %v829 = vpack.c.b16 %v817, %v816
      %v830 = vpack.c.b16 %v819, %v818
      %v831 = vpack.c.b16 %v821, %v820
      %v832 = vpack.c.b16 %v823, %v822
      %v833 = vpack.c.b16 %v825, %v824
      %842 = vmatprep.subr.bf16.mxu0 0
      %843 = vmatpush1.bf16.msra.mxu0 %v833
      %844 = vmatprep.subr.bf16.mxu0 0
      %845 = vmatpush1.bf16.msra.mxu0 %v832
      %846 = vmatprep.subr.bf16.mxu0 0
      %847 = vmatpush1.bf16.msra.mxu0 %v831
      %848 = vmatprep.subr.bf16.mxu0 0
      %849 = vmatpush1.bf16.msra.mxu0 %v830
      %850 = vmatprep.subr.bf16.mxu0 0
      %851 = vmatpush1.bf16.msra.mxu0 %v829
      %852 = vmatprep.subr.bf16.mxu0 0
      %853 = vmatpush1.bf16.msra.mxu0 %v828
      %854 = vmatprep.subr.bf16.mxu0 0
      %855 = vmatpush1.bf16.msra.mxu0 %v827
      %856 = vmatprep.subr.bf16.mxu0 0
      %857 = vmatpush1.bf16.msra.mxu0 %v826
      %858 = vmatprep.subr.bf16.mxu0 0
      %859 = vmatpush2.bf16.msra.mxu0 0
      %860 = vmatprep.subr.bf16.mxu0 0
      %861 = vmatpush2.bf16.msra.mxu0 0
      %862 = vmatprep.subr.bf16.mxu0 0
      %863 = vmatpush2.bf16.msra.mxu0 0
      %864 = vmatprep.subr.bf16.mxu0 0
      %865 = vmatpush2.bf16.msra.mxu0 0
      %866 = vmatprep.subr.bf16.mxu0 0
      %867 = vmatpush2.bf16.msra.mxu0 0
      %868 = vmatprep.subr.bf16.mxu0 0
      %869 = vmatpush2.bf16.msra.mxu0 0
      %870 = vmatprep.subr.bf16.mxu0 0
      %871 = vmatpush2.bf16.msra.mxu0 0
      %872 = vmatprep.subr.bf16.mxu0 0
      %873 = vmatpush2.bf16.msra.mxu0 0
      %874 = vmatprep.mubr.bf16.mxu0 0
      %875 = vmatmul.mubr.bf16.gmra.mxu0 %v534
      %v876 = vpop.f32.mrf.mxu0
      %v877 = vadd.f32 %v668, %v876
      %v878 = vpop.f32.mrf.mxu0
      %v879 = vpop.f32.mrf.mxu0
      %v880 = vadd.f32 %v671, %v879
      %v881 = vpop.f32.mrf.mxu0
      %882 = vmatprep.mubr.bf16.mxu0 0
      %883 = vmatmul.mubr.bf16.gmra.mxu0 %v535
      %v884 = vpop.f32.mrf.mxu0
      %v885 = vadd.f32 %v676, %v884
      %v886 = vpop.f32.mrf.mxu0
      %v887 = vpop.f32.mrf.mxu0
      %v888 = vadd.f32 %v679, %v887
      %v889 = vpop.f32.mrf.mxu0
      %890 = vmatprep.mubr.bf16.mxu0 0
      %891 = vmatmul.mubr.bf16.gmra.mxu0 %v536
      %v892 = vpop.f32.mrf.mxu0
      %v893 = vadd.f32 %v684, %v892
      %v894 = vpop.f32.mrf.mxu0
      %v895 = vpop.f32.mrf.mxu0
      %v896 = vadd.f32 %v687, %v895
      %v897 = vpop.f32.mrf.mxu0
      %898 = vmatprep.mubr.bf16.mxu0 0
      %899 = vmatmul.mubr.bf16.gmra.mxu0 %v537
      %v900 = vpop.f32.mrf.mxu0
      %v901 = vadd.f32 %v692, %v900
      %v902 = vpop.f32.mrf.mxu0
      %v903 = vpop.f32.mrf.mxu0
      %v904 = vadd.f32 %v695, %v903
      %v905 = vpop.f32.mrf.mxu0
      %906 = vmatprep.mubr.bf16.mxu0 0
      %907 = vmatmul.mubr.bf16.gmra.mxu0 %v538
      %v908 = vpop.f32.mrf.mxu0
      %v909 = vadd.f32 %v700, %v908
      %v910 = vpop.f32.mrf.mxu0
      %v911 = vpop.f32.mrf.mxu0
      %v912 = vadd.f32 %v703, %v911
      %v913 = vpop.f32.mrf.mxu0
      %914 = vmatprep.mubr.bf16.mxu0 0
      %915 = vmatmul.mubr.bf16.gmra.mxu0 %v539
      %v916 = vpop.f32.mrf.mxu0
      %v917 = vadd.f32 %v708, %v916
      %v918 = vpop.f32.mrf.mxu0
      %v919 = vpop.f32.mrf.mxu0
      %v920 = vadd.f32 %v711, %v919
      %v921 = vpop.f32.mrf.mxu0
      %922 = vmatprep.mubr.bf16.mxu0 0
      %923 = vmatmul.mubr.bf16.gmra.mxu0 %v540
      %v924 = vpop.f32.mrf.mxu0
      %v925 = vadd.f32 %v716, %v924
      %v926 = vpop.f32.mrf.mxu0
      %v927 = vpop.f32.mrf.mxu0
      %v928 = vadd.f32 %v719, %v927
      %v929 = vpop.f32.mrf.mxu0
      %930 = vmatprep.mubr.bf16.mxu0 0
      %931 = vmatmul.mubr.bf16.gmra.mxu0 %v541
      %v932 = vpop.f32.mrf.mxu0
      %v933 = vadd.f32 %v724, %v932
      %v934 = vpop.f32.mrf.mxu0
      %v935 = vpop.f32.mrf.mxu0
      %v936 = vadd.f32 %v727, %v935
      %v937 = vpop.f32.mrf.mxu0
      %938 = vmatprep.mubr.bf16.mxu0 0
      %939 = vmatmul.mubr.bf16.gmra.mxu0 %v542
      %v940 = vpop.f32.mrf.mxu0
      %v941 = vadd.f32 %v732, %v940
      %v942 = vpop.f32.mrf.mxu0
      %v943 = vpop.f32.mrf.mxu0
      %v944 = vadd.f32 %v735, %v943
      %v945 = vpop.f32.mrf.mxu0
      %946 = vmatprep.mubr.bf16.mxu0 0
      %947 = vmatmul.mubr.bf16.gmra.mxu0 %v543
      %v948 = vpop.f32.mrf.mxu0
      %v949 = vadd.f32 %v740, %v948
      %v950 = vpop.f32.mrf.mxu0
      %v951 = vpop.f32.mrf.mxu0
      %v952 = vadd.f32 %v743, %v951
      %v953 = vpop.f32.mrf.mxu0
      %954 = vmatprep.mubr.bf16.mxu0 0
      %955 = vmatmul.mubr.bf16.gmra.mxu0 %v544
      %v956 = vpop.f32.mrf.mxu0
      %v957 = vadd.f32 %v748, %v956
      %v958 = vpop.f32.mrf.mxu0
      %v959 = vpop.f32.mrf.mxu0
      %v960 = vadd.f32 %v751, %v959
      %v961 = vpop.f32.mrf.mxu0
      %962 = vmatprep.mubr.bf16.mxu0 0
      %963 = vmatmul.mubr.bf16.gmra.mxu0 %v545
      %v964 = vpop.f32.mrf.mxu0
      %v965 = vadd.f32 %v756, %v964
      %v966 = vpop.f32.mrf.mxu0
      %v967 = vpop.f32.mrf.mxu0
      %v968 = vadd.f32 %v759, %v967
      %v969 = vpop.f32.mrf.mxu0
      %970 = vmatprep.mubr.bf16.mxu0 0
      %971 = vmatmul.mubr.bf16.gmra.mxu0 %v546
      %v972 = vpop.f32.mrf.mxu0
      %v973 = vadd.f32 %v764, %v972
      %v974 = vpop.f32.mrf.mxu0
      %v975 = vpop.f32.mrf.mxu0
      %v976 = vadd.f32 %v767, %v975
      %v977 = vpop.f32.mrf.mxu0
      %978 = vmatprep.mubr.bf16.mxu0 0
      %979 = vmatmul.mubr.bf16.gmra.mxu0 %v547
      %v980 = vpop.f32.mrf.mxu0
      %v981 = vadd.f32 %v772, %v980
      %v982 = vpop.f32.mrf.mxu0
      %v983 = vpop.f32.mrf.mxu0
      %v984 = vadd.f32 %v775, %v983
      %v985 = vpop.f32.mrf.mxu0
      %986 = vmatprep.mubr.bf16.mxu0 0
      %987 = vmatmul.mubr.bf16.gmra.mxu0 %v548
      %v988 = vpop.f32.mrf.mxu0
      %v989 = vadd.f32 %v780, %v988
      %v990 = vpop.f32.mrf.mxu0
      %v991 = vpop.f32.mrf.mxu0
      %v992 = vadd.f32 %v783, %v991
      %v993 = vpop.f32.mrf.mxu0
      %994 = vmatprep.mubr.bf16.mxu0 0
      %995 = vmatmul.mubr.bf16.gmra.mxu0 %v549
      %v996 = vpop.f32.mrf.mxu0
      %v997 = vadd.f32 %v788, %v996
      %v998 = vpop.f32.mrf.mxu0
      %v999 = vpop.f32.mrf.mxu0
      %v1000 = vadd.f32 %v791, %v999
      %v1001 = vpop.f32.mrf.mxu0
      %1002 = vdwg.mxu0
      %s1003 = scalar_lea.vmem %s3, 384
      %v1004 = vld [vmem:[%s1003] sm:$0xf]
      %v1005 = vld [vmem:[%s1003 + $0x4] sm:$0xf]
      %v1006 = vld [vmem:[%s1003 + $0x8] sm:$0xf]
      %v1007 = vld [vmem:[%s1003 + $0xc] sm:$0xf]
      %v1008 = vld [vmem:[%s1003 + $0x10] sm:$0xf]
      %v1009 = vld [vmem:[%s1003 + $0x14] sm:$0xf]
      %v1010 = vld [vmem:[%s1003 + $0x18] sm:$0xf]
      %v1011 = vld [vmem:[%s1003 + $0x1c] sm:$0xf]
      %v1012 = vld [vmem:[%s1003 + $0x20] sm:$0xf]
      %v1013 = vld [vmem:[%s1003 + $0x24] sm:$0xf]
      %v1014 = vld [vmem:[%s1003 + $0x28] sm:$0xf]
      %v1015 = vld [vmem:[%s1003 + $0x2c] sm:$0xf]
      %v1016 = vld [vmem:[%s1003 + $0x30] sm:$0xf]
      %v1017 = vld [vmem:[%s1003 + $0x34] sm:$0xf]
      %v1018 = vld [vmem:[%s1003 + $0x38] sm:$0xf]
      %v1019 = vld [vmem:[%s1003 + $0x3c] sm:$0xf]
      %v1036 = vunpack.c.l.b16 %v1004
      %v1037 = vunpack.c.l.b16 %v1005
      %v1038 = vunpack.c.l.b16 %v1006
      %v1039 = vunpack.c.l.b16 %v1007
      %v1040 = vunpack.c.l.b16 %v1008
      %v1041 = vunpack.c.l.b16 %v1009
      %v1042 = vunpack.c.l.b16 %v1010
      %v1043 = vunpack.c.l.b16 %v1011
      %v1044 = vunpack.c.l.b16 %v1012
      %v1045 = vunpack.c.l.b16 %v1013
      %v1046 = vunpack.c.l.b16 %v1014
      %v1047 = vunpack.c.l.b16 %v1015
      %v1048 = vunpack.c.l.b16 %v1016
      %v1049 = vunpack.c.l.b16 %v1017
      %v1050 = vunpack.c.l.b16 %v1018
      %v1051 = vunpack.c.l.b16 %v1019
      %v1052 = vpack.c.b16 %v1037, %v1036
      %v1053 = vpack.c.b16 %v1039, %v1038
      %v1054 = vpack.c.b16 %v1041, %v1040
      %v1055 = vpack.c.b16 %v1043, %v1042
      %v1056 = vpack.c.b16 %v1045, %v1044
      %v1057 = vpack.c.b16 %v1047, %v1046
      %v1058 = vpack.c.b16 %v1049, %v1048
      %v1059 = vpack.c.b16 %v1051, %v1050
      %1068 = vmatprep.subr.bf16.mxu0 0
      %1069 = vmatpush1.bf16.msra.mxu0 %v1059
      %1070 = vmatprep.subr.bf16.mxu0 0
      %1071 = vmatpush1.bf16.msra.mxu0 %v1058
      %1072 = vmatprep.subr.bf16.mxu0 0
      %1073 = vmatpush1.bf16.msra.mxu0 %v1057
      %1074 = vmatprep.subr.bf16.mxu0 0
      %1075 = vmatpush1.bf16.msra.mxu0 %v1056
      %1076 = vmatprep.subr.bf16.mxu0 0
      %1077 = vmatpush1.bf16.msra.mxu0 %v1055
      %1078 = vmatprep.subr.bf16.mxu0 0
      %1079 = vmatpush1.bf16.msra.mxu0 %v1054
      %1080 = vmatprep.subr.bf16.mxu0 0
      %1081 = vmatpush1.bf16.msra.mxu0 %v1053
      %1082 = vmatprep.subr.bf16.mxu0 0
      %1083 = vmatpush1.bf16.msra.mxu0 %v1052
      %1084 = vmatprep.subr.bf16.mxu0 0
      %1085 = vmatpush2.bf16.msra.mxu0 0
      %1086 = vmatprep.subr.bf16.mxu0 0
      %1087 = vmatpush2.bf16.msra.mxu0 0
      %1088 = vmatprep.subr.bf16.mxu0 0
      %1089 = vmatpush2.bf16.msra.mxu0 0
      %1090 = vmatprep.subr.bf16.mxu0 0
      %1091 = vmatpush2.bf16.msra.mxu0 0
      %1092 = vmatprep.subr.bf16.mxu0 0
      %1093 = vmatpush2.bf16.msra.mxu0 0
      %1094 = vmatprep.subr.bf16.mxu0 0
      %1095 = vmatpush2.bf16.msra.mxu0 0
      %1096 = vmatprep.subr.bf16.mxu0 0
      %1097 = vmatpush2.bf16.msra.mxu0 0
      %1098 = vmatprep.subr.bf16.mxu0 0
      %1099 = vmatpush2.bf16.msra.mxu0 0
      %1100 = vmatprep.mubr.bf16.mxu0 0
      %1101 = vmatmul.mubr.bf16.gmra.mxu0 %v536
      %v1102 = vpop.f32.mrf.mxu0
      %v1103 = vadd.f32 0.0, %v1102
      %v1104 = vpop.f32.mrf.mxu0
      %v1105 = vpop.f32.mrf.mxu0
      %v1106 = vadd.f32 0.0, %v1105
      %v1107 = vpop.f32.mrf.mxu0
      %1108 = vmatprep.mubr.bf16.mxu0 0
      %1109 = vmatmul.mubr.bf16.gmra.mxu0 %v537
      %v1110 = vpop.f32.mrf.mxu0
      %v1111 = vadd.f32 0.0, %v1110
      %v1112 = vpop.f32.mrf.mxu0
      %v1113 = vpop.f32.mrf.mxu0
      %v1114 = vadd.f32 0.0, %v1113
      %v1115 = vpop.f32.mrf.mxu0
      %1116 = vmatprep.mubr.bf16.mxu0 0
      %1117 = vmatmul.mubr.bf16.gmra.mxu0 %v538
      %v1118 = vpop.f32.mrf.mxu0
      %v1119 = vadd.f32 0.0, %v1118
      %v1120 = vpop.f32.mrf.mxu0
      %v1121 = vpop.f32.mrf.mxu0
      %v1122 = vadd.f32 0.0, %v1121
      %v1123 = vpop.f32.mrf.mxu0
      %1124 = vmatprep.mubr.bf16.mxu0 0
      %1125 = vmatmul.mubr.bf16.gmra.mxu0 %v539
      %v1126 = vpop.f32.mrf.mxu0
      %v1127 = vadd.f32 0.0, %v1126
      %v1128 = vpop.f32.mrf.mxu0
      %v1129 = vpop.f32.mrf.mxu0
      %v1130 = vadd.f32 0.0, %v1129
      %v1131 = vpop.f32.mrf.mxu0
      %1132 = vmatprep.mubr.bf16.mxu0 0
      %1133 = vmatmul.mubr.bf16.gmra.mxu0 %v540
      %v1134 = vpop.f32.mrf.mxu0
      %v1135 = vadd.f32 0.0, %v1134
      %v1136 = vpop.f32.mrf.mxu0
      %v1137 = vpop.f32.mrf.mxu0
      %v1138 = vadd.f32 0.0, %v1137
      %v1139 = vpop.f32.mrf.mxu0
      %1140 = vmatprep.mubr.bf16.mxu0 0
      %1141 = vmatmul.mubr.bf16.gmra.mxu0 %v541
      %v1142 = vpop.f32.mrf.mxu0
      %v1143 = vadd.f32 0.0, %v1142
      %v1144 = vpop.f32.mrf.mxu0
      %v1145 = vpop.f32.mrf.mxu0
      %v1146 = vadd.f32 0.0, %v1145
      %v1147 = vpop.f32.mrf.mxu0
      %1148 = vmatprep.mubr.bf16.mxu0 0
      %1149 = vmatmul.mubr.bf16.gmra.mxu0 %v542
      %v1150 = vpop.f32.mrf.mxu0
      %v1151 = vadd.f32 0.0, %v1150
      %v1152 = vpop.f32.mrf.mxu0
      %v1153 = vpop.f32.mrf.mxu0
      %v1154 = vadd.f32 0.0, %v1153
      %v1155 = vpop.f32.mrf.mxu0
      %1156 = vmatprep.mubr.bf16.mxu0 0
      %1157 = vmatmul.mubr.bf16.gmra.mxu0 %v543
      %v1158 = vpop.f32.mrf.mxu0
      %v1159 = vadd.f32 0.0, %v1158
      %v1160 = vpop.f32.mrf.mxu0
      %v1161 = vpop.f32.mrf.mxu0
      %v1162 = vadd.f32 0.0, %v1161
      %v1163 = vpop.f32.mrf.mxu0
      %1164 = vmatprep.mubr.bf16.mxu0 0
      %1165 = vmatmul.mubr.bf16.gmra.mxu0 %v544
      %v1166 = vpop.f32.mrf.mxu0
      %v1167 = vadd.f32 0.0, %v1166
      %v1168 = vpop.f32.mrf.mxu0
      %v1169 = vpop.f32.mrf.mxu0
      %v1170 = vadd.f32 0.0, %v1169
      %v1171 = vpop.f32.mrf.mxu0
      %1172 = vmatprep.mubr.bf16.mxu0 0
      %1173 = vmatmul.mubr.bf16.gmra.mxu0 %v545
      %v1174 = vpop.f32.mrf.mxu0
      %v1175 = vadd.f32 0.0, %v1174
      %v1176 = vpop.f32.mrf.mxu0
      %v1177 = vpop.f32.mrf.mxu0
      %v1178 = vadd.f32 0.0, %v1177
      %v1179 = vpop.f32.mrf.mxu0
      %1180 = vmatprep.mubr.bf16.mxu0 0
      %1181 = vmatmul.mubr.bf16.gmra.mxu0 %v546
      %v1182 = vpop.f32.mrf.mxu0
      %v1183 = vadd.f32 0.0, %v1182
      %v1184 = vpop.f32.mrf.mxu0
      %v1185 = vpop.f32.mrf.mxu0
      %v1186 = vadd.f32 0.0, %v1185
      %v1187 = vpop.f32.mrf.mxu0
      %1188 = vmatprep.mubr.bf16.mxu0 0
      %1189 = vmatmul.mubr.bf16.gmra.mxu0 %v547
      %v1190 = vpop.f32.mrf.mxu0
      %v1191 = vadd.f32 0.0, %v1190
      %v1192 = vpop.f32.mrf.mxu0
      %v1193 = vpop.f32.mrf.mxu0
      %v1194 = vadd.f32 0.0, %v1193
      %v1195 = vpop.f32.mrf.mxu0
      %1196 = vmatprep.mubr.bf16.mxu0 0
      %1197 = vmatmul.mubr.bf16.gmra.mxu0 %v548
      %v1198 = vpop.f32.mrf.mxu0
      %v1199 = vadd.f32 0.0, %v1198
      %v1200 = vpop.f32.mrf.mxu0
      %v1201 = vpop.f32.mrf.mxu0
      %v1202 = vadd.f32 0.0, %v1201
      %v1203 = vpop.f32.mrf.mxu0
      %1204 = vmatprep.mubr.bf16.mxu0 0
      %1205 = vmatmul.mubr.bf16.gmra.mxu0 %v549
      %v1206 = vpop.f32.mrf.mxu0
      %v1207 = vadd.f32 0.0, %v1206
      %v1208 = vpop.f32.mrf.mxu0
      %v1209 = vpop.f32.mrf.mxu0
      %v1210 = vadd.f32 0.0, %v1209
      %v1211 = vpop.f32.mrf.mxu0
      %1212 = vmatprep.mubr.bf16.mxu0 0
      %1213 = vmatmul.mubr.bf16.gmra.mxu0 %v550
      %v1214 = vpop.f32.mrf.mxu0
      %v1215 = vadd.f32 0.0, %v1214
      %v1216 = vpop.f32.mrf.mxu0
      %v1217 = vpop.f32.mrf.mxu0
      %v1218 = vadd.f32 0.0, %v1217
      %v1219 = vpop.f32.mrf.mxu0
      %1220 = vmatprep.mubr.bf16.mxu0 0
      %1221 = vmatmul.mubr.bf16.gmra.mxu0 %v551
      %v1222 = vpop.f32.mrf.mxu0
      %v1223 = vadd.f32 0.0, %v1222
      %v1224 = vpop.f32.mrf.mxu0
      %v1225 = vpop.f32.mrf.mxu0
      %v1226 = vadd.f32 0.0, %v1225
      %v1227 = vpop.f32.mrf.mxu0
      %1228 = vdwg.mxu0
      %v1229 = vadd.f32 %v877, %v1103
      %v1230 = vadd.f32 %v880, %v1106
      %v1231 = vadd.f32 %v885, %v1111
      %v1232 = vadd.f32 %v888, %v1114
      %v1233 = vadd.f32 %v893, %v1119
      %v1234 = vadd.f32 %v896, %v1122
      %v1235 = vadd.f32 %v901, %v1127
      %v1236 = vadd.f32 %v904, %v1130
      %v1237 = vadd.f32 %v909, %v1135
      %v1238 = vadd.f32 %v912, %v1138
      %v1239 = vadd.f32 %v917, %v1143
      %v1240 = vadd.f32 %v920, %v1146
      %v1241 = vadd.f32 %v925, %v1151
      %v1242 = vadd.f32 %v928, %v1154
      %v1243 = vadd.f32 %v933, %v1159
      %v1244 = vadd.f32 %v936, %v1162
      %v1245 = vadd.f32 %v941, %v1167
      %v1246 = vadd.f32 %v944, %v1170
      %v1247 = vadd.f32 %v949, %v1175
      %v1248 = vadd.f32 %v952, %v1178
      %v1249 = vadd.f32 %v957, %v1183
      %v1250 = vadd.f32 %v960, %v1186
      %v1251 = vadd.f32 %v965, %v1191
      %v1252 = vadd.f32 %v968, %v1194
      %v1253 = vadd.f32 %v973, %v1199
      %v1254 = vadd.f32 %v976, %v1202
      %v1255 = vadd.f32 %v981, %v1207
      %v1256 = vadd.f32 %v984, %v1210
      %v1257 = vadd.f32 %v989, %v1215
      %v1258 = vadd.f32 %v992, %v1218
      %v1259 = vadd.f32 %v997, %v1223
      %v1260 = vadd.f32 %v1000, %v1226
      %v1261 = vld [vmem:[#allocation2 + $0x1] sm:$0xff]
      %v1262 = vld [vmem:[#allocation2 + $0x9] sm:$0xff]
      %v1263 = vld [vmem:[#allocation2 + $0x19] sm:$0xff]
      %v1264 = vld [vmem:[#allocation2 + $0x21] sm:$0xff]
      %v1265 = vld [vmem:[#allocation2 + $0x31] sm:$0xff]
      %v1266 = vld [vmem:[#allocation2 + $0x39] sm:$0xff]
      %v1267 = vld [vmem:[#allocation2 + $0x49] sm:$0xff]
      %v1268 = vld [vmem:[#allocation2 + $0x51] sm:$0xff]
      %v1269 = vld [vmem:[#allocation2 + $0x61] sm:$0xff]
      %v1270 = vld [vmem:[#allocation2 + $0x69] sm:$0xff]
      %v1271 = vld [vmem:[#allocation2 + $0x79] sm:$0xff]
      %v1272 = vld [vmem:[#allocation2 + $0x81] sm:$0xff]
      %v1273 = vld [vmem:[#allocation2 + $0x91] sm:$0xff]
      %v1274 = vld [vmem:[#allocation2 + $0x99] sm:$0xff]
      %v1275 = vld [vmem:[#allocation2 + $0xa9] sm:$0xff]
      %v1276 = vld [vmem:[#allocation2 + $0xb1] sm:$0xff]
      %v1277 = vld [vmem:[#allocation2 + $0xc1] sm:$0xff]
      %v1278 = vld [vmem:[#allocation2 + $0xc9] sm:$0xff]
      %v1279 = vld [vmem:[#allocation2 + $0xd9] sm:$0xff]
      %v1280 = vld [vmem:[#allocation2 + $0xe1] sm:$0xff]
      %v1281 = vld [vmem:[#allocation2 + $0xf1] sm:$0xff]
      %v1282 = vld [vmem:[#allocation2 + $0xf9] sm:$0xff]
      %v1283 = vld [vmem:[#allocation2 + $0x109] sm:$0xff]
      %v1284 = vld [vmem:[#allocation2 + $0x111] sm:$0xff]
      %v1285 = vld [vmem:[#allocation2 + $0x121] sm:$0xff]
      %v1286 = vld [vmem:[#allocation2 + $0x129] sm:$0xff]
      %v1287 = vld [vmem:[#allocation2 + $0x139] sm:$0xff]
      %v1288 = vld [vmem:[#allocation2 + $0x141] sm:$0xff]
      %v1289 = vld [vmem:[#allocation2 + $0x151] sm:$0xff]
      %v1290 = vld [vmem:[#allocation2 + $0x159] sm:$0xff]
      %v1291 = vld [vmem:[#allocation2 + $0x169] sm:$0xff]
      %v1292 = vld [vmem:[#allocation2 + $0x171] sm:$0xff]
      %v1293 = vld [vmem:[#allocation2 + $0x181] sm:$0xff]
      %v1294 = vld [vmem:[#allocation2 + $0x189] sm:$0xff]
      %v1295 = vld [vmem:[#allocation2 + $0x199] sm:$0xff]
      %v1296 = vld [vmem:[#allocation2 + $0x1a1] sm:$0xff]
      %v1297 = vpack.c.bf16 %v1262, %v1261
      %v1298 = vpack.c.bf16 %v1264, %v1263
      %v1299 = vpack.c.bf16 %v1266, %v1265
      %v1300 = vpack.c.bf16 %v1268, %v1267
      %v1301 = vpack.c.bf16 %v1270, %v1269
      %v1302 = vpack.c.bf16 %v1272, %v1271
      %v1303 = vpack.c.bf16 %v1274, %v1273
      %v1304 = vpack.c.bf16 %v1276, %v1275
      %v1305 = vpack.c.bf16 %v1278, %v1277
      %v1306 = vpack.c.bf16 %v1280, %v1279
      %v1307 = vpack.c.bf16 %v1282, %v1281
      %v1308 = vpack.c.bf16 %v1284, %v1283
      %v1309 = vpack.c.bf16 %v1286, %v1285
      %v1310 = vpack.c.bf16 %v1288, %v1287
      %v1311 = vpack.c.bf16 %v1290, %v1289
      %v1312 = vpack.c.bf16 %v1292, %v1291
      %v1313 = vpack.c.bf16 %v1294, %v1293
      %v1314 = vpack.c.bf16 %v1296, %v1295
      %s1315 = scalar_lea.vmem %s3, 64
      %v1316 = vld [vmem:[%s1315] sm:$0xf]
      %v1317 = vld [vmem:[%s1315 + $0x4] sm:$0xf]
      %v1318 = vld [vmem:[%s1315 + $0x8] sm:$0xf]
      %v1319 = vld [vmem:[%s1315 + $0xc] sm:$0xf]
      %v1320 = vld [vmem:[%s1315 + $0x10] sm:$0xf]
      %v1321 = vld [vmem:[%s1315 + $0x14] sm:$0xf]
      %v1322 = vld [vmem:[%s1315 + $0x18] sm:$0xf]
      %v1323 = vld [vmem:[%s1315 + $0x1c] sm:$0xf]
      %v1324 = vld [vmem:[%s1315 + $0x20] sm:$0xf]
      %v1325 = vld [vmem:[%s1315 + $0x24] sm:$0xf]
      %v1326 = vld [vmem:[%s1315 + $0x28] sm:$0xf]
      %v1327 = vld [vmem:[%s1315 + $0x2c] sm:$0xf]
      %v1328 = vld [vmem:[%s1315 + $0x30] sm:$0xf]
      %v1329 = vld [vmem:[%s1315 + $0x34] sm:$0xf]
      %v1330 = vld [vmem:[%s1315 + $0x38] sm:$0xf]
      %v1331 = vld [vmem:[%s1315 + $0x3c] sm:$0xf]
      %v1348 = vunpack.c.l.b16 %v1316
      %v1349 = vunpack.c.l.b16 %v1317
      %v1350 = vunpack.c.l.b16 %v1318
      %v1351 = vunpack.c.l.b16 %v1319
      %v1352 = vunpack.c.l.b16 %v1320
      %v1353 = vunpack.c.l.b16 %v1321
      %v1354 = vunpack.c.l.b16 %v1322
      %v1355 = vunpack.c.l.b16 %v1323
      %v1356 = vunpack.c.l.b16 %v1324
      %v1357 = vunpack.c.l.b16 %v1325
      %v1358 = vunpack.c.l.b16 %v1326
      %v1359 = vunpack.c.l.b16 %v1327
      %v1360 = vunpack.c.l.b16 %v1328
      %v1361 = vunpack.c.l.b16 %v1329
      %v1362 = vunpack.c.l.b16 %v1330
      %v1363 = vunpack.c.l.b16 %v1331
      %v1364 = vpack.c.b16 %v1349, %v1348
      %v1365 = vpack.c.b16 %v1351, %v1350
      %v1366 = vpack.c.b16 %v1353, %v1352
      %v1367 = vpack.c.b16 %v1355, %v1354
      %v1368 = vpack.c.b16 %v1357, %v1356
      %v1369 = vpack.c.b16 %v1359, %v1358
      %v1370 = vpack.c.b16 %v1361, %v1360
      %v1371 = vpack.c.b16 %v1363, %v1362
      %1380 = vmatprep.subr.bf16.mxu0 0
      %1381 = vmatpush1.bf16.msra.mxu0 %v1371
      %1382 = vmatprep.subr.bf16.mxu0 0
      %1383 = vmatpush1.bf16.msra.mxu0 %v1370
      %1384 = vmatprep.subr.bf16.mxu0 0
      %1385 = vmatpush1.bf16.msra.mxu0 %v1369
      %1386 = vmatprep.subr.bf16.mxu0 0
      %1387 = vmatpush1.bf16.msra.mxu0 %v1368
      %1388 = vmatprep.subr.bf16.mxu0 0
      %1389 = vmatpush1.bf16.msra.mxu0 %v1367
      %1390 = vmatprep.subr.bf16.mxu0 0
      %1391 = vmatpush1.bf16.msra.mxu0 %v1366
      %1392 = vmatprep.subr.bf16.mxu0 0
      %1393 = vmatpush1.bf16.msra.mxu0 %v1365
      %1394 = vmatprep.subr.bf16.mxu0 0
      %1395 = vmatpush1.bf16.msra.mxu0 %v1364
      %1396 = vmatprep.subr.bf16.mxu0 0
      %1397 = vmatpush2.bf16.msra.mxu0 0
      %1398 = vmatprep.subr.bf16.mxu0 0
      %1399 = vmatpush2.bf16.msra.mxu0 0
      %1400 = vmatprep.subr.bf16.mxu0 0
      %1401 = vmatpush2.bf16.msra.mxu0 0
      %1402 = vmatprep.subr.bf16.mxu0 0
      %1403 = vmatpush2.bf16.msra.mxu0 0
      %1404 = vmatprep.subr.bf16.mxu0 0
      %1405 = vmatpush2.bf16.msra.mxu0 0
      %1406 = vmatprep.subr.bf16.mxu0 0
      %1407 = vmatpush2.bf16.msra.mxu0 0
      %1408 = vmatprep.subr.bf16.mxu0 0
      %1409 = vmatpush2.bf16.msra.mxu0 0
      %1410 = vmatprep.subr.bf16.mxu0 0
      %1411 = vmatpush2.bf16.msra.mxu0 0
      %1412 = vmatprep.mubr.bf16.mxu0 0
      %1413 = vmatmul.mubr.bf16.gmra.mxu0 %v1297
      %v1414 = vpop.f32.mrf.mxu0
      %v1415 = vadd.f32 0.0, %v1414
      %v1416 = vpop.f32.mrf.mxu0
      %v1417 = vpop.f32.mrf.mxu0
      %v1418 = vadd.f32 0.0, %v1417
      %v1419 = vpop.f32.mrf.mxu0
      %1420 = vmatprep.mubr.bf16.mxu0 0
      %1421 = vmatmul.mubr.bf16.gmra.mxu0 %v1298
      %v1422 = vpop.f32.mrf.mxu0
      %v1423 = vadd.f32 0.0, %v1422
      %v1424 = vpop.f32.mrf.mxu0
      %v1425 = vpop.f32.mrf.mxu0
      %v1426 = vadd.f32 0.0, %v1425
      %v1427 = vpop.f32.mrf.mxu0
      %1428 = vmatprep.mubr.bf16.mxu0 0
      %1429 = vmatmul.mubr.bf16.gmra.mxu0 %v1299
      %v1430 = vpop.f32.mrf.mxu0
      %v1431 = vadd.f32 0.0, %v1430
      %v1432 = vpop.f32.mrf.mxu0
      %v1433 = vpop.f32.mrf.mxu0
      %v1434 = vadd.f32 0.0, %v1433
      %v1435 = vpop.f32.mrf.mxu0
      %1436 = vmatprep.mubr.bf16.mxu0 0
      %1437 = vmatmul.mubr.bf16.gmra.mxu0 %v1300
      %v1438 = vpop.f32.mrf.mxu0
      %v1439 = vadd.f32 0.0, %v1438
      %v1440 = vpop.f32.mrf.mxu0
      %v1441 = vpop.f32.mrf.mxu0
      %v1442 = vadd.f32 0.0, %v1441
      %v1443 = vpop.f32.mrf.mxu0
      %1444 = vmatprep.mubr.bf16.mxu0 0
      %1445 = vmatmul.mubr.bf16.gmra.mxu0 %v1301
      %v1446 = vpop.f32.mrf.mxu0
      %v1447 = vadd.f32 0.0, %v1446
      %v1448 = vpop.f32.mrf.mxu0
      %v1449 = vpop.f32.mrf.mxu0
      %v1450 = vadd.f32 0.0, %v1449
      %v1451 = vpop.f32.mrf.mxu0
      %1452 = vmatprep.mubr.bf16.mxu0 0
      %1453 = vmatmul.mubr.bf16.gmra.mxu0 %v1302
      %v1454 = vpop.f32.mrf.mxu0
      %v1455 = vadd.f32 0.0, %v1454
      %v1456 = vpop.f32.mrf.mxu0
      %v1457 = vpop.f32.mrf.mxu0
      %v1458 = vadd.f32 0.0, %v1457
      %v1459 = vpop.f32.mrf.mxu0
      %1460 = vmatprep.mubr.bf16.mxu0 0
      %1461 = vmatmul.mubr.bf16.gmra.mxu0 %v1303
      %v1462 = vpop.f32.mrf.mxu0
      %v1463 = vadd.f32 0.0, %v1462
      %v1464 = vpop.f32.mrf.mxu0
      %v1465 = vpop.f32.mrf.mxu0
      %v1466 = vadd.f32 0.0, %v1465
      %v1467 = vpop.f32.mrf.mxu0
      %1468 = vmatprep.mubr.bf16.mxu0 0
      %1469 = vmatmul.mubr.bf16.gmra.mxu0 %v1304
      %v1470 = vpop.f32.mrf.mxu0
      %v1471 = vadd.f32 0.0, %v1470
      %v1472 = vpop.f32.mrf.mxu0
      %v1473 = vpop.f32.mrf.mxu0
      %v1474 = vadd.f32 0.0, %v1473
      %v1475 = vpop.f32.mrf.mxu0
      %1476 = vmatprep.mubr.bf16.mxu0 0
      %1477 = vmatmul.mubr.bf16.gmra.mxu0 %v1305
      %v1478 = vpop.f32.mrf.mxu0
      %v1479 = vadd.f32 0.0, %v1478
      %v1480 = vpop.f32.mrf.mxu0
      %v1481 = vpop.f32.mrf.mxu0
      %v1482 = vadd.f32 0.0, %v1481
      %v1483 = vpop.f32.mrf.mxu0
      %1484 = vmatprep.mubr.bf16.mxu0 0
      %1485 = vmatmul.mubr.bf16.gmra.mxu0 %v1306
      %v1486 = vpop.f32.mrf.mxu0
      %v1487 = vadd.f32 0.0, %v1486
      %v1488 = vpop.f32.mrf.mxu0
      %v1489 = vpop.f32.mrf.mxu0
      %v1490 = vadd.f32 0.0, %v1489
      %v1491 = vpop.f32.mrf.mxu0
      %1492 = vmatprep.mubr.bf16.mxu0 0
      %1493 = vmatmul.mubr.bf16.gmra.mxu0 %v1307
      %v1494 = vpop.f32.mrf.mxu0
      %v1495 = vadd.f32 0.0, %v1494
      %v1496 = vpop.f32.mrf.mxu0
      %v1497 = vpop.f32.mrf.mxu0
      %v1498 = vadd.f32 0.0, %v1497
      %v1499 = vpop.f32.mrf.mxu0
      %1500 = vmatprep.mubr.bf16.mxu0 0
      %1501 = vmatmul.mubr.bf16.gmra.mxu0 %v1308
      %v1502 = vpop.f32.mrf.mxu0
      %v1503 = vadd.f32 0.0, %v1502
      %v1504 = vpop.f32.mrf.mxu0
      %v1505 = vpop.f32.mrf.mxu0
      %v1506 = vadd.f32 0.0, %v1505
      %v1507 = vpop.f32.mrf.mxu0
      %1508 = vmatprep.mubr.bf16.mxu0 0
      %1509 = vmatmul.mubr.bf16.gmra.mxu0 %v1309
      %v1510 = vpop.f32.mrf.mxu0
      %v1511 = vadd.f32 0.0, %v1510
      %v1512 = vpop.f32.mrf.mxu0
      %v1513 = vpop.f32.mrf.mxu0
      %v1514 = vadd.f32 0.0, %v1513
      %v1515 = vpop.f32.mrf.mxu0
      %1516 = vmatprep.mubr.bf16.mxu0 0
      %1517 = vmatmul.mubr.bf16.gmra.mxu0 %v1310
      %v1518 = vpop.f32.mrf.mxu0
      %v1519 = vadd.f32 0.0, %v1518
      %v1520 = vpop.f32.mrf.mxu0
      %v1521 = vpop.f32.mrf.mxu0
      %v1522 = vadd.f32 0.0, %v1521
      %v1523 = vpop.f32.mrf.mxu0
      %1524 = vmatprep.mubr.bf16.mxu0 0
      %1525 = vmatmul.mubr.bf16.gmra.mxu0 %v1311
      %v1526 = vpop.f32.mrf.mxu0
      %v1527 = vadd.f32 0.0, %v1526
      %v1528 = vpop.f32.mrf.mxu0
      %v1529 = vpop.f32.mrf.mxu0
      %v1530 = vadd.f32 0.0, %v1529
      %v1531 = vpop.f32.mrf.mxu0
      %1532 = vmatprep.mubr.bf16.mxu0 0
      %1533 = vmatmul.mubr.bf16.gmra.mxu0 %v1312
      %v1534 = vpop.f32.mrf.mxu0
      %v1535 = vadd.f32 0.0, %v1534
      %v1536 = vpop.f32.mrf.mxu0
      %v1537 = vpop.f32.mrf.mxu0
      %v1538 = vadd.f32 0.0, %v1537
      %v1539 = vpop.f32.mrf.mxu0
      %1540 = vdwg.mxu0
      %v1541 = vadd.f32 %v1229, %v1415
      %v1542 = vadd.f32 %v1230, %v1418
      %v1543 = vadd.f32 %v1231, %v1423
      %v1544 = vadd.f32 %v1232, %v1426
      %v1545 = vadd.f32 %v1233, %v1431
      %v1546 = vadd.f32 %v1234, %v1434
      %v1547 = vadd.f32 %v1235, %v1439
      %v1548 = vadd.f32 %v1236, %v1442
      %v1549 = vadd.f32 %v1237, %v1447
      %v1550 = vadd.f32 %v1238, %v1450
      %v1551 = vadd.f32 %v1239, %v1455
      %v1552 = vadd.f32 %v1240, %v1458
      %v1553 = vadd.f32 %v1241, %v1463
      %v1554 = vadd.f32 %v1242, %v1466
      %v1555 = vadd.f32 %v1243, %v1471
      %v1556 = vadd.f32 %v1244, %v1474
      %v1557 = vadd.f32 %v1245, %v1479
      %v1558 = vadd.f32 %v1246, %v1482
      %v1559 = vadd.f32 %v1247, %v1487
      %v1560 = vadd.f32 %v1248, %v1490
      %v1561 = vadd.f32 %v1249, %v1495
      %v1562 = vadd.f32 %v1250, %v1498
      %v1563 = vadd.f32 %v1251, %v1503
      %v1564 = vadd.f32 %v1252, %v1506
      %v1565 = vadd.f32 %v1253, %v1511
      %v1566 = vadd.f32 %v1254, %v1514
      %v1567 = vadd.f32 %v1255, %v1519
      %v1568 = vadd.f32 %v1256, %v1522
      %v1569 = vadd.f32 %v1257, %v1527
      %v1570 = vadd.f32 %v1258, %v1530
      %v1571 = vadd.f32 %v1259, %v1535
      %v1572 = vadd.f32 %v1260, %v1538
      %s1573 = scalar_lea.vmem %s3, 256
      %v1574 = vld [vmem:[%s1573] sm:$0xf]
      %v1575 = vld [vmem:[%s1573 + $0x4] sm:$0xf]
      %v1576 = vld [vmem:[%s1573 + $0x8] sm:$0xf]
      %v1577 = vld [vmem:[%s1573 + $0xc] sm:$0xf]
      %v1578 = vld [vmem:[%s1573 + $0x10] sm:$0xf]
      %v1579 = vld [vmem:[%s1573 + $0x14] sm:$0xf]
      %v1580 = vld [vmem:[%s1573 + $0x18] sm:$0xf]
      %v1581 = vld [vmem:[%s1573 + $0x1c] sm:$0xf]
      %v1582 = vld [vmem:[%s1573 + $0x20] sm:$0xf]
      %v1583 = vld [vmem:[%s1573 + $0x24] sm:$0xf]
      %v1584 = vld [vmem:[%s1573 + $0x28] sm:$0xf]
      %v1585 = vld [vmem:[%s1573 + $0x2c] sm:$0xf]
      %v1586 = vld [vmem:[%s1573 + $0x30] sm:$0xf]
      %v1587 = vld [vmem:[%s1573 + $0x34] sm:$0xf]
      %v1588 = vld [vmem:[%s1573 + $0x38] sm:$0xf]
      %v1589 = vld [vmem:[%s1573 + $0x3c] sm:$0xf]
      %v1606 = vunpack.c.l.b16 %v1574
      %v1607 = vunpack.c.l.b16 %v1575
      %v1608 = vunpack.c.l.b16 %v1576
      %v1609 = vunpack.c.l.b16 %v1577
      %v1610 = vunpack.c.l.b16 %v1578
      %v1611 = vunpack.c.l.b16 %v1579
      %v1612 = vunpack.c.l.b16 %v1580
      %v1613 = vunpack.c.l.b16 %v1581
      %v1614 = vunpack.c.l.b16 %v1582
      %v1615 = vunpack.c.l.b16 %v1583
      %v1616 = vunpack.c.l.b16 %v1584
      %v1617 = vunpack.c.l.b16 %v1585
      %v1618 = vunpack.c.l.b16 %v1586
      %v1619 = vunpack.c.l.b16 %v1587
      %v1620 = vunpack.c.l.b16 %v1588
      %v1621 = vunpack.c.l.b16 %v1589
      %v1622 = vpack.c.b16 %v1607, %v1606
      %v1623 = vpack.c.b16 %v1609, %v1608
      %v1624 = vpack.c.b16 %v1611, %v1610
      %v1625 = vpack.c.b16 %v1613, %v1612
      %v1626 = vpack.c.b16 %v1615, %v1614
      %v1627 = vpack.c.b16 %v1617, %v1616
      %v1628 = vpack.c.b16 %v1619, %v1618
      %v1629 = vpack.c.b16 %v1621, %v1620
      %1638 = vmatprep.subr.bf16.mxu0 0
      %1639 = vmatpush1.bf16.msra.mxu0 %v1629
      %1640 = vmatprep.subr.bf16.mxu0 0
      %1641 = vmatpush1.bf16.msra.mxu0 %v1628
      %1642 = vmatprep.subr.bf16.mxu0 0
      %1643 = vmatpush1.bf16.msra.mxu0 %v1627
      %1644 = vmatprep.subr.bf16.mxu0 0
      %1645 = vmatpush1.bf16.msra.mxu0 %v1626
      %1646 = vmatprep.subr.bf16.mxu0 0
      %1647 = vmatpush1.bf16.msra.mxu0 %v1625
      %1648 = vmatprep.subr.bf16.mxu0 0
      %1649 = vmatpush1.bf16.msra.mxu0 %v1624
      %1650 = vmatprep.subr.bf16.mxu0 0
      %1651 = vmatpush1.bf16.msra.mxu0 %v1623
      %1652 = vmatprep.subr.bf16.mxu0 0
      %1653 = vmatpush1.bf16.msra.mxu0 %v1622
      %1654 = vmatprep.subr.bf16.mxu0 0
      %1655 = vmatpush2.bf16.msra.mxu0 0
      %1656 = vmatprep.subr.bf16.mxu0 0
      %1657 = vmatpush2.bf16.msra.mxu0 0
      %1658 = vmatprep.subr.bf16.mxu0 0
      %1659 = vmatpush2.bf16.msra.mxu0 0
      %1660 = vmatprep.subr.bf16.mxu0 0
      %1661 = vmatpush2.bf16.msra.mxu0 0
      %1662 = vmatprep.subr.bf16.mxu0 0
      %1663 = vmatpush2.bf16.msra.mxu0 0
      %1664 = vmatprep.subr.bf16.mxu0 0
      %1665 = vmatpush2.bf16.msra.mxu0 0
      %1666 = vmatprep.subr.bf16.mxu0 0
      %1667 = vmatpush2.bf16.msra.mxu0 0
      %1668 = vmatprep.subr.bf16.mxu0 0
      %1669 = vmatpush2.bf16.msra.mxu0 0
      %1670 = vmatprep.mubr.bf16.mxu0 0
      %1671 = vmatmul.mubr.bf16.gmra.mxu0 %v1298
      %v1672 = vpop.f32.mrf.mxu0
      %v1673 = vadd.f32 0.0, %v1672
      %v1674 = vpop.f32.mrf.mxu0
      %v1675 = vpop.f32.mrf.mxu0
      %v1676 = vadd.f32 0.0, %v1675
      %v1677 = vpop.f32.mrf.mxu0
      %1678 = vmatprep.mubr.bf16.mxu0 0
      %1679 = vmatmul.mubr.bf16.gmra.mxu0 %v1299
      %v1680 = vpop.f32.mrf.mxu0
      %v1681 = vadd.f32 0.0, %v1680
      %v1682 = vpop.f32.mrf.mxu0
      %v1683 = vpop.f32.mrf.mxu0
      %v1684 = vadd.f32 0.0, %v1683
      %v1685 = vpop.f32.mrf.mxu0
      %1686 = vmatprep.mubr.bf16.mxu0 0
      %1687 = vmatmul.mubr.bf16.gmra.mxu0 %v1300
      %v1688 = vpop.f32.mrf.mxu0
      %v1689 = vadd.f32 0.0, %v1688
      %v1690 = vpop.f32.mrf.mxu0
      %v1691 = vpop.f32.mrf.mxu0
      %v1692 = vadd.f32 0.0, %v1691
      %v1693 = vpop.f32.mrf.mxu0
      %1694 = vmatprep.mubr.bf16.mxu0 0
      %1695 = vmatmul.mubr.bf16.gmra.mxu0 %v1301
      %v1696 = vpop.f32.mrf.mxu0
      %v1697 = vadd.f32 0.0, %v1696
      %v1698 = vpop.f32.mrf.mxu0
      %v1699 = vpop.f32.mrf.mxu0
      %v1700 = vadd.f32 0.0, %v1699
      %v1701 = vpop.f32.mrf.mxu0
      %1702 = vmatprep.mubr.bf16.mxu0 0
      %1703 = vmatmul.mubr.bf16.gmra.mxu0 %v1302
      %v1704 = vpop.f32.mrf.mxu0
      %v1705 = vadd.f32 0.0, %v1704
      %v1706 = vpop.f32.mrf.mxu0
      %v1707 = vpop.f32.mrf.mxu0
      %v1708 = vadd.f32 0.0, %v1707
      %v1709 = vpop.f32.mrf.mxu0
      %1710 = vmatprep.mubr.bf16.mxu0 0
      %1711 = vmatmul.mubr.bf16.gmra.mxu0 %v1303
      %v1712 = vpop.f32.mrf.mxu0
      %v1713 = vadd.f32 0.0, %v1712
      %v1714 = vpop.f32.mrf.mxu0
      %v1715 = vpop.f32.mrf.mxu0
      %v1716 = vadd.f32 0.0, %v1715
      %v1717 = vpop.f32.mrf.mxu0
      %1718 = vmatprep.mubr.bf16.mxu0 0
      %1719 = vmatmul.mubr.bf16.gmra.mxu0 %v1304
      %v1720 = vpop.f32.mrf.mxu0
      %v1721 = vadd.f32 0.0, %v1720
      %v1722 = vpop.f32.mrf.mxu0
      %v1723 = vpop.f32.mrf.mxu0
      %v1724 = vadd.f32 0.0, %v1723
      %v1725 = vpop.f32.mrf.mxu0
      %1726 = vmatprep.mubr.bf16.mxu0 0
      %1727 = vmatmul.mubr.bf16.gmra.mxu0 %v1305
      %v1728 = vpop.f32.mrf.mxu0
      %v1729 = vadd.f32 0.0, %v1728
      %v1730 = vpop.f32.mrf.mxu0
      %v1731 = vpop.f32.mrf.mxu0
      %v1732 = vadd.f32 0.0, %v1731
      %v1733 = vpop.f32.mrf.mxu0
      %1734 = vmatprep.mubr.bf16.mxu0 0
      %1735 = vmatmul.mubr.bf16.gmra.mxu0 %v1306
      %v1736 = vpop.f32.mrf.mxu0
      %v1737 = vadd.f32 0.0, %v1736
      %v1738 = vpop.f32.mrf.mxu0
      %v1739 = vpop.f32.mrf.mxu0
      %v1740 = vadd.f32 0.0, %v1739
      %v1741 = vpop.f32.mrf.mxu0
      %1742 = vmatprep.mubr.bf16.mxu0 0
      %1743 = vmatmul.mubr.bf16.gmra.mxu0 %v1307
      %v1744 = vpop.f32.mrf.mxu0
      %v1745 = vadd.f32 0.0, %v1744
      %v1746 = vpop.f32.mrf.mxu0
      %v1747 = vpop.f32.mrf.mxu0
      %v1748 = vadd.f32 0.0, %v1747
      %v1749 = vpop.f32.mrf.mxu0
      %1750 = vmatprep.mubr.bf16.mxu0 0
      %1751 = vmatmul.mubr.bf16.gmra.mxu0 %v1308
      %v1752 = vpop.f32.mrf.mxu0
      %v1753 = vadd.f32 0.0, %v1752
      %v1754 = vpop.f32.mrf.mxu0
      %v1755 = vpop.f32.mrf.mxu0
      %v1756 = vadd.f32 0.0, %v1755
      %v1757 = vpop.f32.mrf.mxu0
      %1758 = vmatprep.mubr.bf16.mxu0 0
      %1759 = vmatmul.mubr.bf16.gmra.mxu0 %v1309
      %v1760 = vpop.f32.mrf.mxu0
      %v1761 = vadd.f32 0.0, %v1760
      %v1762 = vpop.f32.mrf.mxu0
      %v1763 = vpop.f32.mrf.mxu0
      %v1764 = vadd.f32 0.0, %v1763
      %v1765 = vpop.f32.mrf.mxu0
      %1766 = vmatprep.mubr.bf16.mxu0 0
      %1767 = vmatmul.mubr.bf16.gmra.mxu0 %v1310
      %v1768 = vpop.f32.mrf.mxu0
      %v1769 = vadd.f32 0.0, %v1768
      %v1770 = vpop.f32.mrf.mxu0
      %v1771 = vpop.f32.mrf.mxu0
      %v1772 = vadd.f32 0.0, %v1771
      %v1773 = vpop.f32.mrf.mxu0
      %1774 = vmatprep.mubr.bf16.mxu0 0
      %1775 = vmatmul.mubr.bf16.gmra.mxu0 %v1311
      %v1776 = vpop.f32.mrf.mxu0
      %v1777 = vadd.f32 0.0, %v1776
      %v1778 = vpop.f32.mrf.mxu0
      %v1779 = vpop.f32.mrf.mxu0
      %v1780 = vadd.f32 0.0, %v1779
      %v1781 = vpop.f32.mrf.mxu0
      %1782 = vmatprep.mubr.bf16.mxu0 0
      %1783 = vmatmul.mubr.bf16.gmra.mxu0 %v1312
      %v1784 = vpop.f32.mrf.mxu0
      %v1785 = vadd.f32 0.0, %v1784
      %v1786 = vpop.f32.mrf.mxu0
      %v1787 = vpop.f32.mrf.mxu0
      %v1788 = vadd.f32 0.0, %v1787
      %v1789 = vpop.f32.mrf.mxu0
      %1790 = vmatprep.mubr.bf16.mxu0 0
      %1791 = vmatmul.mubr.bf16.gmra.mxu0 %v1313
      %v1792 = vpop.f32.mrf.mxu0
      %v1793 = vadd.f32 0.0, %v1792
      %v1794 = vpop.f32.mrf.mxu0
      %v1795 = vpop.f32.mrf.mxu0
      %v1796 = vadd.f32 0.0, %v1795
      %v1797 = vpop.f32.mrf.mxu0
      %1798 = vdwg.mxu0
      %v1799 = vadd.f32 %v1541, %v1673
      %v1800 = vadd.f32 %v1542, %v1676
      %v1801 = vadd.f32 %v1543, %v1681
      %v1802 = vadd.f32 %v1544, %v1684
      %v1803 = vadd.f32 %v1545, %v1689
      %v1804 = vadd.f32 %v1546, %v1692
      %v1805 = vadd.f32 %v1547, %v1697
      %v1806 = vadd.f32 %v1548, %v1700
      %v1807 = vadd.f32 %v1549, %v1705
      %v1808 = vadd.f32 %v1550, %v1708
      %v1809 = vadd.f32 %v1551, %v1713
      %v1810 = vadd.f32 %v1552, %v1716
      %v1811 = vadd.f32 %v1553, %v1721
      %v1812 = vadd.f32 %v1554, %v1724
      %v1813 = vadd.f32 %v1555, %v1729
      %v1814 = vadd.f32 %v1556, %v1732
      %v1815 = vadd.f32 %v1557, %v1737
      %v1816 = vadd.f32 %v1558, %v1740
      %v1817 = vadd.f32 %v1559, %v1745
      %v1818 = vadd.f32 %v1560, %v1748
      %v1819 = vadd.f32 %v1561, %v1753
      %v1820 = vadd.f32 %v1562, %v1756
      %v1821 = vadd.f32 %v1563, %v1761
      %v1822 = vadd.f32 %v1564, %v1764
      %v1823 = vadd.f32 %v1565, %v1769
      %v1824 = vadd.f32 %v1566, %v1772
      %v1825 = vadd.f32 %v1567, %v1777
      %v1826 = vadd.f32 %v1568, %v1780
      %v1827 = vadd.f32 %v1569, %v1785
      %v1828 = vadd.f32 %v1570, %v1788
      %v1829 = vadd.f32 %v1571, %v1793
      %v1830 = vadd.f32 %v1572, %v1796
      %s1831 = scalar_lea.vmem %s3, 448
      %v1832 = vld [vmem:[%s1831] sm:$0xf]
      %v1833 = vld [vmem:[%s1831 + $0x4] sm:$0xf]
      %v1834 = vld [vmem:[%s1831 + $0x8] sm:$0xf]
      %v1835 = vld [vmem:[%s1831 + $0xc] sm:$0xf]
      %v1836 = vld [vmem:[%s1831 + $0x10] sm:$0xf]
      %v1837 = vld [vmem:[%s1831 + $0x14] sm:$0xf]
      %v1838 = vld [vmem:[%s1831 + $0x18] sm:$0xf]
      %v1839 = vld [vmem:[%s1831 + $0x1c] sm:$0xf]
      %v1840 = vld [vmem:[%s1831 + $0x20] sm:$0xf]
      %v1841 = vld [vmem:[%s1831 + $0x24] sm:$0xf]
      %v1842 = vld [vmem:[%s1831 + $0x28] sm:$0xf]
      %v1843 = vld [vmem:[%s1831 + $0x2c] sm:$0xf]
      %v1844 = vld [vmem:[%s1831 + $0x30] sm:$0xf]
      %v1845 = vld [vmem:[%s1831 + $0x34] sm:$0xf]
      %v1846 = vld [vmem:[%s1831 + $0x38] sm:$0xf]
      %v1847 = vld [vmem:[%s1831 + $0x3c] sm:$0xf]
      %v1864 = vunpack.c.l.b16 %v1832
      %v1865 = vunpack.c.l.b16 %v1833
      %v1866 = vunpack.c.l.b16 %v1834
      %v1867 = vunpack.c.l.b16 %v1835
      %v1868 = vunpack.c.l.b16 %v1836
      %v1869 = vunpack.c.l.b16 %v1837
      %v1870 = vunpack.c.l.b16 %v1838
      %v1871 = vunpack.c.l.b16 %v1839
      %v1872 = vunpack.c.l.b16 %v1840
      %v1873 = vunpack.c.l.b16 %v1841
      %v1874 = vunpack.c.l.b16 %v1842
      %v1875 = vunpack.c.l.b16 %v1843
      %v1876 = vunpack.c.l.b16 %v1844
      %v1877 = vunpack.c.l.b16 %v1845
      %v1878 = vunpack.c.l.b16 %v1846
      %v1879 = vunpack.c.l.b16 %v1847
      %v1880 = vpack.c.b16 %v1865, %v1864
      %v1881 = vpack.c.b16 %v1867, %v1866
      %v1882 = vpack.c.b16 %v1869, %v1868
      %v1883 = vpack.c.b16 %v1871, %v1870
      %v1884 = vpack.c.b16 %v1873, %v1872
      %v1885 = vpack.c.b16 %v1875, %v1874
      %v1886 = vpack.c.b16 %v1877, %v1876
      %v1887 = vpack.c.b16 %v1879, %v1878
      %1896 = vmatprep.subr.bf16.mxu0 0
      %1897 = vmatpush1.bf16.msra.mxu0 %v1887
      %1898 = vmatprep.subr.bf16.mxu0 0
      %1899 = vmatpush1.bf16.msra.mxu0 %v1886
      %1900 = vmatprep.subr.bf16.mxu0 0
      %1901 = vmatpush1.bf16.msra.mxu0 %v1885
      %1902 = vmatprep.subr.bf16.mxu0 0
      %1903 = vmatpush1.bf16.msra.mxu0 %v1884
      %1904 = vmatprep.subr.bf16.mxu0 0
      %1905 = vmatpush1.bf16.msra.mxu0 %v1883
      %1906 = vmatprep.subr.bf16.mxu0 0
      %1907 = vmatpush1.bf16.msra.mxu0 %v1882
      %1908 = vmatprep.subr.bf16.mxu0 0
      %1909 = vmatpush1.bf16.msra.mxu0 %v1881
      %1910 = vmatprep.subr.bf16.mxu0 0
      %1911 = vmatpush1.bf16.msra.mxu0 %v1880
      %1912 = vmatprep.subr.bf16.mxu0 0
      %1913 = vmatpush2.bf16.msra.mxu0 0
      %1914 = vmatprep.subr.bf16.mxu0 0
      %1915 = vmatpush2.bf16.msra.mxu0 0
      %1916 = vmatprep.subr.bf16.mxu0 0
      %1917 = vmatpush2.bf16.msra.mxu0 0
      %1918 = vmatprep.subr.bf16.mxu0 0
      %1919 = vmatpush2.bf16.msra.mxu0 0
      %1920 = vmatprep.subr.bf16.mxu0 0
      %1921 = vmatpush2.bf16.msra.mxu0 0
      %1922 = vmatprep.subr.bf16.mxu0 0
      %1923 = vmatpush2.bf16.msra.mxu0 0
      %1924 = vmatprep.subr.bf16.mxu0 0
      %1925 = vmatpush2.bf16.msra.mxu0 0
      %1926 = vmatprep.subr.bf16.mxu0 0
      %1927 = vmatpush2.bf16.msra.mxu0 0
      %1928 = vmatprep.mubr.bf16.mxu0 0
      %1929 = vmatmul.mubr.bf16.gmra.mxu0 %v1299
      %v1930 = vpop.f32.mrf.mxu0
      %v1931 = vadd.f32 0.0, %v1930
      %v1932 = vpop.f32.mrf.mxu0
      %v1933 = vpop.f32.mrf.mxu0
      %v1934 = vadd.f32 0.0, %v1933
      %v1935 = vpop.f32.mrf.mxu0
      %1936 = vmatprep.mubr.bf16.mxu0 0
      %1937 = vmatmul.mubr.bf16.gmra.mxu0 %v1300
      %v1938 = vpop.f32.mrf.mxu0
      %v1939 = vadd.f32 0.0, %v1938
      %v1940 = vpop.f32.mrf.mxu0
      %v1941 = vpop.f32.mrf.mxu0
      %v1942 = vadd.f32 0.0, %v1941
      %v1943 = vpop.f32.mrf.mxu0
      %1944 = vmatprep.mubr.bf16.mxu0 0
      %1945 = vmatmul.mubr.bf16.gmra.mxu0 %v1301
      %v1946 = vpop.f32.mrf.mxu0
      %v1947 = vadd.f32 0.0, %v1946
      %v1948 = vpop.f32.mrf.mxu0
      %v1949 = vpop.f32.mrf.mxu0
      %v1950 = vadd.f32 0.0, %v1949
      %v1951 = vpop.f32.mrf.mxu0
      %1952 = vmatprep.mubr.bf16.mxu0 0
      %1953 = vmatmul.mubr.bf16.gmra.mxu0 %v1302
      %v1954 = vpop.f32.mrf.mxu0
      %v1955 = vadd.f32 0.0, %v1954
      %v1956 = vpop.f32.mrf.mxu0
      %v1957 = vpop.f32.mrf.mxu0
      %v1958 = vadd.f32 0.0, %v1957
      %v1959 = vpop.f32.mrf.mxu0
      %1960 = vmatprep.mubr.bf16.mxu0 0
      %1961 = vmatmul.mubr.bf16.gmra.mxu0 %v1303
      %v1962 = vpop.f32.mrf.mxu0
      %v1963 = vadd.f32 0.0, %v1962
      %v1964 = vpop.f32.mrf.mxu0
      %v1965 = vpop.f32.mrf.mxu0
      %v1966 = vadd.f32 0.0, %v1965
      %v1967 = vpop.f32.mrf.mxu0
      %1968 = vmatprep.mubr.bf16.mxu0 0
      %1969 = vmatmul.mubr.bf16.gmra.mxu0 %v1304
      %v1970 = vpop.f32.mrf.mxu0
      %v1971 = vadd.f32 0.0, %v1970
      %v1972 = vpop.f32.mrf.mxu0
      %v1973 = vpop.f32.mrf.mxu0
      %v1974 = vadd.f32 0.0, %v1973
      %v1975 = vpop.f32.mrf.mxu0
      %1976 = vmatprep.mubr.bf16.mxu0 0
      %1977 = vmatmul.mubr.bf16.gmra.mxu0 %v1305
      %v1978 = vpop.f32.mrf.mxu0
      %v1979 = vadd.f32 0.0, %v1978
      %v1980 = vpop.f32.mrf.mxu0
      %v1981 = vpop.f32.mrf.mxu0
      %v1982 = vadd.f32 0.0, %v1981
      %v1983 = vpop.f32.mrf.mxu0
      %1984 = vmatprep.mubr.bf16.mxu0 0
      %1985 = vmatmul.mubr.bf16.gmra.mxu0 %v1306
      %v1986 = vpop.f32.mrf.mxu0
      %v1987 = vadd.f32 0.0, %v1986
      %v1988 = vpop.f32.mrf.mxu0
      %v1989 = vpop.f32.mrf.mxu0
      %v1990 = vadd.f32 0.0, %v1989
      %v1991 = vpop.f32.mrf.mxu0
      %1992 = vmatprep.mubr.bf16.mxu0 0
      %1993 = vmatmul.mubr.bf16.gmra.mxu0 %v1307
      %v1994 = vpop.f32.mrf.mxu0
      %v1995 = vadd.f32 0.0, %v1994
      %v1996 = vpop.f32.mrf.mxu0
      %v1997 = vpop.f32.mrf.mxu0
      %v1998 = vadd.f32 0.0, %v1997
      %v1999 = vpop.f32.mrf.mxu0
      %2000 = vmatprep.mubr.bf16.mxu0 0
      %2001 = vmatmul.mubr.bf16.gmra.mxu0 %v1308
      %v2002 = vpop.f32.mrf.mxu0
      %v2003 = vadd.f32 0.0, %v2002
      %v2004 = vpop.f32.mrf.mxu0
      %v2005 = vpop.f32.mrf.mxu0
      %v2006 = vadd.f32 0.0, %v2005
      %v2007 = vpop.f32.mrf.mxu0
      %2008 = vmatprep.mubr.bf16.mxu0 0
      %2009 = vmatmul.mubr.bf16.gmra.mxu0 %v1309
      %v2010 = vpop.f32.mrf.mxu0
      %v2011 = vadd.f32 0.0, %v2010
      %v2012 = vpop.f32.mrf.mxu0
      %v2013 = vpop.f32.mrf.mxu0
      %v2014 = vadd.f32 0.0, %v2013
      %v2015 = vpop.f32.mrf.mxu0
      %2016 = vmatprep.mubr.bf16.mxu0 0
      %2017 = vmatmul.mubr.bf16.gmra.mxu0 %v1310
      %v2018 = vpop.f32.mrf.mxu0
      %v2019 = vadd.f32 0.0, %v2018
      %v2020 = vpop.f32.mrf.mxu0
      %v2021 = vpop.f32.mrf.mxu0
      %v2022 = vadd.f32 0.0, %v2021
      %v2023 = vpop.f32.mrf.mxu0
      %2024 = vmatprep.mubr.bf16.mxu0 0
      %2025 = vmatmul.mubr.bf16.gmra.mxu0 %v1311
      %v2026 = vpop.f32.mrf.mxu0
      %v2027 = vadd.f32 0.0, %v2026
      %v2028 = vpop.f32.mrf.mxu0
      %v2029 = vpop.f32.mrf.mxu0
      %v2030 = vadd.f32 0.0, %v2029
      %v2031 = vpop.f32.mrf.mxu0
      %2032 = vmatprep.mubr.bf16.mxu0 0
      %2033 = vmatmul.mubr.bf16.gmra.mxu0 %v1312
      %v2034 = vpop.f32.mrf.mxu0
      %v2035 = vadd.f32 0.0, %v2034
      %v2036 = vpop.f32.mrf.mxu0
      %v2037 = vpop.f32.mrf.mxu0
      %v2038 = vadd.f32 0.0, %v2037
      %v2039 = vpop.f32.mrf.mxu0
      %2040 = vmatprep.mubr.bf16.mxu0 0
      %2041 = vmatmul.mubr.bf16.gmra.mxu0 %v1313
      %v2042 = vpop.f32.mrf.mxu0
      %v2043 = vadd.f32 0.0, %v2042
      %v2044 = vpop.f32.mrf.mxu0
      %v2045 = vpop.f32.mrf.mxu0
      %v2046 = vadd.f32 0.0, %v2045
      %v2047 = vpop.f32.mrf.mxu0
      %2048 = vmatprep.mubr.bf16.mxu0 0
      %2049 = vmatmul.mubr.bf16.gmra.mxu0 %v1314
      %v2050 = vpop.f32.mrf.mxu0
      %v2051 = vadd.f32 0.0, %v2050
      %v2052 = vpop.f32.mrf.mxu0
      %v2053 = vpop.f32.mrf.mxu0
      %v2054 = vadd.f32 0.0, %v2053
      %v2055 = vpop.f32.mrf.mxu0
      %2056 = vdwg.mxu0
      %v2057 = vadd.f32 %v1799, %v1931
      %v2058 = vadd.f32 %v1800, %v1934
      %v2059 = vadd.f32 %v1801, %v1939
      %v2060 = vadd.f32 %v1802, %v1942
      %v2061 = vadd.f32 %v1803, %v1947
      %v2062 = vadd.f32 %v1804, %v1950
      %v2063 = vadd.f32 %v1805, %v1955
      %v2064 = vadd.f32 %v1806, %v1958
      %v2065 = vadd.f32 %v1807, %v1963
      %v2066 = vadd.f32 %v1808, %v1966
      %v2067 = vadd.f32 %v1809, %v1971
      %v2068 = vadd.f32 %v1810, %v1974
      %v2069 = vadd.f32 %v1811, %v1979
      %v2070 = vadd.f32 %v1812, %v1982
      %v2071 = vadd.f32 %v1813, %v1987
      %v2072 = vadd.f32 %v1814, %v1990
      %v2073 = vadd.f32 %v1815, %v1995
      %v2074 = vadd.f32 %v1816, %v1998
      %v2075 = vadd.f32 %v1817, %v2003
      %v2076 = vadd.f32 %v1818, %v2006
      %v2077 = vadd.f32 %v1819, %v2011
      %v2078 = vadd.f32 %v1820, %v2014
      %v2079 = vadd.f32 %v1821, %v2019
      %v2080 = vadd.f32 %v1822, %v2022
      %v2081 = vadd.f32 %v1823, %v2027
      %v2082 = vadd.f32 %v1824, %v2030
      %v2083 = vadd.f32 %v1825, %v2035
      %v2084 = vadd.f32 %v1826, %v2038
      %v2085 = vadd.f32 %v1827, %v2043
      %v2086 = vadd.f32 %v1828, %v2046
      %v2087 = vadd.f32 %v1829, %v2051
      %v2088 = vadd.f32 %v1830, %v2054
      %v2089 = vld [vmem:[#allocation2 + $0x2] sm:$0xff]
      %v2090 = vld [vmem:[#allocation2 + $0xa] sm:$0xff]
      %v2091 = vld [vmem:[#allocation2 + $0x1a] sm:$0xff]
      %v2092 = vld [vmem:[#allocation2 + $0x22] sm:$0xff]
      %v2093 = vld [vmem:[#allocation2 + $0x32] sm:$0xff]
      %v2094 = vld [vmem:[#allocation2 + $0x3a] sm:$0xff]
      %v2095 = vld [vmem:[#allocation2 + $0x4a] sm:$0xff]
      %v2096 = vld [vmem:[#allocation2 + $0x52] sm:$0xff]
      %v2097 = vld [vmem:[#allocation2 + $0x62] sm:$0xff]
      %v2098 = vld [vmem:[#allocation2 + $0x6a] sm:$0xff]
      %v2099 = vld [vmem:[#allocation2 + $0x7a] sm:$0xff]
      %v2100 = vld [vmem:[#allocation2 + $0x82] sm:$0xff]
      %v2101 = vld [vmem:[#allocation2 + $0x92] sm:$0xff]
      %v2102 = vld [vmem:[#allocation2 + $0x9a] sm:$0xff]
      %v2103 = vld [vmem:[#allocation2 + $0xaa] sm:$0xff]
      %v2104 = vld [vmem:[#allocation2 + $0xb2] sm:$0xff]
      %v2105 = vld [vmem:[#allocation2 + $0xc2] sm:$0xff]
      %v2106 = vld [vmem:[#allocation2 + $0xca] sm:$0xff]
      %v2107 = vld [vmem:[#allocation2 + $0xda] sm:$0xff]
      %v2108 = vld [vmem:[#allocation2 + $0xe2] sm:$0xff]
      %v2109 = vld [vmem:[#allocation2 + $0xf2] sm:$0xff]
      %v2110 = vld [vmem:[#allocation2 + $0xfa] sm:$0xff]
      %v2111 = vld [vmem:[#allocation2 + $0x10a] sm:$0xff]
      %v2112 = vld [vmem:[#allocation2 + $0x112] sm:$0xff]
      %v2113 = vld [vmem:[#allocation2 + $0x122] sm:$0xff]
      %v2114 = vld [vmem:[#allocation2 + $0x12a] sm:$0xff]
      %v2115 = vld [vmem:[#allocation2 + $0x13a] sm:$0xff]
      %v2116 = vld [vmem:[#allocation2 + $0x142] sm:$0xff]
      %v2117 = vld [vmem:[#allocation2 + $0x152] sm:$0xff]
      %v2118 = vld [vmem:[#allocation2 + $0x15a] sm:$0xff]
      %v2119 = vld [vmem:[#allocation2 + $0x16a] sm:$0xff]
      %v2120 = vld [vmem:[#allocation2 + $0x172] sm:$0xff]
      %v2121 = vld [vmem:[#allocation2 + $0x182] sm:$0xff]
      %v2122 = vld [vmem:[#allocation2 + $0x18a] sm:$0xff]
      %v2123 = vld [vmem:[#allocation2 + $0x19a] sm:$0xff]
      %v2124 = vld [vmem:[#allocation2 + $0x1a2] sm:$0xff]
      %v2125 = vpack.c.bf16 %v2090, %v2089
      %v2126 = vpack.c.bf16 %v2092, %v2091
      %v2127 = vpack.c.bf16 %v2094, %v2093
      %v2128 = vpack.c.bf16 %v2096, %v2095
      %v2129 = vpack.c.bf16 %v2098, %v2097
      %v2130 = vpack.c.bf16 %v2100, %v2099
      %v2131 = vpack.c.bf16 %v2102, %v2101
      %v2132 = vpack.c.bf16 %v2104, %v2103
      %v2133 = vpack.c.bf16 %v2106, %v2105
      %v2134 = vpack.c.bf16 %v2108, %v2107
      %v2135 = vpack.c.bf16 %v2110, %v2109
      %v2136 = vpack.c.bf16 %v2112, %v2111
      %v2137 = vpack.c.bf16 %v2114, %v2113
      %v2138 = vpack.c.bf16 %v2116, %v2115
      %v2139 = vpack.c.bf16 %v2118, %v2117
      %v2140 = vpack.c.bf16 %v2120, %v2119
      %v2141 = vpack.c.bf16 %v2122, %v2121
      %v2142 = vpack.c.bf16 %v2124, %v2123
      %s2143 = scalar_lea.vmem %s3, 128
      %v2144 = vld [vmem:[%s2143] sm:$0xf]
      %v2145 = vld [vmem:[%s2143 + $0x4] sm:$0xf]
      %v2146 = vld [vmem:[%s2143 + $0x8] sm:$0xf]
      %v2147 = vld [vmem:[%s2143 + $0xc] sm:$0xf]
      %v2148 = vld [vmem:[%s2143 + $0x10] sm:$0xf]
      %v2149 = vld [vmem:[%s2143 + $0x14] sm:$0xf]
      %v2150 = vld [vmem:[%s2143 + $0x18] sm:$0xf]
      %v2151 = vld [vmem:[%s2143 + $0x1c] sm:$0xf]
      %v2152 = vld [vmem:[%s2143 + $0x20] sm:$0xf]
      %v2153 = vld [vmem:[%s2143 + $0x24] sm:$0xf]
      %v2154 = vld [vmem:[%s2143 + $0x28] sm:$0xf]
      %v2155 = vld [vmem:[%s2143 + $0x2c] sm:$0xf]
      %v2156 = vld [vmem:[%s2143 + $0x30] sm:$0xf]
      %v2157 = vld [vmem:[%s2143 + $0x34] sm:$0xf]
      %v2158 = vld [vmem:[%s2143 + $0x38] sm:$0xf]
      %v2159 = vld [vmem:[%s2143 + $0x3c] sm:$0xf]
      %v2176 = vunpack.c.l.b16 %v2144
      %v2177 = vunpack.c.l.b16 %v2145
      %v2178 = vunpack.c.l.b16 %v2146
      %v2179 = vunpack.c.l.b16 %v2147
      %v2180 = vunpack.c.l.b16 %v2148
      %v2181 = vunpack.c.l.b16 %v2149
      %v2182 = vunpack.c.l.b16 %v2150
      %v2183 = vunpack.c.l.b16 %v2151
      %v2184 = vunpack.c.l.b16 %v2152
      %v2185 = vunpack.c.l.b16 %v2153
      %v2186 = vunpack.c.l.b16 %v2154
      %v2187 = vunpack.c.l.b16 %v2155
      %v2188 = vunpack.c.l.b16 %v2156
      %v2189 = vunpack.c.l.b16 %v2157
      %v2190 = vunpack.c.l.b16 %v2158
      %v2191 = vunpack.c.l.b16 %v2159
      %v2192 = vpack.c.b16 %v2177, %v2176
      %v2193 = vpack.c.b16 %v2179, %v2178
      %v2194 = vpack.c.b16 %v2181, %v2180
      %v2195 = vpack.c.b16 %v2183, %v2182
      %v2196 = vpack.c.b16 %v2185, %v2184
      %v2197 = vpack.c.b16 %v2187, %v2186
      %v2198 = vpack.c.b16 %v2189, %v2188
      %v2199 = vpack.c.b16 %v2191, %v2190
      %2208 = vmatprep.subr.bf16.mxu0 0
      %2209 = vmatpush1.bf16.msra.mxu0 %v2199
      %2210 = vmatprep.subr.bf16.mxu0 0
      %2211 = vmatpush1.bf16.msra.mxu0 %v2198
      %2212 = vmatprep.subr.bf16.mxu0 0
      %2213 = vmatpush1.bf16.msra.mxu0 %v2197
      %2214 = vmatprep.subr.bf16.mxu0 0
      %2215 = vmatpush1.bf16.msra.mxu0 %v2196
      %2216 = vmatprep.subr.bf16.mxu0 0
      %2217 = vmatpush1.bf16.msra.mxu0 %v2195
      %2218 = vmatprep.subr.bf16.mxu0 0
      %2219 = vmatpush1.bf16.msra.mxu0 %v2194
      %2220 = vmatprep.subr.bf16.mxu0 0
      %2221 = vmatpush1.bf16.msra.mxu0 %v2193
      %2222 = vmatprep.subr.bf16.mxu0 0
      %2223 = vmatpush1.bf16.msra.mxu0 %v2192
      %2224 = vmatprep.subr.bf16.mxu0 0
      %2225 = vmatpush2.bf16.msra.mxu0 0
      %2226 = vmatprep.subr.bf16.mxu0 0
      %2227 = vmatpush2.bf16.msra.mxu0 0
      %2228 = vmatprep.subr.bf16.mxu0 0
      %2229 = vmatpush2.bf16.msra.mxu0 0
      %2230 = vmatprep.subr.bf16.mxu0 0
      %2231 = vmatpush2.bf16.msra.mxu0 0
      %2232 = vmatprep.subr.bf16.mxu0 0
      %2233 = vmatpush2.bf16.msra.mxu0 0
      %2234 = vmatprep.subr.bf16.mxu0 0
      %2235 = vmatpush2.bf16.msra.mxu0 0
      %2236 = vmatprep.subr.bf16.mxu0 0
      %2237 = vmatpush2.bf16.msra.mxu0 0
      %2238 = vmatprep.subr.bf16.mxu0 0
      %2239 = vmatpush2.bf16.msra.mxu0 0
      %2240 = vmatprep.mubr.bf16.mxu0 0
      %2241 = vmatmul.mubr.bf16.gmra.mxu0 %v2125
      %v2242 = vpop.f32.mrf.mxu0
      %v2243 = vadd.f32 0.0, %v2242
      %v2244 = vpop.f32.mrf.mxu0
      %v2245 = vpop.f32.mrf.mxu0
      %v2246 = vadd.f32 0.0, %v2245
      %v2247 = vpop.f32.mrf.mxu0
      %2248 = vmatprep.mubr.bf16.mxu0 0
      %2249 = vmatmul.mubr.bf16.gmra.mxu0 %v2126
      %v2250 = vpop.f32.mrf.mxu0
      %v2251 = vadd.f32 0.0, %v2250
      %v2252 = vpop.f32.mrf.mxu0
      %v2253 = vpop.f32.mrf.mxu0
      %v2254 = vadd.f32 0.0, %v2253
      %v2255 = vpop.f32.mrf.mxu0
      %2256 = vmatprep.mubr.bf16.mxu0 0
      %2257 = vmatmul.mubr.bf16.gmra.mxu0 %v2127
      %v2258 = vpop.f32.mrf.mxu0
      %v2259 = vadd.f32 0.0, %v2258
      %v2260 = vpop.f32.mrf.mxu0
      %v2261 = vpop.f32.mrf.mxu0
      %v2262 = vadd.f32 0.0, %v2261
      %v2263 = vpop.f32.mrf.mxu0
      %2264 = vmatprep.mubr.bf16.mxu0 0
      %2265 = vmatmul.mubr.bf16.gmra.mxu0 %v2128
      %v2266 = vpop.f32.mrf.mxu0
      %v2267 = vadd.f32 0.0, %v2266
      %v2268 = vpop.f32.mrf.mxu0
      %v2269 = vpop.f32.mrf.mxu0
      %v2270 = vadd.f32 0.0, %v2269
      %v2271 = vpop.f32.mrf.mxu0
      %2272 = vmatprep.mubr.bf16.mxu0 0
      %2273 = vmatmul.mubr.bf16.gmra.mxu0 %v2129
      %v2274 = vpop.f32.mrf.mxu0
      %v2275 = vadd.f32 0.0, %v2274
      %v2276 = vpop.f32.mrf.mxu0
      %v2277 = vpop.f32.mrf.mxu0
      %v2278 = vadd.f32 0.0, %v2277
      %v2279 = vpop.f32.mrf.mxu0
      %2280 = vmatprep.mubr.bf16.mxu0 0
      %2281 = vmatmul.mubr.bf16.gmra.mxu0 %v2130
      %v2282 = vpop.f32.mrf.mxu0
      %v2283 = vadd.f32 0.0, %v2282
      %v2284 = vpop.f32.mrf.mxu0
      %v2285 = vpop.f32.mrf.mxu0
      %v2286 = vadd.f32 0.0, %v2285
      %v2287 = vpop.f32.mrf.mxu0
      %2288 = vmatprep.mubr.bf16.mxu0 0
      %2289 = vmatmul.mubr.bf16.gmra.mxu0 %v2131
      %v2290 = vpop.f32.mrf.mxu0
      %v2291 = vadd.f32 0.0, %v2290
      %v2292 = vpop.f32.mrf.mxu0
      %v2293 = vpop.f32.mrf.mxu0
      %v2294 = vadd.f32 0.0, %v2293
      %v2295 = vpop.f32.mrf.mxu0
      %2296 = vmatprep.mubr.bf16.mxu0 0
      %2297 = vmatmul.mubr.bf16.gmra.mxu0 %v2132
      %v2298 = vpop.f32.mrf.mxu0
      %v2299 = vadd.f32 0.0, %v2298
      %v2300 = vpop.f32.mrf.mxu0
      %v2301 = vpop.f32.mrf.mxu0
      %v2302 = vadd.f32 0.0, %v2301
      %v2303 = vpop.f32.mrf.mxu0
      %2304 = vmatprep.mubr.bf16.mxu0 0
      %2305 = vmatmul.mubr.bf16.gmra.mxu0 %v2133
      %v2306 = vpop.f32.mrf.mxu0
      %v2307 = vadd.f32 0.0, %v2306
      %v2308 = vpop.f32.mrf.mxu0
      %v2309 = vpop.f32.mrf.mxu0
      %v2310 = vadd.f32 0.0, %v2309
      %v2311 = vpop.f32.mrf.mxu0
      %2312 = vmatprep.mubr.bf16.mxu0 0
      %2313 = vmatmul.mubr.bf16.gmra.mxu0 %v2134
      %v2314 = vpop.f32.mrf.mxu0
      %v2315 = vadd.f32 0.0, %v2314
      %v2316 = vpop.f32.mrf.mxu0
      %v2317 = vpop.f32.mrf.mxu0
      %v2318 = vadd.f32 0.0, %v2317
      %v2319 = vpop.f32.mrf.mxu0
      %2320 = vmatprep.mubr.bf16.mxu0 0
      %2321 = vmatmul.mubr.bf16.gmra.mxu0 %v2135
      %v2322 = vpop.f32.mrf.mxu0
      %v2323 = vadd.f32 0.0, %v2322
      %v2324 = vpop.f32.mrf.mxu0
      %v2325 = vpop.f32.mrf.mxu0
      %v2326 = vadd.f32 0.0, %v2325
      %v2327 = vpop.f32.mrf.mxu0
      %2328 = vmatprep.mubr.bf16.mxu0 0
      %2329 = vmatmul.mubr.bf16.gmra.mxu0 %v2136
      %v2330 = vpop.f32.mrf.mxu0
      %v2331 = vadd.f32 0.0, %v2330
      %v2332 = vpop.f32.mrf.mxu0
      %v2333 = vpop.f32.mrf.mxu0
      %v2334 = vadd.f32 0.0, %v2333
      %v2335 = vpop.f32.mrf.mxu0
      %2336 = vmatprep.mubr.bf16.mxu0 0
      %2337 = vmatmul.mubr.bf16.gmra.mxu0 %v2137
      %v2338 = vpop.f32.mrf.mxu0
      %v2339 = vadd.f32 0.0, %v2338
      %v2340 = vpop.f32.mrf.mxu0
      %v2341 = vpop.f32.mrf.mxu0
      %v2342 = vadd.f32 0.0, %v2341
      %v2343 = vpop.f32.mrf.mxu0
      %2344 = vmatprep.mubr.bf16.mxu0 0
      %2345 = vmatmul.mubr.bf16.gmra.mxu0 %v2138
      %v2346 = vpop.f32.mrf.mxu0
      %v2347 = vadd.f32 0.0, %v2346
      %v2348 = vpop.f32.mrf.mxu0
      %v2349 = vpop.f32.mrf.mxu0
      %v2350 = vadd.f32 0.0, %v2349
      %v2351 = vpop.f32.mrf.mxu0
      %2352 = vmatprep.mubr.bf16.mxu0 0
      %2353 = vmatmul.mubr.bf16.gmra.mxu0 %v2139
      %v2354 = vpop.f32.mrf.mxu0
      %v2355 = vadd.f32 0.0, %v2354
      %v2356 = vpop.f32.mrf.mxu0
      %v2357 = vpop.f32.mrf.mxu0
      %v2358 = vadd.f32 0.0, %v2357
      %v2359 = vpop.f32.mrf.mxu0
      %2360 = vmatprep.mubr.bf16.mxu0 0
      %2361 = vmatmul.mubr.bf16.gmra.mxu0 %v2140
      %v2362 = vpop.f32.mrf.mxu0
      %v2363 = vadd.f32 0.0, %v2362
      %v2364 = vpop.f32.mrf.mxu0
      %v2365 = vpop.f32.mrf.mxu0
      %v2366 = vadd.f32 0.0, %v2365
      %v2367 = vpop.f32.mrf.mxu0
      %2368 = vdwg.mxu0
      %v2369 = vadd.f32 %v2057, %v2243
      %v2370 = vadd.f32 %v2058, %v2246
      %v2371 = vadd.f32 %v2059, %v2251
      %v2372 = vadd.f32 %v2060, %v2254
      %v2373 = vadd.f32 %v2061, %v2259
      %v2374 = vadd.f32 %v2062, %v2262
      %v2375 = vadd.f32 %v2063, %v2267
      %v2376 = vadd.f32 %v2064, %v2270
      %v2377 = vadd.f32 %v2065, %v2275
      %v2378 = vadd.f32 %v2066, %v2278
      %v2379 = vadd.f32 %v2067, %v2283
      %v2380 = vadd.f32 %v2068, %v2286
      %v2381 = vadd.f32 %v2069, %v2291
      %v2382 = vadd.f32 %v2070, %v2294
      %v2383 = vadd.f32 %v2071, %v2299
      %v2384 = vadd.f32 %v2072, %v2302
      %v2385 = vadd.f32 %v2073, %v2307
      %v2386 = vadd.f32 %v2074, %v2310
      %v2387 = vadd.f32 %v2075, %v2315
      %v2388 = vadd.f32 %v2076, %v2318
      %v2389 = vadd.f32 %v2077, %v2323
      %v2390 = vadd.f32 %v2078, %v2326
      %v2391 = vadd.f32 %v2079, %v2331
      %v2392 = vadd.f32 %v2080, %v2334
      %v2393 = vadd.f32 %v2081, %v2339
      %v2394 = vadd.f32 %v2082, %v2342
      %v2395 = vadd.f32 %v2083, %v2347
      %v2396 = vadd.f32 %v2084, %v2350
      %v2397 = vadd.f32 %v2085, %v2355
      %v2398 = vadd.f32 %v2086, %v2358
      %v2399 = vadd.f32 %v2087, %v2363
      %v2400 = vadd.f32 %v2088, %v2366
      %s2401 = scalar_lea.vmem %s3, 320
      %v2402 = vld [vmem:[%s2401] sm:$0xf]
      %v2403 = vld [vmem:[%s2401 + $0x4] sm:$0xf]
      %v2404 = vld [vmem:[%s2401 + $0x8] sm:$0xf]
      %v2405 = vld [vmem:[%s2401 + $0xc] sm:$0xf]
      %v2406 = vld [vmem:[%s2401 + $0x10] sm:$0xf]
      %v2407 = vld [vmem:[%s2401 + $0x14] sm:$0xf]
      %v2408 = vld [vmem:[%s2401 + $0x18] sm:$0xf]
      %v2409 = vld [vmem:[%s2401 + $0x1c] sm:$0xf]
      %v2410 = vld [vmem:[%s2401 + $0x20] sm:$0xf]
      %v2411 = vld [vmem:[%s2401 + $0x24] sm:$0xf]
      %v2412 = vld [vmem:[%s2401 + $0x28] sm:$0xf]
      %v2413 = vld [vmem:[%s2401 + $0x2c] sm:$0xf]
      %v2414 = vld [vmem:[%s2401 + $0x30] sm:$0xf]
      %v2415 = vld [vmem:[%s2401 + $0x34] sm:$0xf]
      %v2416 = vld [vmem:[%s2401 + $0x38] sm:$0xf]
      %v2417 = vld [vmem:[%s2401 + $0x3c] sm:$0xf]
      %v2434 = vunpack.c.l.b16 %v2402
      %v2435 = vunpack.c.l.b16 %v2403
      %v2436 = vunpack.c.l.b16 %v2404
      %v2437 = vunpack.c.l.b16 %v2405
      %v2438 = vunpack.c.l.b16 %v2406
      %v2439 = vunpack.c.l.b16 %v2407
      %v2440 = vunpack.c.l.b16 %v2408
      %v2441 = vunpack.c.l.b16 %v2409
      %v2442 = vunpack.c.l.b16 %v2410
      %v2443 = vunpack.c.l.b16 %v2411
      %v2444 = vunpack.c.l.b16 %v2412
      %v2445 = vunpack.c.l.b16 %v2413
      %v2446 = vunpack.c.l.b16 %v2414
      %v2447 = vunpack.c.l.b16 %v2415
      %v2448 = vunpack.c.l.b16 %v2416
      %v2449 = vunpack.c.l.b16 %v2417
      %v2450 = vpack.c.b16 %v2435, %v2434
      %v2451 = vpack.c.b16 %v2437, %v2436
      %v2452 = vpack.c.b16 %v2439, %v2438
      %v2453 = vpack.c.b16 %v2441, %v2440
      %v2454 = vpack.c.b16 %v2443, %v2442
      %v2455 = vpack.c.b16 %v2445, %v2444
      %v2456 = vpack.c.b16 %v2447, %v2446
      %v2457 = vpack.c.b16 %v2449, %v2448
      %2466 = vmatprep.subr.bf16.mxu0 0
      %2467 = vmatpush1.bf16.msra.mxu0 %v2457
      %2468 = vmatprep.subr.bf16.mxu0 0
      %2469 = vmatpush1.bf16.msra.mxu0 %v2456
      %2470 = vmatprep.subr.bf16.mxu0 0
      %2471 = vmatpush1.bf16.msra.mxu0 %v2455
      %2472 = vmatprep.subr.bf16.mxu0 0
      %2473 = vmatpush1.bf16.msra.mxu0 %v2454
      %2474 = vmatprep.subr.bf16.mxu0 0
      %2475 = vmatpush1.bf16.msra.mxu0 %v2453
      %2476 = vmatprep.subr.bf16.mxu0 0
      %2477 = vmatpush1.bf16.msra.mxu0 %v2452
      %2478 = vmatprep.subr.bf16.mxu0 0
      %2479 = vmatpush1.bf16.msra.mxu0 %v2451
      %2480 = vmatprep.subr.bf16.mxu0 0
      %2481 = vmatpush1.bf16.msra.mxu0 %v2450
      %2482 = vmatprep.subr.bf16.mxu0 0
      %2483 = vmatpush2.bf16.msra.mxu0 0
      %2484 = vmatprep.subr.bf16.mxu0 0
      %2485 = vmatpush2.bf16.msra.mxu0 0
      %2486 = vmatprep.subr.bf16.mxu0 0
      %2487 = vmatpush2.bf16.msra.mxu0 0
      %2488 = vmatprep.subr.bf16.mxu0 0
      %2489 = vmatpush2.bf16.msra.mxu0 0
      %2490 = vmatprep.subr.bf16.mxu0 0
      %2491 = vmatpush2.bf16.msra.mxu0 0
      %2492 = vmatprep.subr.bf16.mxu0 0
      %2493 = vmatpush2.bf16.msra.mxu0 0
      %2494 = vmatprep.subr.bf16.mxu0 0
      %2495 = vmatpush2.bf16.msra.mxu0 0
      %2496 = vmatprep.subr.bf16.mxu0 0
      %2497 = vmatpush2.bf16.msra.mxu0 0
      %2498 = vmatprep.mubr.bf16.mxu0 0
      %2499 = vmatmul.mubr.bf16.gmra.mxu0 %v2126
      %v2500 = vpop.f32.mrf.mxu0
      %v2501 = vadd.f32 0.0, %v2500
      %v2502 = vpop.f32.mrf.mxu0
      %v2503 = vpop.f32.mrf.mxu0
      %v2504 = vadd.f32 0.0, %v2503
      %v2505 = vpop.f32.mrf.mxu0
      %2506 = vmatprep.mubr.bf16.mxu0 0
      %2507 = vmatmul.mubr.bf16.gmra.mxu0 %v2127
      %v2508 = vpop.f32.mrf.mxu0
      %v2509 = vadd.f32 0.0, %v2508
      %v2510 = vpop.f32.mrf.mxu0
      %v2511 = vpop.f32.mrf.mxu0
      %v2512 = vadd.f32 0.0, %v2511
      %v2513 = vpop.f32.mrf.mxu0
      %2514 = vmatprep.mubr.bf16.mxu0 0
      %2515 = vmatmul.mubr.bf16.gmra.mxu0 %v2128
      %v2516 = vpop.f32.mrf.mxu0
      %v2517 = vadd.f32 0.0, %v2516
      %v2518 = vpop.f32.mrf.mxu0
      %v2519 = vpop.f32.mrf.mxu0
      %v2520 = vadd.f32 0.0, %v2519
      %v2521 = vpop.f32.mrf.mxu0
      %2522 = vmatprep.mubr.bf16.mxu0 0
      %2523 = vmatmul.mubr.bf16.gmra.mxu0 %v2129
      %v2524 = vpop.f32.mrf.mxu0
      %v2525 = vadd.f32 0.0, %v2524
      %v2526 = vpop.f32.mrf.mxu0
      %v2527 = vpop.f32.mrf.mxu0
      %v2528 = vadd.f32 0.0, %v2527
      %v2529 = vpop.f32.mrf.mxu0
      %2530 = vmatprep.mubr.bf16.mxu0 0
      %2531 = vmatmul.mubr.bf16.gmra.mxu0 %v2130
      %v2532 = vpop.f32.mrf.mxu0
      %v2533 = vadd.f32 0.0, %v2532
      %v2534 = vpop.f32.mrf.mxu0
      %v2535 = vpop.f32.mrf.mxu0
      %v2536 = vadd.f32 0.0, %v2535
      %v2537 = vpop.f32.mrf.mxu0
      %2538 = vmatprep.mubr.bf16.mxu0 0
      %2539 = vmatmul.mubr.bf16.gmra.mxu0 %v2131
      %v2540 = vpop.f32.mrf.mxu0
      %v2541 = vadd.f32 0.0, %v2540
      %v2542 = vpop.f32.mrf.mxu0
      %v2543 = vpop.f32.mrf.mxu0
      %v2544 = vadd.f32 0.0, %v2543
      %v2545 = vpop.f32.mrf.mxu0
      %2546 = vmatprep.mubr.bf16.mxu0 0
      %2547 = vmatmul.mubr.bf16.gmra.mxu0 %v2132
      %v2548 = vpop.f32.mrf.mxu0
      %v2549 = vadd.f32 0.0, %v2548
      %v2550 = vpop.f32.mrf.mxu0
      %v2551 = vpop.f32.mrf.mxu0
      %v2552 = vadd.f32 0.0, %v2551
      %v2553 = vpop.f32.mrf.mxu0
      %2554 = vmatprep.mubr.bf16.mxu0 0
      %2555 = vmatmul.mubr.bf16.gmra.mxu0 %v2133
      %v2556 = vpop.f32.mrf.mxu0
      %v2557 = vadd.f32 0.0, %v2556
      %v2558 = vpop.f32.mrf.mxu0
      %v2559 = vpop.f32.mrf.mxu0
      %v2560 = vadd.f32 0.0, %v2559
      %v2561 = vpop.f32.mrf.mxu0
      %2562 = vmatprep.mubr.bf16.mxu0 0
      %2563 = vmatmul.mubr.bf16.gmra.mxu0 %v2134
      %v2564 = vpop.f32.mrf.mxu0
      %v2565 = vadd.f32 0.0, %v2564
      %v2566 = vpop.f32.mrf.mxu0
      %v2567 = vpop.f32.mrf.mxu0
      %v2568 = vadd.f32 0.0, %v2567
      %v2569 = vpop.f32.mrf.mxu0
      %2570 = vmatprep.mubr.bf16.mxu0 0
      %2571 = vmatmul.mubr.bf16.gmra.mxu0 %v2135
      %v2572 = vpop.f32.mrf.mxu0
      %v2573 = vadd.f32 0.0, %v2572
      %v2574 = vpop.f32.mrf.mxu0
      %v2575 = vpop.f32.mrf.mxu0
      %v2576 = vadd.f32 0.0, %v2575
      %v2577 = vpop.f32.mrf.mxu0
      %2578 = vmatprep.mubr.bf16.mxu0 0
      %2579 = vmatmul.mubr.bf16.gmra.mxu0 %v2136
      %v2580 = vpop.f32.mrf.mxu0
      %v2581 = vadd.f32 0.0, %v2580
      %v2582 = vpop.f32.mrf.mxu0
      %v2583 = vpop.f32.mrf.mxu0
      %v2584 = vadd.f32 0.0, %v2583
      %v2585 = vpop.f32.mrf.mxu0
      %2586 = vmatprep.mubr.bf16.mxu0 0
      %2587 = vmatmul.mubr.bf16.gmra.mxu0 %v2137
      %v2588 = vpop.f32.mrf.mxu0
      %v2589 = vadd.f32 0.0, %v2588
      %v2590 = vpop.f32.mrf.mxu0
      %v2591 = vpop.f32.mrf.mxu0
      %v2592 = vadd.f32 0.0, %v2591
      %v2593 = vpop.f32.mrf.mxu0
      %2594 = vmatprep.mubr.bf16.mxu0 0
      %2595 = vmatmul.mubr.bf16.gmra.mxu0 %v2138
      %v2596 = vpop.f32.mrf.mxu0
      %v2597 = vadd.f32 0.0, %v2596
      %v2598 = vpop.f32.mrf.mxu0
      %v2599 = vpop.f32.mrf.mxu0
      %v2600 = vadd.f32 0.0, %v2599
      %v2601 = vpop.f32.mrf.mxu0
      %2602 = vmatprep.mubr.bf16.mxu0 0
      %2603 = vmatmul.mubr.bf16.gmra.mxu0 %v2139
      %v2604 = vpop.f32.mrf.mxu0
      %v2605 = vadd.f32 0.0, %v2604
      %v2606 = vpop.f32.mrf.mxu0
      %v2607 = vpop.f32.mrf.mxu0
      %v2608 = vadd.f32 0.0, %v2607
      %v2609 = vpop.f32.mrf.mxu0
      %2610 = vmatprep.mubr.bf16.mxu0 0
      %2611 = vmatmul.mubr.bf16.gmra.mxu0 %v2140
      %v2612 = vpop.f32.mrf.mxu0
      %v2613 = vadd.f32 0.0, %v2612
      %v2614 = vpop.f32.mrf.mxu0
      %v2615 = vpop.f32.mrf.mxu0
      %v2616 = vadd.f32 0.0, %v2615
      %v2617 = vpop.f32.mrf.mxu0
      %2618 = vmatprep.mubr.bf16.mxu0 0
      %2619 = vmatmul.mubr.bf16.gmra.mxu0 %v2141
      %v2620 = vpop.f32.mrf.mxu0
      %v2621 = vadd.f32 0.0, %v2620
      %v2622 = vpop.f32.mrf.mxu0
      %v2623 = vpop.f32.mrf.mxu0
      %v2624 = vadd.f32 0.0, %v2623
      %v2625 = vpop.f32.mrf.mxu0
      %2626 = vdwg.mxu0
      %v2627 = vadd.f32 %v2369, %v2501
      %v2628 = vadd.f32 %v2370, %v2504
      %v2629 = vadd.f32 %v2371, %v2509
      %v2630 = vadd.f32 %v2372, %v2512
      %v2631 = vadd.f32 %v2373, %v2517
      %v2632 = vadd.f32 %v2374, %v2520
      %v2633 = vadd.f32 %v2375, %v2525
      %v2634 = vadd.f32 %v2376, %v2528
      %v2635 = vadd.f32 %v2377, %v2533
      %v2636 = vadd.f32 %v2378, %v2536
      %v2637 = vadd.f32 %v2379, %v2541
      %v2638 = vadd.f32 %v2380, %v2544
      %v2639 = vadd.f32 %v2381, %v2549
      %v2640 = vadd.f32 %v2382, %v2552
      %v2641 = vadd.f32 %v2383, %v2557
      %v2642 = vadd.f32 %v2384, %v2560
      %v2643 = vadd.f32 %v2385, %v2565
      %v2644 = vadd.f32 %v2386, %v2568
      %v2645 = vadd.f32 %v2387, %v2573
      %v2646 = vadd.f32 %v2388, %v2576
      %v2647 = vadd.f32 %v2389, %v2581
      %v2648 = vadd.f32 %v2390, %v2584
      %v2649 = vadd.f32 %v2391, %v2589
      %v2650 = vadd.f32 %v2392, %v2592
      %v2651 = vadd.f32 %v2393, %v2597
      %v2652 = vadd.f32 %v2394, %v2600
      %v2653 = vadd.f32 %v2395, %v2605
      %v2654 = vadd.f32 %v2396, %v2608
      %v2655 = vadd.f32 %v2397, %v2613
      %v2656 = vadd.f32 %v2398, %v2616
      %v2657 = vadd.f32 %v2399, %v2621
      %v2658 = vadd.f32 %v2400, %v2624
      %s2659 = scalar_lea.vmem %s3, 512
      %v2660 = vld [vmem:[%s2659] sm:$0xf]
      %v2661 = vld [vmem:[%s2659 + $0x4] sm:$0xf]
      %v2662 = vld [vmem:[%s2659 + $0x8] sm:$0xf]
      %v2663 = vld [vmem:[%s2659 + $0xc] sm:$0xf]
      %v2664 = vld [vmem:[%s2659 + $0x10] sm:$0xf]
      %v2665 = vld [vmem:[%s2659 + $0x14] sm:$0xf]
      %v2666 = vld [vmem:[%s2659 + $0x18] sm:$0xf]
      %v2667 = vld [vmem:[%s2659 + $0x1c] sm:$0xf]
      %v2668 = vld [vmem:[%s2659 + $0x20] sm:$0xf]
      %v2669 = vld [vmem:[%s2659 + $0x24] sm:$0xf]
      %v2670 = vld [vmem:[%s2659 + $0x28] sm:$0xf]
      %v2671 = vld [vmem:[%s2659 + $0x2c] sm:$0xf]
      %v2672 = vld [vmem:[%s2659 + $0x30] sm:$0xf]
      %v2673 = vld [vmem:[%s2659 + $0x34] sm:$0xf]
      %v2674 = vld [vmem:[%s2659 + $0x38] sm:$0xf]
      %v2675 = vld [vmem:[%s2659 + $0x3c] sm:$0xf]
      %v2692 = vunpack.c.l.b16 %v2660
      %v2693 = vunpack.c.l.b16 %v2661
      %v2694 = vunpack.c.l.b16 %v2662
      %v2695 = vunpack.c.l.b16 %v2663
      %v2696 = vunpack.c.l.b16 %v2664
      %v2697 = vunpack.c.l.b16 %v2665
      %v2698 = vunpack.c.l.b16 %v2666
      %v2699 = vunpack.c.l.b16 %v2667
      %v2700 = vunpack.c.l.b16 %v2668
      %v2701 = vunpack.c.l.b16 %v2669
      %v2702 = vunpack.c.l.b16 %v2670
      %v2703 = vunpack.c.l.b16 %v2671
      %v2704 = vunpack.c.l.b16 %v2672
      %v2705 = vunpack.c.l.b16 %v2673
      %v2706 = vunpack.c.l.b16 %v2674
      %v2707 = vunpack.c.l.b16 %v2675
      %v2708 = vpack.c.b16 %v2693, %v2692
      %v2709 = vpack.c.b16 %v2695, %v2694
      %v2710 = vpack.c.b16 %v2697, %v2696
      %v2711 = vpack.c.b16 %v2699, %v2698
      %v2712 = vpack.c.b16 %v2701, %v2700
      %v2713 = vpack.c.b16 %v2703, %v2702
      %v2714 = vpack.c.b16 %v2705, %v2704
      %v2715 = vpack.c.b16 %v2707, %v2706
      %2724 = vmatprep.subr.bf16.mxu0 0
      %2725 = vmatpush1.bf16.msra.mxu0 %v2715
      %2726 = vmatprep.subr.bf16.mxu0 0
      %2727 = vmatpush1.bf16.msra.mxu0 %v2714
      %2728 = vmatprep.subr.bf16.mxu0 0
      %2729 = vmatpush1.bf16.msra.mxu0 %v2713
      %2730 = vmatprep.subr.bf16.mxu0 0
      %2731 = vmatpush1.bf16.msra.mxu0 %v2712
      %2732 = vmatprep.subr.bf16.mxu0 0
      %2733 = vmatpush1.bf16.msra.mxu0 %v2711
      %2734 = vmatprep.subr.bf16.mxu0 0
      %2735 = vmatpush1.bf16.msra.mxu0 %v2710
      %2736 = vmatprep.subr.bf16.mxu0 0
      %2737 = vmatpush1.bf16.msra.mxu0 %v2709
      %2738 = vmatprep.subr.bf16.mxu0 0
      %2739 = vmatpush1.bf16.msra.mxu0 %v2708
      %2740 = vmatprep.subr.bf16.mxu0 0
      %2741 = vmatpush2.bf16.msra.mxu0 0
      %2742 = vmatprep.subr.bf16.mxu0 0
      %2743 = vmatpush2.bf16.msra.mxu0 0
      %2744 = vmatprep.subr.bf16.mxu0 0
      %2745 = vmatpush2.bf16.msra.mxu0 0
      %2746 = vmatprep.subr.bf16.mxu0 0
      %2747 = vmatpush2.bf16.msra.mxu0 0
      %2748 = vmatprep.subr.bf16.mxu0 0
      %2749 = vmatpush2.bf16.msra.mxu0 0
      %2750 = vmatprep.subr.bf16.mxu0 0
      %2751 = vmatpush2.bf16.msra.mxu0 0
      %2752 = vmatprep.subr.bf16.mxu0 0
      %2753 = vmatpush2.bf16.msra.mxu0 0
      %2754 = vmatprep.subr.bf16.mxu0 0
      %2755 = vmatpush2.bf16.msra.mxu0 0
      %2756 = vmatprep.mubr.bf16.mxu0 0
      %2757 = vmatmul.mubr.bf16.gmra.mxu0 %v2127
      %v2758 = vpop.f32.mrf.mxu0
      %v2759 = vadd.f32 0.0, %v2758
      %v2760 = vpop.f32.mrf.mxu0
      %v2761 = vpop.f32.mrf.mxu0
      %v2762 = vadd.f32 0.0, %v2761
      %v2763 = vpop.f32.mrf.mxu0
      %2764 = vmatprep.mubr.bf16.mxu0 0
      %2765 = vmatmul.mubr.bf16.gmra.mxu0 %v2128
      %v2766 = vpop.f32.mrf.mxu0
      %v2767 = vadd.f32 0.0, %v2766
      %v2768 = vpop.f32.mrf.mxu0
      %v2769 = vpop.f32.mrf.mxu0
      %v2770 = vadd.f32 0.0, %v2769
      %v2771 = vpop.f32.mrf.mxu0
      %2772 = vmatprep.mubr.bf16.mxu0 0
      %2773 = vmatmul.mubr.bf16.gmra.mxu0 %v2129
      %v2774 = vpop.f32.mrf.mxu0
      %v2775 = vadd.f32 0.0, %v2774
      %v2776 = vpop.f32.mrf.mxu0
      %v2777 = vpop.f32.mrf.mxu0
      %v2778 = vadd.f32 0.0, %v2777
      %v2779 = vpop.f32.mrf.mxu0
      %2780 = vmatprep.mubr.bf16.mxu0 0
      %2781 = vmatmul.mubr.bf16.gmra.mxu0 %v2130
      %v2782 = vpop.f32.mrf.mxu0
      %v2783 = vadd.f32 0.0, %v2782
      %v2784 = vpop.f32.mrf.mxu0
      %v2785 = vpop.f32.mrf.mxu0
      %v2786 = vadd.f32 0.0, %v2785
      %v2787 = vpop.f32.mrf.mxu0
      %2788 = vmatprep.mubr.bf16.mxu0 0
      %2789 = vmatmul.mubr.bf16.gmra.mxu0 %v2131
      %v2790 = vpop.f32.mrf.mxu0
      %v2791 = vadd.f32 0.0, %v2790
      %v2792 = vpop.f32.mrf.mxu0
      %v2793 = vpop.f32.mrf.mxu0
      %v2794 = vadd.f32 0.0, %v2793
      %v2795 = vpop.f32.mrf.mxu0
      %2796 = vmatprep.mubr.bf16.mxu0 0
      %2797 = vmatmul.mubr.bf16.gmra.mxu0 %v2132
      %v2798 = vpop.f32.mrf.mxu0
      %v2799 = vadd.f32 0.0, %v2798
      %v2800 = vpop.f32.mrf.mxu0
      %v2801 = vpop.f32.mrf.mxu0
      %v2802 = vadd.f32 0.0, %v2801
      %v2803 = vpop.f32.mrf.mxu0
      %2804 = vmatprep.mubr.bf16.mxu0 0
      %2805 = vmatmul.mubr.bf16.gmra.mxu0 %v2133
      %v2806 = vpop.f32.mrf.mxu0
      %v2807 = vadd.f32 0.0, %v2806
      %v2808 = vpop.f32.mrf.mxu0
      %v2809 = vpop.f32.mrf.mxu0
      %v2810 = vadd.f32 0.0, %v2809
      %v2811 = vpop.f32.mrf.mxu0
      %2812 = vmatprep.mubr.bf16.mxu0 0
      %2813 = vmatmul.mubr.bf16.gmra.mxu0 %v2134
      %v2814 = vpop.f32.mrf.mxu0
      %v2815 = vadd.f32 0.0, %v2814
      %v2816 = vpop.f32.mrf.mxu0
      %v2817 = vpop.f32.mrf.mxu0
      %v2818 = vadd.f32 0.0, %v2817
      %v2819 = vpop.f32.mrf.mxu0
      %2820 = vmatprep.mubr.bf16.mxu0 0
      %2821 = vmatmul.mubr.bf16.gmra.mxu0 %v2135
      %v2822 = vpop.f32.mrf.mxu0
      %v2823 = vadd.f32 0.0, %v2822
      %v2824 = vpop.f32.mrf.mxu0
      %v2825 = vpop.f32.mrf.mxu0
      %v2826 = vadd.f32 0.0, %v2825
      %v2827 = vpop.f32.mrf.mxu0
      %2828 = vmatprep.mubr.bf16.mxu0 0
      %2829 = vmatmul.mubr.bf16.gmra.mxu0 %v2136
      %v2830 = vpop.f32.mrf.mxu0
      %v2831 = vadd.f32 0.0, %v2830
      %v2832 = vpop.f32.mrf.mxu0
      %v2833 = vpop.f32.mrf.mxu0
      %v2834 = vadd.f32 0.0, %v2833
      %v2835 = vpop.f32.mrf.mxu0
      %2836 = vmatprep.mubr.bf16.mxu0 0
      %2837 = vmatmul.mubr.bf16.gmra.mxu0 %v2137
      %v2838 = vpop.f32.mrf.mxu0
      %v2839 = vadd.f32 0.0, %v2838
      %v2840 = vpop.f32.mrf.mxu0
      %v2841 = vpop.f32.mrf.mxu0
      %v2842 = vadd.f32 0.0, %v2841
      %v2843 = vpop.f32.mrf.mxu0
      %2844 = vmatprep.mubr.bf16.mxu0 0
      %2845 = vmatmul.mubr.bf16.gmra.mxu0 %v2138
      %v2846 = vpop.f32.mrf.mxu0
      %v2847 = vadd.f32 0.0, %v2846
      %v2848 = vpop.f32.mrf.mxu0
      %v2849 = vpop.f32.mrf.mxu0
      %v2850 = vadd.f32 0.0, %v2849
      %v2851 = vpop.f32.mrf.mxu0
      %2852 = vmatprep.mubr.bf16.mxu0 0
      %2853 = vmatmul.mubr.bf16.gmra.mxu0 %v2139
      %v2854 = vpop.f32.mrf.mxu0
      %v2855 = vadd.f32 0.0, %v2854
      %v2856 = vpop.f32.mrf.mxu0
      %v2857 = vpop.f32.mrf.mxu0
      %v2858 = vadd.f32 0.0, %v2857
      %v2859 = vpop.f32.mrf.mxu0
      %2860 = vmatprep.mubr.bf16.mxu0 0
      %2861 = vmatmul.mubr.bf16.gmra.mxu0 %v2140
      %v2862 = vpop.f32.mrf.mxu0
      %v2863 = vadd.f32 0.0, %v2862
      %v2864 = vpop.f32.mrf.mxu0
      %v2865 = vpop.f32.mrf.mxu0
      %v2866 = vadd.f32 0.0, %v2865
      %v2867 = vpop.f32.mrf.mxu0
      %2868 = vmatprep.mubr.bf16.mxu0 0
      %2869 = vmatmul.mubr.bf16.gmra.mxu0 %v2141
      %v2870 = vpop.f32.mrf.mxu0
      %v2871 = vadd.f32 0.0, %v2870
      %v2872 = vpop.f32.mrf.mxu0
      %v2873 = vpop.f32.mrf.mxu0
      %v2874 = vadd.f32 0.0, %v2873
      %v2875 = vpop.f32.mrf.mxu0
      %2876 = vmatprep.mubr.bf16.mxu0 0
      %2877 = vmatmul.mubr.bf16.gmra.mxu0 %v2142
      %v2878 = vpop.f32.mrf.mxu0
      %v2879 = vadd.f32 0.0, %v2878
      %v2880 = vpop.f32.mrf.mxu0
      %v2881 = vpop.f32.mrf.mxu0
      %v2882 = vadd.f32 0.0, %v2881
      %v2883 = vpop.f32.mrf.mxu0
      %2884 = vdwg.mxu0
      %v2885 = vadd.f32 %v2627, %v2759
      %v2886 = vadd.f32 %v2628, %v2762
      %v2887 = vadd.f32 %v2629, %v2767
      %v2888 = vadd.f32 %v2630, %v2770
      %v2889 = vadd.f32 %v2631, %v2775
      %v2890 = vadd.f32 %v2632, %v2778
      %v2891 = vadd.f32 %v2633, %v2783
      %v2892 = vadd.f32 %v2634, %v2786
      %v2893 = vadd.f32 %v2635, %v2791
      %v2894 = vadd.f32 %v2636, %v2794
      %v2895 = vadd.f32 %v2637, %v2799
      %v2896 = vadd.f32 %v2638, %v2802
      %v2897 = vadd.f32 %v2639, %v2807
      %v2898 = vadd.f32 %v2640, %v2810
      %v2899 = vadd.f32 %v2641, %v2815
      %v2900 = vadd.f32 %v2642, %v2818
      %v2901 = vadd.f32 %v2643, %v2823
      %v2902 = vadd.f32 %v2644, %v2826
      %v2903 = vadd.f32 %v2645, %v2831
      %v2904 = vadd.f32 %v2646, %v2834
      %v2905 = vadd.f32 %v2647, %v2839
      %v2906 = vadd.f32 %v2648, %v2842
      %v2907 = vadd.f32 %v2649, %v2847
      %v2908 = vadd.f32 %v2650, %v2850
      %v2909 = vadd.f32 %v2651, %v2855
      %v2910 = vadd.f32 %v2652, %v2858
      %v2911 = vadd.f32 %v2653, %v2863
      %v2912 = vadd.f32 %v2654, %v2866
      %v2913 = vadd.f32 %v2655, %v2871
      %v2914 = vadd.f32 %v2656, %v2874
      %v2915 = vadd.f32 %v2657, %v2879
      %v2916 = vadd.f32 %v2658, %v2882
      %v2917 = vadd.f32 %v2885, %v2886
      %v2918 = vadd.f32 %v2917, %v2887
      %v2919 = vadd.f32 %v2918, %v2888
      %v2920 = vadd.f32 %v2919, %v2889
      %v2921 = vadd.f32 %v2920, %v2890
      %v2922 = vadd.f32 %v2921, %v2891
      %v2923 = vadd.f32 %v2922, %v2892
      %v2924 = vadd.f32 %v2923, %v2893
      %v2925 = vadd.f32 %v2924, %v2894
      %v2926 = vadd.f32 %v2925, %v2895
      %v2927 = vadd.f32 %v2926, %v2896
      %v2928 = vadd.f32 %v2927, %v2897
      %v2929 = vadd.f32 %v2928, %v2898
      %v2930 = vadd.f32 %v2929, %v2899
      %v2931 = vadd.f32 %v2930, %v2900
      %v2932 = vadd.f32 %v2931, %v2901
      %v2933 = vadd.f32 %v2932, %v2902
      %v2934 = vadd.f32 %v2933, %v2903
      %v2935 = vadd.f32 %v2934, %v2904
      %v2936 = vadd.f32 %v2935, %v2905
      %v2937 = vadd.f32 %v2936, %v2906
      %v2938 = vadd.f32 %v2937, %v2907
      %v2939 = vadd.f32 %v2938, %v2908
      %v2940 = vadd.f32 %v2939, %v2909
      %v2941 = vadd.f32 %v2940, %v2910
      %v2942 = vadd.f32 %v2941, %v2911
      %v2943 = vadd.f32 %v2942, %v2912
      %v2944 = vadd.f32 %v2943, %v2913
      %v2945 = vadd.f32 %v2944, %v2914
      %v2946 = vadd.f32 %v2945, %v2915
      %v2947 = vadd.f32 %v2946, %v2916
      %v2948 = vrot.slane %v2947, 4
      %v2949 = vadd.f32 %v2947, %v2948
      %v2950 = vrot.slane %v2949, 2
      %v2951 = vadd.f32 %v2949, %v2950
      %v2952 = vrot.slane %v2951, 1
      %v2953 = vadd.f32 %v2951, %v2952
      %v2954 = vmul.f32 %v2885, %v2885
      %v2955 = vmul.f32 %v2886, %v2886
      %v2956 = vmul.f32 %v2887, %v2887
      %v2957 = vmul.f32 %v2888, %v2888
      %v2958 = vmul.f32 %v2889, %v2889
      %v2959 = vmul.f32 %v2890, %v2890
      %v2960 = vmul.f32 %v2891, %v2891
      %v2961 = vmul.f32 %v2892, %v2892
      %v2962 = vmul.f32 %v2893, %v2893
      %v2963 = vmul.f32 %v2894, %v2894
      %v2964 = vmul.f32 %v2895, %v2895
      %v2965 = vmul.f32 %v2896, %v2896
      %v2966 = vmul.f32 %v2897, %v2897
      %v2967 = vmul.f32 %v2898, %v2898
      %v2968 = vmul.f32 %v2899, %v2899
      %v2969 = vmul.f32 %v2900, %v2900
      %v2970 = vmul.f32 %v2901, %v2901
      %v2971 = vmul.f32 %v2902, %v2902
      %v2972 = vmul.f32 %v2903, %v2903
      %v2973 = vmul.f32 %v2904, %v2904
      %v2974 = vmul.f32 %v2905, %v2905
      %v2975 = vmul.f32 %v2906, %v2906
      %v2976 = vmul.f32 %v2907, %v2907
      %v2977 = vmul.f32 %v2908, %v2908
      %v2978 = vmul.f32 %v2909, %v2909
      %v2979 = vmul.f32 %v2910, %v2910
      %v2980 = vmul.f32 %v2911, %v2911
      %v2981 = vmul.f32 %v2912, %v2912
      %v2982 = vmul.f32 %v2913, %v2913
      %v2983 = vmul.f32 %v2914, %v2914
      %v2984 = vmul.f32 %v2915, %v2915
      %v2985 = vmul.f32 %v2916, %v2916
      %v2986 = vadd.f32 %v2954, %v2955
      %v2987 = vadd.f32 %v2986, %v2956
      %v2988 = vadd.f32 %v2987, %v2957
      %v2989 = vadd.f32 %v2988, %v2958
      %v2990 = vadd.f32 %v2989, %v2959
      %v2991 = vadd.f32 %v2990, %v2960
      %v2992 = vadd.f32 %v2991, %v2961
      %v2993 = vadd.f32 %v2992, %v2962
      %v2994 = vadd.f32 %v2993, %v2963
      %v2995 = vadd.f32 %v2994, %v2964
      %v2996 = vadd.f32 %v2995, %v2965
      %v2997 = vadd.f32 %v2996, %v2966
      %v2998 = vadd.f32 %v2997, %v2967
      %v2999 = vadd.f32 %v2998, %v2968
      %v3000 = vadd.f32 %v2999, %v2969
      %v3001 = vadd.f32 %v3000, %v2970
      %v3002 = vadd.f32 %v3001, %v2971
      %v3003 = vadd.f32 %v3002, %v2972
      %v3004 = vadd.f32 %v3003, %v2973
      %v3005 = vadd.f32 %v3004, %v2974
      %v3006 = vadd.f32 %v3005, %v2975
      %v3007 = vadd.f32 %v3006, %v2976
      %v3008 = vadd.f32 %v3007, %v2977
      %v3009 = vadd.f32 %v3008, %v2978
      %v3010 = vadd.f32 %v3009, %v2979
      %v3011 = vadd.f32 %v3010, %v2980
      %v3012 = vadd.f32 %v3011, %v2981
      %v3013 = vadd.f32 %v3012, %v2982
      %v3014 = vadd.f32 %v3013, %v2983
      %v3015 = vadd.f32 %v3014, %v2984
      %v3016 = vadd.f32 %v3015, %v2985
      %v3017 = vrot.slane %v3016, 4
      %v3018 = vadd.f32 %v3016, %v3017
      %v3019 = vrot.slane %v3018, 2
      %v3020 = vadd.f32 %v3018, %v3019
      %v3021 = vrot.slane %v3020, 1
      %v3022 = vadd.f32 %v3020, %v3021
      %vm3023 = vcmask 1040384
      %v3024 = vsel %vm3023, %v2953, %v3022
      %3025 = vst [vmem:[%s235] sm:$0x3] %v3024
      %v3026 = vpack.c.bf16 %v2886, %v2885
      %v3027 = vpack.c.bf16 %v2888, %v2887
      %v3028 = vpack.c.bf16 %v2890, %v2889
      %v3029 = vpack.c.bf16 %v2892, %v2891
      %v3030 = vpack.c.bf16 %v2894, %v2893
      %v3031 = vpack.c.bf16 %v2896, %v2895
      %v3032 = vpack.c.bf16 %v2898, %v2897
      %v3033 = vpack.c.bf16 %v2900, %v2899
      %v3034 = vpack.c.bf16 %v2902, %v2901
      %v3035 = vpack.c.bf16 %v2904, %v2903
      %v3036 = vpack.c.bf16 %v2906, %v2905
      %v3037 = vpack.c.bf16 %v2908, %v2907
      %v3038 = vpack.c.bf16 %v2910, %v2909
      %v3039 = vpack.c.bf16 %v2912, %v2911
      %v3040 = vpack.c.bf16 %v2914, %v2913
      %v3041 = vpack.c.bf16 %v2916, %v2915
      %v3058 = vunpack.c.l.b16 %v3026
      %v3059 = vunpack.c.h.b16 %v3026
      %v3060 = vunpack.c.l.b16 %v3027
      %v3061 = vunpack.c.h.b16 %v3027
      %v3062 = vunpack.c.l.b16 %v3028
      %v3063 = vunpack.c.h.b16 %v3028
      %v3064 = vunpack.c.l.b16 %v3029
      %v3065 = vunpack.c.h.b16 %v3029
      %v3066 = vunpack.c.l.b16 %v3030
      %v3067 = vunpack.c.h.b16 %v3030
      %v3068 = vunpack.c.l.b16 %v3031
      %v3069 = vunpack.c.h.b16 %v3031
      %v3070 = vunpack.c.l.b16 %v3032
      %v3071 = vunpack.c.h.b16 %v3032
      %v3072 = vunpack.c.l.b16 %v3033
      %v3073 = vunpack.c.h.b16 %v3033
      %v3074 = vunpack.c.l.b16 %v3034
      %v3075 = vunpack.c.h.b16 %v3034
      %v3076 = vunpack.c.l.b16 %v3035
      %v3077 = vunpack.c.h.b16 %v3035
      %v3078 = vunpack.c.l.b16 %v3036
      %v3079 = vunpack.c.h.b16 %v3036
      %v3080 = vunpack.c.l.b16 %v3037
      %v3081 = vunpack.c.h.b16 %v3037
      %v3082 = vunpack.c.l.b16 %v3038
      %v3083 = vunpack.c.h.b16 %v3038
      %v3084 = vunpack.c.l.b16 %v3039
      %v3085 = vunpack.c.h.b16 %v3039
      %v3086 = vunpack.c.l.b16 %v3040
      %v3087 = vunpack.c.h.b16 %v3040
      %v3088 = vunpack.c.l.b16 %v3041
      %v3089 = vunpack.c.h.b16 %v3041
      %v3090 = vpack.c.b16 %v3058, %v3058
      %v3091 = vpack.c.b16 %v3059, %v3059
      %v3092 = vpack.c.b16 %v3060, %v3060
      %v3093 = vpack.c.b16 %v3061, %v3061
      %v3094 = vpack.c.b16 %v3062, %v3062
      %v3095 = vpack.c.b16 %v3063, %v3063
      %v3096 = vpack.c.b16 %v3064, %v3064
      %v3097 = vpack.c.b16 %v3065, %v3065
      %v3098 = vpack.c.b16 %v3066, %v3066
      %v3099 = vpack.c.b16 %v3067, %v3067
      %v3100 = vpack.c.b16 %v3068, %v3068
      %v3101 = vpack.c.b16 %v3069, %v3069
      %v3102 = vpack.c.b16 %v3070, %v3070
      %v3103 = vpack.c.b16 %v3071, %v3071
      %v3104 = vpack.c.b16 %v3072, %v3072
      %v3105 = vpack.c.b16 %v3073, %v3073
      %v3106 = vpack.c.b16 %v3074, %v3074
      %v3107 = vpack.c.b16 %v3075, %v3075
      %v3108 = vpack.c.b16 %v3076, %v3076
      %v3109 = vpack.c.b16 %v3077, %v3077
      %v3110 = vpack.c.b16 %v3078, %v3078
      %v3111 = vpack.c.b16 %v3079, %v3079
      %v3112 = vpack.c.b16 %v3080, %v3080
      %v3113 = vpack.c.b16 %v3081, %v3081
      %v3114 = vpack.c.b16 %v3082, %v3082
      %v3115 = vpack.c.b16 %v3083, %v3083
      %v3116 = vpack.c.b16 %v3084, %v3084
      %v3117 = vpack.c.b16 %v3085, %v3085
      %v3118 = vpack.c.b16 %v3086, %v3086
      %v3119 = vpack.c.b16 %v3087, %v3087
      %v3120 = vpack.c.b16 %v3088, %v3088
      %v3121 = vpack.c.b16 %v3089, %v3089
      %3154 = vst [vmem:[%s231] sm:$0xf] %v3090
      %3155 = vst [vmem:[%s231 + $0x4] sm:$0xf] %v3091
      %3156 = vst [vmem:[%s231 + $0x8] sm:$0xf] %v3092
      %3157 = vst [vmem:[%s231 + $0xc] sm:$0xf] %v3093
      %3158 = vst [vmem:[%s231 + $0x10] sm:$0xf] %v3094
      %3159 = vst [vmem:[%s231 + $0x14] sm:$0xf] %v3095
      %3160 = vst [vmem:[%s231 + $0x18] sm:$0xf] %v3096
      %3161 = vst [vmem:[%s231 + $0x1c] sm:$0xf] %v3097
      %3162 = vst [vmem:[%s231 + $0x20] sm:$0xf] %v3098
      %3163 = vst [vmem:[%s231 + $0x24] sm:$0xf] %v3099
      %3164 = vst [vmem:[%s231 + $0x28] sm:$0xf] %v3100
      %3165 = vst [vmem:[%s231 + $0x2c] sm:$0xf] %v3101
      %3166 = vst [vmem:[%s231 + $0x30] sm:$0xf] %v3102
      %3167 = vst [vmem:[%s231 + $0x34] sm:$0xf] %v3103
      %3168 = vst [vmem:[%s231 + $0x38] sm:$0xf] %v3104
      %3169 = vst [vmem:[%s231 + $0x3c] sm:$0xf] %v3105
      %3170 = vst [vmem:[%s231 + $0x40] sm:$0xf] %v3106
      %3171 = vst [vmem:[%s231 + $0x44] sm:$0xf] %v3107
      %3172 = vst [vmem:[%s231 + $0x48] sm:$0xf] %v3108
      %3173 = vst [vmem:[%s231 + $0x4c] sm:$0xf] %v3109
      %3174 = vst [vmem:[%s231 + $0x50] sm:$0xf] %v3110
      %3175 = vst [vmem:[%s231 + $0x54] sm:$0xf] %v3111
      %3176 = vst [vmem:[%s231 + $0x58] sm:$0xf] %v3112
      %3177 = vst [vmem:[%s231 + $0x5c] sm:$0xf] %v3113
      %3178 = vst [vmem:[%s231 + $0x60] sm:$0xf] %v3114
      %3179 = vst [vmem:[%s231 + $0x64] sm:$0xf] %v3115
      %3180 = vst [vmem:[%s231 + $0x68] sm:$0xf] %v3116
      %3181 = vst [vmem:[%s231 + $0x6c] sm:$0xf] %v3117
      %3182 = vst [vmem:[%s231 + $0x70] sm:$0xf] %v3118
      %3183 = vst [vmem:[%s231 + $0x74] sm:$0xf] %v3119
      %3184 = vst [vmem:[%s231 + $0x78] sm:$0xf] %v3120
      %3185 = vst [vmem:[%s231 + $0x7c] sm:$0xf] %v3121
      %p3186 = scmp.lt.s32.totalorder %s17, 1
      %s3187 = scalar_select %p3186, %s17, 1
      %s3188 = smul.addr %s3187, 32
      %s3189 = smul.addr %s3188, 4
      %s3190 = scalar_lea.vmem %s4, %s3189
      %p3191 = scmp.lt.s32.totalorder %s17, 1
      %s3192 = scalar_select %p3191, %s17, 1
      %s3193 = smul.addr %s3192, 2
      %s3194 = scalar_lea.vmem %s5, %s3193
      // Predicated region
      $region37: #{basic_block_forward.4} parent=35 // pred_check
        %p3195 = pneg %p124
      $region38: #{basic_block_forward.4} parent=35 // pred_check_branch
        %3197 = sbr.rel (%p3195) target = $region40
      $region39: #{basic_block_forward.4} parent=35 // pred_region
        _
      $region40: #{basic_block_forward.4} parent=35 // pred_fallthru
        _
      // Predicated region
      $region41: #{basic_block_forward.4} parent=35 // pred_check
        %p3198 = pneg %p150
      $region42: #{basic_block_forward.4} parent=35 // pred_check_branch
        %3200 = sbr.rel (%p3198) target = $region44
      $region43: #{basic_block_forward.4} parent=35 // pred_region
        _
      $region44: #{basic_block_forward.4} parent=35 // pred_fallthru
        _
    $region36: #{basic_block_forward.4} parent=5 // pred_fallthru
      _
    %p3201 = scmp.le.s32.totalorder 2, %s12
    // Predicated region
    $region45: #{basic_block_forward.4} parent=5 // pred_check
      %p3202 = pneg %p3201
    $region46: #{basic_block_forward.4} parent=5 // pred_check_branch
      %3204 = sbr.rel (%p3202) target = $region48
    $region47: #{basic_block_forward.4} parent=5 // pred_region
      %s3205 = ssub.s32 %s12, 2
      // Predicated region
      $region49: #{basic_block_forward.4} parent=47 // pred_check
        %p3206 = pneg %p130
      $region50: #{basic_block_forward.4} parent=47 // pred_check_branch
        %3208 = sbr.rel (%p3206) target = $region52
      $region51: #{basic_block_forward.4} parent=47 // pred_region
        %p3209 = scmp.lt.s32.totalorder %s18, 1
        %s3210 = scalar_select %p3209, %s18, 1
        %s3211 = smul.addr %s3210, 32
        %s3212 = smul.addr %s3211, 4
        %s3213 = scalar_lea.vmem %s4, %s3212
      $region52: #{basic_block_forward.4} parent=47 // pred_fallthru
        _
      // Predicated region
      $region53: #{basic_block_forward.4} parent=47 // pred_check
        %p3214 = pneg %p156
      $region54: #{basic_block_forward.4} parent=47 // pred_check_branch
        %3216 = sbr.rel (%p3214) target = $region56
      $region55: #{basic_block_forward.4} parent=47 // pred_region
        %p3217 = scmp.lt.s32.totalorder %s18, 1
        %s3218 = scalar_select %p3217, %s18, 1
        %s3219 = smul.addr %s3218, 2
        %s3220 = scalar_lea.vmem %s5, %s3219
      $region56: #{basic_block_forward.4} parent=47 // pred_fallthru
        _
    $region48: #{basic_block_forward.4} parent=5 // pred_fallthru
      _
  $region6: #{basic_block_forward.4} parent=0 // loop_footer
    %s16 = sadd.s32 1, %s12
  $region7: #{basic_block_forward.4} parent=0 // loop_footer_branch
    %11 = sbr.rel target = $region3
  $region8: #{basic_block_forward.4} parent=0 // loop_exit
    _

// kernel: basic_block_forward.3
$region0: #{basic_block_forward.3}
  #allocation0 [shape = 'u32[]', space=smem, size = 0x4, offset = 0x4, fixed_abs, tag = 'smem constant byte address 0x4 - core index']
  #allocation1 [shape = 'u32[144,128]{1,0:T(1,128)}', space=vmem, size = 0x12000, scoped, tag = 'internal scratch']
  %s0 = inlined_call_operand.vmem [shape: bf16[2,18,18,128], index: 0, kind: input, shape index: {}]
  %s1 = inlined_call_operand.vmem [shape: bf16[9,128,128], index: 1, kind: input, shape index: {}]
  %s2 = inlined_call_operand.vmem [shape: bf16[2,16,16,128], index: 2, kind: output, shape index: {0}]
  %s3 = inlined_call_operand.vmem [shape: f32[2,2,128], index: 3, kind: output, shape index: {1}]
  %4 = xla_tuple %s2, %s3
  %s5 = sld [smem:[#allocation0]]
  $region49: #{basic_block_forward.3} parent=0
    _
  %s7 = ssub.s32 1, %s5
  %s8 = scalar_select 0, %s7, %s5
  loop: start=0, step=1, limit=4
  $region2: #{basic_block_forward.3} parent=0 // loop_pre_header
    _
  $region3: #{basic_block_forward.3} parent=0 // loop_header
    %s10 = sphi 0, %s14
    %p11 = scmp.ge.s32.totalorder %s10, 4
    %s20 = sphi 0, %s22
    %s23 = sphi 0, %s20
    %s24 = sphi 0, %s23
    %s40 = sphi 0, %s24
    %s44 = sphi 0, %s44
    %s46 = sphi 0, %s44
    %s47 = sphi 0, %s46
    %s61 = sphi 0, %s47
    %s67 = sphi 0, %s69
    %s70 = sphi 0, %s67
    %s71 = sphi 0, %s70
    %s87 = sphi 0, %s71
    %s93 = sphi 0, %s95
    %s96 = sphi 0, %s93
    %s97 = sphi 0, %s96
    %s113 = sphi 0, %s97
  $region4: #{basic_block_forward.3} parent=0 // loop_header_branch
    %13 = sbr.rel (%p11) target = $region8
  $region5: #{basic_block_forward.3} parent=0 // loop_body
    %s15 = ssub.s32 %s10, 1
    %s16 = ssub.s32 %s10, 2
    %s17 = sadd.s32 %s10, 1
    %s18 = ssub.s32 %s10, %s17
    %p19 = scmp.eq.s32.totalorder %s18, 0
    %s21 = sadd.s32 %s20, 1
    %s22 = scalar_select %p19, %s20, %s21
    %p25 = pneg %p19
    %p26 = scmp.eq.s32.totalorder %s10, 1
    %p27 = por %p25, %p26
    %p28 = scmp.ne.s32.totalorder %s20, %s23
    %p29 = scmp.eq.s32.totalorder %s10, 0
    %p30 = por %p28, %p29
    %p31 = scmp.ne.s32.totalorder %s20, %s23
    %p32 = scmp.eq.s32.totalorder %s15, 1
    %p33 = por %p31, %p32
    %p34 = scmp.ne.s32.totalorder %s23, %s24
    %p35 = scmp.eq.s32.totalorder %s15, 0
    %p36 = por %p34, %p35
    %p37 = scmp.ne.s32.totalorder %s23, %s24
    %p38 = scmp.eq.s32.totalorder %s16, 1
    %p39 = por %p37, %p38
    %p41 = scmp.ne.s32.totalorder %s24, %s40
    %p42 = scmp.eq.s32.totalorder %s16, 0
    %p43 = por %p41, %p42
    %s45 = sadd.s32 %s44, 1
    %p48 = scmp.eq.s32.totalorder %s10, 1
    %p49 = scmp.ne.s32.totalorder %s44, %s46
    %p50 = scmp.eq.s32.totalorder %s10, 0
    %p51 = por %p49, %p50
    %p52 = scmp.ne.s32.totalorder %s44, %s46
    %p53 = scmp.eq.s32.totalorder %s15, 1
    %p54 = por %p52, %p53
    %p55 = scmp.ne.s32.totalorder %s46, %s47
    %p56 = scmp.eq.s32.totalorder %s15, 0
    %p57 = por %p55, %p56
    %p58 = scmp.ne.s32.totalorder %s46, %s47
    %p59 = scmp.eq.s32.totalorder %s16, 1
    %p60 = por %p58, %p59
    %p62 = scmp.ne.s32.totalorder %s47, %s61
    %p63 = scmp.eq.s32.totalorder %s16, 0
    %p64 = por %p62, %p63
    %s65 = ssub.s32 %s10, %s17
    %p66 = scmp.eq.s32.totalorder %s65, 0
    %s68 = sadd.s32 %s67, 1
    %s69 = scalar_select %p66, %s67, %s68
    %p72 = pneg %p66
    %p73 = scmp.eq.s32.totalorder %s10, 1
    %p74 = por %p72, %p73
    %p75 = scmp.ne.s32.totalorder %s67, %s70
    %p76 = scmp.eq.s32.totalorder %s10, 0
    %p77 = por %p75, %p76
    %p78 = scmp.ne.s32.totalorder %s67, %s70
    %p79 = scmp.eq.s32.totalorder %s15, 1
    %p80 = por %p78, %p79
    %p81 = scmp.ne.s32.totalorder %s70, %s71
    %p82 = scmp.eq.s32.totalorder %s15, 0
    %p83 = por %p81, %p82
    %p84 = scmp.ne.s32.totalorder %s70, %s71
    %p85 = scmp.eq.s32.totalorder %s16, 1
    %p86 = por %p84, %p85
    %p88 = scmp.ne.s32.totalorder %s71, %s87
    %p89 = scmp.eq.s32.totalorder %s16, 0
    %p90 = por %p88, %p89
    %s91 = ssub.s32 %s10, %s17
    %p92 = scmp.eq.s32.totalorder %s91, 0
    %s94 = sadd.s32 %s93, 1
    %s95 = scalar_select %p92, %s93, %s94
    %p98 = pneg %p92
    %p99 = scmp.eq.s32.totalorder %s10, 1
    %p100 = por %p98, %p99
    %p101 = scmp.ne.s32.totalorder %s93, %s96
    %p102 = scmp.eq.s32.totalorder %s10, 0
    %p103 = por %p101, %p102
    %p104 = scmp.ne.s32.totalorder %s93, %s96
    %p105 = scmp.eq.s32.totalorder %s15, 1
    %p106 = por %p104, %p105
    %p107 = scmp.ne.s32.totalorder %s96, %s97
    %p108 = scmp.eq.s32.totalorder %s15, 0
    %p109 = por %p107, %p108
    %p110 = scmp.ne.s32.totalorder %s96, %s97
    %p111 = scmp.eq.s32.totalorder %s16, 1
    %p112 = por %p110, %p111
    %p114 = scmp.ne.s32.totalorder %s97, %s113
    %p115 = scmp.eq.s32.totalorder %s16, 0
    %p116 = por %p114, %p115
    %p117 = scmp.le.s32.totalorder 1, %s10
    %p118 = scmp.lt.s32.totalorder %s10, 3
    %p119 = pnand %p117, %p118
    %p120 = pneg %p119
    // Predicated region
    $region9: #{basic_block_forward.3} parent=5 // pred_check
      _
    $region10: #{basic_block_forward.3} parent=5 // pred_check_branch
      %122 = sbr.rel (%p119) target = $region12
    $region11: #{basic_block_forward.3} parent=5 // pred_region
      %s123 = ssub.s32 %s10, 1
      // Predicated region
      $region13: #{basic_block_forward.3} parent=11 // pred_check
        %p124 = pneg %p57
      $region14: #{basic_block_forward.3} parent=11 // pred_check_branch
        %126 = sbr.rel (%p124) target = $region16
      $region15: #{basic_block_forward.3} parent=11 // pred_region
        _
      $region16: #{basic_block_forward.3} parent=11 // pred_fallthru
        _
    $region12: #{basic_block_forward.3} parent=5 // pred_fallthru
      _
    %p127 = scmp.lt.s32.totalorder %s10, 2
    // Predicated region
    $region17: #{basic_block_forward.3} parent=5 // pred_check
      %p128 = pneg %p127
    $region18: #{basic_block_forward.3} parent=5 // pred_check_branch
      %130 = sbr.rel (%p128) target = $region20
    $region19: #{basic_block_forward.3} parent=5 // pred_region
      // Predicated region
      $region21: #{basic_block_forward.3} parent=19 // pred_check
        %p131 = pneg %p30
      $region22: #{basic_block_forward.3} parent=19 // pred_check_branch
        %133 = sbr.rel (%p131) target = $region24
      $region23: #{basic_block_forward.3} parent=19 // pred_region
        %p134 = scmp.lt.s32.totalorder %s10, 1
        %s135 = scalar_select %p134, %s10, 1
        %s136 = smul.addr %s135, 54
        %s137 = smul.addr %s136, 4
        %s138 = scalar_lea.vmem %s0, %s137
      $region24: #{basic_block_forward.3} parent=19 // pred_fallthru
        _
    $region20: #{basic_block_forward.3} parent=5 // pred_fallthru
      _
    %p139 = scmp.le.s32.totalorder 1, %s10
    %p140 = scmp.lt.s32.totalorder %s10, 3
    %p141 = pnand %p139, %p140
    %p142 = pneg %p141
    // Predicated region
    $region25: #{basic_block_forward.3} parent=5 // pred_check
      _
    $region26: #{basic_block_forward.3} parent=5 // pred_check_branch
      %144 = sbr.rel (%p141) target = $region28
    $region27: #{basic_block_forward.3} parent=5 // pred_region
      %s145 = ssub.s32 %s10, 1
      %p146 = scmp.lt.s32.totalorder %s15, 1
      %s147 = scalar_select %p146, %s15, 1
      %s148 = smul.addr %s147, 54
      %s149 = smul.addr %s148, 4
      %s150 = scalar_lea.vmem %s0, %s149
      %p151 = pneg %p36
      %p152 = pneg %p33
      %p153 = pneg %p57
      %p154 = pneg %p54
      %p155 = pneg %p83
      %p156 = pneg %p80
      %p157 = scmp.lt.s32.totalorder %s15, 1
      %s158 = scalar_select %p157, %s15, 1
      %s159 = smul.addr %s158, 32
      %s160 = smul.addr %s159, 4
      %s161 = scalar_lea.vmem %s2, %s160
      %p162 = pneg %p109
      %p163 = pneg %p106
      %p164 = scmp.lt.s32.totalorder %s15, 1
      %s165 = scalar_select %p164, %s15, 1
      %s166 = smul.addr %s165, 2
      %s167 = scalar_lea.vmem %s3, %s166
      %p168 = scmp.lt.s32.totalorder %s15, 1
      %s169 = scalar_select %p168, %s15, 1
      %s170 = smul.addr %s169, 54
      %s171 = smul.addr %s170, 4
      %s172 = scalar_lea.vmem %s0, %s171
      %p173 = scmp.lt.s32.totalorder %s15, 1
      %s174 = scalar_select %p173, %s15, 1
      %s175 = smul.addr %s174, 32
      %s176 = smul.addr %s175, 4
      %s177 = scalar_lea.vmem %s2, %s176
      %p178 = scmp.lt.s32.totalorder %s15, 1
      %s179 = scalar_select %p178, %s15, 1
      %s180 = smul.addr %s179, 2
      %s181 = scalar_lea.vmem %s3, %s180
      %v183 = vld [vmem:[%s172] sm:$0xf]
      %v184 = vld [vmem:[%s172 + $0x4] sm:$0xf]
      %v185 = vld [vmem:[%s172 + $0xc] sm:$0xf]
      %v186 = vld [vmem:[%s172 + $0x10] sm:$0xf]
      %v187 = vld [vmem:[%s172 + $0x18] sm:$0xf]
      %v188 = vld [vmem:[%s172 + $0x1c] sm:$0xf]
      %v189 = vld [vmem:[%s172 + $0x24] sm:$0xf]
      %v190 = vld [vmem:[%s172 + $0x28] sm:$0xf]
      %v191 = vld [vmem:[%s172 + $0x30] sm:$0xf]
      %v192 = vld [vmem:[%s172 + $0x34] sm:$0xf]
      %v193 = vld [vmem:[%s172 + $0x3c] sm:$0xf]
      %v194 = vld [vmem:[%s172 + $0x40] sm:$0xf]
      %v195 = vld [vmem:[%s172 + $0x48] sm:$0xf]
      %v196 = vld [vmem:[%s172 + $0x4c] sm:$0xf]
      %v197 = vld [vmem:[%s172 + $0x54] sm:$0xf]
      %v198 = vld [vmem:[%s172 + $0x58] sm:$0xf]
      %v199 = vld [vmem:[%s172 + $0x60] sm:$0xf]
      %v200 = vld [vmem:[%s172 + $0x64] sm:$0xf]
      %v201 = vld [vmem:[%s172 + $0x6c] sm:$0xf]
      %v202 = vld [vmem:[%s172 + $0x70] sm:$0xf]
      %v203 = vld [vmem:[%s172 + $0x78] sm:$0xf]
      %v204 = vld [vmem:[%s172 + $0x7c] sm:$0xf]
      %v205 = vld [vmem:[%s172 + $0x84] sm:$0xf]
      %v206 = vld [vmem:[%s172 + $0x88] sm:$0xf]
      %v207 = vld [vmem:[%s172 + $0x90] sm:$0xf]
      %v208 = vld [vmem:[%s172 + $0x94] sm:$0xf]
      %v209 = vld [vmem:[%s172 + $0x9c] sm:$0xf]
      %v210 = vld [vmem:[%s172 + $0xa0] sm:$0xf]
      %v211 = vld [vmem:[%s172 + $0xa8] sm:$0xf]
      %v212 = vld [vmem:[%s172 + $0xac] sm:$0xf]
      %v213 = vld [vmem:[%s172 + $0xb4] sm:$0xf]
      %v214 = vld [vmem:[%s172 + $0xb8] sm:$0xf]
      %v215 = vld [vmem:[%s172 + $0xc0] sm:$0xf]
      %v216 = vld [vmem:[%s172 + $0xc4] sm:$0xf]
      %v217 = vld [vmem:[%s172 + $0xcc] sm:$0xf]
      %v218 = vld [vmem:[%s172 + $0xd0] sm:$0xf]
      %v219 = vld [vmem:[%s1] sm:$0xf]
      %v220 = vld [vmem:[%s1 + $0x4] sm:$0xf]
      %v221 = vld [vmem:[%s1 + $0x8] sm:$0xf]
      %v222 = vld [vmem:[%s1 + $0xc] sm:$0xf]
      %v223 = vld [vmem:[%s1 + $0x10] sm:$0xf]
      %v224 = vld [vmem:[%s1 + $0x14] sm:$0xf]
      %v225 = vld [vmem:[%s1 + $0x18] sm:$0xf]
      %v226 = vld [vmem:[%s1 + $0x1c] sm:$0xf]
      %v227 = vld [vmem:[%s1 + $0x20] sm:$0xf]
      %v228 = vld [vmem:[%s1 + $0x24] sm:$0xf]
      %v229 = vld [vmem:[%s1 + $0x28] sm:$0xf]
      %v230 = vld [vmem:[%s1 + $0x2c] sm:$0xf]
      %v231 = vld [vmem:[%s1 + $0x30] sm:$0xf]
      %v232 = vld [vmem:[%s1 + $0x34] sm:$0xf]
      %v233 = vld [vmem:[%s1 + $0x38] sm:$0xf]
      %v234 = vld [vmem:[%s1 + $0x3c] sm:$0xf]
      %s235 = scalar_lea.vmem %s1, 192
      %v236 = vld [vmem:[%s235] sm:$0xf]
      %v237 = vld [vmem:[%s235 + $0x4] sm:$0xf]
      %v238 = vld [vmem:[%s235 + $0x8] sm:$0xf]
      %v239 = vld [vmem:[%s235 + $0xc] sm:$0xf]
      %v240 = vld [vmem:[%s235 + $0x10] sm:$0xf]
      %v241 = vld [vmem:[%s235 + $0x14] sm:$0xf]
      %v242 = vld [vmem:[%s235 + $0x18] sm:$0xf]
      %v243 = vld [vmem:[%s235 + $0x1c] sm:$0xf]
      %v244 = vld [vmem:[%s235 + $0x20] sm:$0xf]
      %v245 = vld [vmem:[%s235 + $0x24] sm:$0xf]
      %v246 = vld [vmem:[%s235 + $0x28] sm:$0xf]
      %v247 = vld [vmem:[%s235 + $0x2c] sm:$0xf]
      %v248 = vld [vmem:[%s235 + $0x30] sm:$0xf]
      %v249 = vld [vmem:[%s235 + $0x34] sm:$0xf]
      %v250 = vld [vmem:[%s235 + $0x38] sm:$0xf]
      %v251 = vld [vmem:[%s235 + $0x3c] sm:$0xf]
      %v284 = vunpack.c.l.b16 %v185
      %v285 = vunpack.c.l.b16 %v186
      %v286 = vunpack.c.l.b16 %v187
      %v287 = vunpack.c.l.b16 %v188
      %v288 = vunpack.c.l.b16 %v189
      %v289 = vunpack.c.l.b16 %v190
      %v290 = vunpack.c.l.b16 %v191
      %v291 = vunpack.c.l.b16 %v192
      %v292 = vunpack.c.l.b16 %v193
      %v293 = vunpack.c.l.b16 %v194
      %v294 = vunpack.c.l.b16 %v195
      %v295 = vunpack.c.l.b16 %v196
      %v296 = vunpack.c.l.b16 %v197
      %v297 = vunpack.c.l.b16 %v198
      %v298 = vunpack.c.l.b16 %v199
      %v299 = vunpack.c.l.b16 %v200
      %v300 = vunpack.c.l.b16 %v201
      %v301 = vunpack.c.l.b16 %v202
      %v302 = vunpack.c.l.b16 %v203
      %v303 = vunpack.c.l.b16 %v204
      %v304 = vunpack.c.l.b16 %v205
      %v305 = vunpack.c.l.b16 %v206
      %v306 = vunpack.c.l.b16 %v207
      %v307 = vunpack.c.l.b16 %v208
      %v308 = vunpack.c.l.b16 %v209
      %v309 = vunpack.c.l.b16 %v210
      %v310 = vunpack.c.l.b16 %v211
      %v311 = vunpack.c.l.b16 %v212
      %v312 = vunpack.c.l.b16 %v213
      %v313 = vunpack.c.l.b16 %v214
      %v314 = vunpack.c.l.b16 %v215
      %v315 = vunpack.c.l.b16 %v216
      %v316 = vpack.c.b16 %v285, %v284
      %v317 = vpack.c.b16 %v287, %v286
      %v318 = vpack.c.b16 %v289, %v288
      %v319 = vpack.c.b16 %v291, %v290
      %v320 = vpack.c.b16 %v293, %v292
      %v321 = vpack.c.b16 %v295, %v294
      %v322 = vpack.c.b16 %v297, %v296
      %v323 = vpack.c.b16 %v299, %v298
      %v324 = vpack.c.b16 %v301, %v300
      %v325 = vpack.c.b16 %v303, %v302
      %v326 = vpack.c.b16 %v305, %v304
      %v327 = vpack.c.b16 %v307, %v306
      %v328 = vpack.c.b16 %v309, %v308
      %v329 = vpack.c.b16 %v311, %v310
      %v330 = vpack.c.b16 %v313, %v312
      %v331 = vpack.c.b16 %v315, %v314
      %v364 = vunpack.c.l.b16 %v236
      %v365 = vunpack.c.l.b16 %v237
      %v366 = vunpack.c.l.b16 %v238
      %v367 = vunpack.c.l.b16 %v239
      %v368 = vunpack.c.l.b16 %v240
      %v369 = vunpack.c.l.b16 %v241
      %v370 = vunpack.c.l.b16 %v242
      %v371 = vunpack.c.l.b16 %v243
      %v372 = vunpack.c.l.b16 %v244
      %v373 = vunpack.c.l.b16 %v245
      %v374 = vunpack.c.l.b16 %v246
      %v375 = vunpack.c.l.b16 %v247
      %v376 = vunpack.c.l.b16 %v248
      %v377 = vunpack.c.l.b16 %v249
      %v378 = vunpack.c.l.b16 %v250
      %v379 = vunpack.c.l.b16 %v251
      %v380 = vpack.c.b16 %v365, %v364
      %v381 = vpack.c.b16 %v367, %v366
      %v382 = vpack.c.b16 %v369, %v368
      %v383 = vpack.c.b16 %v371, %v370
      %v384 = vpack.c.b16 %v373, %v372
      %v385 = vpack.c.b16 %v375, %v374
      %v386 = vpack.c.b16 %v377, %v376
      %v387 = vpack.c.b16 %v379, %v378
      %396 = vmatprep.subr.bf16.mxu0 0
      %397 = vmatpush1.bf16.msra.mxu0 %v387
      %398 = vmatprep.subr.bf16.mxu0 0
      %399 = vmatpush1.bf16.msra.mxu0 %v386
      %400 = vmatprep.subr.bf16.mxu0 0
      %401 = vmatpush1.bf16.msra.mxu0 %v385
      %402 = vmatprep.subr.bf16.mxu0 0
      %403 = vmatpush1.bf16.msra.mxu0 %v384
      %404 = vmatprep.subr.bf16.mxu0 0
      %405 = vmatpush1.bf16.msra.mxu0 %v383
      %406 = vmatprep.subr.bf16.mxu0 0
      %407 = vmatpush1.bf16.msra.mxu0 %v382
      %408 = vmatprep.subr.bf16.mxu0 0
      %409 = vmatpush1.bf16.msra.mxu0 %v381
      %410 = vmatprep.subr.bf16.mxu0 0
      %411 = vmatpush1.bf16.msra.mxu0 %v380
      %412 = vmatprep.subr.bf16.mxu0 0
      %413 = vmatpush2.bf16.msra.mxu0 0
      %414 = vmatprep.subr.bf16.mxu0 0
      %415 = vmatpush2.bf16.msra.mxu0 0
      %416 = vmatprep.subr.bf16.mxu0 0
      %417 = vmatpush2.bf16.msra.mxu0 0
      %418 = vmatprep.subr.bf16.mxu0 0
      %419 = vmatpush2.bf16.msra.mxu0 0
      %420 = vmatprep.subr.bf16.mxu0 0
      %421 = vmatpush2.bf16.msra.mxu0 0
      %422 = vmatprep.subr.bf16.mxu0 0
      %423 = vmatpush2.bf16.msra.mxu0 0
      %424 = vmatprep.subr.bf16.mxu0 0
      %425 = vmatpush2.bf16.msra.mxu0 0
      %426 = vmatprep.subr.bf16.mxu0 0
      %427 = vmatpush2.bf16.msra.mxu0 0
      %428 = vmatprep.mubr.bf16.mxu0 0
      %429 = vmatmul.mubr.bf16.gmra.mxu0 %v316
      %v430 = vpop.f32.mrf.mxu0
      %v431 = vadd.f32 0.0, %v430
      %v432 = vpop.f32.mrf.mxu0
      %v433 = vpop.f32.mrf.mxu0
      %v434 = vadd.f32 0.0, %v433
      %v435 = vpop.f32.mrf.mxu0
      %436 = vmatprep.mubr.bf16.mxu0 0
      %437 = vmatmul.mubr.bf16.gmra.mxu0 %v317
      %v438 = vpop.f32.mrf.mxu0
      %v439 = vadd.f32 0.0, %v438
      %v440 = vpop.f32.mrf.mxu0
      %v441 = vpop.f32.mrf.mxu0
      %v442 = vadd.f32 0.0, %v441
      %v443 = vpop.f32.mrf.mxu0
      %444 = vmatprep.mubr.bf16.mxu0 0
      %445 = vmatmul.mubr.bf16.gmra.mxu0 %v318
      %v446 = vpop.f32.mrf.mxu0
      %v447 = vadd.f32 0.0, %v446
      %v448 = vpop.f32.mrf.mxu0
      %v449 = vpop.f32.mrf.mxu0
      %v450 = vadd.f32 0.0, %v449
      %v451 = vpop.f32.mrf.mxu0
      %452 = vmatprep.mubr.bf16.mxu0 0
      %453 = vmatmul.mubr.bf16.gmra.mxu0 %v319
      %v454 = vpop.f32.mrf.mxu0
      %v455 = vadd.f32 0.0, %v454
      %v456 = vpop.f32.mrf.mxu0
      %v457 = vpop.f32.mrf.mxu0
      %v458 = vadd.f32 0.0, %v457
      %v459 = vpop.f32.mrf.mxu0
      %460 = vmatprep.mubr.bf16.mxu0 0
      %461 = vmatmul.mubr.bf16.gmra.mxu0 %v320
      %v462 = vpop.f32.mrf.mxu0
      %v463 = vadd.f32 0.0, %v462
      %v464 = vpop.f32.mrf.mxu0
      %v465 = vpop.f32.mrf.mxu0
      %v466 = vadd.f32 0.0, %v465
      %v467 = vpop.f32.mrf.mxu0
      %468 = vmatprep.mubr.bf16.mxu0 0
      %469 = vmatmul.mubr.bf16.gmra.mxu0 %v321
      %v470 = vpop.f32.mrf.mxu0
      %v471 = vadd.f32 0.0, %v470
      %v472 = vpop.f32.mrf.mxu0
      %v473 = vpop.f32.mrf.mxu0
      %v474 = vadd.f32 0.0, %v473
      %v475 = vpop.f32.mrf.mxu0
      %476 = vmatprep.mubr.bf16.mxu0 0
      %477 = vmatmul.mubr.bf16.gmra.mxu0 %v322
      %v478 = vpop.f32.mrf.mxu0
      %v479 = vadd.f32 0.0, %v478
      %v480 = vpop.f32.mrf.mxu0
      %v481 = vpop.f32.mrf.mxu0
      %v482 = vadd.f32 0.0, %v481
      %v483 = vpop.f32.mrf.mxu0
      %484 = vmatprep.mubr.bf16.mxu0 0
      %485 = vmatmul.mubr.bf16.gmra.mxu0 %v323
      %v486 = vpop.f32.mrf.mxu0
      %v487 = vadd.f32 0.0, %v486
      %v488 = vpop.f32.mrf.mxu0
      %v489 = vpop.f32.mrf.mxu0
      %v490 = vadd.f32 0.0, %v489
      %v491 = vpop.f32.mrf.mxu0
      %492 = vmatprep.mubr.bf16.mxu0 0
      %493 = vmatmul.mubr.bf16.gmra.mxu0 %v324
      %v494 = vpop.f32.mrf.mxu0
      %v495 = vadd.f32 0.0, %v494
      %v496 = vpop.f32.mrf.mxu0
      %v497 = vpop.f32.mrf.mxu0
      %v498 = vadd.f32 0.0, %v497
      %v499 = vpop.f32.mrf.mxu0
      %500 = vmatprep.mubr.bf16.mxu0 0
      %501 = vmatmul.mubr.bf16.gmra.mxu0 %v325
      %v502 = vpop.f32.mrf.mxu0
      %v503 = vadd.f32 0.0, %v502
      %v504 = vpop.f32.mrf.mxu0
      %v505 = vpop.f32.mrf.mxu0
      %v506 = vadd.f32 0.0, %v505
      %v507 = vpop.f32.mrf.mxu0
      %508 = vmatprep.mubr.bf16.mxu0 0
      %509 = vmatmul.mubr.bf16.gmra.mxu0 %v326
      %v510 = vpop.f32.mrf.mxu0
      %v511 = vadd.f32 0.0, %v510
      %v512 = vpop.f32.mrf.mxu0
      %v513 = vpop.f32.mrf.mxu0
      %v514 = vadd.f32 0.0, %v513
      %v515 = vpop.f32.mrf.mxu0
      %516 = vmatprep.mubr.bf16.mxu0 0
      %517 = vmatmul.mubr.bf16.gmra.mxu0 %v327
      %v518 = vpop.f32.mrf.mxu0
      %v519 = vadd.f32 0.0, %v518
      %v520 = vpop.f32.mrf.mxu0
      %v521 = vpop.f32.mrf.mxu0
      %v522 = vadd.f32 0.0, %v521
      %v523 = vpop.f32.mrf.mxu0
      %524 = vmatprep.mubr.bf16.mxu0 0
      %525 = vmatmul.mubr.bf16.gmra.mxu0 %v328
      %v526 = vpop.f32.mrf.mxu0
      %v527 = vadd.f32 0.0, %v526
      %v528 = vpop.f32.mrf.mxu0
      %v529 = vpop.f32.mrf.mxu0
      %v530 = vadd.f32 0.0, %v529
      %v531 = vpop.f32.mrf.mxu0
      %532 = vmatprep.mubr.bf16.mxu0 0
      %533 = vmatmul.mubr.bf16.gmra.mxu0 %v329
      %v534 = vpop.f32.mrf.mxu0
      %v535 = vadd.f32 0.0, %v534
      %v536 = vpop.f32.mrf.mxu0
      %v537 = vpop.f32.mrf.mxu0
      %v538 = vadd.f32 0.0, %v537
      %v539 = vpop.f32.mrf.mxu0
      %540 = vmatprep.mubr.bf16.mxu0 0
      %541 = vmatmul.mubr.bf16.gmra.mxu0 %v330
      %v542 = vpop.f32.mrf.mxu0
      %v543 = vadd.f32 0.0, %v542
      %v544 = vpop.f32.mrf.mxu0
      %v545 = vpop.f32.mrf.mxu0
      %v546 = vadd.f32 0.0, %v545
      %v547 = vpop.f32.mrf.mxu0
      %548 = vmatprep.mubr.bf16.mxu0 0
      %549 = vmatmul.mubr.bf16.gmra.mxu0 %v331
      %v550 = vpop.f32.mrf.mxu0
      %v551 = vadd.f32 0.0, %v550
      %v552 = vpop.f32.mrf.mxu0
      %v553 = vpop.f32.mrf.mxu0
      %v554 = vadd.f32 0.0, %v553
      %v555 = vpop.f32.mrf.mxu0
      %556 = vdwg.mxu0
      %v559 = vunpack.c.l.b16 %v183
      %v560 = vunpack.c.l.b16 %v184
      %v561 = vpack.c.b16 %v560, %v559
      %v579 = vunpack.c.l.b16 %v219
      %v580 = vunpack.c.l.b16 %v220
      %v581 = vunpack.c.l.b16 %v221
      %v582 = vunpack.c.l.b16 %v222
      %v583 = vunpack.c.l.b16 %v223
      %v584 = vunpack.c.l.b16 %v224
      %v585 = vunpack.c.l.b16 %v225
      %v586 = vunpack.c.l.b16 %v226
      %v587 = vunpack.c.l.b16 %v227
      %v588 = vunpack.c.l.b16 %v228
      %v589 = vunpack.c.l.b16 %v229
      %v590 = vunpack.c.l.b16 %v230
      %v591 = vunpack.c.l.b16 %v231
      %v592 = vunpack.c.l.b16 %v232
      %v593 = vunpack.c.l.b16 %v233
      %v594 = vunpack.c.l.b16 %v234
      %v595 = vpack.c.b16 %v580, %v579
      %v596 = vpack.c.b16 %v582, %v581
      %v597 = vpack.c.b16 %v584, %v583
      %v598 = vpack.c.b16 %v586, %v585
      %v599 = vpack.c.b16 %v588, %v587
      %v600 = vpack.c.b16 %v590, %v589
      %v601 = vpack.c.b16 %v592, %v591
      %v602 = vpack.c.b16 %v594, %v593
      %611 = vmatprep.subr.bf16.mxu0 0
      %612 = vmatpush1.bf16.msra.mxu0 %v602
      %613 = vmatprep.subr.bf16.mxu0 0
      %614 = vmatpush1.bf16.msra.mxu0 %v601
      %615 = vmatprep.subr.bf16.mxu0 0
      %616 = vmatpush1.bf16.msra.mxu0 %v600
      %617 = vmatprep.subr.bf16.mxu0 0
      %618 = vmatpush1.bf16.msra.mxu0 %v599
      %619 = vmatprep.subr.bf16.mxu0 0
      %620 = vmatpush1.bf16.msra.mxu0 %v598
      %621 = vmatprep.subr.bf16.mxu0 0
      %622 = vmatpush1.bf16.msra.mxu0 %v597
      %623 = vmatprep.subr.bf16.mxu0 0
      %624 = vmatpush1.bf16.msra.mxu0 %v596
      %625 = vmatprep.subr.bf16.mxu0 0
      %626 = vmatpush1.bf16.msra.mxu0 %v595
      %627 = vmatprep.subr.bf16.mxu0 0
      %628 = vmatpush2.bf16.msra.mxu0 0
      %629 = vmatprep.subr.bf16.mxu0 0
      %630 = vmatpush2.bf16.msra.mxu0 0
      %631 = vmatprep.subr.bf16.mxu0 0
      %632 = vmatpush2.bf16.msra.mxu0 0
      %633 = vmatprep.subr.bf16.mxu0 0
      %634 = vmatpush2.bf16.msra.mxu0 0
      %635 = vmatprep.subr.bf16.mxu0 0
      %636 = vmatpush2.bf16.msra.mxu0 0
      %637 = vmatprep.subr.bf16.mxu0 0
      %638 = vmatpush2.bf16.msra.mxu0 0
      %639 = vmatprep.subr.bf16.mxu0 0
      %640 = vmatpush2.bf16.msra.mxu0 0
      %641 = vmatprep.subr.bf16.mxu0 0
      %642 = vmatpush2.bf16.msra.mxu0 0
      %643 = vmatprep.mubr.bf16.mxu0 0
      %644 = vmatmul.mubr.bf16.gmra.mxu0 %v561
      %v645 = vpop.f32.mrf.mxu0
      %v646 = vadd.f32 %v431, %v645
      %v647 = vpop.f32.mrf.mxu0
      %v648 = vpop.f32.mrf.mxu0
      %v649 = vadd.f32 %v434, %v648
      %v650 = vpop.f32.mrf.mxu0
      %651 = vmatprep.mubr.bf16.mxu0 0
      %652 = vmatmul.mubr.bf16.gmra.mxu0 %v316
      %v653 = vpop.f32.mrf.mxu0
      %v654 = vadd.f32 %v439, %v653
      %v655 = vpop.f32.mrf.mxu0
      %v656 = vpop.f32.mrf.mxu0
      %v657 = vadd.f32 %v442, %v656
      %v658 = vpop.f32.mrf.mxu0
      %659 = vmatprep.mubr.bf16.mxu0 0
      %660 = vmatmul.mubr.bf16.gmra.mxu0 %v317
      %v661 = vpop.f32.mrf.mxu0
      %v662 = vadd.f32 %v447, %v661
      %v663 = vpop.f32.mrf.mxu0
      %v664 = vpop.f32.mrf.mxu0
      %v665 = vadd.f32 %v450, %v664
      %v666 = vpop.f32.mrf.mxu0
      %667 = vmatprep.mubr.bf16.mxu0 0
      %668 = vmatmul.mubr.bf16.gmra.mxu0 %v318
      %v669 = vpop.f32.mrf.mxu0
      %v670 = vadd.f32 %v455, %v669
      %v671 = vpop.f32.mrf.mxu0
      %v672 = vpop.f32.mrf.mxu0
      %v673 = vadd.f32 %v458, %v672
      %v674 = vpop.f32.mrf.mxu0
      %675 = vmatprep.mubr.bf16.mxu0 0
      %676 = vmatmul.mubr.bf16.gmra.mxu0 %v319
      %v677 = vpop.f32.mrf.mxu0
      %v678 = vadd.f32 %v463, %v677
      %v679 = vpop.f32.mrf.mxu0
      %v680 = vpop.f32.mrf.mxu0
      %v681 = vadd.f32 %v466, %v680
      %v682 = vpop.f32.mrf.mxu0
      %683 = vmatprep.mubr.bf16.mxu0 0
      %684 = vmatmul.mubr.bf16.gmra.mxu0 %v320
      %v685 = vpop.f32.mrf.mxu0
      %v686 = vadd.f32 %v471, %v685
      %v687 = vpop.f32.mrf.mxu0
      %v688 = vpop.f32.mrf.mxu0
      %v689 = vadd.f32 %v474, %v688
      %v690 = vpop.f32.mrf.mxu0
      %691 = vmatprep.mubr.bf16.mxu0 0
      %692 = vmatmul.mubr.bf16.gmra.mxu0 %v321
      %v693 = vpop.f32.mrf.mxu0
      %v694 = vadd.f32 %v479, %v693
      %v695 = vpop.f32.mrf.mxu0
      %v696 = vpop.f32.mrf.mxu0
      %v697 = vadd.f32 %v482, %v696
      %v698 = vpop.f32.mrf.mxu0
      %699 = vmatprep.mubr.bf16.mxu0 0
      %700 = vmatmul.mubr.bf16.gmra.mxu0 %v322
      %v701 = vpop.f32.mrf.mxu0
      %v702 = vadd.f32 %v487, %v701
      %v703 = vpop.f32.mrf.mxu0
      %v704 = vpop.f32.mrf.mxu0
      %v705 = vadd.f32 %v490, %v704
      %v706 = vpop.f32.mrf.mxu0
      %707 = vmatprep.mubr.bf16.mxu0 0
      %708 = vmatmul.mubr.bf16.gmra.mxu0 %v323
      %v709 = vpop.f32.mrf.mxu0
      %v710 = vadd.f32 %v495, %v709
      %v711 = vpop.f32.mrf.mxu0
      %v712 = vpop.f32.mrf.mxu0
      %v713 = vadd.f32 %v498, %v712
      %v714 = vpop.f32.mrf.mxu0
      %715 = vmatprep.mubr.bf16.mxu0 0
      %716 = vmatmul.mubr.bf16.gmra.mxu0 %v324
      %v717 = vpop.f32.mrf.mxu0
      %v718 = vadd.f32 %v503, %v717
      %v719 = vpop.f32.mrf.mxu0
      %v720 = vpop.f32.mrf.mxu0
      %v721 = vadd.f32 %v506, %v720
      %v722 = vpop.f32.mrf.mxu0
      %723 = vmatprep.mubr.bf16.mxu0 0
      %724 = vmatmul.mubr.bf16.gmra.mxu0 %v325
      %v725 = vpop.f32.mrf.mxu0
      %v726 = vadd.f32 %v511, %v725
      %v727 = vpop.f32.mrf.mxu0
      %v728 = vpop.f32.mrf.mxu0
      %v729 = vadd.f32 %v514, %v728
      %v730 = vpop.f32.mrf.mxu0
      %731 = vmatprep.mubr.bf16.mxu0 0
      %732 = vmatmul.mubr.bf16.gmra.mxu0 %v326
      %v733 = vpop.f32.mrf.mxu0
      %v734 = vadd.f32 %v519, %v733
      %v735 = vpop.f32.mrf.mxu0
      %v736 = vpop.f32.mrf.mxu0
      %v737 = vadd.f32 %v522, %v736
      %v738 = vpop.f32.mrf.mxu0
      %739 = vmatprep.mubr.bf16.mxu0 0
      %740 = vmatmul.mubr.bf16.gmra.mxu0 %v327
      %v741 = vpop.f32.mrf.mxu0
      %v742 = vadd.f32 %v527, %v741
      %v743 = vpop.f32.mrf.mxu0
      %v744 = vpop.f32.mrf.mxu0
      %v745 = vadd.f32 %v530, %v744
      %v746 = vpop.f32.mrf.mxu0
      %747 = vmatprep.mubr.bf16.mxu0 0
      %748 = vmatmul.mubr.bf16.gmra.mxu0 %v328
      %v749 = vpop.f32.mrf.mxu0
      %v750 = vadd.f32 %v535, %v749
      %v751 = vpop.f32.mrf.mxu0
      %v752 = vpop.f32.mrf.mxu0
      %v753 = vadd.f32 %v538, %v752
      %v754 = vpop.f32.mrf.mxu0
      %755 = vmatprep.mubr.bf16.mxu0 0
      %756 = vmatmul.mubr.bf16.gmra.mxu0 %v329
      %v757 = vpop.f32.mrf.mxu0
      %v758 = vadd.f32 %v543, %v757
      %v759 = vpop.f32.mrf.mxu0
      %v760 = vpop.f32.mrf.mxu0
      %v761 = vadd.f32 %v546, %v760
      %v762 = vpop.f32.mrf.mxu0
      %763 = vmatprep.mubr.bf16.mxu0 0
      %764 = vmatmul.mubr.bf16.gmra.mxu0 %v330
      %v765 = vpop.f32.mrf.mxu0
      %v766 = vadd.f32 %v551, %v765
      %v767 = vpop.f32.mrf.mxu0
      %v768 = vpop.f32.mrf.mxu0
      %v769 = vadd.f32 %v554, %v768
      %v770 = vpop.f32.mrf.mxu0
      %771 = vdwg.mxu0
      %s772 = scalar_lea.vmem %s1, 384
      %v773 = vld [vmem:[%s772] sm:$0xf]
      %v774 = vld [vmem:[%s772 + $0x4] sm:$0xf]
      %v775 = vld [vmem:[%s772 + $0x8] sm:$0xf]
      %v776 = vld [vmem:[%s772 + $0xc] sm:$0xf]
      %v777 = vld [vmem:[%s772 + $0x10] sm:$0xf]
      %v778 = vld [vmem:[%s772 + $0x14] sm:$0xf]
      %v779 = vld [vmem:[%s772 + $0x18] sm:$0xf]
      %v780 = vld [vmem:[%s772 + $0x1c] sm:$0xf]
      %v781 = vld [vmem:[%s772 + $0x20] sm:$0xf]
      %v782 = vld [vmem:[%s772 + $0x24] sm:$0xf]
      %v783 = vld [vmem:[%s772 + $0x28] sm:$0xf]
      %v784 = vld [vmem:[%s772 + $0x2c] sm:$0xf]
      %v785 = vld [vmem:[%s772 + $0x30] sm:$0xf]
      %v786 = vld [vmem:[%s772 + $0x34] sm:$0xf]
      %v787 = vld [vmem:[%s772 + $0x38] sm:$0xf]
      %v788 = vld [vmem:[%s772 + $0x3c] sm:$0xf]
      %v791 = vunpack.c.l.b16 %v217
      %v792 = vunpack.c.l.b16 %v218
      %v793 = vpack.c.b16 %v792, %v791
      %v811 = vunpack.c.l.b16 %v773
      %v812 = vunpack.c.l.b16 %v774
      %v813 = vunpack.c.l.b16 %v775
      %v814 = vunpack.c.l.b16 %v776
      %v815 = vunpack.c.l.b16 %v777
      %v816 = vunpack.c.l.b16 %v778
      %v817 = vunpack.c.l.b16 %v779
      %v818 = vunpack.c.l.b16 %v780
      %v819 = vunpack.c.l.b16 %v781
      %v820 = vunpack.c.l.b16 %v782
      %v821 = vunpack.c.l.b16 %v783
      %v822 = vunpack.c.l.b16 %v784
      %v823 = vunpack.c.l.b16 %v785
      %v824 = vunpack.c.l.b16 %v786
      %v825 = vunpack.c.l.b16 %v787
      %v826 = vunpack.c.l.b16 %v788
      %v827 = vpack.c.b16 %v812, %v811
      %v828 = vpack.c.b16 %v814, %v813
      %v829 = vpack.c.b16 %v816, %v815
      %v830 = vpack.c.b16 %v818, %v817
      %v831 = vpack.c.b16 %v820, %v819
      %v832 = vpack.c.b16 %v822, %v821
      %v833 = vpack.c.b16 %v824, %v823
      %v834 = vpack.c.b16 %v826, %v825
      %843 = vmatprep.subr.bf16.mxu0 0
      %844 = vmatpush1.bf16.msra.mxu0 %v834
      %845 = vmatprep.subr.bf16.mxu0 0
      %846 = vmatpush1.bf16.msra.mxu0 %v833
      %847 = vmatprep.subr.bf16.mxu0 0
      %848 = vmatpush1.bf16.msra.mxu0 %v832
      %849 = vmatprep.subr.bf16.mxu0 0
      %850 = vmatpush1.bf16.msra.mxu0 %v831
      %851 = vmatprep.subr.bf16.mxu0 0
      %852 = vmatpush1.bf16.msra.mxu0 %v830
      %853 = vmatprep.subr.bf16.mxu0 0
      %854 = vmatpush1.bf16.msra.mxu0 %v829
      %855 = vmatprep.subr.bf16.mxu0 0
      %856 = vmatpush1.bf16.msra.mxu0 %v828
      %857 = vmatprep.subr.bf16.mxu0 0
      %858 = vmatpush1.bf16.msra.mxu0 %v827
      %859 = vmatprep.subr.bf16.mxu0 0
      %860 = vmatpush2.bf16.msra.mxu0 0
      %861 = vmatprep.subr.bf16.mxu0 0
      %862 = vmatpush2.bf16.msra.mxu0 0
      %863 = vmatprep.subr.bf16.mxu0 0
      %864 = vmatpush2.bf16.msra.mxu0 0
      %865 = vmatprep.subr.bf16.mxu0 0
      %866 = vmatpush2.bf16.msra.mxu0 0
      %867 = vmatprep.subr.bf16.mxu0 0
      %868 = vmatpush2.bf16.msra.mxu0 0
      %869 = vmatprep.subr.bf16.mxu0 0
      %870 = vmatpush2.bf16.msra.mxu0 0
      %871 = vmatprep.subr.bf16.mxu0 0
      %872 = vmatpush2.bf16.msra.mxu0 0
      %873 = vmatprep.subr.bf16.mxu0 0
      %874 = vmatpush2.bf16.msra.mxu0 0
      %875 = vmatprep.mubr.bf16.mxu0 0
      %876 = vmatmul.mubr.bf16.gmra.mxu0 %v317
      %v877 = vpop.f32.mrf.mxu0
      %v878 = vadd.f32 0.0, %v877
      %v879 = vpop.f32.mrf.mxu0
      %v880 = vpop.f32.mrf.mxu0
      %v881 = vadd.f32 0.0, %v880
      %v882 = vpop.f32.mrf.mxu0
      %883 = vmatprep.mubr.bf16.mxu0 0
      %884 = vmatmul.mubr.bf16.gmra.mxu0 %v318
      %v885 = vpop.f32.mrf.mxu0
      %v886 = vadd.f32 0.0, %v885
      %v887 = vpop.f32.mrf.mxu0
      %v888 = vpop.f32.mrf.mxu0
      %v889 = vadd.f32 0.0, %v888
      %v890 = vpop.f32.mrf.mxu0
      %891 = vmatprep.mubr.bf16.mxu0 0
      %892 = vmatmul.mubr.bf16.gmra.mxu0 %v319
      %v893 = vpop.f32.mrf.mxu0
      %v894 = vadd.f32 0.0, %v893
      %v895 = vpop.f32.mrf.mxu0
      %v896 = vpop.f32.mrf.mxu0
      %v897 = vadd.f32 0.0, %v896
      %v898 = vpop.f32.mrf.mxu0
      %899 = vmatprep.mubr.bf16.mxu0 0
      %900 = vmatmul.mubr.bf16.gmra.mxu0 %v320
      %v901 = vpop.f32.mrf.mxu0
      %v902 = vadd.f32 0.0, %v901
      %v903 = vpop.f32.mrf.mxu0
      %v904 = vpop.f32.mrf.mxu0
      %v905 = vadd.f32 0.0, %v904
      %v906 = vpop.f32.mrf.mxu0
      %907 = vmatprep.mubr.bf16.mxu0 0
      %908 = vmatmul.mubr.bf16.gmra.mxu0 %v321
      %v909 = vpop.f32.mrf.mxu0
      %v910 = vadd.f32 0.0, %v909
      %v911 = vpop.f32.mrf.mxu0
      %v912 = vpop.f32.mrf.mxu0
      %v913 = vadd.f32 0.0, %v912
      %v914 = vpop.f32.mrf.mxu0
      %915 = vmatprep.mubr.bf16.mxu0 0
      %916 = vmatmul.mubr.bf16.gmra.mxu0 %v322
      %v917 = vpop.f32.mrf.mxu0
      %v918 = vadd.f32 0.0, %v917
      %v919 = vpop.f32.mrf.mxu0
      %v920 = vpop.f32.mrf.mxu0
      %v921 = vadd.f32 0.0, %v920
      %v922 = vpop.f32.mrf.mxu0
      %923 = vmatprep.mubr.bf16.mxu0 0
      %924 = vmatmul.mubr.bf16.gmra.mxu0 %v323
      %v925 = vpop.f32.mrf.mxu0
      %v926 = vadd.f32 0.0, %v925
      %v927 = vpop.f32.mrf.mxu0
      %v928 = vpop.f32.mrf.mxu0
      %v929 = vadd.f32 0.0, %v928
      %v930 = vpop.f32.mrf.mxu0
      %931 = vmatprep.mubr.bf16.mxu0 0
      %932 = vmatmul.mubr.bf16.gmra.mxu0 %v324
      %v933 = vpop.f32.mrf.mxu0
      %v934 = vadd.f32 0.0, %v933
      %v935 = vpop.f32.mrf.mxu0
      %v936 = vpop.f32.mrf.mxu0
      %v937 = vadd.f32 0.0, %v936
      %v938 = vpop.f32.mrf.mxu0
      %939 = vmatprep.mubr.bf16.mxu0 0
      %940 = vmatmul.mubr.bf16.gmra.mxu0 %v325
      %v941 = vpop.f32.mrf.mxu0
      %v942 = vadd.f32 0.0, %v941
      %v943 = vpop.f32.mrf.mxu0
      %v944 = vpop.f32.mrf.mxu0
      %v945 = vadd.f32 0.0, %v944
      %v946 = vpop.f32.mrf.mxu0
      %947 = vmatprep.mubr.bf16.mxu0 0
      %948 = vmatmul.mubr.bf16.gmra.mxu0 %v326
      %v949 = vpop.f32.mrf.mxu0
      %v950 = vadd.f32 0.0, %v949
      %v951 = vpop.f32.mrf.mxu0
      %v952 = vpop.f32.mrf.mxu0
      %v953 = vadd.f32 0.0, %v952
      %v954 = vpop.f32.mrf.mxu0
      %955 = vmatprep.mubr.bf16.mxu0 0
      %956 = vmatmul.mubr.bf16.gmra.mxu0 %v327
      %v957 = vpop.f32.mrf.mxu0
      %v958 = vadd.f32 0.0, %v957
      %v959 = vpop.f32.mrf.mxu0
      %v960 = vpop.f32.mrf.mxu0
      %v961 = vadd.f32 0.0, %v960
      %v962 = vpop.f32.mrf.mxu0
      %963 = vmatprep.mubr.bf16.mxu0 0
      %964 = vmatmul.mubr.bf16.gmra.mxu0 %v328
      %v965 = vpop.f32.mrf.mxu0
      %v966 = vadd.f32 0.0, %v965
      %v967 = vpop.f32.mrf.mxu0
      %v968 = vpop.f32.mrf.mxu0
      %v969 = vadd.f32 0.0, %v968
      %v970 = vpop.f32.mrf.mxu0
      %971 = vmatprep.mubr.bf16.mxu0 0
      %972 = vmatmul.mubr.bf16.gmra.mxu0 %v329
      %v973 = vpop.f32.mrf.mxu0
      %v974 = vadd.f32 0.0, %v973
      %v975 = vpop.f32.mrf.mxu0
      %v976 = vpop.f32.mrf.mxu0
      %v977 = vadd.f32 0.0, %v976
      %v978 = vpop.f32.mrf.mxu0
      %979 = vmatprep.mubr.bf16.mxu0 0
      %980 = vmatmul.mubr.bf16.gmra.mxu0 %v330
      %v981 = vpop.f32.mrf.mxu0
      %v982 = vadd.f32 0.0, %v981
      %v983 = vpop.f32.mrf.mxu0
      %v984 = vpop.f32.mrf.mxu0
      %v985 = vadd.f32 0.0, %v984
      %v986 = vpop.f32.mrf.mxu0
      %987 = vmatprep.mubr.bf16.mxu0 0
      %988 = vmatmul.mubr.bf16.gmra.mxu0 %v331
      %v989 = vpop.f32.mrf.mxu0
      %v990 = vadd.f32 0.0, %v989
      %v991 = vpop.f32.mrf.mxu0
      %v992 = vpop.f32.mrf.mxu0
      %v993 = vadd.f32 0.0, %v992
      %v994 = vpop.f32.mrf.mxu0
      %995 = vmatprep.mubr.bf16.mxu0 0
      %996 = vmatmul.mubr.bf16.gmra.mxu0 %v793
      %v997 = vpop.f32.mrf.mxu0
      %v998 = vadd.f32 0.0, %v997
      %v999 = vpop.f32.mrf.mxu0
      %v1000 = vpop.f32.mrf.mxu0
      %v1001 = vadd.f32 0.0, %v1000
      %v1002 = vpop.f32.mrf.mxu0
      %1003 = vdwg.mxu0
      %v1004 = vadd.f32 %v646, %v878
      %v1005 = vadd.f32 %v649, %v881
      %v1006 = vadd.f32 %v654, %v886
      %v1007 = vadd.f32 %v657, %v889
      %v1008 = vadd.f32 %v662, %v894
      %v1009 = vadd.f32 %v665, %v897
      %v1010 = vadd.f32 %v670, %v902
      %v1011 = vadd.f32 %v673, %v905
      %v1012 = vadd.f32 %v678, %v910
      %v1013 = vadd.f32 %v681, %v913
      %v1014 = vadd.f32 %v686, %v918
      %v1015 = vadd.f32 %v689, %v921
      %v1016 = vadd.f32 %v694, %v926
      %v1017 = vadd.f32 %v697, %v929
      %v1018 = vadd.f32 %v702, %v934
      %v1019 = vadd.f32 %v705, %v937
      %v1020 = vadd.f32 %v710, %v942
      %v1021 = vadd.f32 %v713, %v945
      %v1022 = vadd.f32 %v718, %v950
      %v1023 = vadd.f32 %v721, %v953
      %v1024 = vadd.f32 %v726, %v958
      %v1025 = vadd.f32 %v729, %v961
      %v1026 = vadd.f32 %v734, %v966
      %v1027 = vadd.f32 %v737, %v969
      %v1028 = vadd.f32 %v742, %v974
      %v1029 = vadd.f32 %v745, %v977
      %v1030 = vadd.f32 %v750, %v982
      %v1031 = vadd.f32 %v753, %v985
      %v1032 = vadd.f32 %v758, %v990
      %v1033 = vadd.f32 %v761, %v993
      %v1034 = vadd.f32 %v766, %v998
      %v1035 = vadd.f32 %v769, %v1001
      %v1036 = vld [vmem:[%s172] sm:$0xf]
      %v1037 = vld [vmem:[%s172 + $0x4] sm:$0xf]
      %v1038 = vld [vmem:[%s172 + $0x8] sm:$0x1]
      %v1039 = vld [vmem:[%s172 + $0xc] sm:$0xf]
      %v1040 = vld [vmem:[%s172 + $0x10] sm:$0xf]
      %v1041 = vld [vmem:[%s172 + $0x14] sm:$0x1]
      %v1042 = vld [vmem:[%s172 + $0x18] sm:$0xf]
      %v1043 = vld [vmem:[%s172 + $0x1c] sm:$0xf]
      %v1044 = vld [vmem:[%s172 + $0x20] sm:$0x1]
      %v1045 = vld [vmem:[%s172 + $0x24] sm:$0xf]
      %v1046 = vld [vmem:[%s172 + $0x28] sm:$0xf]
      %v1047 = vld [vmem:[%s172 + $0x2c] sm:$0x1]
      %v1048 = vld [vmem:[%s172 + $0x30] sm:$0xf]
      %v1049 = vld [vmem:[%s172 + $0x34] sm:$0xf]
      %v1050 = vld [vmem:[%s172 + $0x38] sm:$0x1]
      %v1051 = vld [vmem:[%s172 + $0x3c] sm:$0xf]
      %v1052 = vld [vmem:[%s172 + $0x40] sm:$0xf]
      %v1053 = vld [vmem:[%s172 + $0x44] sm:$0x1]
      %v1054 = vld [vmem:[%s172 + $0x48] sm:$0xf]
      %v1055 = vld [vmem:[%s172 + $0x4c] sm:$0xf]
      %v1056 = vld [vmem:[%s172 + $0x50] sm:$0x1]
      %v1057 = vld [vmem:[%s172 + $0x54] sm:$0xf]
      %v1058 = vld [vmem:[%s172 + $0x58] sm:$0xf]
      %v1059 = vld [vmem:[%s172 + $0x5c] sm:$0x1]
      %v1060 = vld [vmem:[%s172 + $0x60] sm:$0xf]
      %v1061 = vld [vmem:[%s172 + $0x64] sm:$0xf]
      %v1062 = vld [vmem:[%s172 + $0x68] sm:$0x1]
      %v1063 = vld [vmem:[%s172 + $0x6c] sm:$0xf]
      %v1064 = vld [vmem:[%s172 + $0x70] sm:$0xf]
      %v1065 = vld [vmem:[%s172 + $0x74] sm:$0x1]
      %v1066 = vld [vmem:[%s172 + $0x78] sm:$0xf]
      %v1067 = vld [vmem:[%s172 + $0x7c] sm:$0xf]
      %v1068 = vld [vmem:[%s172 + $0x80] sm:$0x1]
      %v1069 = vld [vmem:[%s172 + $0x84] sm:$0xf]
      %v1070 = vld [vmem:[%s172 + $0x88] sm:$0xf]
      %v1071 = vld [vmem:[%s172 + $0x8c] sm:$0x1]
      %v1072 = vld [vmem:[%s172 + $0x90] sm:$0xf]
      %v1073 = vld [vmem:[%s172 + $0x94] sm:$0xf]
      %v1074 = vld [vmem:[%s172 + $0x98] sm:$0x1]
      %v1075 = vld [vmem:[%s172 + $0x9c] sm:$0xf]
      %v1076 = vld [vmem:[%s172 + $0xa0] sm:$0xf]
      %v1077 = vld [vmem:[%s172 + $0xa4] sm:$0x1]
      %v1078 = vld [vmem:[%s172 + $0xa8] sm:$0xf]
      %v1079 = vld [vmem:[%s172 + $0xac] sm:$0xf]
      %v1080 = vld [vmem:[%s172 + $0xb0] sm:$0x1]
      %v1081 = vld [vmem:[%s172 + $0xb4] sm:$0xf]
      %v1082 = vld [vmem:[%s172 + $0xb8] sm:$0xf]
      %v1083 = vld [vmem:[%s172 + $0xbc] sm:$0x1]
      %v1084 = vld [vmem:[%s172 + $0xc0] sm:$0xf]
      %v1085 = vld [vmem:[%s172 + $0xc4] sm:$0xf]
      %v1086 = vld [vmem:[%s172 + $0xc8] sm:$0x1]
      %v1087 = vld [vmem:[%s172 + $0xcc] sm:$0xf]
      %v1088 = vld [vmem:[%s172 + $0xd0] sm:$0xf]
      %v1089 = vld [vmem:[%s172 + $0xd4] sm:$0x1]
      %vm1090 = vsmask.f32 3328
      %vm1091 = vsmask.f32 7440
      %vm1092 = vmor %vm1090, %vm1091
      %v1094 = vshrl.u32 %v1036, 16
      %v1096 = vrot.slane %v1094, 4
      %v1097 = vshll.u32 %v1036, 16
      %v1099 = vrot.slane %v1097, 5
      %v1100 = vor.u32 %v1096, %v1099
      %v1101 = vrot.slane %v1100, 4
      %v1103 = vshll.u32 %v1037, 16
      %v1105 = vrot.slane %v1103, 5
      %v1106 = vsel %vm1092, %v1101, %v1105
      %v1107 = vshrl.u32 %v1037, 16
      %v1109 = vrot.slane %v1107, 4
      %v1110 = vor.u32 %v1109, %v1105
      %v1111 = vrot.slane %v1110, 4
      %v1113 = vshll.u32 %v1038, 16
      %v1115 = vrot.slane %v1113, 5
      %v1116 = vsel %vm1092, %v1111, %v1115
      %v1118 = vshrl.u32 %v1039, 16
      %v1120 = vrot.slane %v1118, 4
      %v1121 = vshll.u32 %v1039, 16
      %v1123 = vrot.slane %v1121, 5
      %v1124 = vor.u32 %v1120, %v1123
      %v1125 = vrot.slane %v1124, 4
      %v1127 = vshll.u32 %v1040, 16
      %v1129 = vrot.slane %v1127, 5
      %v1130 = vsel %vm1092, %v1125, %v1129
      %v1131 = vshrl.u32 %v1040, 16
      %v1133 = vrot.slane %v1131, 4
      %v1134 = vor.u32 %v1133, %v1129
      %v1135 = vrot.slane %v1134, 4
      %v1137 = vshll.u32 %v1041, 16
      %v1139 = vrot.slane %v1137, 5
      %v1140 = vsel %vm1092, %v1135, %v1139
      %v1142 = vshrl.u32 %v1042, 16
      %v1144 = vrot.slane %v1142, 4
      %v1145 = vshll.u32 %v1042, 16
      %v1147 = vrot.slane %v1145, 5
      %v1148 = vor.u32 %v1144, %v1147
      %v1149 = vrot.slane %v1148, 4
      %v1151 = vshll.u32 %v1043, 16
      %v1153 = vrot.slane %v1151, 5
      %v1154 = vsel %vm1092, %v1149, %v1153
      %v1155 = vshrl.u32 %v1043, 16
      %v1157 = vrot.slane %v1155, 4
      %v1158 = vor.u32 %v1157, %v1153
      %v1159 = vrot.slane %v1158, 4
      %v1161 = vshll.u32 %v1044, 16
      %v1163 = vrot.slane %v1161, 5
      %v1164 = vsel %vm1092, %v1159, %v1163
      %v1166 = vshrl.u32 %v1045, 16
      %v1168 = vrot.slane %v1166, 4
      %v1169 = vshll.u32 %v1045, 16
      %v1171 = vrot.slane %v1169, 5
      %v1172 = vor.u32 %v1168, %v1171
      %v1173 = vrot.slane %v1172, 4
      %v1175 = vshll.u32 %v1046, 16
      %v1177 = vrot.slane %v1175, 5
      %v1178 = vsel %vm1092, %v1173, %v1177
      %v1179 = vshrl.u32 %v1046, 16
      %v1181 = vrot.slane %v1179, 4
      %v1182 = vor.u32 %v1181, %v1177
      %v1183 = vrot.slane %v1182, 4
      %v1185 = vshll.u32 %v1047, 16
      %v1187 = vrot.slane %v1185, 5
      %v1188 = vsel %vm1092, %v1183, %v1187
      %v1190 = vshrl.u32 %v1048, 16
      %v1192 = vrot.slane %v1190, 4
      %v1193 = vshll.u32 %v1048, 16
      %v1195 = vrot.slane %v1193, 5
      %v1196 = vor.u32 %v1192, %v1195
      %v1197 = vrot.slane %v1196, 4
      %v1199 = vshll.u32 %v1049, 16
      %v1201 = vrot.slane %v1199, 5
      %v1202 = vsel %vm1092, %v1197, %v1201
      %v1203 = vshrl.u32 %v1049, 16
      %v1205 = vrot.slane %v1203, 4
      %v1206 = vor.u32 %v1205, %v1201
      %v1207 = vrot.slane %v1206, 4
      %v1209 = vshll.u32 %v1050, 16
      %v1211 = vrot.slane %v1209, 5
      %v1212 = vsel %vm1092, %v1207, %v1211
      %v1214 = vshrl.u32 %v1051, 16
      %v1216 = vrot.slane %v1214, 4
      %v1217 = vshll.u32 %v1051, 16
      %v1219 = vrot.slane %v1217, 5
      %v1220 = vor.u32 %v1216, %v1219
      %v1221 = vrot.slane %v1220, 4
      %v1223 = vshll.u32 %v1052, 16
      %v1225 = vrot.slane %v1223, 5
      %v1226 = vsel %vm1092, %v1221, %v1225
      %v1227 = vshrl.u32 %v1052, 16
      %v1229 = vrot.slane %v1227, 4
      %v1230 = vor.u32 %v1229, %v1225
      %v1231 = vrot.slane %v1230, 4
      %v1233 = vshll.u32 %v1053, 16
      %v1235 = vrot.slane %v1233, 5
      %v1236 = vsel %vm1092, %v1231, %v1235
      %v1238 = vshrl.u32 %v1054, 16
      %v1240 = vrot.slane %v1238, 4
      %v1241 = vshll.u32 %v1054, 16
      %v1243 = vrot.slane %v1241, 5
      %v1244 = vor.u32 %v1240, %v1243
      %v1245 = vrot.slane %v1244, 4
      %v1247 = vshll.u32 %v1055, 16
      %v1249 = vrot.slane %v1247, 5
      %v1250 = vsel %vm1092, %v1245, %v1249
      %v1251 = vshrl.u32 %v1055, 16
      %v1253 = vrot.slane %v1251, 4
      %v1254 = vor.u32 %v1253, %v1249
      %v1255 = vrot.slane %v1254, 4
      %v1257 = vshll.u32 %v1056, 16
      %v1259 = vrot.slane %v1257, 5
      %v1260 = vsel %vm1092, %v1255, %v1259
      %v1262 = vshrl.u32 %v1057, 16
      %v1264 = vrot.slane %v1262, 4
      %v1265 = vshll.u32 %v1057, 16
      %v1267 = vrot.slane %v1265, 5
      %v1268 = vor.u32 %v1264, %v1267
      %v1269 = vrot.slane %v1268, 4
      %v1271 = vshll.u32 %v1058, 16
      %v1273 = vrot.slane %v1271, 5
      %v1274 = vsel %vm1092, %v1269, %v1273
      %v1275 = vshrl.u32 %v1058, 16
      %v1277 = vrot.slane %v1275, 4
      %v1278 = vor.u32 %v1277, %v1273
      %v1279 = vrot.slane %v1278, 4
      %v1281 = vshll.u32 %v1059, 16
      %v1283 = vrot.slane %v1281, 5
      %v1284 = vsel %vm1092, %v1279, %v1283
      %v1286 = vshrl.u32 %v1060, 16
      %v1288 = vrot.slane %v1286, 4
      %v1289 = vshll.u32 %v1060, 16
      %v1291 = vrot.slane %v1289, 5
      %v1292 = vor.u32 %v1288, %v1291
      %v1293 = vrot.slane %v1292, 4
      %v1295 = vshll.u32 %v1061, 16
      %v1297 = vrot.slane %v1295, 5
      %v1298 = vsel %vm1092, %v1293, %v1297
      %v1299 = vshrl.u32 %v1061, 16
      %v1301 = vrot.slane %v1299, 4
      %v1302 = vor.u32 %v1301, %v1297
      %v1303 = vrot.slane %v1302, 4
      %v1305 = vshll.u32 %v1062, 16
      %v1307 = vrot.slane %v1305, 5
      %v1308 = vsel %vm1092, %v1303, %v1307
      %v1310 = vshrl.u32 %v1063, 16
      %v1312 = vrot.slane %v1310, 4
      %v1313 = vshll.u32 %v1063, 16
      %v1315 = vrot.slane %v1313, 5
      %v1316 = vor.u32 %v1312, %v1315
      %v1317 = vrot.slane %v1316, 4
      %v1319 = vshll.u32 %v1064, 16
      %v1321 = vrot.slane %v1319, 5
      %v1322 = vsel %vm1092, %v1317, %v1321
      %v1323 = vshrl.u32 %v1064, 16
      %v1325 = vrot.slane %v1323, 4
      %v1326 = vor.u32 %v1325, %v1321
      %v1327 = vrot.slane %v1326, 4
      %v1329 = vshll.u32 %v1065, 16
      %v1331 = vrot.slane %v1329, 5
      %v1332 = vsel %vm1092, %v1327, %v1331
      %v1334 = vshrl.u32 %v1066, 16
      %v1336 = vrot.slane %v1334, 4
      %v1337 = vshll.u32 %v1066, 16
      %v1339 = vrot.slane %v1337, 5
      %v1340 = vor.u32 %v1336, %v1339
      %v1341 = vrot.slane %v1340, 4
      %v1343 = vshll.u32 %v1067, 16
      %v1345 = vrot.slane %v1343, 5
      %v1346 = vsel %vm1092, %v1341, %v1345
      %v1347 = vshrl.u32 %v1067, 16
      %v1349 = vrot.slane %v1347, 4
      %v1350 = vor.u32 %v1349, %v1345
      %v1351 = vrot.slane %v1350, 4
      %v1353 = vshll.u32 %v1068, 16
      %v1355 = vrot.slane %v1353, 5
      %v1356 = vsel %vm1092, %v1351, %v1355
      %v1358 = vshrl.u32 %v1069, 16
      %v1360 = vrot.slane %v1358, 4
      %v1361 = vshll.u32 %v1069, 16
      %v1363 = vrot.slane %v1361, 5
      %v1364 = vor.u32 %v1360, %v1363
      %v1365 = vrot.slane %v1364, 4
      %v1367 = vshll.u32 %v1070, 16
      %v1369 = vrot.slane %v1367, 5
      %v1370 = vsel %vm1092, %v1365, %v1369
      %v1371 = vshrl.u32 %v1070, 16
      %v1373 = vrot.slane %v1371, 4
      %v1374 = vor.u32 %v1373, %v1369
      %v1375 = vrot.slane %v1374, 4
      %v1377 = vshll.u32 %v1071, 16
      %v1379 = vrot.slane %v1377, 5
      %v1380 = vsel %vm1092, %v1375, %v1379
      %v1382 = vshrl.u32 %v1072, 16
      %v1384 = vrot.slane %v1382, 4
      %v1385 = vshll.u32 %v1072, 16
      %v1387 = vrot.slane %v1385, 5
      %v1388 = vor.u32 %v1384, %v1387
      %v1389 = vrot.slane %v1388, 4
      %v1391 = vshll.u32 %v1073, 16
      %v1393 = vrot.slane %v1391, 5
      %v1394 = vsel %vm1092, %v1389, %v1393
      %v1395 = vshrl.u32 %v1073, 16
      %v1397 = vrot.slane %v1395, 4
      %v1398 = vor.u32 %v1397, %v1393
      %v1399 = vrot.slane %v1398, 4
      %v1401 = vshll.u32 %v1074, 16
      %v1403 = vrot.slane %v1401, 5
      %v1404 = vsel %vm1092, %v1399, %v1403
      %v1406 = vshrl.u32 %v1075, 16
      %v1408 = vrot.slane %v1406, 4
      %v1409 = vshll.u32 %v1075, 16
      %v1411 = vrot.slane %v1409, 5
      %v1412 = vor.u32 %v1408, %v1411
      %v1413 = vrot.slane %v1412, 4
      %v1415 = vshll.u32 %v1076, 16
      %v1417 = vrot.slane %v1415, 5
      %v1418 = vsel %vm1092, %v1413, %v1417
      %v1419 = vshrl.u32 %v1076, 16
      %v1421 = vrot.slane %v1419, 4
      %v1422 = vor.u32 %v1421, %v1417
      %v1423 = vrot.slane %v1422, 4
      %v1425 = vshll.u32 %v1077, 16
      %v1427 = vrot.slane %v1425, 5
      %v1428 = vsel %vm1092, %v1423, %v1427
      %v1430 = vshrl.u32 %v1078, 16
      %v1432 = vrot.slane %v1430, 4
      %v1433 = vshll.u32 %v1078, 16
      %v1435 = vrot.slane %v1433, 5
      %v1436 = vor.u32 %v1432, %v1435
      %v1437 = vrot.slane %v1436, 4
      %v1439 = vshll.u32 %v1079, 16
      %v1441 = vrot.slane %v1439, 5
      %v1442 = vsel %vm1092, %v1437, %v1441
      %v1443 = vshrl.u32 %v1079, 16
      %v1445 = vrot.slane %v1443, 4
      %v1446 = vor.u32 %v1445, %v1441
      %v1447 = vrot.slane %v1446, 4
      %v1449 = vshll.u32 %v1080, 16
      %v1451 = vrot.slane %v1449, 5
      %v1452 = vsel %vm1092, %v1447, %v1451
      %v1454 = vshrl.u32 %v1081, 16
      %v1456 = vrot.slane %v1454, 4
      %v1457 = vshll.u32 %v1081, 16
      %v1459 = vrot.slane %v1457, 5
      %v1460 = vor.u32 %v1456, %v1459
      %v1461 = vrot.slane %v1460, 4
      %v1463 = vshll.u32 %v1082, 16
      %v1465 = vrot.slane %v1463, 5
      %v1466 = vsel %vm1092, %v1461, %v1465
      %v1467 = vshrl.u32 %v1082, 16
      %v1469 = vrot.slane %v1467, 4
      %v1470 = vor.u32 %v1469, %v1465
      %v1471 = vrot.slane %v1470, 4
      %v1473 = vshll.u32 %v1083, 16
      %v1475 = vrot.slane %v1473, 5
      %v1476 = vsel %vm1092, %v1471, %v1475
      %v1478 = vshrl.u32 %v1084, 16
      %v1480 = vrot.slane %v1478, 4
      %v1481 = vshll.u32 %v1084, 16
      %v1483 = vrot.slane %v1481, 5
      %v1484 = vor.u32 %v1480, %v1483
      %v1485 = vrot.slane %v1484, 4
      %v1487 = vshll.u32 %v1085, 16
      %v1489 = vrot.slane %v1487, 5
      %v1490 = vsel %vm1092, %v1485, %v1489
      %v1491 = vshrl.u32 %v1085, 16
      %v1493 = vrot.slane %v1491, 4
      %v1494 = vor.u32 %v1493, %v1489
      %v1495 = vrot.slane %v1494, 4
      %v1497 = vshll.u32 %v1086, 16
      %v1499 = vrot.slane %v1497, 5
      %v1500 = vsel %vm1092, %v1495, %v1499
      %v1502 = vshrl.u32 %v1087, 16
      %v1504 = vrot.slane %v1502, 4
      %v1505 = vshll.u32 %v1087, 16
      %v1507 = vrot.slane %v1505, 5
      %v1508 = vor.u32 %v1504, %v1507
      %v1509 = vrot.slane %v1508, 4
      %v1511 = vshll.u32 %v1088, 16
      %v1513 = vrot.slane %v1511, 5
      %v1514 = vsel %vm1092, %v1509, %v1513
      %v1515 = vshrl.u32 %v1088, 16
      %v1517 = vrot.slane %v1515, 4
      %v1518 = vor.u32 %v1517, %v1513
      %v1519 = vrot.slane %v1518, 4
      %v1521 = vshll.u32 %v1089, 16
      %v1523 = vrot.slane %v1521, 5
      %v1524 = vsel %vm1092, %v1519, %v1523
      %s1525 = scalar_lea.vmem %s1, 64
      %v1526 = vld [vmem:[%s1525] sm:$0xf]
      %v1527 = vld [vmem:[%s1525 + $0x4] sm:$0xf]
      %v1528 = vld [vmem:[%s1525 + $0x8] sm:$0xf]
      %v1529 = vld [vmem:[%s1525 + $0xc] sm:$0xf]
      %v1530 = vld [vmem:[%s1525 + $0x10] sm:$0xf]
      %v1531 = vld [vmem:[%s1525 + $0x14] sm:$0xf]
      %v1532 = vld [vmem:[%s1525 + $0x18] sm:$0xf]
      %v1533 = vld [vmem:[%s1525 + $0x1c] sm:$0xf]
      %v1534 = vld [vmem:[%s1525 + $0x20] sm:$0xf]
      %v1535 = vld [vmem:[%s1525 + $0x24] sm:$0xf]
      %v1536 = vld [vmem:[%s1525 + $0x28] sm:$0xf]
      %v1537 = vld [vmem:[%s1525 + $0x2c] sm:$0xf]
      %v1538 = vld [vmem:[%s1525 + $0x30] sm:$0xf]
      %v1539 = vld [vmem:[%s1525 + $0x34] sm:$0xf]
      %v1540 = vld [vmem:[%s1525 + $0x38] sm:$0xf]
      %v1541 = vld [vmem:[%s1525 + $0x3c] sm:$0xf]
      %v1542 = vunpack.c.l.b16 %v1106
      %v1543 = vunpack.c.l.b16 %v1116
      %v1544 = vunpack.c.l.b16 %v1130
      %v1545 = vunpack.c.l.b16 %v1140
      %v1546 = vunpack.c.l.b16 %v1154
      %v1547 = vunpack.c.l.b16 %v1164
      %v1548 = vunpack.c.l.b16 %v1178
      %v1549 = vunpack.c.l.b16 %v1188
      %v1550 = vunpack.c.l.b16 %v1202
      %v1551 = vunpack.c.l.b16 %v1212
      %v1552 = vunpack.c.l.b16 %v1226
      %v1553 = vunpack.c.l.b16 %v1236
      %v1554 = vunpack.c.l.b16 %v1250
      %v1555 = vunpack.c.l.b16 %v1260
      %v1556 = vunpack.c.l.b16 %v1274
      %v1557 = vunpack.c.l.b16 %v1284
      %v1558 = vunpack.c.l.b16 %v1298
      %v1559 = vunpack.c.l.b16 %v1308
      %v1560 = vunpack.c.l.b16 %v1322
      %v1561 = vunpack.c.l.b16 %v1332
      %v1562 = vunpack.c.l.b16 %v1346
      %v1563 = vunpack.c.l.b16 %v1356
      %v1564 = vunpack.c.l.b16 %v1370
      %v1565 = vunpack.c.l.b16 %v1380
      %v1566 = vunpack.c.l.b16 %v1394
      %v1567 = vunpack.c.l.b16 %v1404
      %v1568 = vunpack.c.l.b16 %v1418
      %v1569 = vunpack.c.l.b16 %v1428
      %v1570 = vunpack.c.l.b16 %v1442
      %v1571 = vunpack.c.l.b16 %v1452
      %v1572 = vunpack.c.l.b16 %v1466
      %v1573 = vunpack.c.l.b16 %v1476
      %v1574 = vpack.c.b16 %v1543, %v1542
      %v1575 = vpack.c.b16 %v1545, %v1544
      %v1576 = vpack.c.b16 %v1547, %v1546
      %v1577 = vpack.c.b16 %v1549, %v1548
      %v1578 = vpack.c.b16 %v1551, %v1550
      %v1579 = vpack.c.b16 %v1553, %v1552
      %v1580 = vpack.c.b16 %v1555, %v1554
      %v1581 = vpack.c.b16 %v1557, %v1556
      %v1582 = vpack.c.b16 %v1559, %v1558
      %v1583 = vpack.c.b16 %v1561, %v1560
      %v1584 = vpack.c.b16 %v1563, %v1562
      %v1585 = vpack.c.b16 %v1565, %v1564
      %v1586 = vpack.c.b16 %v1567, %v1566
      %v1587 = vpack.c.b16 %v1569, %v1568
      %v1588 = vpack.c.b16 %v1571, %v1570
      %v1589 = vpack.c.b16 %v1573, %v1572
      %v1622 = vunpack.c.l.b16 %v1526
      %v1623 = vunpack.c.l.b16 %v1527
      %v1624 = vunpack.c.l.b16 %v1528
      %v1625 = vunpack.c.l.b16 %v1529
      %v1626 = vunpack.c.l.b16 %v1530
      %v1627 = vunpack.c.l.b16 %v1531
      %v1628 = vunpack.c.l.b16 %v1532
      %v1629 = vunpack.c.l.b16 %v1533
      %v1630 = vunpack.c.l.b16 %v1534
      %v1631 = vunpack.c.l.b16 %v1535
      %v1632 = vunpack.c.l.b16 %v1536
      %v1633 = vunpack.c.l.b16 %v1537
      %v1634 = vunpack.c.l.b16 %v1538
      %v1635 = vunpack.c.l.b16 %v1539
      %v1636 = vunpack.c.l.b16 %v1540
      %v1637 = vunpack.c.l.b16 %v1541
      %v1638 = vpack.c.b16 %v1623, %v1622
      %v1639 = vpack.c.b16 %v1625, %v1624
      %v1640 = vpack.c.b16 %v1627, %v1626
      %v1641 = vpack.c.b16 %v1629, %v1628
      %v1642 = vpack.c.b16 %v1631, %v1630
      %v1643 = vpack.c.b16 %v1633, %v1632
      %v1644 = vpack.c.b16 %v1635, %v1634
      %v1645 = vpack.c.b16 %v1637, %v1636
      %1654 = vmatprep.subr.bf16.mxu0 0
      %1655 = vmatpush1.bf16.msra.mxu0 %v1645
      %1656 = vmatprep.subr.bf16.mxu0 0
      %1657 = vmatpush1.bf16.msra.mxu0 %v1644
      %1658 = vmatprep.subr.bf16.mxu0 0
      %1659 = vmatpush1.bf16.msra.mxu0 %v1643
      %1660 = vmatprep.subr.bf16.mxu0 0
      %1661 = vmatpush1.bf16.msra.mxu0 %v1642
      %1662 = vmatprep.subr.bf16.mxu0 0
      %1663 = vmatpush1.bf16.msra.mxu0 %v1641
      %1664 = vmatprep.subr.bf16.mxu0 0
      %1665 = vmatpush1.bf16.msra.mxu0 %v1640
      %1666 = vmatprep.subr.bf16.mxu0 0
      %1667 = vmatpush1.bf16.msra.mxu0 %v1639
      %1668 = vmatprep.subr.bf16.mxu0 0
      %1669 = vmatpush1.bf16.msra.mxu0 %v1638
      %1670 = vmatprep.subr.bf16.mxu0 0
      %1671 = vmatpush2.bf16.msra.mxu0 0
      %1672 = vmatprep.subr.bf16.mxu0 0
      %1673 = vmatpush2.bf16.msra.mxu0 0
      %1674 = vmatprep.subr.bf16.mxu0 0
      %1675 = vmatpush2.bf16.msra.mxu0 0
      %1676 = vmatprep.subr.bf16.mxu0 0
      %1677 = vmatpush2.bf16.msra.mxu0 0
      %1678 = vmatprep.subr.bf16.mxu0 0
      %1679 = vmatpush2.bf16.msra.mxu0 0
      %1680 = vmatprep.subr.bf16.mxu0 0
      %1681 = vmatpush2.bf16.msra.mxu0 0
      %1682 = vmatprep.subr.bf16.mxu0 0
      %1683 = vmatpush2.bf16.msra.mxu0 0
      %1684 = vmatprep.subr.bf16.mxu0 0
      %1685 = vmatpush2.bf16.msra.mxu0 0
      %1686 = vmatprep.mubr.bf16.mxu0 0
      %1687 = vmatmul.mubr.bf16.gmra.mxu0 %v1574
      %v1688 = vpop.f32.mrf.mxu0
      %v1689 = vadd.f32 0.0, %v1688
      %v1690 = vpop.f32.mrf.mxu0
      %v1691 = vpop.f32.mrf.mxu0
      %v1692 = vadd.f32 0.0, %v1691
      %v1693 = vpop.f32.mrf.mxu0
      %1694 = vmatprep.mubr.bf16.mxu0 0
      %1695 = vmatmul.mubr.bf16.gmra.mxu0 %v1575
      %v1696 = vpop.f32.mrf.mxu0
      %v1697 = vadd.f32 0.0, %v1696
      %v1698 = vpop.f32.mrf.mxu0
      %v1699 = vpop.f32.mrf.mxu0
      %v1700 = vadd.f32 0.0, %v1699
      %v1701 = vpop.f32.mrf.mxu0
      %1702 = vmatprep.mubr.bf16.mxu0 0
      %1703 = vmatmul.mubr.bf16.gmra.mxu0 %v1576
      %v1704 = vpop.f32.mrf.mxu0
      %v1705 = vadd.f32 0.0, %v1704
      %v1706 = vpop.f32.mrf.mxu0
      %v1707 = vpop.f32.mrf.mxu0
      %v1708 = vadd.f32 0.0, %v1707
      %v1709 = vpop.f32.mrf.mxu0
      %1710 = vmatprep.mubr.bf16.mxu0 0
      %1711 = vmatmul.mubr.bf16.gmra.mxu0 %v1577
      %v1712 = vpop.f32.mrf.mxu0
      %v1713 = vadd.f32 0.0, %v1712
      %v1714 = vpop.f32.mrf.mxu0
      %v1715 = vpop.f32.mrf.mxu0
      %v1716 = vadd.f32 0.0, %v1715
      %v1717 = vpop.f32.mrf.mxu0
      %1718 = vmatprep.mubr.bf16.mxu0 0
      %1719 = vmatmul.mubr.bf16.gmra.mxu0 %v1578
      %v1720 = vpop.f32.mrf.mxu0
      %v1721 = vadd.f32 0.0, %v1720
      %v1722 = vpop.f32.mrf.mxu0
      %v1723 = vpop.f32.mrf.mxu0
      %v1724 = vadd.f32 0.0, %v1723
      %v1725 = vpop.f32.mrf.mxu0
      %1726 = vmatprep.mubr.bf16.mxu0 0
      %1727 = vmatmul.mubr.bf16.gmra.mxu0 %v1579
      %v1728 = vpop.f32.mrf.mxu0
      %v1729 = vadd.f32 0.0, %v1728
      %v1730 = vpop.f32.mrf.mxu0
      %v1731 = vpop.f32.mrf.mxu0
      %v1732 = vadd.f32 0.0, %v1731
      %v1733 = vpop.f32.mrf.mxu0
      %1734 = vmatprep.mubr.bf16.mxu0 0
      %1735 = vmatmul.mubr.bf16.gmra.mxu0 %v1580
      %v1736 = vpop.f32.mrf.mxu0
      %v1737 = vadd.f32 0.0, %v1736
      %v1738 = vpop.f32.mrf.mxu0
      %v1739 = vpop.f32.mrf.mxu0
      %v1740 = vadd.f32 0.0, %v1739
      %v1741 = vpop.f32.mrf.mxu0
      %1742 = vmatprep.mubr.bf16.mxu0 0
      %1743 = vmatmul.mubr.bf16.gmra.mxu0 %v1581
      %v1744 = vpop.f32.mrf.mxu0
      %v1745 = vadd.f32 0.0, %v1744
      %v1746 = vpop.f32.mrf.mxu0
      %v1747 = vpop.f32.mrf.mxu0
      %v1748 = vadd.f32 0.0, %v1747
      %v1749 = vpop.f32.mrf.mxu0
      %1750 = vmatprep.mubr.bf16.mxu0 0
      %1751 = vmatmul.mubr.bf16.gmra.mxu0 %v1582
      %v1752 = vpop.f32.mrf.mxu0
      %v1753 = vadd.f32 0.0, %v1752
      %v1754 = vpop.f32.mrf.mxu0
      %v1755 = vpop.f32.mrf.mxu0
      %v1756 = vadd.f32 0.0, %v1755
      %v1757 = vpop.f32.mrf.mxu0
      %1758 = vmatprep.mubr.bf16.mxu0 0
      %1759 = vmatmul.mubr.bf16.gmra.mxu0 %v1583
      %v1760 = vpop.f32.mrf.mxu0
      %v1761 = vadd.f32 0.0, %v1760
      %v1762 = vpop.f32.mrf.mxu0
      %v1763 = vpop.f32.mrf.mxu0
      %v1764 = vadd.f32 0.0, %v1763
      %v1765 = vpop.f32.mrf.mxu0
      %1766 = vmatprep.mubr.bf16.mxu0 0
      %1767 = vmatmul.mubr.bf16.gmra.mxu0 %v1584
      %v1768 = vpop.f32.mrf.mxu0
      %v1769 = vadd.f32 0.0, %v1768
      %v1770 = vpop.f32.mrf.mxu0
      %v1771 = vpop.f32.mrf.mxu0
      %v1772 = vadd.f32 0.0, %v1771
      %v1773 = vpop.f32.mrf.mxu0
      %1774 = vmatprep.mubr.bf16.mxu0 0
      %1775 = vmatmul.mubr.bf16.gmra.mxu0 %v1585
      %v1776 = vpop.f32.mrf.mxu0
      %v1777 = vadd.f32 0.0, %v1776
      %v1778 = vpop.f32.mrf.mxu0
      %v1779 = vpop.f32.mrf.mxu0
      %v1780 = vadd.f32 0.0, %v1779
      %v1781 = vpop.f32.mrf.mxu0
      %1782 = vmatprep.mubr.bf16.mxu0 0
      %1783 = vmatmul.mubr.bf16.gmra.mxu0 %v1586
      %v1784 = vpop.f32.mrf.mxu0
      %v1785 = vadd.f32 0.0, %v1784
      %v1786 = vpop.f32.mrf.mxu0
      %v1787 = vpop.f32.mrf.mxu0
      %v1788 = vadd.f32 0.0, %v1787
      %v1789 = vpop.f32.mrf.mxu0
      %1790 = vmatprep.mubr.bf16.mxu0 0
      %1791 = vmatmul.mubr.bf16.gmra.mxu0 %v1587
      %v1792 = vpop.f32.mrf.mxu0
      %v1793 = vadd.f32 0.0, %v1792
      %v1794 = vpop.f32.mrf.mxu0
      %v1795 = vpop.f32.mrf.mxu0
      %v1796 = vadd.f32 0.0, %v1795
      %v1797 = vpop.f32.mrf.mxu0
      %1798 = vmatprep.mubr.bf16.mxu0 0
      %1799 = vmatmul.mubr.bf16.gmra.mxu0 %v1588
      %v1800 = vpop.f32.mrf.mxu0
      %v1801 = vadd.f32 0.0, %v1800
      %v1802 = vpop.f32.mrf.mxu0
      %v1803 = vpop.f32.mrf.mxu0
      %v1804 = vadd.f32 0.0, %v1803
      %v1805 = vpop.f32.mrf.mxu0
      %1806 = vmatprep.mubr.bf16.mxu0 0
      %1807 = vmatmul.mubr.bf16.gmra.mxu0 %v1589
      %v1808 = vpop.f32.mrf.mxu0
      %v1809 = vadd.f32 0.0, %v1808
      %v1810 = vpop.f32.mrf.mxu0
      %v1811 = vpop.f32.mrf.mxu0
      %v1812 = vadd.f32 0.0, %v1811
      %v1813 = vpop.f32.mrf.mxu0
      %1814 = vdwg.mxu0
      %v1815 = vadd.f32 %v1004, %v1689
      %v1816 = vadd.f32 %v1005, %v1692
      %v1817 = vadd.f32 %v1006, %v1697
      %v1818 = vadd.f32 %v1007, %v1700
      %v1819 = vadd.f32 %v1008, %v1705
      %v1820 = vadd.f32 %v1009, %v1708
      %v1821 = vadd.f32 %v1010, %v1713
      %v1822 = vadd.f32 %v1011, %v1716
      %v1823 = vadd.f32 %v1012, %v1721
      %v1824 = vadd.f32 %v1013, %v1724
      %v1825 = vadd.f32 %v1014, %v1729
      %v1826 = vadd.f32 %v1015, %v1732
      %v1827 = vadd.f32 %v1016, %v1737
      %v1828 = vadd.f32 %v1017, %v1740
      %v1829 = vadd.f32 %v1018, %v1745
      %v1830 = vadd.f32 %v1019, %v1748
      %v1831 = vadd.f32 %v1020, %v1753
      %v1832 = vadd.f32 %v1021, %v1756
      %v1833 = vadd.f32 %v1022, %v1761
      %v1834 = vadd.f32 %v1023, %v1764
      %v1835 = vadd.f32 %v1024, %v1769
      %v1836 = vadd.f32 %v1025, %v1772
      %v1837 = vadd.f32 %v1026, %v1777
      %v1838 = vadd.f32 %v1027, %v1780
      %v1839 = vadd.f32 %v1028, %v1785
      %v1840 = vadd.f32 %v1029, %v1788
      %v1841 = vadd.f32 %v1030, %v1793
      %v1842 = vadd.f32 %v1031, %v1796
      %v1843 = vadd.f32 %v1032, %v1801
      %v1844 = vadd.f32 %v1033, %v1804
      %v1845 = vadd.f32 %v1034, %v1809
      %v1846 = vadd.f32 %v1035, %v1812
      %s1847 = scalar_lea.vmem %s1, 256
      %v1848 = vld [vmem:[%s1847] sm:$0xf]
      %v1849 = vld [vmem:[%s1847 + $0x4] sm:$0xf]
      %v1850 = vld [vmem:[%s1847 + $0x8] sm:$0xf]
      %v1851 = vld [vmem:[%s1847 + $0xc] sm:$0xf]
      %v1852 = vld [vmem:[%s1847 + $0x10] sm:$0xf]
      %v1853 = vld [vmem:[%s1847 + $0x14] sm:$0xf]
      %v1854 = vld [vmem:[%s1847 + $0x18] sm:$0xf]
      %v1855 = vld [vmem:[%s1847 + $0x1c] sm:$0xf]
      %v1856 = vld [vmem:[%s1847 + $0x20] sm:$0xf]
      %v1857 = vld [vmem:[%s1847 + $0x24] sm:$0xf]
      %v1858 = vld [vmem:[%s1847 + $0x28] sm:$0xf]
      %v1859 = vld [vmem:[%s1847 + $0x2c] sm:$0xf]
      %v1860 = vld [vmem:[%s1847 + $0x30] sm:$0xf]
      %v1861 = vld [vmem:[%s1847 + $0x34] sm:$0xf]
      %v1862 = vld [vmem:[%s1847 + $0x38] sm:$0xf]
      %v1863 = vld [vmem:[%s1847 + $0x3c] sm:$0xf]
      %v1864 = vunpack.c.l.b16 %v1490
      %v1865 = vunpack.c.l.b16 %v1500
      %v1866 = vpack.c.b16 %v1865, %v1864
      %v1884 = vunpack.c.l.b16 %v1848
      %v1885 = vunpack.c.l.b16 %v1849
      %v1886 = vunpack.c.l.b16 %v1850
      %v1887 = vunpack.c.l.b16 %v1851
      %v1888 = vunpack.c.l.b16 %v1852
      %v1889 = vunpack.c.l.b16 %v1853
      %v1890 = vunpack.c.l.b16 %v1854
      %v1891 = vunpack.c.l.b16 %v1855
      %v1892 = vunpack.c.l.b16 %v1856
      %v1893 = vunpack.c.l.b16 %v1857
      %v1894 = vunpack.c.l.b16 %v1858
      %v1895 = vunpack.c.l.b16 %v1859
      %v1896 = vunpack.c.l.b16 %v1860
      %v1897 = vunpack.c.l.b16 %v1861
      %v1898 = vunpack.c.l.b16 %v1862
      %v1899 = vunpack.c.l.b16 %v1863
      %v1900 = vpack.c.b16 %v1885, %v1884
      %v1901 = vpack.c.b16 %v1887, %v1886
      %v1902 = vpack.c.b16 %v1889, %v1888
      %v1903 = vpack.c.b16 %v1891, %v1890
      %v1904 = vpack.c.b16 %v1893, %v1892
      %v1905 = vpack.c.b16 %v1895, %v1894
      %v1906 = vpack.c.b16 %v1897, %v1896
      %v1907 = vpack.c.b16 %v1899, %v1898
      %1916 = vmatprep.subr.bf16.mxu0 0
      %1917 = vmatpush1.bf16.msra.mxu0 %v1907
      %1918 = vmatprep.subr.bf16.mxu0 0
      %1919 = vmatpush1.bf16.msra.mxu0 %v1906
      %1920 = vmatprep.subr.bf16.mxu0 0
      %1921 = vmatpush1.bf16.msra.mxu0 %v1905
      %1922 = vmatprep.subr.bf16.mxu0 0
      %1923 = vmatpush1.bf16.msra.mxu0 %v1904
      %1924 = vmatprep.subr.bf16.mxu0 0
      %1925 = vmatpush1.bf16.msra.mxu0 %v1903
      %1926 = vmatprep.subr.bf16.mxu0 0
      %1927 = vmatpush1.bf16.msra.mxu0 %v1902
      %1928 = vmatprep.subr.bf16.mxu0 0
      %1929 = vmatpush1.bf16.msra.mxu0 %v1901
      %1930 = vmatprep.subr.bf16.mxu0 0
      %1931 = vmatpush1.bf16.msra.mxu0 %v1900
      %1932 = vmatprep.subr.bf16.mxu0 0
      %1933 = vmatpush2.bf16.msra.mxu0 0
      %1934 = vmatprep.subr.bf16.mxu0 0
      %1935 = vmatpush2.bf16.msra.mxu0 0
      %1936 = vmatprep.subr.bf16.mxu0 0
      %1937 = vmatpush2.bf16.msra.mxu0 0
      %1938 = vmatprep.subr.bf16.mxu0 0
      %1939 = vmatpush2.bf16.msra.mxu0 0
      %1940 = vmatprep.subr.bf16.mxu0 0
      %1941 = vmatpush2.bf16.msra.mxu0 0
      %1942 = vmatprep.subr.bf16.mxu0 0
      %1943 = vmatpush2.bf16.msra.mxu0 0
      %1944 = vmatprep.subr.bf16.mxu0 0
      %1945 = vmatpush2.bf16.msra.mxu0 0
      %1946 = vmatprep.subr.bf16.mxu0 0
      %1947 = vmatpush2.bf16.msra.mxu0 0
      %1948 = vmatprep.mubr.bf16.mxu0 0
      %1949 = vmatmul.mubr.bf16.gmra.mxu0 %v1575
      %v1950 = vpop.f32.mrf.mxu0
      %v1951 = vadd.f32 0.0, %v1950
      %v1952 = vpop.f32.mrf.mxu0
      %v1953 = vpop.f32.mrf.mxu0
      %v1954 = vadd.f32 0.0, %v1953
      %v1955 = vpop.f32.mrf.mxu0
      %1956 = vmatprep.mubr.bf16.mxu0 0
      %1957 = vmatmul.mubr.bf16.gmra.mxu0 %v1576
      %v1958 = vpop.f32.mrf.mxu0
      %v1959 = vadd.f32 0.0, %v1958
      %v1960 = vpop.f32.mrf.mxu0
      %v1961 = vpop.f32.mrf.mxu0
      %v1962 = vadd.f32 0.0, %v1961
      %v1963 = vpop.f32.mrf.mxu0
      %1964 = vmatprep.mubr.bf16.mxu0 0
      %1965 = vmatmul.mubr.bf16.gmra.mxu0 %v1577
      %v1966 = vpop.f32.mrf.mxu0
      %v1967 = vadd.f32 0.0, %v1966
      %v1968 = vpop.f32.mrf.mxu0
      %v1969 = vpop.f32.mrf.mxu0
      %v1970 = vadd.f32 0.0, %v1969
      %v1971 = vpop.f32.mrf.mxu0
      %1972 = vmatprep.mubr.bf16.mxu0 0
      %1973 = vmatmul.mubr.bf16.gmra.mxu0 %v1578
      %v1974 = vpop.f32.mrf.mxu0
      %v1975 = vadd.f32 0.0, %v1974
      %v1976 = vpop.f32.mrf.mxu0
      %v1977 = vpop.f32.mrf.mxu0
      %v1978 = vadd.f32 0.0, %v1977
      %v1979 = vpop.f32.mrf.mxu0
      %1980 = vmatprep.mubr.bf16.mxu0 0
      %1981 = vmatmul.mubr.bf16.gmra.mxu0 %v1579
      %v1982 = vpop.f32.mrf.mxu0
      %v1983 = vadd.f32 0.0, %v1982
      %v1984 = vpop.f32.mrf.mxu0
      %v1985 = vpop.f32.mrf.mxu0
      %v1986 = vadd.f32 0.0, %v1985
      %v1987 = vpop.f32.mrf.mxu0
      %1988 = vmatprep.mubr.bf16.mxu0 0
      %1989 = vmatmul.mubr.bf16.gmra.mxu0 %v1580
      %v1990 = vpop.f32.mrf.mxu0
      %v1991 = vadd.f32 0.0, %v1990
      %v1992 = vpop.f32.mrf.mxu0
      %v1993 = vpop.f32.mrf.mxu0
      %v1994 = vadd.f32 0.0, %v1993
      %v1995 = vpop.f32.mrf.mxu0
      %1996 = vmatprep.mubr.bf16.mxu0 0
      %1997 = vmatmul.mubr.bf16.gmra.mxu0 %v1581
      %v1998 = vpop.f32.mrf.mxu0
      %v1999 = vadd.f32 0.0, %v1998
      %v2000 = vpop.f32.mrf.mxu0
      %v2001 = vpop.f32.mrf.mxu0
      %v2002 = vadd.f32 0.0, %v2001
      %v2003 = vpop.f32.mrf.mxu0
      %2004 = vmatprep.mubr.bf16.mxu0 0
      %2005 = vmatmul.mubr.bf16.gmra.mxu0 %v1582
      %v2006 = vpop.f32.mrf.mxu0
      %v2007 = vadd.f32 0.0, %v2006
      %v2008 = vpop.f32.mrf.mxu0
      %v2009 = vpop.f32.mrf.mxu0
      %v2010 = vadd.f32 0.0, %v2009
      %v2011 = vpop.f32.mrf.mxu0
      %2012 = vmatprep.mubr.bf16.mxu0 0
      %2013 = vmatmul.mubr.bf16.gmra.mxu0 %v1583
      %v2014 = vpop.f32.mrf.mxu0
      %v2015 = vadd.f32 0.0, %v2014
      %v2016 = vpop.f32.mrf.mxu0
      %v2017 = vpop.f32.mrf.mxu0
      %v2018 = vadd.f32 0.0, %v2017
      %v2019 = vpop.f32.mrf.mxu0
      %2020 = vmatprep.mubr.bf16.mxu0 0
      %2021 = vmatmul.mubr.bf16.gmra.mxu0 %v1584
      %v2022 = vpop.f32.mrf.mxu0
      %v2023 = vadd.f32 0.0, %v2022
      %v2024 = vpop.f32.mrf.mxu0
      %v2025 = vpop.f32.mrf.mxu0
      %v2026 = vadd.f32 0.0, %v2025
      %v2027 = vpop.f32.mrf.mxu0
      %2028 = vmatprep.mubr.bf16.mxu0 0
      %2029 = vmatmul.mubr.bf16.gmra.mxu0 %v1585
      %v2030 = vpop.f32.mrf.mxu0
      %v2031 = vadd.f32 0.0, %v2030
      %v2032 = vpop.f32.mrf.mxu0
      %v2033 = vpop.f32.mrf.mxu0
      %v2034 = vadd.f32 0.0, %v2033
      %v2035 = vpop.f32.mrf.mxu0
      %2036 = vmatprep.mubr.bf16.mxu0 0
      %2037 = vmatmul.mubr.bf16.gmra.mxu0 %v1586
      %v2038 = vpop.f32.mrf.mxu0
      %v2039 = vadd.f32 0.0, %v2038
      %v2040 = vpop.f32.mrf.mxu0
      %v2041 = vpop.f32.mrf.mxu0
      %v2042 = vadd.f32 0.0, %v2041
      %v2043 = vpop.f32.mrf.mxu0
      %2044 = vmatprep.mubr.bf16.mxu0 0
      %2045 = vmatmul.mubr.bf16.gmra.mxu0 %v1587
      %v2046 = vpop.f32.mrf.mxu0
      %v2047 = vadd.f32 0.0, %v2046
      %v2048 = vpop.f32.mrf.mxu0
      %v2049 = vpop.f32.mrf.mxu0
      %v2050 = vadd.f32 0.0, %v2049
      %v2051 = vpop.f32.mrf.mxu0
      %2052 = vmatprep.mubr.bf16.mxu0 0
      %2053 = vmatmul.mubr.bf16.gmra.mxu0 %v1588
      %v2054 = vpop.f32.mrf.mxu0
      %v2055 = vadd.f32 0.0, %v2054
      %v2056 = vpop.f32.mrf.mxu0
      %v2057 = vpop.f32.mrf.mxu0
      %v2058 = vadd.f32 0.0, %v2057
      %v2059 = vpop.f32.mrf.mxu0
      %2060 = vmatprep.mubr.bf16.mxu0 0
      %2061 = vmatmul.mubr.bf16.gmra.mxu0 %v1589
      %v2062 = vpop.f32.mrf.mxu0
      %v2063 = vadd.f32 0.0, %v2062
      %v2064 = vpop.f32.mrf.mxu0
      %v2065 = vpop.f32.mrf.mxu0
      %v2066 = vadd.f32 0.0, %v2065
      %v2067 = vpop.f32.mrf.mxu0
      %2068 = vmatprep.mubr.bf16.mxu0 0
      %2069 = vmatmul.mubr.bf16.gmra.mxu0 %v1866
      %v2070 = vpop.f32.mrf.mxu0
      %v2071 = vadd.f32 0.0, %v2070
      %v2072 = vpop.f32.mrf.mxu0
      %v2073 = vpop.f32.mrf.mxu0
      %v2074 = vadd.f32 0.0, %v2073
      %v2075 = vpop.f32.mrf.mxu0
      %2076 = vdwg.mxu0
      %v2077 = vadd.f32 %v1815, %v1951
      %v2078 = vadd.f32 %v1816, %v1954
      %v2079 = vadd.f32 %v1817, %v1959
      %v2080 = vadd.f32 %v1818, %v1962
      %v2081 = vadd.f32 %v1819, %v1967
      %v2082 = vadd.f32 %v1820, %v1970
      %v2083 = vadd.f32 %v1821, %v1975
      %v2084 = vadd.f32 %v1822, %v1978
      %v2085 = vadd.f32 %v1823, %v1983
      %v2086 = vadd.f32 %v1824, %v1986
      %v2087 = vadd.f32 %v1825, %v1991
      %v2088 = vadd.f32 %v1826, %v1994
      %v2089 = vadd.f32 %v1827, %v1999
      %v2090 = vadd.f32 %v1828, %v2002
      %v2091 = vadd.f32 %v1829, %v2007
      %v2092 = vadd.f32 %v1830, %v2010
      %v2093 = vadd.f32 %v1831, %v2015
      %v2094 = vadd.f32 %v1832, %v2018
      %v2095 = vadd.f32 %v1833, %v2023
      %v2096 = vadd.f32 %v1834, %v2026
      %v2097 = vadd.f32 %v1835, %v2031
      %v2098 = vadd.f32 %v1836, %v2034
      %v2099 = vadd.f32 %v1837, %v2039
      %v2100 = vadd.f32 %v1838, %v2042
      %v2101 = vadd.f32 %v1839, %v2047
      %v2102 = vadd.f32 %v1840, %v2050
      %v2103 = vadd.f32 %v1841, %v2055
      %v2104 = vadd.f32 %v1842, %v2058
      %v2105 = vadd.f32 %v1843, %v2063
      %v2106 = vadd.f32 %v1844, %v2066
      %v2107 = vadd.f32 %v1845, %v2071
      %v2108 = vadd.f32 %v1846, %v2074
      %s2109 = scalar_lea.vmem %s1, 448
      %v2110 = vld [vmem:[%s2109] sm:$0xf]
      %v2111 = vld [vmem:[%s2109 + $0x4] sm:$0xf]
      %v2112 = vld [vmem:[%s2109 + $0x8] sm:$0xf]
      %v2113 = vld [vmem:[%s2109 + $0xc] sm:$0xf]
      %v2114 = vld [vmem:[%s2109 + $0x10] sm:$0xf]
      %v2115 = vld [vmem:[%s2109 + $0x14] sm:$0xf]
      %v2116 = vld [vmem:[%s2109 + $0x18] sm:$0xf]
      %v2117 = vld [vmem:[%s2109 + $0x1c] sm:$0xf]
      %v2118 = vld [vmem:[%s2109 + $0x20] sm:$0xf]
      %v2119 = vld [vmem:[%s2109 + $0x24] sm:$0xf]
      %v2120 = vld [vmem:[%s2109 + $0x28] sm:$0xf]
      %v2121 = vld [vmem:[%s2109 + $0x2c] sm:$0xf]
      %v2122 = vld [vmem:[%s2109 + $0x30] sm:$0xf]
      %v2123 = vld [vmem:[%s2109 + $0x34] sm:$0xf]
      %v2124 = vld [vmem:[%s2109 + $0x38] sm:$0xf]
      %v2125 = vld [vmem:[%s2109 + $0x3c] sm:$0xf]
      %v2126 = vunpack.c.l.b16 %v1514
      %v2127 = vunpack.c.l.b16 %v1524
      %v2128 = vpack.c.b16 %v2127, %v2126
      %v2146 = vunpack.c.l.b16 %v2110
      %v2147 = vunpack.c.l.b16 %v2111
      %v2148 = vunpack.c.l.b16 %v2112
      %v2149 = vunpack.c.l.b16 %v2113
      %v2150 = vunpack.c.l.b16 %v2114
      %v2151 = vunpack.c.l.b16 %v2115
      %v2152 = vunpack.c.l.b16 %v2116
      %v2153 = vunpack.c.l.b16 %v2117
      %v2154 = vunpack.c.l.b16 %v2118
      %v2155 = vunpack.c.l.b16 %v2119
      %v2156 = vunpack.c.l.b16 %v2120
      %v2157 = vunpack.c.l.b16 %v2121
      %v2158 = vunpack.c.l.b16 %v2122
      %v2159 = vunpack.c.l.b16 %v2123
      %v2160 = vunpack.c.l.b16 %v2124
      %v2161 = vunpack.c.l.b16 %v2125
      %v2162 = vpack.c.b16 %v2147, %v2146
      %v2163 = vpack.c.b16 %v2149, %v2148
      %v2164 = vpack.c.b16 %v2151, %v2150
      %v2165 = vpack.c.b16 %v2153, %v2152
      %v2166 = vpack.c.b16 %v2155, %v2154
      %v2167 = vpack.c.b16 %v2157, %v2156
      %v2168 = vpack.c.b16 %v2159, %v2158
      %v2169 = vpack.c.b16 %v2161, %v2160
      %2178 = vmatprep.subr.bf16.mxu0 0
      %2179 = vmatpush1.bf16.msra.mxu0 %v2169
      %2180 = vmatprep.subr.bf16.mxu0 0
      %2181 = vmatpush1.bf16.msra.mxu0 %v2168
      %2182 = vmatprep.subr.bf16.mxu0 0
      %2183 = vmatpush1.bf16.msra.mxu0 %v2167
      %2184 = vmatprep.subr.bf16.mxu0 0
      %2185 = vmatpush1.bf16.msra.mxu0 %v2166
      %2186 = vmatprep.subr.bf16.mxu0 0
      %2187 = vmatpush1.bf16.msra.mxu0 %v2165
      %2188 = vmatprep.subr.bf16.mxu0 0
      %2189 = vmatpush1.bf16.msra.mxu0 %v2164
      %2190 = vmatprep.subr.bf16.mxu0 0
      %2191 = vmatpush1.bf16.msra.mxu0 %v2163
      %2192 = vmatprep.subr.bf16.mxu0 0
      %2193 = vmatpush1.bf16.msra.mxu0 %v2162
      %2194 = vmatprep.subr.bf16.mxu0 0
      %2195 = vmatpush2.bf16.msra.mxu0 0
      %2196 = vmatprep.subr.bf16.mxu0 0
      %2197 = vmatpush2.bf16.msra.mxu0 0
      %2198 = vmatprep.subr.bf16.mxu0 0
      %2199 = vmatpush2.bf16.msra.mxu0 0
      %2200 = vmatprep.subr.bf16.mxu0 0
      %2201 = vmatpush2.bf16.msra.mxu0 0
      %2202 = vmatprep.subr.bf16.mxu0 0
      %2203 = vmatpush2.bf16.msra.mxu0 0
      %2204 = vmatprep.subr.bf16.mxu0 0
      %2205 = vmatpush2.bf16.msra.mxu0 0
      %2206 = vmatprep.subr.bf16.mxu0 0
      %2207 = vmatpush2.bf16.msra.mxu0 0
      %2208 = vmatprep.subr.bf16.mxu0 0
      %2209 = vmatpush2.bf16.msra.mxu0 0
      %2210 = vmatprep.mubr.bf16.mxu0 0
      %2211 = vmatmul.mubr.bf16.gmra.mxu0 %v1576
      %v2212 = vpop.f32.mrf.mxu0
      %v2213 = vadd.f32 0.0, %v2212
      %v2214 = vpop.f32.mrf.mxu0
      %v2215 = vpop.f32.mrf.mxu0
      %v2216 = vadd.f32 0.0, %v2215
      %v2217 = vpop.f32.mrf.mxu0
      %2218 = vmatprep.mubr.bf16.mxu0 0
      %2219 = vmatmul.mubr.bf16.gmra.mxu0 %v1577
      %v2220 = vpop.f32.mrf.mxu0
      %v2221 = vadd.f32 0.0, %v2220
      %v2222 = vpop.f32.mrf.mxu0
      %v2223 = vpop.f32.mrf.mxu0
      %v2224 = vadd.f32 0.0, %v2223
      %v2225 = vpop.f32.mrf.mxu0
      %2226 = vmatprep.mubr.bf16.mxu0 0
      %2227 = vmatmul.mubr.bf16.gmra.mxu0 %v1578
      %v2228 = vpop.f32.mrf.mxu0
      %v2229 = vadd.f32 0.0, %v2228
      %v2230 = vpop.f32.mrf.mxu0
      %v2231 = vpop.f32.mrf.mxu0
      %v2232 = vadd.f32 0.0, %v2231
      %v2233 = vpop.f32.mrf.mxu0
      %2234 = vmatprep.mubr.bf16.mxu0 0
      %2235 = vmatmul.mubr.bf16.gmra.mxu0 %v1579
      %v2236 = vpop.f32.mrf.mxu0
      %v2237 = vadd.f32 0.0, %v2236
      %v2238 = vpop.f32.mrf.mxu0
      %v2239 = vpop.f32.mrf.mxu0
      %v2240 = vadd.f32 0.0, %v2239
      %v2241 = vpop.f32.mrf.mxu0
      %2242 = vmatprep.mubr.bf16.mxu0 0
      %2243 = vmatmul.mubr.bf16.gmra.mxu0 %v1580
      %v2244 = vpop.f32.mrf.mxu0
      %v2245 = vadd.f32 0.0, %v2244
      %v2246 = vpop.f32.mrf.mxu0
      %v2247 = vpop.f32.mrf.mxu0
      %v2248 = vadd.f32 0.0, %v2247
      %v2249 = vpop.f32.mrf.mxu0
      %2250 = vmatprep.mubr.bf16.mxu0 0
      %2251 = vmatmul.mubr.bf16.gmra.mxu0 %v1581
      %v2252 = vpop.f32.mrf.mxu0
      %v2253 = vadd.f32 0.0, %v2252
      %v2254 = vpop.f32.mrf.mxu0
      %v2255 = vpop.f32.mrf.mxu0
      %v2256 = vadd.f32 0.0, %v2255
      %v2257 = vpop.f32.mrf.mxu0
      %2258 = vmatprep.mubr.bf16.mxu0 0
      %2259 = vmatmul.mubr.bf16.gmra.mxu0 %v1582
      %v2260 = vpop.f32.mrf.mxu0
      %v2261 = vadd.f32 0.0, %v2260
      %v2262 = vpop.f32.mrf.mxu0
      %v2263 = vpop.f32.mrf.mxu0
      %v2264 = vadd.f32 0.0, %v2263
      %v2265 = vpop.f32.mrf.mxu0
      %2266 = vmatprep.mubr.bf16.mxu0 0
      %2267 = vmatmul.mubr.bf16.gmra.mxu0 %v1583
      %v2268 = vpop.f32.mrf.mxu0
      %v2269 = vadd.f32 0.0, %v2268
      %v2270 = vpop.f32.mrf.mxu0
      %v2271 = vpop.f32.mrf.mxu0
      %v2272 = vadd.f32 0.0, %v2271
      %v2273 = vpop.f32.mrf.mxu0
      %2274 = vmatprep.mubr.bf16.mxu0 0
      %2275 = vmatmul.mubr.bf16.gmra.mxu0 %v1584
      %v2276 = vpop.f32.mrf.mxu0
      %v2277 = vadd.f32 0.0, %v2276
      %v2278 = vpop.f32.mrf.mxu0
      %v2279 = vpop.f32.mrf.mxu0
      %v2280 = vadd.f32 0.0, %v2279
      %v2281 = vpop.f32.mrf.mxu0
      %2282 = vmatprep.mubr.bf16.mxu0 0
      %2283 = vmatmul.mubr.bf16.gmra.mxu0 %v1585
      %v2284 = vpop.f32.mrf.mxu0
      %v2285 = vadd.f32 0.0, %v2284
      %v2286 = vpop.f32.mrf.mxu0
      %v2287 = vpop.f32.mrf.mxu0
      %v2288 = vadd.f32 0.0, %v2287
      %v2289 = vpop.f32.mrf.mxu0
      %2290 = vmatprep.mubr.bf16.mxu0 0
      %2291 = vmatmul.mubr.bf16.gmra.mxu0 %v1586
      %v2292 = vpop.f32.mrf.mxu0
      %v2293 = vadd.f32 0.0, %v2292
      %v2294 = vpop.f32.mrf.mxu0
      %v2295 = vpop.f32.mrf.mxu0
      %v2296 = vadd.f32 0.0, %v2295
      %v2297 = vpop.f32.mrf.mxu0
      %2298 = vmatprep.mubr.bf16.mxu0 0
      %2299 = vmatmul.mubr.bf16.gmra.mxu0 %v1587
      %v2300 = vpop.f32.mrf.mxu0
      %v2301 = vadd.f32 0.0, %v2300
      %v2302 = vpop.f32.mrf.mxu0
      %v2303 = vpop.f32.mrf.mxu0
      %v2304 = vadd.f32 0.0, %v2303
      %v2305 = vpop.f32.mrf.mxu0
      %2306 = vmatprep.mubr.bf16.mxu0 0
      %2307 = vmatmul.mubr.bf16.gmra.mxu0 %v1588
      %v2308 = vpop.f32.mrf.mxu0
      %v2309 = vadd.f32 0.0, %v2308
      %v2310 = vpop.f32.mrf.mxu0
      %v2311 = vpop.f32.mrf.mxu0
      %v2312 = vadd.f32 0.0, %v2311
      %v2313 = vpop.f32.mrf.mxu0
      %2314 = vmatprep.mubr.bf16.mxu0 0
      %2315 = vmatmul.mubr.bf16.gmra.mxu0 %v1589
      %v2316 = vpop.f32.mrf.mxu0
      %v2317 = vadd.f32 0.0, %v2316
      %v2318 = vpop.f32.mrf.mxu0
      %v2319 = vpop.f32.mrf.mxu0
      %v2320 = vadd.f32 0.0, %v2319
      %v2321 = vpop.f32.mrf.mxu0
      %2322 = vmatprep.mubr.bf16.mxu0 0
      %2323 = vmatmul.mubr.bf16.gmra.mxu0 %v1866
      %v2324 = vpop.f32.mrf.mxu0
      %v2325 = vadd.f32 0.0, %v2324
      %v2326 = vpop.f32.mrf.mxu0
      %v2327 = vpop.f32.mrf.mxu0
      %v2328 = vadd.f32 0.0, %v2327
      %v2329 = vpop.f32.mrf.mxu0
      %2330 = vmatprep.mubr.bf16.mxu0 0
      %2331 = vmatmul.mubr.bf16.gmra.mxu0 %v2128
      %v2332 = vpop.f32.mrf.mxu0
      %v2333 = vadd.f32 0.0, %v2332
      %v2334 = vpop.f32.mrf.mxu0
      %v2335 = vpop.f32.mrf.mxu0
      %v2336 = vadd.f32 0.0, %v2335
      %v2337 = vpop.f32.mrf.mxu0
      %2338 = vdwg.mxu0
      %v2339 = vadd.f32 %v2077, %v2213
      %v2340 = vadd.f32 %v2078, %v2216
      %v2341 = vadd.f32 %v2079, %v2221
      %v2342 = vadd.f32 %v2080, %v2224
      %v2343 = vadd.f32 %v2081, %v2229
      %v2344 = vadd.f32 %v2082, %v2232
      %v2345 = vadd.f32 %v2083, %v2237
      %v2346 = vadd.f32 %v2084, %v2240
      %v2347 = vadd.f32 %v2085, %v2245
      %v2348 = vadd.f32 %v2086, %v2248
      %v2349 = vadd.f32 %v2087, %v2253
      %v2350 = vadd.f32 %v2088, %v2256
      %v2351 = vadd.f32 %v2089, %v2261
      %v2352 = vadd.f32 %v2090, %v2264
      %v2353 = vadd.f32 %v2091, %v2269
      %v2354 = vadd.f32 %v2092, %v2272
      %v2355 = vadd.f32 %v2093, %v2277
      %v2356 = vadd.f32 %v2094, %v2280
      %v2357 = vadd.f32 %v2095, %v2285
      %v2358 = vadd.f32 %v2096, %v2288
      %v2359 = vadd.f32 %v2097, %v2293
      %v2360 = vadd.f32 %v2098, %v2296
      %v2361 = vadd.f32 %v2099, %v2301
      %v2362 = vadd.f32 %v2100, %v2304
      %v2363 = vadd.f32 %v2101, %v2309
      %v2364 = vadd.f32 %v2102, %v2312
      %v2365 = vadd.f32 %v2103, %v2317
      %v2366 = vadd.f32 %v2104, %v2320
      %v2367 = vadd.f32 %v2105, %v2325
      %v2368 = vadd.f32 %v2106, %v2328
      %v2369 = vadd.f32 %v2107, %v2333
      %v2370 = vadd.f32 %v2108, %v2336
      %v2371 = vld [vmem:[%s172] sm:$0xe]
      %v2372 = vld [vmem:[%s172 + $0xc] sm:$0xe]
      %v2373 = vld [vmem:[%s172 + $0x18] sm:$0xe]
      %v2374 = vld [vmem:[%s172 + $0x24] sm:$0xe]
      %v2375 = vld [vmem:[%s172 + $0x30] sm:$0xe]
      %v2376 = vld [vmem:[%s172 + $0x3c] sm:$0xe]
      %v2377 = vld [vmem:[%s172 + $0x48] sm:$0xe]
      %v2378 = vld [vmem:[%s172 + $0x54] sm:$0xe]
      %v2379 = vld [vmem:[%s172 + $0x60] sm:$0xe]
      %v2380 = vld [vmem:[%s172 + $0x6c] sm:$0xe]
      %v2381 = vld [vmem:[%s172 + $0x78] sm:$0xe]
      %v2382 = vld [vmem:[%s172 + $0x84] sm:$0xe]
      %v2383 = vld [vmem:[%s172 + $0x90] sm:$0xe]
      %v2384 = vld [vmem:[%s172 + $0x9c] sm:$0xe]
      %v2385 = vld [vmem:[%s172 + $0xa8] sm:$0xe]
      %v2386 = vld [vmem:[%s172 + $0xb4] sm:$0xe]
      %v2387 = vld [vmem:[%s172 + $0xc0] sm:$0xe]
      %v2388 = vld [vmem:[%s172 + $0xcc] sm:$0xe]
      %vm2443 = vcmask 1042432
      %vm2444 = vcmask 1046532
      %vm2445 = vmor %vm2443, %vm2444
      %v2446 = vrot.slane %v2371, 5
      %v2447 = vrot.slane %v2446, 4
      %v2448 = vrot.slane %v1037, 5
      %v2449 = vsel %vm2445, %v2447, %v2448
      %v2450 = vrot.slane %v2448, 4
      %v2451 = vrot.slane %v1038, 5
      %v2452 = vsel %vm2445, %v2450, %v2451
      %v2453 = vrot.slane %v2372, 5
      %v2454 = vrot.slane %v2453, 4
      %v2455 = vrot.slane %v1040, 5
      %v2456 = vsel %vm2445, %v2454, %v2455
      %v2457 = vrot.slane %v2455, 4
      %v2458 = vrot.slane %v1041, 5
      %v2459 = vsel %vm2445, %v2457, %v2458
      %v2460 = vrot.slane %v2373, 5
      %v2461 = vrot.slane %v2460, 4
      %v2462 = vrot.slane %v1043, 5
      %v2463 = vsel %vm2445, %v2461, %v2462
      %v2464 = vrot.slane %v2462, 4
      %v2465 = vrot.slane %v1044, 5
      %v2466 = vsel %vm2445, %v2464, %v2465
      %v2467 = vrot.slane %v2374, 5
      %v2468 = vrot.slane %v2467, 4
      %v2469 = vrot.slane %v1046, 5
      %v2470 = vsel %vm2445, %v2468, %v2469
      %v2471 = vrot.slane %v2469, 4
      %v2472 = vrot.slane %v1047, 5
      %v2473 = vsel %vm2445, %v2471, %v2472
      %v2474 = vrot.slane %v2375, 5
      %v2475 = vrot.slane %v2474, 4
      %v2476 = vrot.slane %v1049, 5
      %v2477 = vsel %vm2445, %v2475, %v2476
      %v2478 = vrot.slane %v2476, 4
      %v2479 = vrot.slane %v1050, 5
      %v2480 = vsel %vm2445, %v2478, %v2479
      %v2481 = vrot.slane %v2376, 5
      %v2482 = vrot.slane %v2481, 4
      %v2483 = vrot.slane %v1052, 5
      %v2484 = vsel %vm2445, %v2482, %v2483
      %v2485 = vrot.slane %v2483, 4
      %v2486 = vrot.slane %v1053, 5
      %v2487 = vsel %vm2445, %v2485, %v2486
      %v2488 = vrot.slane %v2377, 5
      %v2489 = vrot.slane %v2488, 4
      %v2490 = vrot.slane %v1055, 5
      %v2491 = vsel %vm2445, %v2489, %v2490
      %v2492 = vrot.slane %v2490, 4
      %v2493 = vrot.slane %v1056, 5
      %v2494 = vsel %vm2445, %v2492, %v2493
      %v2495 = vrot.slane %v2378, 5
      %v2496 = vrot.slane %v2495, 4
      %v2497 = vrot.slane %v1058, 5
      %v2498 = vsel %vm2445, %v2496, %v2497
      %v2499 = vrot.slane %v2497, 4
      %v2500 = vrot.slane %v1059, 5
      %v2501 = vsel %vm2445, %v2499, %v2500
      %v2502 = vrot.slane %v2379, 5
      %v2503 = vrot.slane %v2502, 4
      %v2504 = vrot.slane %v1061, 5
      %v2505 = vsel %vm2445, %v2503, %v2504
      %v2506 = vrot.slane %v2504, 4
      %v2507 = vrot.slane %v1062, 5
      %v2508 = vsel %vm2445, %v2506, %v2507
      %v2509 = vrot.slane %v2380, 5
      %v2510 = vrot.slane %v2509, 4
      %v2511 = vrot.slane %v1064, 5
      %v2512 = vsel %vm2445, %v2510, %v2511
      %v2513 = vrot.slane %v2511, 4
      %v2514 = vrot.slane %v1065, 5
      %v2515 = vsel %vm2445, %v2513, %v2514
      %v2516 = vrot.slane %v2381, 5
      %v2517 = vrot.slane %v2516, 4
      %v2518 = vrot.slane %v1067, 5
      %v2519 = vsel %vm2445, %v2517, %v2518
      %v2520 = vrot.slane %v2518, 4
      %v2521 = vrot.slane %v1068, 5
      %v2522 = vsel %vm2445, %v2520, %v2521
      %v2523 = vrot.slane %v2382, 5
      %v2524 = vrot.slane %v2523, 4
      %v2525 = vrot.slane %v1070, 5
      %v2526 = vsel %vm2445, %v2524, %v2525
      %v2527 = vrot.slane %v2525, 4
      %v2528 = vrot.slane %v1071, 5
      %v2529 = vsel %vm2445, %v2527, %v2528
      %v2530 = vrot.slane %v2383, 5
      %v2531 = vrot.slane %v2530, 4
      %v2532 = vrot.slane %v1073, 5
      %v2533 = vsel %vm2445, %v2531, %v2532
      %v2534 = vrot.slane %v2532, 4
      %v2535 = vrot.slane %v1074, 5
      %v2536 = vsel %vm2445, %v2534, %v2535
      %v2537 = vrot.slane %v2384, 5
      %v2538 = vrot.slane %v2537, 4
      %v2539 = vrot.slane %v1076, 5
      %v2540 = vsel %vm2445, %v2538, %v2539
      %v2541 = vrot.slane %v2539, 4
      %v2542 = vrot.slane %v1077, 5
      %v2543 = vsel %vm2445, %v2541, %v2542
      %v2544 = vrot.slane %v2385, 5
      %v2545 = vrot.slane %v2544, 4
      %v2546 = vrot.slane %v1079, 5
      %v2547 = vsel %vm2445, %v2545, %v2546
      %v2548 = vrot.slane %v2546, 4
      %v2549 = vrot.slane %v1080, 5
      %v2550 = vsel %vm2445, %v2548, %v2549
      %v2551 = vrot.slane %v2386, 5
      %v2552 = vrot.slane %v2551, 4
      %v2553 = vrot.slane %v1082, 5
      %v2554 = vsel %vm2445, %v2552, %v2553
      %v2555 = vrot.slane %v2553, 4
      %v2556 = vrot.slane %v1083, 5
      %v2557 = vsel %vm2445, %v2555, %v2556
      %v2558 = vrot.slane %v2387, 5
      %v2559 = vrot.slane %v2558, 4
      %v2560 = vrot.slane %v1085, 5
      %v2561 = vsel %vm2445, %v2559, %v2560
      %v2562 = vrot.slane %v2560, 4
      %v2563 = vrot.slane %v1086, 5
      %v2564 = vsel %vm2445, %v2562, %v2563
      %v2565 = vrot.slane %v2388, 5
      %v2566 = vrot.slane %v2565, 4
      %v2567 = vrot.slane %v1088, 5
      %v2568 = vsel %vm2445, %v2566, %v2567
      %v2569 = vrot.slane %v2567, 4
      %v2570 = vrot.slane %v1089, 5
      %v2571 = vsel %vm2445, %v2569, %v2570
      %s2572 = scalar_lea.vmem %s1, 128
      %v2573 = vld [vmem:[%s2572] sm:$0xf]
      %v2574 = vld [vmem:[%s2572 + $0x4] sm:$0xf]
      %v2575 = vld [vmem:[%s2572 + $0x8] sm:$0xf]
      %v2576 = vld [vmem:[%s2572 + $0xc] sm:$0xf]
      %v2577 = vld [vmem:[%s2572 + $0x10] sm:$0xf]
      %v2578 = vld [vmem:[%s2572 + $0x14] sm:$0xf]
      %v2579 = vld [vmem:[%s2572 + $0x18] sm:$0xf]
      %v2580 = vld [vmem:[%s2572 + $0x1c] sm:$0xf]
      %v2581 = vld [vmem:[%s2572 + $0x20] sm:$0xf]
      %v2582 = vld [vmem:[%s2572 + $0x24] sm:$0xf]
      %v2583 = vld [vmem:[%s2572 + $0x28] sm:$0xf]
      %v2584 = vld [vmem:[%s2572 + $0x2c] sm:$0xf]
      %v2585 = vld [vmem:[%s2572 + $0x30] sm:$0xf]
      %v2586 = vld [vmem:[%s2572 + $0x34] sm:$0xf]
      %v2587 = vld [vmem:[%s2572 + $0x38] sm:$0xf]
      %v2588 = vld [vmem:[%s2572 + $0x3c] sm:$0xf]
      %v2589 = vunpack.c.l.b16 %v2449
      %v2590 = vunpack.c.l.b16 %v2452
      %v2591 = vunpack.c.l.b16 %v2456
      %v2592 = vunpack.c.l.b16 %v2459
      %v2593 = vunpack.c.l.b16 %v2463
      %v2594 = vunpack.c.l.b16 %v2466
      %v2595 = vunpack.c.l.b16 %v2470
      %v2596 = vunpack.c.l.b16 %v2473
      %v2597 = vunpack.c.l.b16 %v2477
      %v2598 = vunpack.c.l.b16 %v2480
      %v2599 = vunpack.c.l.b16 %v2484
      %v2600 = vunpack.c.l.b16 %v2487
      %v2601 = vunpack.c.l.b16 %v2491
      %v2602 = vunpack.c.l.b16 %v2494
      %v2603 = vunpack.c.l.b16 %v2498
      %v2604 = vunpack.c.l.b16 %v2501
      %v2605 = vunpack.c.l.b16 %v2505
      %v2606 = vunpack.c.l.b16 %v2508
      %v2607 = vunpack.c.l.b16 %v2512
      %v2608 = vunpack.c.l.b16 %v2515
      %v2609 = vunpack.c.l.b16 %v2519
      %v2610 = vunpack.c.l.b16 %v2522
      %v2611 = vunpack.c.l.b16 %v2526
      %v2612 = vunpack.c.l.b16 %v2529
      %v2613 = vunpack.c.l.b16 %v2533
      %v2614 = vunpack.c.l.b16 %v2536
      %v2615 = vunpack.c.l.b16 %v2540
      %v2616 = vunpack.c.l.b16 %v2543
      %v2617 = vunpack.c.l.b16 %v2547
      %v2618 = vunpack.c.l.b16 %v2550
      %v2619 = vunpack.c.l.b16 %v2554
      %v2620 = vunpack.c.l.b16 %v2557
      %v2621 = vpack.c.b16 %v2590, %v2589
      %v2622 = vpack.c.b16 %v2592, %v2591
      %v2623 = vpack.c.b16 %v2594, %v2593
      %v2624 = vpack.c.b16 %v2596, %v2595
      %v2625 = vpack.c.b16 %v2598, %v2597
      %v2626 = vpack.c.b16 %v2600, %v2599
      %v2627 = vpack.c.b16 %v2602, %v2601
      %v2628 = vpack.c.b16 %v2604, %v2603
      %v2629 = vpack.c.b16 %v2606, %v2605
      %v2630 = vpack.c.b16 %v2608, %v2607
      %v2631 = vpack.c.b16 %v2610, %v2609
      %v2632 = vpack.c.b16 %v2612, %v2611
      %v2633 = vpack.c.b16 %v2614, %v2613
      %v2634 = vpack.c.b16 %v2616, %v2615
      %v2635 = vpack.c.b16 %v2618, %v2617
      %v2636 = vpack.c.b16 %v2620, %v2619
      %v2669 = vunpack.c.l.b16 %v2573
      %v2670 = vunpack.c.l.b16 %v2574
      %v2671 = vunpack.c.l.b16 %v2575
      %v2672 = vunpack.c.l.b16 %v2576
      %v2673 = vunpack.c.l.b16 %v2577
      %v2674 = vunpack.c.l.b16 %v2578
      %v2675 = vunpack.c.l.b16 %v2579
      %v2676 = vunpack.c.l.b16 %v2580
      %v2677 = vunpack.c.l.b16 %v2581
      %v2678 = vunpack.c.l.b16 %v2582
      %v2679 = vunpack.c.l.b16 %v2583
      %v2680 = vunpack.c.l.b16 %v2584
      %v2681 = vunpack.c.l.b16 %v2585
      %v2682 = vunpack.c.l.b16 %v2586
      %v2683 = vunpack.c.l.b16 %v2587
      %v2684 = vunpack.c.l.b16 %v2588
      %v2685 = vpack.c.b16 %v2670, %v2669
      %v2686 = vpack.c.b16 %v2672, %v2671
      %v2687 = vpack.c.b16 %v2674, %v2673
      %v2688 = vpack.c.b16 %v2676, %v2675
      %v2689 = vpack.c.b16 %v2678, %v2677
      %v2690 = vpack.c.b16 %v2680, %v2679
      %v2691 = vpack.c.b16 %v2682, %v2681
      %v2692 = vpack.c.b16 %v2684, %v2683
      %2701 = vmatprep.subr.bf16.mxu0 0
      %2702 = vmatpush1.bf16.msra.mxu0 %v2692
      %2703 = vmatprep.subr.bf16.mxu0 0
      %2704 = vmatpush1.bf16.msra.mxu0 %v2691
      %2705 = vmatprep.subr.bf16.mxu0 0
      %2706 = vmatpush1.bf16.msra.mxu0 %v2690
      %2707 = vmatprep.subr.bf16.mxu0 0
      %2708 = vmatpush1.bf16.msra.mxu0 %v2689
      %2709 = vmatprep.subr.bf16.mxu0 0
      %2710 = vmatpush1.bf16.msra.mxu0 %v2688
      %2711 = vmatprep.subr.bf16.mxu0 0
      %2712 = vmatpush1.bf16.msra.mxu0 %v2687
      %2713 = vmatprep.subr.bf16.mxu0 0
      %2714 = vmatpush1.bf16.msra.mxu0 %v2686
      %2715 = vmatprep.subr.bf16.mxu0 0
      %2716 = vmatpush1.bf16.msra.mxu0 %v2685
      %2717 = vmatprep.subr.bf16.mxu0 0
      %2718 = vmatpush2.bf16.msra.mxu0 0
      %2719 = vmatprep.subr.bf16.mxu0 0
      %2720 = vmatpush2.bf16.msra.mxu0 0
      %2721 = vmatprep.subr.bf16.mxu0 0
      %2722 = vmatpush2.bf16.msra.mxu0 0
      %2723 = vmatprep.subr.bf16.mxu0 0
      %2724 = vmatpush2.bf16.msra.mxu0 0
      %2725 = vmatprep.subr.bf16.mxu0 0
      %2726 = vmatpush2.bf16.msra.mxu0 0
      %2727 = vmatprep.subr.bf16.mxu0 0
      %2728 = vmatpush2.bf16.msra.mxu0 0
      %2729 = vmatprep.subr.bf16.mxu0 0
      %2730 = vmatpush2.bf16.msra.mxu0 0
      %2731 = vmatprep.subr.bf16.mxu0 0
      %2732 = vmatpush2.bf16.msra.mxu0 0
      %2733 = vmatprep.mubr.bf16.mxu0 0
      %2734 = vmatmul.mubr.bf16.gmra.mxu0 %v2621
      %v2735 = vpop.f32.mrf.mxu0
      %v2736 = vadd.f32 0.0, %v2735
      %v2737 = vpop.f32.mrf.mxu0
      %v2738 = vpop.f32.mrf.mxu0
      %v2739 = vadd.f32 0.0, %v2738
      %v2740 = vpop.f32.mrf.mxu0
      %2741 = vmatprep.mubr.bf16.mxu0 0
      %2742 = vmatmul.mubr.bf16.gmra.mxu0 %v2622
      %v2743 = vpop.f32.mrf.mxu0
      %v2744 = vadd.f32 0.0, %v2743
      %v2745 = vpop.f32.mrf.mxu0
      %v2746 = vpop.f32.mrf.mxu0
      %v2747 = vadd.f32 0.0, %v2746
      %v2748 = vpop.f32.mrf.mxu0
      %2749 = vmatprep.mubr.bf16.mxu0 0
      %2750 = vmatmul.mubr.bf16.gmra.mxu0 %v2623
      %v2751 = vpop.f32.mrf.mxu0
      %v2752 = vadd.f32 0.0, %v2751
      %v2753 = vpop.f32.mrf.mxu0
      %v2754 = vpop.f32.mrf.mxu0
      %v2755 = vadd.f32 0.0, %v2754
      %v2756 = vpop.f32.mrf.mxu0
      %2757 = vmatprep.mubr.bf16.mxu0 0
      %2758 = vmatmul.mubr.bf16.gmra.mxu0 %v2624
      %v2759 = vpop.f32.mrf.mxu0
      %v2760 = vadd.f32 0.0, %v2759
      %v2761 = vpop.f32.mrf.mxu0
      %v2762 = vpop.f32.mrf.mxu0
      %v2763 = vadd.f32 0.0, %v2762
      %v2764 = vpop.f32.mrf.mxu0
      %2765 = vmatprep.mubr.bf16.mxu0 0
      %2766 = vmatmul.mubr.bf16.gmra.mxu0 %v2625
      %v2767 = vpop.f32.mrf.mxu0
      %v2768 = vadd.f32 0.0, %v2767
      %v2769 = vpop.f32.mrf.mxu0
      %v2770 = vpop.f32.mrf.mxu0
      %v2771 = vadd.f32 0.0, %v2770
      %v2772 = vpop.f32.mrf.mxu0
      %2773 = vmatprep.mubr.bf16.mxu0 0
      %2774 = vmatmul.mubr.bf16.gmra.mxu0 %v2626
      %v2775 = vpop.f32.mrf.mxu0
      %v2776 = vadd.f32 0.0, %v2775
      %v2777 = vpop.f32.mrf.mxu0
      %v2778 = vpop.f32.mrf.mxu0
      %v2779 = vadd.f32 0.0, %v2778
      %v2780 = vpop.f32.mrf.mxu0
      %2781 = vmatprep.mubr.bf16.mxu0 0
      %2782 = vmatmul.mubr.bf16.gmra.mxu0 %v2627
      %v2783 = vpop.f32.mrf.mxu0
      %v2784 = vadd.f32 0.0, %v2783
      %v2785 = vpop.f32.mrf.mxu0
      %v2786 = vpop.f32.mrf.mxu0
      %v2787 = vadd.f32 0.0, %v2786
      %v2788 = vpop.f32.mrf.mxu0
      %2789 = vmatprep.mubr.bf16.mxu0 0
      %2790 = vmatmul.mubr.bf16.gmra.mxu0 %v2628
      %v2791 = vpop.f32.mrf.mxu0
      %v2792 = vadd.f32 0.0, %v2791
      %v2793 = vpop.f32.mrf.mxu0
      %v2794 = vpop.f32.mrf.mxu0
      %v2795 = vadd.f32 0.0, %v2794
      %v2796 = vpop.f32.mrf.mxu0
      %2797 = vmatprep.mubr.bf16.mxu0 0
      %2798 = vmatmul.mubr.bf16.gmra.mxu0 %v2629
      %v2799 = vpop.f32.mrf.mxu0
      %v2800 = vadd.f32 0.0, %v2799
      %v2801 = vpop.f32.mrf.mxu0
      %v2802 = vpop.f32.mrf.mxu0
      %v2803 = vadd.f32 0.0, %v2802
      %v2804 = vpop.f32.mrf.mxu0
      %2805 = vmatprep.mubr.bf16.mxu0 0
      %2806 = vmatmul.mubr.bf16.gmra.mxu0 %v2630
      %v2807 = vpop.f32.mrf.mxu0
      %v2808 = vadd.f32 0.0, %v2807
      %v2809 = vpop.f32.mrf.mxu0
      %v2810 = vpop.f32.mrf.mxu0
      %v2811 = vadd.f32 0.0, %v2810
      %v2812 = vpop.f32.mrf.mxu0
      %2813 = vmatprep.mubr.bf16.mxu0 0
      %2814 = vmatmul.mubr.bf16.gmra.mxu0 %v2631
      %v2815 = vpop.f32.mrf.mxu0
      %v2816 = vadd.f32 0.0, %v2815
      %v2817 = vpop.f32.mrf.mxu0
      %v2818 = vpop.f32.mrf.mxu0
      %v2819 = vadd.f32 0.0, %v2818
      %v2820 = vpop.f32.mrf.mxu0
      %2821 = vmatprep.mubr.bf16.mxu0 0
      %2822 = vmatmul.mubr.bf16.gmra.mxu0 %v2632
      %v2823 = vpop.f32.mrf.mxu0
      %v2824 = vadd.f32 0.0, %v2823
      %v2825 = vpop.f32.mrf.mxu0
      %v2826 = vpop.f32.mrf.mxu0
      %v2827 = vadd.f32 0.0, %v2826
      %v2828 = vpop.f32.mrf.mxu0
      %2829 = vmatprep.mubr.bf16.mxu0 0
      %2830 = vmatmul.mubr.bf16.gmra.mxu0 %v2633
      %v2831 = vpop.f32.mrf.mxu0
      %v2832 = vadd.f32 0.0, %v2831
      %v2833 = vpop.f32.mrf.mxu0
      %v2834 = vpop.f32.mrf.mxu0
      %v2835 = vadd.f32 0.0, %v2834
      %v2836 = vpop.f32.mrf.mxu0
      %2837 = vmatprep.mubr.bf16.mxu0 0
      %2838 = vmatmul.mubr.bf16.gmra.mxu0 %v2634
      %v2839 = vpop.f32.mrf.mxu0
      %v2840 = vadd.f32 0.0, %v2839
      %v2841 = vpop.f32.mrf.mxu0
      %v2842 = vpop.f32.mrf.mxu0
      %v2843 = vadd.f32 0.0, %v2842
      %v2844 = vpop.f32.mrf.mxu0
      %2845 = vmatprep.mubr.bf16.mxu0 0
      %2846 = vmatmul.mubr.bf16.gmra.mxu0 %v2635
      %v2847 = vpop.f32.mrf.mxu0
      %v2848 = vadd.f32 0.0, %v2847
      %v2849 = vpop.f32.mrf.mxu0
      %v2850 = vpop.f32.mrf.mxu0
      %v2851 = vadd.f32 0.0, %v2850
      %v2852 = vpop.f32.mrf.mxu0
      %2853 = vmatprep.mubr.bf16.mxu0 0
      %2854 = vmatmul.mubr.bf16.gmra.mxu0 %v2636
      %v2855 = vpop.f32.mrf.mxu0
      %v2856 = vadd.f32 0.0, %v2855
      %v2857 = vpop.f32.mrf.mxu0
      %v2858 = vpop.f32.mrf.mxu0
      %v2859 = vadd.f32 0.0, %v2858
      %v2860 = vpop.f32.mrf.mxu0
      %2861 = vdwg.mxu0
      %v2862 = vadd.f32 %v2339, %v2736
      %v2863 = vadd.f32 %v2340, %v2739
      %v2864 = vadd.f32 %v2341, %v2744
      %v2865 = vadd.f32 %v2342, %v2747
      %v2866 = vadd.f32 %v2343, %v2752
      %v2867 = vadd.f32 %v2344, %v2755
      %v2868 = vadd.f32 %v2345, %v2760
      %v2869 = vadd.f32 %v2346, %v2763
      %v2870 = vadd.f32 %v2347, %v2768
      %v2871 = vadd.f32 %v2348, %v2771
      %v2872 = vadd.f32 %v2349, %v2776
      %v2873 = vadd.f32 %v2350, %v2779
      %v2874 = vadd.f32 %v2351, %v2784
      %v2875 = vadd.f32 %v2352, %v2787
      %v2876 = vadd.f32 %v2353, %v2792
      %v2877 = vadd.f32 %v2354, %v2795
      %v2878 = vadd.f32 %v2355, %v2800
      %v2879 = vadd.f32 %v2356, %v2803
      %v2880 = vadd.f32 %v2357, %v2808
      %v2881 = vadd.f32 %v2358, %v2811
      %v2882 = vadd.f32 %v2359, %v2816
      %v2883 = vadd.f32 %v2360, %v2819
      %v2884 = vadd.f32 %v2361, %v2824
      %v2885 = vadd.f32 %v2362, %v2827
      %v2886 = vadd.f32 %v2363, %v2832
      %v2887 = vadd.f32 %v2364, %v2835
      %v2888 = vadd.f32 %v2365, %v2840
      %v2889 = vadd.f32 %v2366, %v2843
      %v2890 = vadd.f32 %v2367, %v2848
      %v2891 = vadd.f32 %v2368, %v2851
      %v2892 = vadd.f32 %v2369, %v2856
      %v2893 = vadd.f32 %v2370, %v2859
      %s2894 = scalar_lea.vmem %s1, 320
      %v2895 = vld [vmem:[%s2894] sm:$0xf]
      %v2896 = vld [vmem:[%s2894 + $0x4] sm:$0xf]
      %v2897 = vld [vmem:[%s2894 + $0x8] sm:$0xf]
      %v2898 = vld [vmem:[%s2894 + $0xc] sm:$0xf]
      %v2899 = vld [vmem:[%s2894 + $0x10] sm:$0xf]
      %v2900 = vld [vmem:[%s2894 + $0x14] sm:$0xf]
      %v2901 = vld [vmem:[%s2894 + $0x18] sm:$0xf]
      %v2902 = vld [vmem:[%s2894 + $0x1c] sm:$0xf]
      %v2903 = vld [vmem:[%s2894 + $0x20] sm:$0xf]
      %v2904 = vld [vmem:[%s2894 + $0x24] sm:$0xf]
      %v2905 = vld [vmem:[%s2894 + $0x28] sm:$0xf]
      %v2906 = vld [vmem:[%s2894 + $0x2c] sm:$0xf]
      %v2907 = vld [vmem:[%s2894 + $0x30] sm:$0xf]
      %v2908 = vld [vmem:[%s2894 + $0x34] sm:$0xf]
      %v2909 = vld [vmem:[%s2894 + $0x38] sm:$0xf]
      %v2910 = vld [vmem:[%s2894 + $0x3c] sm:$0xf]
      %v2911 = vunpack.c.l.b16 %v2561
      %v2912 = vunpack.c.l.b16 %v2564
      %v2913 = vpack.c.b16 %v2912, %v2911
      %v2931 = vunpack.c.l.b16 %v2895
      %v2932 = vunpack.c.l.b16 %v2896
      %v2933 = vunpack.c.l.b16 %v2897
      %v2934 = vunpack.c.l.b16 %v2898
      %v2935 = vunpack.c.l.b16 %v2899
      %v2936 = vunpack.c.l.b16 %v2900
      %v2937 = vunpack.c.l.b16 %v2901
      %v2938 = vunpack.c.l.b16 %v2902
      %v2939 = vunpack.c.l.b16 %v2903
      %v2940 = vunpack.c.l.b16 %v2904
      %v2941 = vunpack.c.l.b16 %v2905
      %v2942 = vunpack.c.l.b16 %v2906
      %v2943 = vunpack.c.l.b16 %v2907
      %v2944 = vunpack.c.l.b16 %v2908
      %v2945 = vunpack.c.l.b16 %v2909
      %v2946 = vunpack.c.l.b16 %v2910
      %v2947 = vpack.c.b16 %v2932, %v2931
      %v2948 = vpack.c.b16 %v2934, %v2933
      %v2949 = vpack.c.b16 %v2936, %v2935
      %v2950 = vpack.c.b16 %v2938, %v2937
      %v2951 = vpack.c.b16 %v2940, %v2939
      %v2952 = vpack.c.b16 %v2942, %v2941
      %v2953 = vpack.c.b16 %v2944, %v2943
      %v2954 = vpack.c.b16 %v2946, %v2945
      %2963 = vmatprep.subr.bf16.mxu0 0
      %2964 = vmatpush1.bf16.msra.mxu0 %v2954
      %2965 = vmatprep.subr.bf16.mxu0 0
      %2966 = vmatpush1.bf16.msra.mxu0 %v2953
      %2967 = vmatprep.subr.bf16.mxu0 0
      %2968 = vmatpush1.bf16.msra.mxu0 %v2952
      %2969 = vmatprep.subr.bf16.mxu0 0
      %2970 = vmatpush1.bf16.msra.mxu0 %v2951
      %2971 = vmatprep.subr.bf16.mxu0 0
      %2972 = vmatpush1.bf16.msra.mxu0 %v2950
      %2973 = vmatprep.subr.bf16.mxu0 0
      %2974 = vmatpush1.bf16.msra.mxu0 %v2949
      %2975 = vmatprep.subr.bf16.mxu0 0
      %2976 = vmatpush1.bf16.msra.mxu0 %v2948
      %2977 = vmatprep.subr.bf16.mxu0 0
      %2978 = vmatpush1.bf16.msra.mxu0 %v2947
      %2979 = vmatprep.subr.bf16.mxu0 0
      %2980 = vmatpush2.bf16.msra.mxu0 0
      %2981 = vmatprep.subr.bf16.mxu0 0
      %2982 = vmatpush2.bf16.msra.mxu0 0
      %2983 = vmatprep.subr.bf16.mxu0 0
      %2984 = vmatpush2.bf16.msra.mxu0 0
      %2985 = vmatprep.subr.bf16.mxu0 0
      %2986 = vmatpush2.bf16.msra.mxu0 0
      %2987 = vmatprep.subr.bf16.mxu0 0
      %2988 = vmatpush2.bf16.msra.mxu0 0
      %2989 = vmatprep.subr.bf16.mxu0 0
      %2990 = vmatpush2.bf16.msra.mxu0 0
      %2991 = vmatprep.subr.bf16.mxu0 0
      %2992 = vmatpush2.bf16.msra.mxu0 0
      %2993 = vmatprep.subr.bf16.mxu0 0
      %2994 = vmatpush2.bf16.msra.mxu0 0
      %2995 = vmatprep.mubr.bf16.mxu0 0
      %2996 = vmatmul.mubr.bf16.gmra.mxu0 %v2622
      %v2997 = vpop.f32.mrf.mxu0
      %v2998 = vadd.f32 0.0, %v2997
      %v2999 = vpop.f32.mrf.mxu0
      %v3000 = vpop.f32.mrf.mxu0
      %v3001 = vadd.f32 0.0, %v3000
      %v3002 = vpop.f32.mrf.mxu0
      %3003 = vmatprep.mubr.bf16.mxu0 0
      %3004 = vmatmul.mubr.bf16.gmra.mxu0 %v2623
      %v3005 = vpop.f32.mrf.mxu0
      %v3006 = vadd.f32 0.0, %v3005
      %v3007 = vpop.f32.mrf.mxu0
      %v3008 = vpop.f32.mrf.mxu0
      %v3009 = vadd.f32 0.0, %v3008
      %v3010 = vpop.f32.mrf.mxu0
      %3011 = vmatprep.mubr.bf16.mxu0 0
      %3012 = vmatmul.mubr.bf16.gmra.mxu0 %v2624
      %v3013 = vpop.f32.mrf.mxu0
      %v3014 = vadd.f32 0.0, %v3013
      %v3015 = vpop.f32.mrf.mxu0
      %v3016 = vpop.f32.mrf.mxu0
      %v3017 = vadd.f32 0.0, %v3016
      %v3018 = vpop.f32.mrf.mxu0
      %3019 = vmatprep.mubr.bf16.mxu0 0
      %3020 = vmatmul.mubr.bf16.gmra.mxu0 %v2625
      %v3021 = vpop.f32.mrf.mxu0
      %v3022 = vadd.f32 0.0, %v3021
      %v3023 = vpop.f32.mrf.mxu0
      %v3024 = vpop.f32.mrf.mxu0
      %v3025 = vadd.f32 0.0, %v3024
      %v3026 = vpop.f32.mrf.mxu0
      %3027 = vmatprep.mubr.bf16.mxu0 0
      %3028 = vmatmul.mubr.bf16.gmra.mxu0 %v2626
      %v3029 = vpop.f32.mrf.mxu0
      %v3030 = vadd.f32 0.0, %v3029
      %v3031 = vpop.f32.mrf.mxu0
      %v3032 = vpop.f32.mrf.mxu0
      %v3033 = vadd.f32 0.0, %v3032
      %v3034 = vpop.f32.mrf.mxu0
      %3035 = vmatprep.mubr.bf16.mxu0 0
      %3036 = vmatmul.mubr.bf16.gmra.mxu0 %v2627
      %v3037 = vpop.f32.mrf.mxu0
      %v3038 = vadd.f32 0.0, %v3037
      %v3039 = vpop.f32.mrf.mxu0
      %v3040 = vpop.f32.mrf.mxu0
      %v3041 = vadd.f32 0.0, %v3040
      %v3042 = vpop.f32.mrf.mxu0
      %3043 = vmatprep.mubr.bf16.mxu0 0
      %3044 = vmatmul.mubr.bf16.gmra.mxu0 %v2628
      %v3045 = vpop.f32.mrf.mxu0
      %v3046 = vadd.f32 0.0, %v3045
      %v3047 = vpop.f32.mrf.mxu0
      %v3048 = vpop.f32.mrf.mxu0
      %v3049 = vadd.f32 0.0, %v3048
      %v3050 = vpop.f32.mrf.mxu0
      %3051 = vmatprep.mubr.bf16.mxu0 0
      %3052 = vmatmul.mubr.bf16.gmra.mxu0 %v2629
      %v3053 = vpop.f32.mrf.mxu0
      %v3054 = vadd.f32 0.0, %v3053
      %v3055 = vpop.f32.mrf.mxu0
      %v3056 = vpop.f32.mrf.mxu0
      %v3057 = vadd.f32 0.0, %v3056
      %v3058 = vpop.f32.mrf.mxu0
      %3059 = vmatprep.mubr.bf16.mxu0 0
      %3060 = vmatmul.mubr.bf16.gmra.mxu0 %v2630
      %v3061 = vpop.f32.mrf.mxu0
      %v3062 = vadd.f32 0.0, %v3061
      %v3063 = vpop.f32.mrf.mxu0
      %v3064 = vpop.f32.mrf.mxu0
      %v3065 = vadd.f32 0.0, %v3064
      %v3066 = vpop.f32.mrf.mxu0
      %3067 = vmatprep.mubr.bf16.mxu0 0
      %3068 = vmatmul.mubr.bf16.gmra.mxu0 %v2631
      %v3069 = vpop.f32.mrf.mxu0
      %v3070 = vadd.f32 0.0, %v3069
      %v3071 = vpop.f32.mrf.mxu0
      %v3072 = vpop.f32.mrf.mxu0
      %v3073 = vadd.f32 0.0, %v3072
      %v3074 = vpop.f32.mrf.mxu0
      %3075 = vmatprep.mubr.bf16.mxu0 0
      %3076 = vmatmul.mubr.bf16.gmra.mxu0 %v2632
      %v3077 = vpop.f32.mrf.mxu0
      %v3078 = vadd.f32 0.0, %v3077
      %v3079 = vpop.f32.mrf.mxu0
      %v3080 = vpop.f32.mrf.mxu0
      %v3081 = vadd.f32 0.0, %v3080
      %v3082 = vpop.f32.mrf.mxu0
      %3083 = vmatprep.mubr.bf16.mxu0 0
      %3084 = vmatmul.mubr.bf16.gmra.mxu0 %v2633
      %v3085 = vpop.f32.mrf.mxu0
      %v3086 = vadd.f32 0.0, %v3085
      %v3087 = vpop.f32.mrf.mxu0
      %v3088 = vpop.f32.mrf.mxu0
      %v3089 = vadd.f32 0.0, %v3088
      %v3090 = vpop.f32.mrf.mxu0
      %3091 = vmatprep.mubr.bf16.mxu0 0
      %3092 = vmatmul.mubr.bf16.gmra.mxu0 %v2634
      %v3093 = vpop.f32.mrf.mxu0
      %v3094 = vadd.f32 0.0, %v3093
      %v3095 = vpop.f32.mrf.mxu0
      %v3096 = vpop.f32.mrf.mxu0
      %v3097 = vadd.f32 0.0, %v3096
      %v3098 = vpop.f32.mrf.mxu0
      %3099 = vmatprep.mubr.bf16.mxu0 0
      %3100 = vmatmul.mubr.bf16.gmra.mxu0 %v2635
      %v3101 = vpop.f32.mrf.mxu0
      %v3102 = vadd.f32 0.0, %v3101
      %v3103 = vpop.f32.mrf.mxu0
      %v3104 = vpop.f32.mrf.mxu0
      %v3105 = vadd.f32 0.0, %v3104
      %v3106 = vpop.f32.mrf.mxu0
      %3107 = vmatprep.mubr.bf16.mxu0 0
      %3108 = vmatmul.mubr.bf16.gmra.mxu0 %v2636
      %v3109 = vpop.f32.mrf.mxu0
      %v3110 = vadd.f32 0.0, %v3109
      %v3111 = vpop.f32.mrf.mxu0
      %v3112 = vpop.f32.mrf.mxu0
      %v3113 = vadd.f32 0.0, %v3112
      %v3114 = vpop.f32.mrf.mxu0
      %3115 = vmatprep.mubr.bf16.mxu0 0
      %3116 = vmatmul.mubr.bf16.gmra.mxu0 %v2913
      %v3117 = vpop.f32.mrf.mxu0
      %v3118 = vadd.f32 0.0, %v3117
      %v3119 = vpop.f32.mrf.mxu0
      %v3120 = vpop.f32.mrf.mxu0
      %v3121 = vadd.f32 0.0, %v3120
      %v3122 = vpop.f32.mrf.mxu0
      %3123 = vdwg.mxu0
      %v3124 = vadd.f32 %v2862, %v2998
      %v3125 = vadd.f32 %v2863, %v3001
      %v3126 = vadd.f32 %v2864, %v3006
      %v3127 = vadd.f32 %v2865, %v3009
      %v3128 = vadd.f32 %v2866, %v3014
      %v3129 = vadd.f32 %v2867, %v3017
      %v3130 = vadd.f32 %v2868, %v3022
      %v3131 = vadd.f32 %v2869, %v3025
      %v3132 = vadd.f32 %v2870, %v3030
      %v3133 = vadd.f32 %v2871, %v3033
      %v3134 = vadd.f32 %v2872, %v3038
      %v3135 = vadd.f32 %v2873, %v3041
      %v3136 = vadd.f32 %v2874, %v3046
      %v3137 = vadd.f32 %v2875, %v3049
      %v3138 = vadd.f32 %v2876, %v3054
      %v3139 = vadd.f32 %v2877, %v3057
      %v3140 = vadd.f32 %v2878, %v3062
      %v3141 = vadd.f32 %v2879, %v3065
      %v3142 = vadd.f32 %v2880, %v3070
      %v3143 = vadd.f32 %v2881, %v3073
      %v3144 = vadd.f32 %v2882, %v3078
      %v3145 = vadd.f32 %v2883, %v3081
      %v3146 = vadd.f32 %v2884, %v3086
      %v3147 = vadd.f32 %v2885, %v3089
      %v3148 = vadd.f32 %v2886, %v3094
      %v3149 = vadd.f32 %v2887, %v3097
      %v3150 = vadd.f32 %v2888, %v3102
      %v3151 = vadd.f32 %v2889, %v3105
      %v3152 = vadd.f32 %v2890, %v3110
      %v3153 = vadd.f32 %v2891, %v3113
      %v3154 = vadd.f32 %v2892, %v3118
      %v3155 = vadd.f32 %v2893, %v3121
      %s3156 = scalar_lea.vmem %s1, 512
      %v3157 = vld [vmem:[%s3156] sm:$0xf]
      %v3158 = vld [vmem:[%s3156 + $0x4] sm:$0xf]
      %v3159 = vld [vmem:[%s3156 + $0x8] sm:$0xf]
      %v3160 = vld [vmem:[%s3156 + $0xc] sm:$0xf]
      %v3161 = vld [vmem:[%s3156 + $0x10] sm:$0xf]
      %v3162 = vld [vmem:[%s3156 + $0x14] sm:$0xf]
      %v3163 = vld [vmem:[%s3156 + $0x18] sm:$0xf]
      %v3164 = vld [vmem:[%s3156 + $0x1c] sm:$0xf]
      %v3165 = vld [vmem:[%s3156 + $0x20] sm:$0xf]
      %v3166 = vld [vmem:[%s3156 + $0x24] sm:$0xf]
      %v3167 = vld [vmem:[%s3156 + $0x28] sm:$0xf]
      %v3168 = vld [vmem:[%s3156 + $0x2c] sm:$0xf]
      %v3169 = vld [vmem:[%s3156 + $0x30] sm:$0xf]
      %v3170 = vld [vmem:[%s3156 + $0x34] sm:$0xf]
      %v3171 = vld [vmem:[%s3156 + $0x38] sm:$0xf]
      %v3172 = vld [vmem:[%s3156 + $0x3c] sm:$0xf]
      %v3173 = vunpack.c.l.b16 %v2568
      %v3174 = vunpack.c.l.b16 %v2571
      %v3175 = vpack.c.b16 %v3174, %v3173
      %v3193 = vunpack.c.l.b16 %v3157
      %v3194 = vunpack.c.l.b16 %v3158
      %v3195 = vunpack.c.l.b16 %v3159
      %v3196 = vunpack.c.l.b16 %v3160
      %v3197 = vunpack.c.l.b16 %v3161
      %v3198 = vunpack.c.l.b16 %v3162
      %v3199 = vunpack.c.l.b16 %v3163
      %v3200 = vunpack.c.l.b16 %v3164
      %v3201 = vunpack.c.l.b16 %v3165
      %v3202 = vunpack.c.l.b16 %v3166
      %v3203 = vunpack.c.l.b16 %v3167
      %v3204 = vunpack.c.l.b16 %v3168
      %v3205 = vunpack.c.l.b16 %v3169
      %v3206 = vunpack.c.l.b16 %v3170
      %v3207 = vunpack.c.l.b16 %v3171
      %v3208 = vunpack.c.l.b16 %v3172
      %v3209 = vpack.c.b16 %v3194, %v3193
      %v3210 = vpack.c.b16 %v3196, %v3195
      %v3211 = vpack.c.b16 %v3198, %v3197
      %v3212 = vpack.c.b16 %v3200, %v3199
      %v3213 = vpack.c.b16 %v3202, %v3201
      %v3214 = vpack.c.b16 %v3204, %v3203
      %v3215 = vpack.c.b16 %v3206, %v3205
      %v3216 = vpack.c.b16 %v3208, %v3207
      %3225 = vmatprep.subr.bf16.mxu0 0
      %3226 = vmatpush1.bf16.msra.mxu0 %v3216
      %3227 = vmatprep.subr.bf16.mxu0 0
      %3228 = vmatpush1.bf16.msra.mxu0 %v3215
      %3229 = vmatprep.subr.bf16.mxu0 0
      %3230 = vmatpush1.bf16.msra.mxu0 %v3214
      %3231 = vmatprep.subr.bf16.mxu0 0
      %3232 = vmatpush1.bf16.msra.mxu0 %v3213
      %3233 = vmatprep.subr.bf16.mxu0 0
      %3234 = vmatpush1.bf16.msra.mxu0 %v3212
      %3235 = vmatprep.subr.bf16.mxu0 0
      %3236 = vmatpush1.bf16.msra.mxu0 %v3211
      %3237 = vmatprep.subr.bf16.mxu0 0
      %3238 = vmatpush1.bf16.msra.mxu0 %v3210
      %3239 = vmatprep.subr.bf16.mxu0 0
      %3240 = vmatpush1.bf16.msra.mxu0 %v3209
      %3241 = vmatprep.subr.bf16.mxu0 0
      %3242 = vmatpush2.bf16.msra.mxu0 0
      %3243 = vmatprep.subr.bf16.mxu0 0
      %3244 = vmatpush2.bf16.msra.mxu0 0
      %3245 = vmatprep.subr.bf16.mxu0 0
      %3246 = vmatpush2.bf16.msra.mxu0 0
      %3247 = vmatprep.subr.bf16.mxu0 0
      %3248 = vmatpush2.bf16.msra.mxu0 0
      %3249 = vmatprep.subr.bf16.mxu0 0
      %3250 = vmatpush2.bf16.msra.mxu0 0
      %3251 = vmatprep.subr.bf16.mxu0 0
      %3252 = vmatpush2.bf16.msra.mxu0 0
      %3253 = vmatprep.subr.bf16.mxu0 0
      %3254 = vmatpush2.bf16.msra.mxu0 0
      %3255 = vmatprep.subr.bf16.mxu0 0
      %3256 = vmatpush2.bf16.msra.mxu0 0
      %3257 = vmatprep.mubr.bf16.mxu0 0
      %3258 = vmatmul.mubr.bf16.gmra.mxu0 %v2623
      %v3259 = vpop.f32.mrf.mxu0
      %v3260 = vadd.f32 0.0, %v3259
      %v3261 = vpop.f32.mrf.mxu0
      %v3262 = vpop.f32.mrf.mxu0
      %v3263 = vadd.f32 0.0, %v3262
      %v3264 = vpop.f32.mrf.mxu0
      %3265 = vmatprep.mubr.bf16.mxu0 0
      %3266 = vmatmul.mubr.bf16.gmra.mxu0 %v2624
      %v3267 = vpop.f32.mrf.mxu0
      %v3268 = vadd.f32 0.0, %v3267
      %v3269 = vpop.f32.mrf.mxu0
      %v3270 = vpop.f32.mrf.mxu0
      %v3271 = vadd.f32 0.0, %v3270
      %v3272 = vpop.f32.mrf.mxu0
      %3273 = vmatprep.mubr.bf16.mxu0 0
      %3274 = vmatmul.mubr.bf16.gmra.mxu0 %v2625
      %v3275 = vpop.f32.mrf.mxu0
      %v3276 = vadd.f32 0.0, %v3275
      %v3277 = vpop.f32.mrf.mxu0
      %v3278 = vpop.f32.mrf.mxu0
      %v3279 = vadd.f32 0.0, %v3278
      %v3280 = vpop.f32.mrf.mxu0
      %3281 = vmatprep.mubr.bf16.mxu0 0
      %3282 = vmatmul.mubr.bf16.gmra.mxu0 %v2626
      %v3283 = vpop.f32.mrf.mxu0
      %v3284 = vadd.f32 0.0, %v3283
      %v3285 = vpop.f32.mrf.mxu0
      %v3286 = vpop.f32.mrf.mxu0
      %v3287 = vadd.f32 0.0, %v3286
      %v3288 = vpop.f32.mrf.mxu0
      %3289 = vmatprep.mubr.bf16.mxu0 0
      %3290 = vmatmul.mubr.bf16.gmra.mxu0 %v2627
      %v3291 = vpop.f32.mrf.mxu0
      %v3292 = vadd.f32 0.0, %v3291
      %v3293 = vpop.f32.mrf.mxu0
      %v3294 = vpop.f32.mrf.mxu0
      %v3295 = vadd.f32 0.0, %v3294
      %v3296 = vpop.f32.mrf.mxu0
      %3297 = vmatprep.mubr.bf16.mxu0 0
      %3298 = vmatmul.mubr.bf16.gmra.mxu0 %v2628
      %v3299 = vpop.f32.mrf.mxu0
      %v3300 = vadd.f32 0.0, %v3299
      %v3301 = vpop.f32.mrf.mxu0
      %v3302 = vpop.f32.mrf.mxu0
      %v3303 = vadd.f32 0.0, %v3302
      %v3304 = vpop.f32.mrf.mxu0
      %3305 = vmatprep.mubr.bf16.mxu0 0
      %3306 = vmatmul.mubr.bf16.gmra.mxu0 %v2629
      %v3307 = vpop.f32.mrf.mxu0
      %v3308 = vadd.f32 0.0, %v3307
      %v3309 = vpop.f32.mrf.mxu0
      %v3310 = vpop.f32.mrf.mxu0
      %v3311 = vadd.f32 0.0, %v3310
      %v3312 = vpop.f32.mrf.mxu0
      %3313 = vmatprep.mubr.bf16.mxu0 0
      %3314 = vmatmul.mubr.bf16.gmra.mxu0 %v2630
      %v3315 = vpop.f32.mrf.mxu0
      %v3316 = vadd.f32 0.0, %v3315
      %v3317 = vpop.f32.mrf.mxu0
      %v3318 = vpop.f32.mrf.mxu0
      %v3319 = vadd.f32 0.0, %v3318
      %v3320 = vpop.f32.mrf.mxu0
      %3321 = vmatprep.mubr.bf16.mxu0 0
      %3322 = vmatmul.mubr.bf16.gmra.mxu0 %v2631
      %v3323 = vpop.f32.mrf.mxu0
      %v3324 = vadd.f32 0.0, %v3323
      %v3325 = vpop.f32.mrf.mxu0
      %v3326 = vpop.f32.mrf.mxu0
      %v3327 = vadd.f32 0.0, %v3326
      %v3328 = vpop.f32.mrf.mxu0
      %3329 = vmatprep.mubr.bf16.mxu0 0
      %3330 = vmatmul.mubr.bf16.gmra.mxu0 %v2632
      %v3331 = vpop.f32.mrf.mxu0
      %v3332 = vadd.f32 0.0, %v3331
      %v3333 = vpop.f32.mrf.mxu0
      %v3334 = vpop.f32.mrf.mxu0
      %v3335 = vadd.f32 0.0, %v3334
      %v3336 = vpop.f32.mrf.mxu0
      %3337 = vmatprep.mubr.bf16.mxu0 0
      %3338 = vmatmul.mubr.bf16.gmra.mxu0 %v2633
      %v3339 = vpop.f32.mrf.mxu0
      %v3340 = vadd.f32 0.0, %v3339
      %v3341 = vpop.f32.mrf.mxu0
      %v3342 = vpop.f32.mrf.mxu0
      %v3343 = vadd.f32 0.0, %v3342
      %v3344 = vpop.f32.mrf.mxu0
      %3345 = vmatprep.mubr.bf16.mxu0 0
      %3346 = vmatmul.mubr.bf16.gmra.mxu0 %v2634
      %v3347 = vpop.f32.mrf.mxu0
      %v3348 = vadd.f32 0.0, %v3347
      %v3349 = vpop.f32.mrf.mxu0
      %v3350 = vpop.f32.mrf.mxu0
      %v3351 = vadd.f32 0.0, %v3350
      %v3352 = vpop.f32.mrf.mxu0
      %3353 = vmatprep.mubr.bf16.mxu0 0
      %3354 = vmatmul.mubr.bf16.gmra.mxu0 %v2635
      %v3355 = vpop.f32.mrf.mxu0
      %v3356 = vadd.f32 0.0, %v3355
      %v3357 = vpop.f32.mrf.mxu0
      %v3358 = vpop.f32.mrf.mxu0
      %v3359 = vadd.f32 0.0, %v3358
      %v3360 = vpop.f32.mrf.mxu0
      %3361 = vmatprep.mubr.bf16.mxu0 0
      %3362 = vmatmul.mubr.bf16.gmra.mxu0 %v2636
      %v3363 = vpop.f32.mrf.mxu0
      %v3364 = vadd.f32 0.0, %v3363
      %v3365 = vpop.f32.mrf.mxu0
      %v3366 = vpop.f32.mrf.mxu0
      %v3367 = vadd.f32 0.0, %v3366
      %v3368 = vpop.f32.mrf.mxu0
      %3369 = vmatprep.mubr.bf16.mxu0 0
      %3370 = vmatmul.mubr.bf16.gmra.mxu0 %v2913
      %v3371 = vpop.f32.mrf.mxu0
      %v3372 = vadd.f32 0.0, %v3371
      %v3373 = vpop.f32.mrf.mxu0
      %v3374 = vpop.f32.mrf.mxu0
      %v3375 = vadd.f32 0.0, %v3374
      %v3376 = vpop.f32.mrf.mxu0
      %3377 = vmatprep.mubr.bf16.mxu0 0
      %3378 = vmatmul.mubr.bf16.gmra.mxu0 %v3175
      %v3379 = vpop.f32.mrf.mxu0
      %v3380 = vadd.f32 0.0, %v3379
      %v3381 = vpop.f32.mrf.mxu0
      %v3382 = vpop.f32.mrf.mxu0
      %v3383 = vadd.f32 0.0, %v3382
      %v3384 = vpop.f32.mrf.mxu0
      %3385 = vdwg.mxu0
      %v3386 = vadd.f32 %v3124, %v3260
      %v3387 = vadd.f32 %v3125, %v3263
      %v3388 = vadd.f32 %v3126, %v3268
      %v3389 = vadd.f32 %v3127, %v3271
      %v3390 = vadd.f32 %v3128, %v3276
      %v3391 = vadd.f32 %v3129, %v3279
      %v3392 = vadd.f32 %v3130, %v3284
      %v3393 = vadd.f32 %v3131, %v3287
      %v3394 = vadd.f32 %v3132, %v3292
      %v3395 = vadd.f32 %v3133, %v3295
      %v3396 = vadd.f32 %v3134, %v3300
      %v3397 = vadd.f32 %v3135, %v3303
      %v3398 = vadd.f32 %v3136, %v3308
      %v3399 = vadd.f32 %v3137, %v3311
      %v3400 = vadd.f32 %v3138, %v3316
      %v3401 = vadd.f32 %v3139, %v3319
      %v3402 = vadd.f32 %v3140, %v3324
      %v3403 = vadd.f32 %v3141, %v3327
      %v3404 = vadd.f32 %v3142, %v3332
      %v3405 = vadd.f32 %v3143, %v3335
      %v3406 = vadd.f32 %v3144, %v3340
      %v3407 = vadd.f32 %v3145, %v3343
      %v3408 = vadd.f32 %v3146, %v3348
      %v3409 = vadd.f32 %v3147, %v3351
      %v3410 = vadd.f32 %v3148, %v3356
      %v3411 = vadd.f32 %v3149, %v3359
      %v3412 = vadd.f32 %v3150, %v3364
      %v3413 = vadd.f32 %v3151, %v3367
      %v3414 = vadd.f32 %v3152, %v3372
      %v3415 = vadd.f32 %v3153, %v3375
      %v3416 = vadd.f32 %v3154, %v3380
      %v3417 = vadd.f32 %v3155, %v3383
      %v3418 = vadd.f32 %v3386, %v3387
      %v3419 = vadd.f32 %v3418, %v3388
      %v3420 = vadd.f32 %v3419, %v3389
      %v3421 = vadd.f32 %v3420, %v3390
      %v3422 = vadd.f32 %v3421, %v3391
      %v3423 = vadd.f32 %v3422, %v3392
      %v3424 = vadd.f32 %v3423, %v3393
      %v3425 = vadd.f32 %v3424, %v3394
      %v3426 = vadd.f32 %v3425, %v3395
      %v3427 = vadd.f32 %v3426, %v3396
      %v3428 = vadd.f32 %v3427, %v3397
      %v3429 = vadd.f32 %v3428, %v3398
      %v3430 = vadd.f32 %v3429, %v3399
      %v3431 = vadd.f32 %v3430, %v3400
      %v3432 = vadd.f32 %v3431, %v3401
      %v3433 = vadd.f32 %v3432, %v3402
      %v3434 = vadd.f32 %v3433, %v3403
      %v3435 = vadd.f32 %v3434, %v3404
      %v3436 = vadd.f32 %v3435, %v3405
      %v3437 = vadd.f32 %v3436, %v3406
      %v3438 = vadd.f32 %v3437, %v3407
      %v3439 = vadd.f32 %v3438, %v3408
      %v3440 = vadd.f32 %v3439, %v3409
      %v3441 = vadd.f32 %v3440, %v3410
      %v3442 = vadd.f32 %v3441, %v3411
      %v3443 = vadd.f32 %v3442, %v3412
      %v3444 = vadd.f32 %v3443, %v3413
      %v3445 = vadd.f32 %v3444, %v3414
      %v3446 = vadd.f32 %v3445, %v3415
      %v3447 = vadd.f32 %v3446, %v3416
      %v3448 = vadd.f32 %v3447, %v3417
      %v3449 = vrot.slane %v3448, 4
      %v3450 = vadd.f32 %v3448, %v3449
      %v3451 = vrot.slane %v3450, 2
      %v3452 = vadd.f32 %v3450, %v3451
      %v3453 = vrot.slane %v3452, 1
      %v3454 = vadd.f32 %v3452, %v3453
      %v3455 = vmul.f32 %v3386, %v3386
      %v3456 = vmul.f32 %v3387, %v3387
      %v3457 = vmul.f32 %v3388, %v3388
      %v3458 = vmul.f32 %v3389, %v3389
      %v3459 = vmul.f32 %v3390, %v3390
      %v3460 = vmul.f32 %v3391, %v3391
      %v3461 = vmul.f32 %v3392, %v3392
      %v3462 = vmul.f32 %v3393, %v3393
      %v3463 = vmul.f32 %v3394, %v3394
      %v3464 = vmul.f32 %v3395, %v3395
      %v3465 = vmul.f32 %v3396, %v3396
      %v3466 = vmul.f32 %v3397, %v3397
      %v3467 = vmul.f32 %v3398, %v3398
      %v3468 = vmul.f32 %v3399, %v3399
      %v3469 = vmul.f32 %v3400, %v3400
      %v3470 = vmul.f32 %v3401, %v3401
      %v3471 = vmul.f32 %v3402, %v3402
      %v3472 = vmul.f32 %v3403, %v3403
      %v3473 = vmul.f32 %v3404, %v3404
      %v3474 = vmul.f32 %v3405, %v3405
      %v3475 = vmul.f32 %v3406, %v3406
      %v3476 = vmul.f32 %v3407, %v3407
      %v3477 = vmul.f32 %v3408, %v3408
      %v3478 = vmul.f32 %v3409, %v3409
      %v3479 = vmul.f32 %v3410, %v3410
      %v3480 = vmul.f32 %v3411, %v3411
      %v3481 = vmul.f32 %v3412, %v3412
      %v3482 = vmul.f32 %v3413, %v3413
      %v3483 = vmul.f32 %v3414, %v3414
      %v3484 = vmul.f32 %v3415, %v3415
      %v3485 = vmul.f32 %v3416, %v3416
      %v3486 = vmul.f32 %v3417, %v3417
      %v3487 = vadd.f32 %v3455, %v3456
      %v3488 = vadd.f32 %v3487, %v3457
      %v3489 = vadd.f32 %v3488, %v3458
      %v3490 = vadd.f32 %v3489, %v3459
      %v3491 = vadd.f32 %v3490, %v3460
      %v3492 = vadd.f32 %v3491, %v3461
      %v3493 = vadd.f32 %v3492, %v3462
      %v3494 = vadd.f32 %v3493, %v3463
      %v3495 = vadd.f32 %v3494, %v3464
      %v3496 = vadd.f32 %v3495, %v3465
      %v3497 = vadd.f32 %v3496, %v3466
      %v3498 = vadd.f32 %v3497, %v3467
      %v3499 = vadd.f32 %v3498, %v3468
      %v3500 = vadd.f32 %v3499, %v3469
      %v3501 = vadd.f32 %v3500, %v3470
      %v3502 = vadd.f32 %v3501, %v3471
      %v3503 = vadd.f32 %v3502, %v3472
      %v3504 = vadd.f32 %v3503, %v3473
      %v3505 = vadd.f32 %v3504, %v3474
      %v3506 = vadd.f32 %v3505, %v3475
      %v3507 = vadd.f32 %v3506, %v3476
      %v3508 = vadd.f32 %v3507, %v3477
      %v3509 = vadd.f32 %v3508, %v3478
      %v3510 = vadd.f32 %v3509, %v3479
      %v3511 = vadd.f32 %v3510, %v3480
      %v3512 = vadd.f32 %v3511, %v3481
      %v3513 = vadd.f32 %v3512, %v3482
      %v3514 = vadd.f32 %v3513, %v3483
      %v3515 = vadd.f32 %v3514, %v3484
      %v3516 = vadd.f32 %v3515, %v3485
      %v3517 = vadd.f32 %v3516, %v3486
      %v3518 = vrot.slane %v3517, 4
      %v3519 = vadd.f32 %v3517, %v3518
      %v3520 = vrot.slane %v3519, 2
      %v3521 = vadd.f32 %v3519, %v3520
      %v3522 = vrot.slane %v3521, 1
      %v3523 = vadd.f32 %v3521, %v3522
      %vm3524 = vcmask 1040384
      %v3525 = vsel %vm3524, %v3454, %v3523
      %3526 = vst [vmem:[%s181] sm:$0x3] %v3525
      %v3527 = vpack.c.bf16 %v3387, %v3386
      %v3528 = vpack.c.bf16 %v3389, %v3388
      %v3529 = vpack.c.bf16 %v3391, %v3390
      %v3530 = vpack.c.bf16 %v3393, %v3392
      %v3531 = vpack.c.bf16 %v3395, %v3394
      %v3532 = vpack.c.bf16 %v3397, %v3396
      %v3533 = vpack.c.bf16 %v3399, %v3398
      %v3534 = vpack.c.bf16 %v3401, %v3400
      %v3535 = vpack.c.bf16 %v3403, %v3402
      %v3536 = vpack.c.bf16 %v3405, %v3404
      %v3537 = vpack.c.bf16 %v3407, %v3406
      %v3538 = vpack.c.bf16 %v3409, %v3408
      %v3539 = vpack.c.bf16 %v3411, %v3410
      %v3540 = vpack.c.bf16 %v3413, %v3412
      %v3541 = vpack.c.bf16 %v3415, %v3414
      %v3542 = vpack.c.bf16 %v3417, %v3416
      %v3559 = vunpack.c.l.b16 %v3527
      %v3560 = vunpack.c.h.b16 %v3527
      %v3561 = vunpack.c.l.b16 %v3528
      %v3562 = vunpack.c.h.b16 %v3528
      %v3563 = vunpack.c.l.b16 %v3529
      %v3564 = vunpack.c.h.b16 %v3529
      %v3565 = vunpack.c.l.b16 %v3530
      %v3566 = vunpack.c.h.b16 %v3530
      %v3567 = vunpack.c.l.b16 %v3531
      %v3568 = vunpack.c.h.b16 %v3531
      %v3569 = vunpack.c.l.b16 %v3532
      %v3570 = vunpack.c.h.b16 %v3532
      %v3571 = vunpack.c.l.b16 %v3533
      %v3572 = vunpack.c.h.b16 %v3533
      %v3573 = vunpack.c.l.b16 %v3534
      %v3574 = vunpack.c.h.b16 %v3534
      %v3575 = vunpack.c.l.b16 %v3535
      %v3576 = vunpack.c.h.b16 %v3535
      %v3577 = vunpack.c.l.b16 %v3536
      %v3578 = vunpack.c.h.b16 %v3536
      %v3579 = vunpack.c.l.b16 %v3537
      %v3580 = vunpack.c.h.b16 %v3537
      %v3581 = vunpack.c.l.b16 %v3538
      %v3582 = vunpack.c.h.b16 %v3538
      %v3583 = vunpack.c.l.b16 %v3539
      %v3584 = vunpack.c.h.b16 %v3539
      %v3585 = vunpack.c.l.b16 %v3540
      %v3586 = vunpack.c.h.b16 %v3540
      %v3587 = vunpack.c.l.b16 %v3541
      %v3588 = vunpack.c.h.b16 %v3541
      %v3589 = vunpack.c.l.b16 %v3542
      %v3590 = vunpack.c.h.b16 %v3542
      %v3591 = vpack.c.b16 %v3559, %v3559
      %v3592 = vpack.c.b16 %v3560, %v3560
      %v3593 = vpack.c.b16 %v3561, %v3561
      %v3594 = vpack.c.b16 %v3562, %v3562
      %v3595 = vpack.c.b16 %v3563, %v3563
      %v3596 = vpack.c.b16 %v3564, %v3564
      %v3597 = vpack.c.b16 %v3565, %v3565
      %v3598 = vpack.c.b16 %v3566, %v3566
      %v3599 = vpack.c.b16 %v3567, %v3567
      %v3600 = vpack.c.b16 %v3568, %v3568
      %v3601 = vpack.c.b16 %v3569, %v3569
      %v3602 = vpack.c.b16 %v3570, %v3570
      %v3603 = vpack.c.b16 %v3571, %v3571
      %v3604 = vpack.c.b16 %v3572, %v3572
      %v3605 = vpack.c.b16 %v3573, %v3573
      %v3606 = vpack.c.b16 %v3574, %v3574
      %v3607 = vpack.c.b16 %v3575, %v3575
      %v3608 = vpack.c.b16 %v3576, %v3576
      %v3609 = vpack.c.b16 %v3577, %v3577
      %v3610 = vpack.c.b16 %v3578, %v3578
      %v3611 = vpack.c.b16 %v3579, %v3579
      %v3612 = vpack.c.b16 %v3580, %v3580
      %v3613 = vpack.c.b16 %v3581, %v3581
      %v3614 = vpack.c.b16 %v3582, %v3582
      %v3615 = vpack.c.b16 %v3583, %v3583
      %v3616 = vpack.c.b16 %v3584, %v3584
      %v3617 = vpack.c.b16 %v3585, %v3585
      %v3618 = vpack.c.b16 %v3586, %v3586
      %v3619 = vpack.c.b16 %v3587, %v3587
      %v3620 = vpack.c.b16 %v3588, %v3588
      %v3621 = vpack.c.b16 %v3589, %v3589
      %v3622 = vpack.c.b16 %v3590, %v3590
      %3655 = vst [vmem:[%s177] sm:$0xf] %v3591
      %3656 = vst [vmem:[%s177 + $0x4] sm:$0xf] %v3592
      %3657 = vst [vmem:[%s177 + $0x8] sm:$0xf] %v3593
      %3658 = vst [vmem:[%s177 + $0xc] sm:$0xf] %v3594
      %3659 = vst [vmem:[%s177 + $0x10] sm:$0xf] %v3595
      %3660 = vst [vmem:[%s177 + $0x14] sm:$0xf] %v3596
      %3661 = vst [vmem:[%s177 + $0x18] sm:$0xf] %v3597
      %3662 = vst [vmem:[%s177 + $0x1c] sm:$0xf] %v3598
      %3663 = vst [vmem:[%s177 + $0x20] sm:$0xf] %v3599
      %3664 = vst [vmem:[%s177 + $0x24] sm:$0xf] %v3600
      %3665 = vst [vmem:[%s177 + $0x28] sm:$0xf] %v3601
      %3666 = vst [vmem:[%s177 + $0x2c] sm:$0xf] %v3602
      %3667 = vst [vmem:[%s177 + $0x30] sm:$0xf] %v3603
      %3668 = vst [vmem:[%s177 + $0x34] sm:$0xf] %v3604
      %3669 = vst [vmem:[%s177 + $0x38] sm:$0xf] %v3605
      %3670 = vst [vmem:[%s177 + $0x3c] sm:$0xf] %v3606
      %3671 = vst [vmem:[%s177 + $0x40] sm:$0xf] %v3607
      %3672 = vst [vmem:[%s177 + $0x44] sm:$0xf] %v3608
      %3673 = vst [vmem:[%s177 + $0x48] sm:$0xf] %v3609
      %3674 = vst [vmem:[%s177 + $0x4c] sm:$0xf] %v3610
      %3675 = vst [vmem:[%s177 + $0x50] sm:$0xf] %v3611
      %3676 = vst [vmem:[%s177 + $0x54] sm:$0xf] %v3612
      %3677 = vst [vmem:[%s177 + $0x58] sm:$0xf] %v3613
      %3678 = vst [vmem:[%s177 + $0x5c] sm:$0xf] %v3614
      %3679 = vst [vmem:[%s177 + $0x60] sm:$0xf] %v3615
      %3680 = vst [vmem:[%s177 + $0x64] sm:$0xf] %v3616
      %3681 = vst [vmem:[%s177 + $0x68] sm:$0xf] %v3617
      %3682 = vst [vmem:[%s177 + $0x6c] sm:$0xf] %v3618
      %3683 = vst [vmem:[%s177 + $0x70] sm:$0xf] %v3619
      %3684 = vst [vmem:[%s177 + $0x74] sm:$0xf] %v3620
      %3685 = vst [vmem:[%s177 + $0x78] sm:$0xf] %v3621
      %3686 = vst [vmem:[%s177 + $0x7c] sm:$0xf] %v3622
      %p3687 = scmp.lt.s32.totalorder %s15, 1
      %s3688 = scalar_select %p3687, %s15, 1
      %s3689 = smul.addr %s3688, 32
      %s3690 = smul.addr %s3689, 4
      %s3691 = scalar_lea.vmem %s2, %s3690
      %p3692 = scmp.lt.s32.totalorder %s15, 1
      %s3693 = scalar_select %p3692, %s15, 1
      %s3694 = smul.addr %s3693, 2
      %s3695 = scalar_lea.vmem %s3, %s3694
      // Predicated region
      $region29: #{basic_block_forward.3} parent=27 // pred_check
        %p3696 = pneg %p80
      $region30: #{basic_block_forward.3} parent=27 // pred_check_branch
        %3698 = sbr.rel (%p3696) target = $region32
      $region31: #{basic_block_forward.3} parent=27 // pred_region
        _
      $region32: #{basic_block_forward.3} parent=27 // pred_fallthru
        _
      // Predicated region
      $region33: #{basic_block_forward.3} parent=27 // pred_check
        %p3699 = pneg %p106
      $region34: #{basic_block_forward.3} parent=27 // pred_check_branch
        %3701 = sbr.rel (%p3699) target = $region36
      $region35: #{basic_block_forward.3} parent=27 // pred_region
        _
      $region36: #{basic_block_forward.3} parent=27 // pred_fallthru
        _
    $region28: #{basic_block_forward.3} parent=5 // pred_fallthru
      _
    %p3702 = scmp.le.s32.totalorder 2, %s10
    // Predicated region
    $region37: #{basic_block_forward.3} parent=5 // pred_check
      %p3703 = pneg %p3702
    $region38: #{basic_block_forward.3} parent=5 // pred_check_branch
      %3705 = sbr.rel (%p3703) target = $region40
    $region39: #{basic_block_forward.3} parent=5 // pred_region
      %s3706 = ssub.s32 %s10, 2
      // Predicated region
      $region41: #{basic_block_forward.3} parent=39 // pred_check
        %p3707 = pneg %p86
      $region42: #{basic_block_forward.3} parent=39 // pred_check_branch
        %3709 = sbr.rel (%p3707) target = $region44
      $region43: #{basic_block_forward.3} parent=39 // pred_region
        %p3710 = scmp.lt.s32.totalorder %s16, 1
        %s3711 = scalar_select %p3710, %s16, 1
        %s3712 = smul.addr %s3711, 32
        %s3713 = smul.addr %s3712, 4
        %s3714 = scalar_lea.vmem %s2, %s3713
      $region44: #{basic_block_forward.3} parent=39 // pred_fallthru
        _
      // Predicated region
      $region45: #{basic_block_forward.3} parent=39 // pred_check
        %p3715 = pneg %p112
      $region46: #{basic_block_forward.3} parent=39 // pred_check_branch
        %3717 = sbr.rel (%p3715) target = $region48
      $region47: #{basic_block_forward.3} parent=39 // pred_region
        %p3718 = scmp.lt.s32.totalorder %s16, 1
        %s3719 = scalar_select %p3718, %s16, 1
        %s3720 = smul.addr %s3719, 2
        %s3721 = scalar_lea.vmem %s3, %s3720
      $region48: #{basic_block_forward.3} parent=39 // pred_fallthru
        _
    $region40: #{basic_block_forward.3} parent=5 // pred_fallthru
      _
  $region6: #{basic_block_forward.3} parent=0 // loop_footer
    %s14 = sadd.s32 1, %s10
  $region7: #{basic_block_forward.3} parent=0 // loop_footer_branch
    %9 = sbr.rel target = $region3
  $region8: #{basic_block_forward.3} parent=0 // loop_exit
    _

</llo_original>
